<compile_context>
chip_gen: v7x
topology: tpu7x:2x2x1
jax: 0.10.0
libtpu: 0.0.40
codegen_flags: <defaults>
</compile_context>

<pallas_src>
import jax
import jax.numpy as jnp
from jax.experimental import pallas as pl
from jax.experimental.pallas import tpu as pltpu

# ----------------------------- config (small) -------------------------------
VOCAB = 64
D_MODEL = 128
N_HEADS = 4
D_HEAD = D_MODEL // N_HEADS
D_FF = 256
NUM_BUCKETS = 8
MAX_DIST = 16
EPS = 1e-6


# ------------------------------ Pallas kernel -------------------------------
def _fid_t5_encoder_block_kernel(x_ref, mask_ref, pos_ref,
                                 ln1_ref, wqkv_ref, wo_ref,
                                 ln2_ref, wi_ref, wff_ref, lnf_ref,
                                 out_ref):
    """One grid step = one block of PB passages (N = PB*S MXU rows).

    x_ref:    (PB, S, D)  bf16 activations (streamed per grid step)
    mask_ref: (PB, 1, S)  f32 attention mask (1 = keep, 0 = pad)
    pos_ref:  (H, S, S)   bf16 shared relative-position bias (fetched once)
    wqkv_ref: (D, 3D)     bf16 fused Q|K|V projection
    wo_ref:   (D, D)      bf16 output projection
    wi/wff:   (D, F)/(F, D) bf16 FFN weights
    ln*_ref:  (1, D)      f32 RMSNorm weights

    Precision: bf16 MXU operands, f32 accumulation; RMSNorm / softmax /
    residuals in f32 (v5e-friendly: no bf16 elementwise math).
    """
    PB, S, D = x_ref.shape
    H = pos_ref.shape[0]
    DH = D // H
    N = PB * S

    x = x_ref[...].astype(jnp.float32).reshape(N, D)          # bf16 stream -> f32 math

    # (rel-pos + mask) bias built in ONE broadcasted pass:  (PB, H, S, S)
    neg_mask = (1.0 - mask_ref[...]) * -1e9                    # (PB, 1, S)
    bias = (pos_ref[...].astype(jnp.float32)[None, :, :, :]
            + neg_mask[:, :, None, :])

    def rms(h, w_ref):                                         # T5 LayerNorm: no mean, no bias
        var = jnp.mean(h * h, axis=-1, keepdims=True)
        return h * jax.lax.rsqrt(var + EPS) * w_ref[...]

    # --- self attention ---
    hn = rms(x, ln1_ref).astype(jnp.bfloat16)
    # One full-width (N, D) @ (D, 3D) MXU matmul for all heads' Q/K/V.
    qkv = jnp.dot(hn, wqkv_ref[...], preferred_element_type=jnp.float32)
    q = qkv[:, 0 * D:1 * D].astype(jnp.bfloat16)               # casts hoisted out of head loop
    k = qkv[:, 1 * D:2 * D].astype(jnp.bfloat16)
    v = qkv[:, 2 * D:3 * D].astype(jnp.bfloat16)

    ctx_heads = []
    for h in range(H):                         # static unroll; einsums stay 3-D (PB batch)
        qh = q[:, h * DH:(h + 1) * DH].reshape(PB, S, DH)
        kh = k[:, h * DH:(h + 1) * DH].reshape(PB, S, DH)
        vh = v[:, h * DH:(h + 1) * DH].reshape(PB, S, DH)
        # T5 attention: no 1/sqrt(d) scaling; additive (rel-pos + mask) bias.
        s = jnp.einsum("bqd,bkd->bqk", qh, kh,
                       preferred_element_type=jnp.float32) + bias[:, h]
        m = jnp.max(s, axis=-1, keepdims=True)
        e = jnp.exp(s - m)
        l = jnp.sum(e, axis=-1, keepdims=True)                 # >= 1 (argmax term is exp(0))
        p = (e / l).astype(jnp.bfloat16)                       # exact divide (matches reference)
        ctx = jnp.einsum("bqk,bkd->bqd", p, vh,
                         preferred_element_type=jnp.float32)   # (PB, S, DH)
        ctx_heads.append(ctx.reshape(N, DH))

    # Packed (N, D) context -> one full-width output projection (full MXU depth).
    ctx_all = jnp.concatenate(ctx_heads, axis=-1).astype(jnp.bfloat16)
    attn = jnp.dot(ctx_all, wo_ref[...], preferred_element_type=jnp.float32)

    h1 = x + attn                                              # residual in f32

    # --- feed forward (ReLU) ---
    hn2 = rms(h1, ln2_ref).astype(jnp.bfloat16)
    ff = jnp.maximum(
        jnp.dot(hn2, wi_ref[...], preferred_element_type=jnp.float32), 0.0)
    h2 = h1 + jnp.dot(ff.astype(jnp.bfloat16), wff_ref[...],
                      preferred_element_type=jnp.float32)

    # --- final encoder RMSNorm, stored lane-dense (D = 128) in bf16 ---
    out_ref[...] = rms(h2, lnf_ref).reshape(PB, S, D).astype(out_ref.dtype)


# ------------------------------ call wrapper ---------------------------------
def _vmem_limit_bytes():
    """Per-generation VMEM ceiling: ~85% of physical, capped at 100 MiB
    (=> ~54 MiB on v7x's 64 MiB/TC, ~100 MiB on v5e/v6e's 128 MiB)."""
    cap = None
    try:
        info = pltpu.get_tpu_info()
        cap = getattr(info, "vmem_capacity_bytes", None) or getattr(
            info, "vmem_size_bytes", None)
    except Exception:
        cap = None
    if not cap:
        cap = 64 * 1024 * 1024
    return int(min(cap * 0.85, 100 * 1024 * 1024))


def _choose_block(B, S, *, target_rows=512, min_grid=2):
    """Pick passages-per-block (pb) and padded passage count B_pad.

    pb targets >= target_rows MXU rows per grid step (fills the MXU M dim and
    amortizes the ~0.35us per-step overhead) while keeping >= min_grid grid
    steps so block DMAs overlap compute; the grid is rounded up to an even
    number of steps so both v7x TensorCores stay busy.  B is padded up instead
    of shrinking pb (a prime B no longer collapses pb to 1)."""
    pb = max(1, target_rows // max(S, 1))
    if B >= min_grid:
        pb = min(pb, B // min_grid)
    pb = max(pb, 1)
    n_blocks = -(-B // pb)
    if n_blocks > 1 and n_blocks % 2:
        n_blocks += 1
    return pb, n_blocks * pb


def _t5_encoder_block_pallas(x, mask, pos, params, *, target_rows=512):
    """x: (B, S, D) bf16, mask: (B, 1, S) f32, pos: (H, S, S) bf16 -> (B, S, D) bf16."""
    B, S, D = x.shape
    H = pos.shape[0]
    F = params["wi"].shape[1]

    pb, B_pad = _choose_block(B, S, target_rows=target_rows)
    if B_pad != B:
        # Pad with empty passages (mask = 0); finite math, rows sliced off below.
        x = jnp.pad(x, ((0, B_pad - B), (0, 0), (0, 0)))
        mask = jnp.pad(mask, ((0, B_pad - B), (0, 0), (0, 0)))
    grid = (B_pad // pb,)

    bf = jnp.bfloat16
    wqkv = jnp.concatenate([params["wq"], params["wk"], params["wv"]],
                           axis=1).astype(bf)                    # (D, 3D) fused
    wo = params["wo"].astype(bf)
    wi = params["wi"].astype(bf)
    wff = params["wff"].astype(bf)

    def block_spec(shape):
        return pl.BlockSpec(shape, lambda b: (b, 0, 0))

    def const_spec(shape, single_buffer):
        n = len(shape)
        idx = lambda b, _n=n: (0,) * _n
        if single_buffer:
            # Constants are fetched once; single-buffer them so they don't burn
            # 2x VMEM (matters at real T5 dims on v7x's 64 MiB/TC budget).
            return pl.BlockSpec(shape, idx, pipeline_mode=pl.Buffered(1))
        return pl.BlockSpec(shape, idx)

    def build(single_buffer_consts):
        c = lambda s: const_spec(s, single_buffer_consts)
        return pl.pallas_call(
            _fid_t5_encoder_block_kernel,
            out_shape=jax.ShapeDtypeStruct((B_pad, S, D), jnp.bfloat16),
            grid=grid,
            in_specs=[
                block_spec((pb, S, D)),        # x (bf16, streamed per step)
                block_spec((pb, 1, S)),        # attention mask
                c((H, S, S)),                  # shared rel-pos bias (bf16)
                c((1, D)),                     # ln1
                c((D, 3 * D)),                 # fused wqkv
                c((D, D)),                     # wo
                c((1, D)),                     # ln2
                c((D, F)),                     # wi
                c((F, D)),                     # wff
                c((1, D)),                     # lnf
            ],
            out_specs=block_spec((pb, S, D)),
            compiler_params=pltpu.CompilerParams(
                dimension_semantics=("parallel",),
                vmem_limit_bytes=_vmem_limit_bytes(),
            ),
        )

    args = (x, mask, pos,
            params["ln1"], wqkv, wo, params["ln2"], wi, wff, params["lnf"])
    try:
        out = jax.block_until_ready(build(True)(*args))
    except Exception:
        # JAX version without BlockSpec(pipeline_mode=...): fall back to default
        # double-buffered constants (identical results, just more VMEM).
        out = jax.block_until_ready(build(False)(*args))
    return out[:B]


# ----------------------------- JAX glue (encoder) ----------------------------
def _relative_position_bucket(rel_pos, num_buckets=NUM_BUCKETS, max_distance=MAX_DIST):
    # Bidirectional (encoder) bucketing, as in HF T5.
    nb = num_buckets // 2
    n = -rel_pos
    ret = (n < 0).astype(jnp.int32) * nb
    n = jnp.abs(n)
    max_exact = nb // 2
    is_small = n < max_exact
    val_large = max_exact + (
        jnp.log(jnp.maximum(n, 1).astype(jnp.float32) / max_exact)
        / jnp.log(max_distance / max_exact) * (nb - max_exact)
    ).astype(jnp.int32)
    val_large = jnp.minimum(val_large, nb - 1)
    return ret + jnp.where(is_small, n, val_large)


def _position_bias(rel_emb, S):
    ctx = jnp.arange(S)[:, None]
    mem = jnp.arange(S)[None, :]
    buckets = _relative_position_bucket(mem - ctx)     # (S, S)
    return jnp.transpose(rel_emb[buckets], (2, 0, 1))  # (H, S, S)


def fid_encoder_wrapper_forward(params, input_ids, attention_mask, n_passages,
                                *, target_rows=512):
    """Exact EncoderWrapper.forward semantics around the Pallas encoder."""
    bsz, total_length = input_ids.shape
    passage_length = total_length // n_passages
    input_ids = input_ids.reshape(bsz * n_passages, passage_length)
    attention_mask = attention_mask.reshape(bsz * n_passages, passage_length)
    B, S = input_ids.shape

    # TODO(synk): token-embedding gather + rel-pos bucket construction stay in
    # plain JAX (data-dependent gather / scalar table math; not a natural fit
    # for a rectangular BlockSpec).
    x = params["embed"][input_ids].astype(jnp.bfloat16)              # (B, S, D) bf16 stream
    pos = _position_bias(params["rel_emb"], S).astype(jnp.bfloat16)  # (H, S, S) bf16
    mask = attention_mask.astype(jnp.float32).reshape(B, 1, S)       # (B, 1, S)

    hidden = _t5_encoder_block_pallas(x, mask, pos, params, target_rows=target_rows)
    # FiD re-fusion: (bsz, n_passages * passage_length, d_model)
    return hidden.reshape(bsz, n_passages * passage_length, -1)


# --------------------------- pure-JAX reference ------------------------------
# Identical precision policy to the kernel: bf16 streamed x / rel-pos bias,
# bf16 MXU operands, f32 accumulation / norms / softmax / residuals, bf16 output.
def _encoder_block_ref(x, mask, pos, p):
    bf = jnp.bfloat16
    B, S, D = x.shape
    H = pos.shape[0]
    DH = D // H

    def rms(h, w):
        return h * jax.lax.rsqrt(jnp.mean(h * h, -1, keepdims=True) + EPS) * w

    hn = rms(x, p["ln1"]).astype(bf)
    q = jnp.dot(hn, p["wq"].astype(bf),
                preferred_element_type=jnp.float32).reshape(B, S, H, DH)
    k = jnp.dot(hn, p["wk"].astype(bf),
                preferred_element_type=jnp.float32).reshape(B, S, H, DH)
    v = jnp.dot(hn, p["wv"].astype(bf),
                preferred_element_type=jnp.float32).reshape(B, S, H, DH)
    neg_mask = (1.0 - mask) * -1e9                                 # (B, 1, S)
    s = jnp.einsum("bqhd,bkhd->bhqk", q.astype(bf), k.astype(bf),
                   preferred_element_type=jnp.float32)
    s = s + pos[None] + neg_mask[:, :, None, :]
    prob = jax.nn.softmax(s, axis=-1)
    ctx = jnp.einsum("bhqk,bkhd->bqhd", prob.astype(bf), v.astype(bf),
                     preferred_element_type=jnp.float32).reshape(B, S, D)
    h1 = x + jnp.dot(ctx.astype(bf), p["wo"].astype(bf),
                     preferred_element_type=jnp.float32)
    hn2 = rms(h1, p["ln2"]).astype(bf)
    ff = jnp.maximum(jnp.dot(hn2, p["wi"].astype(bf),
                             preferred_element_type=jnp.float32), 0.0)
    h2 = h1 + jnp.dot(ff.astype(bf), p["wff"].astype(bf),
                      preferred_element_type=jnp.float32)
    return rms(h2, p["lnf"])


def _fid_ref(params, input_ids, attention_mask, n_passages):
    bsz, total_length = input_ids.shape
    pl_len = total_length // n_passages
    ids = input_ids.reshape(bsz * n_passages, pl_len)
    am = attention_mask.reshape(bsz * n_passages, pl_len)
    # Mirror the kernel's bf16 streaming of x and the rel-pos bias.
    x = params["embed"][ids].astype(jnp.bfloat16).astype(jnp.float32)
    pos = _position_bias(params["rel_emb"], pl_len).astype(jnp.bfloat16).astype(jnp.float32)
    mask = am.astype(jnp.float32).reshape(ids.shape[0], 1, pl_len)
    out = _encoder_block_ref(x, mask, pos, params).astype(jnp.bfloat16)
    return out.reshape(bsz, n_passages * pl_len, -1)


# ---------------------------------- main -------------------------------------
if __name__ == "__main__":
    key = jax.random.PRNGKey(0)
    ks = jax.random.split(key, 12)

    params = {
        "embed":   jax.random.normal(ks[0], (VOCAB, D_MODEL), jnp.float32) * 0.5,
        "rel_emb": jax.random.normal(ks[1], (NUM_BUCKETS, N_HEADS), jnp.float32) * 0.1,
        "ln1":     1.0 + 0.05 * jax.random.normal(ks[2], (1, D_MODEL), jnp.float32),
        "wq":      jax.random.normal(ks[3], (D_MODEL, D_MODEL), jnp.float32) * 0.05,
        "wk":      jax.random.normal(ks[4], (D_MODEL, D_MODEL), jnp.float32) * 0.05,
        "wv":      jax.random.normal(ks[5], (D_MODEL, D_MODEL), jnp.float32) * 0.05,
        "wo":      jax.random.normal(ks[6], (D_MODEL, D_MODEL), jnp.float32) * 0.05,
        "ln2":     1.0 + 0.05 * jax.random.normal(ks[7], (1, D_MODEL), jnp.float32),
        "wi":      jax.random.normal(ks[8], (D_MODEL, D_FF), jnp.float32) * 0.05,
        "wff":     jax.random.normal(ks[9], (D_FF, D_MODEL), jnp.float32) * 0.05,
        "lnf":     1.0 + 0.05 * jax.random.normal(ks[10], (1, D_MODEL), jnp.float32),
    }

    bsz, n_passages, passage_length = 2, 4, 16
    total_length = n_passages * passage_length
    input_ids = jax.random.randint(ks[11], (bsz, total_length), 0, VOCAB, jnp.int32)
    attention_mask = jnp.ones((bsz, total_length), jnp.int32)
    attention_mask = attention_mask.at[:, total_length - 4:].set(0)  # pad tail of last passage

    out = fid_encoder_wrapper_forward(params, input_ids, attention_mask, n_passages)
    out = jax.block_until_ready(out)
    assert out.shape == (bsz, n_passages * passage_length, D_MODEL)

    ref = _fid_ref(params, input_ids, attention_mask, n_passages)
    out_f32 = out.astype(jnp.float32)
    ref_f32 = ref.astype(jnp.float32)
    max_err = float(jnp.max(jnp.abs(out_f32 - ref_f32)))
    assert jnp.allclose(out_f32, ref_f32, rtol=2e-2, atol=2e-2), \
        f"Pallas kernel mismatch vs JAX reference (max abs err {max_err:.4g})"

    print("KERNEL_OK")
</pallas_src>

<mosaic_0001>
module attributes {stable_mosaic.version = 11 : i64} {
  func.func @_fid_t5_encoder_block_kernel(%arg0: i32, %arg1: memref<4x16x128xbf16, #tpu.memory_space<vmem>>, %arg2: memref<4x1x16xf32, #tpu.memory_space<vmem>>, %arg3: memref<4x16x16xbf16, #tpu.memory_space<vmem>>, %arg4: memref<1x128xf32, #tpu.memory_space<vmem>>, %arg5: memref<128x384xbf16, #tpu.memory_space<vmem>>, %arg6: memref<128x128xbf16, #tpu.memory_space<vmem>>, %arg7: memref<1x128xf32, #tpu.memory_space<vmem>>, %arg8: memref<128x256xbf16, #tpu.memory_space<vmem>>, %arg9: memref<256x128xbf16, #tpu.memory_space<vmem>>, %arg10: memref<1x128xf32, #tpu.memory_space<vmem>>, %arg11: memref<4x16x128xbf16, #tpu.memory_space<vmem>>) attributes {dimension_semantics = [#tpu.dimension_semantics<parallel>], iteration_bounds = array<i64: 2>, scalar_prefetch = 0 : i64, scratch_operands = 0 : i64, tpu.core_type = #tpu.core_type<tc>, window_params = [{transform_indices = @transform_0, window_bounds = array<i64: 4, 16, 128>}, {transform_indices = @transform_1, window_bounds = array<i64: 4, 1, 16>}, {pipeline_mode = #tpu.pipeline_mode<synchronous>, transform_indices = @transform_2, window_bounds = array<i64: 4, 16, 16>}, {pipeline_mode = #tpu.pipeline_mode<synchronous>, transform_indices = @transform_3, window_bounds = array<i64: 1, 128>}, {pipeline_mode = #tpu.pipeline_mode<synchronous>, transform_indices = @transform_4, window_bounds = array<i64: 128, 384>}, {pipeline_mode = #tpu.pipeline_mode<synchronous>, transform_indices = @transform_5, window_bounds = array<i64: 128, 128>}, {pipeline_mode = #tpu.pipeline_mode<synchronous>, transform_indices = @transform_6, window_bounds = array<i64: 1, 128>}, {pipeline_mode = #tpu.pipeline_mode<synchronous>, transform_indices = @transform_7, window_bounds = array<i64: 128, 256>}, {pipeline_mode = #tpu.pipeline_mode<synchronous>, transform_indices = @transform_8, window_bounds = array<i64: 256, 128>}, {pipeline_mode = #tpu.pipeline_mode<synchronous>, transform_indices = @transform_9, window_bounds = array<i64: 1, 128>}, {transform_indices = @transform_10, window_bounds = array<i64: 4, 16, 128>}]} {
    %c0 = arith.constant 0 : index
    %c0_0 = arith.constant 0 : index
    %c0_1 = arith.constant 0 : index
    %0 = vector.load %arg1[%c0, %c0_0, %c0_1] : memref<4x16x128xbf16, #tpu.memory_space<vmem>>, vector<4x16x128xbf16>
    %1 = arith.extf %0 : vector<4x16x128xbf16> to vector<4x16x128xf32>
    %2 = vector.shape_cast %1 : vector<4x16x128xf32> to vector<64x128xf32>
    %c0_2 = arith.constant 0 : index
    %c0_3 = arith.constant 0 : index
    %c0_4 = arith.constant 0 : index
    %3 = vector.load %arg2[%c0_2, %c0_3, %c0_4] : memref<4x1x16xf32, #tpu.memory_space<vmem>>, vector<4x1x16xf32>
    %cst = arith.constant 1.000000e+00 : f32
    %4 = vector.broadcast %cst : f32 to vector<4x1x16xf32>
    %5 = arith.subf %4, %3 : vector<4x1x16xf32>
    %cst_5 = arith.constant -1.000000e+09 : f32
    %6 = vector.broadcast %cst_5 : f32 to vector<4x1x16xf32>
    %7 = arith.mulf %5, %6 : vector<4x1x16xf32>
    %c0_6 = arith.constant 0 : index
    %c0_7 = arith.constant 0 : index
    %c0_8 = arith.constant 0 : index
    %8 = vector.load %arg3[%c0_6, %c0_7, %c0_8] : memref<4x16x16xbf16, #tpu.memory_space<vmem>>, vector<4x16x16xbf16>
    %9 = arith.extf %8 : vector<4x16x16xbf16> to vector<4x16x16xf32>
    %10 = vector.shape_cast %9 : vector<4x16x16xf32> to vector<1x4x16x16xf32>
    %11 = vector.shape_cast %7 : vector<4x1x16xf32> to vector<4x1x1x16xf32>
    %12 = vector.broadcast %10 : vector<1x4x16x16xf32> to vector<4x4x16x16xf32>
    %13 = vector.broadcast %11 : vector<4x1x1x16xf32> to vector<4x4x16x16xf32>
    %14 = arith.addf %12, %13 : vector<4x4x16x16xf32>
    %15 = arith.mulf %2, %2 : vector<64x128xf32>
    %cst_9 = arith.constant dense<0.000000e+00> : vector<64xf32>
    %16 = vector.multi_reduction <add>, %15, %cst_9 [1] : vector<64x128xf32> to vector<64xf32>
    %17 = vector.shape_cast %16 : vector<64xf32> to vector<64x1xf32>
    %cst_10 = arith.constant 1.280000e+02 : f32
    %18 = vector.broadcast %cst_10 : f32 to vector<64x1xf32>
    %19 = arith.divf %17, %18 : vector<64x1xf32>
    %cst_11 = arith.constant 9.99999997E-7 : f32
    %20 = vector.broadcast %cst_11 : f32 to vector<64x1xf32>
    %21 = arith.addf %19, %20 : vector<64x1xf32>
    %22 = math.rsqrt %21 : vector<64x1xf32>
    %23 = vector.broadcast %22 : vector<64x1xf32> to vector<64x128xf32>
    %24 = arith.mulf %2, %23 : vector<64x128xf32>
    %c0_12 = arith.constant 0 : index
    %c0_13 = arith.constant 0 : index
    %25 = vector.load %arg4[%c0_12, %c0_13] : memref<1x128xf32, #tpu.memory_space<vmem>>, vector<1x128xf32>
    %26 = vector.broadcast %25 : vector<1x128xf32> to vector<64x128xf32>
    %27 = arith.mulf %24, %26 : vector<64x128xf32>
    %28 = arith.truncf %27 : vector<64x128xf32> to vector<64x128xbf16>
    %c0_14 = arith.constant 0 : index
    %c0_15 = arith.constant 0 : index
    %29 = vector.load %arg5[%c0_14, %c0_15] : memref<128x384xbf16, #tpu.memory_space<vmem>>, vector<128x384xbf16>
    %cst_16 = arith.constant dense<0.000000e+00> : vector<64x384xf32>
    %30 = tpu.matmul %28, %29, %cst_16 {dimension_numbers = #tpu.dot_dimension_numbers<[1], [0], [0], [1], [0, 0, 1, 1], [], []>} : vector<64x128xbf16>, vector<128x384xbf16>, vector<64x384xf32> -> vector<64x384xf32>
    %31 = vector.extract_strided_slice %30 {offsets = [0, 0], sizes = [64, 128], strides = [1, 1]} : vector<64x384xf32> to vector<64x128xf32>
    %32 = arith.truncf %31 : vector<64x128xf32> to vector<64x128xbf16>
    %33 = vector.extract_strided_slice %30 {offsets = [0, 128], sizes = [64, 128], strides = [1, 1]} : vector<64x384xf32> to vector<64x128xf32>
    %34 = arith.truncf %33 : vector<64x128xf32> to vector<64x128xbf16>
    %35 = vector.extract_strided_slice %30 {offsets = [0, 256], sizes = [64, 128], strides = [1, 1]} : vector<64x384xf32> to vector<64x128xf32>
    %36 = arith.truncf %35 : vector<64x128xf32> to vector<64x128xbf16>
    %37 = vector.extract_strided_slice %32 {offsets = [0, 0], sizes = [64, 32], strides = [1, 1]} : vector<64x128xbf16> to vector<64x32xbf16>
    %38 = vector.shape_cast %37 : vector<64x32xbf16> to vector<4x16x32xbf16>
    %39 = vector.extract_strided_slice %34 {offsets = [0, 0], sizes = [64, 32], strides = [1, 1]} : vector<64x128xbf16> to vector<64x32xbf16>
    %40 = vector.shape_cast %39 : vector<64x32xbf16> to vector<4x16x32xbf16>
    %41 = vector.extract_strided_slice %36 {offsets = [0, 0], sizes = [64, 32], strides = [1, 1]} : vector<64x128xbf16> to vector<64x32xbf16>
    %42 = vector.shape_cast %41 : vector<64x32xbf16> to vector<4x16x32xbf16>
    "tpu.trace_start"() <{level = 10 : i32, message = "bqd,bkd->bqk"}> : () -> ()
    %cst_17 = arith.constant dense<0.000000e+00> : vector<4x16x16xf32>
    %43 = tpu.matmul %38, %40, %cst_17 {dimension_numbers = #tpu.dot_dimension_numbers<[2], [2], [1], [1], [0, 0, 0, 1, 1, 1], [0], [0]>} : vector<4x16x32xbf16>, vector<4x16x32xbf16>, vector<4x16x16xf32> -> vector<4x16x16xf32>
    "tpu.trace_stop"() : () -> ()
    %44 = vector.extract_strided_slice %14 {offsets = [0, 0, 0, 0], sizes = [4, 1, 16, 16], strides = [1, 1, 1, 1]} : vector<4x4x16x16xf32> to vector<4x1x16x16xf32>
    %45 = vector.shape_cast %44 : vector<4x1x16x16xf32> to vector<4x16x16xf32>
    %46 = arith.addf %43, %45 : vector<4x16x16xf32>
    %cst_18 = arith.constant dense<0xFF800000> : vector<4x16xf32>
    %47 = vector.multi_reduction <maximumf>, %46, %cst_18 [2] : vector<4x16x16xf32> to vector<4x16xf32>
    %48 = vector.shape_cast %47 : vector<4x16xf32> to vector<4x16x1xf32>
    %49 = vector.broadcast %48 : vector<4x16x1xf32> to vector<4x16x16xf32>
    %50 = arith.subf %46, %49 : vector<4x16x16xf32>
    %51 = math.exp %50 : vector<4x16x16xf32>
    %cst_19 = arith.constant dense<0.000000e+00> : vector<4x16xf32>
    %52 = vector.multi_reduction <add>, %51, %cst_19 [2] : vector<4x16x16xf32> to vector<4x16xf32>
    %53 = vector.shape_cast %52 : vector<4x16xf32> to vector<4x16x1xf32>
    %54 = vector.broadcast %53 : vector<4x16x1xf32> to vector<4x16x16xf32>
    %55 = arith.divf %51, %54 : vector<4x16x16xf32>
    %56 = arith.truncf %55 : vector<4x16x16xf32> to vector<4x16x16xbf16>
    "tpu.trace_start"() <{level = 10 : i32, message = "bqk,bkd->bqd"}> : () -> ()
    %cst_20 = arith.constant dense<0.000000e+00> : vector<4x16x32xf32>
    %57 = tpu.matmul %56, %42, %cst_20 {dimension_numbers = #tpu.dot_dimension_numbers<[2], [1], [1], [2], [0, 0, 0, 1, 1, 2], [0], [0]>} : vector<4x16x16xbf16>, vector<4x16x32xbf16>, vector<4x16x32xf32> -> vector<4x16x32xf32>
    "tpu.trace_stop"() : () -> ()
    %58 = vector.shape_cast %57 : vector<4x16x32xf32> to vector<64x32xf32>
    %59 = vector.extract_strided_slice %32 {offsets = [0, 32], sizes = [64, 32], strides = [1, 1]} : vector<64x128xbf16> to vector<64x32xbf16>
    %60 = vector.shape_cast %59 : vector<64x32xbf16> to vector<4x16x32xbf16>
    %61 = vector.extract_strided_slice %34 {offsets = [0, 32], sizes = [64, 32], strides = [1, 1]} : vector<64x128xbf16> to vector<64x32xbf16>
    %62 = vector.shape_cast %61 : vector<64x32xbf16> to vector<4x16x32xbf16>
    %63 = vector.extract_strided_slice %36 {offsets = [0, 32], sizes = [64, 32], strides = [1, 1]} : vector<64x128xbf16> to vector<64x32xbf16>
    %64 = vector.shape_cast %63 : vector<64x32xbf16> to vector<4x16x32xbf16>
    "tpu.trace_start"() <{level = 10 : i32, message = "bqd,bkd->bqk"}> : () -> ()
    %cst_21 = arith.constant dense<0.000000e+00> : vector<4x16x16xf32>
    %65 = tpu.matmul %60, %62, %cst_21 {dimension_numbers = #tpu.dot_dimension_numbers<[2], [2], [1], [1], [0, 0, 0, 1, 1, 1], [0], [0]>} : vector<4x16x32xbf16>, vector<4x16x32xbf16>, vector<4x16x16xf32> -> vector<4x16x16xf32>
    "tpu.trace_stop"() : () -> ()
    %66 = vector.extract_strided_slice %14 {offsets = [0, 1, 0, 0], sizes = [4, 1, 16, 16], strides = [1, 1, 1, 1]} : vector<4x4x16x16xf32> to vector<4x1x16x16xf32>
    %67 = vector.shape_cast %66 : vector<4x1x16x16xf32> to vector<4x16x16xf32>
    %68 = arith.addf %65, %67 : vector<4x16x16xf32>
    %cst_22 = arith.constant dense<0xFF800000> : vector<4x16xf32>
    %69 = vector.multi_reduction <maximumf>, %68, %cst_22 [2] : vector<4x16x16xf32> to vector<4x16xf32>
    %70 = vector.shape_cast %69 : vector<4x16xf32> to vector<4x16x1xf32>
    %71 = vector.broadcast %70 : vector<4x16x1xf32> to vector<4x16x16xf32>
    %72 = arith.subf %68, %71 : vector<4x16x16xf32>
    %73 = math.exp %72 : vector<4x16x16xf32>
    %cst_23 = arith.constant dense<0.000000e+00> : vector<4x16xf32>
    %74 = vector.multi_reduction <add>, %73, %cst_23 [2] : vector<4x16x16xf32> to vector<4x16xf32>
    %75 = vector.shape_cast %74 : vector<4x16xf32> to vector<4x16x1xf32>
    %76 = vector.broadcast %75 : vector<4x16x1xf32> to vector<4x16x16xf32>
    %77 = arith.divf %73, %76 : vector<4x16x16xf32>
    %78 = arith.truncf %77 : vector<4x16x16xf32> to vector<4x16x16xbf16>
    "tpu.trace_start"() <{level = 10 : i32, message = "bqk,bkd->bqd"}> : () -> ()
    %cst_24 = arith.constant dense<0.000000e+00> : vector<4x16x32xf32>
    %79 = tpu.matmul %78, %64, %cst_24 {dimension_numbers = #tpu.dot_dimension_numbers<[2], [1], [1], [2], [0, 0, 0, 1, 1, 2], [0], [0]>} : vector<4x16x16xbf16>, vector<4x16x32xbf16>, vector<4x16x32xf32> -> vector<4x16x32xf32>
    "tpu.trace_stop"() : () -> ()
    %80 = vector.shape_cast %79 : vector<4x16x32xf32> to vector<64x32xf32>
    %81 = vector.extract_strided_slice %32 {offsets = [0, 64], sizes = [64, 32], strides = [1, 1]} : vector<64x128xbf16> to vector<64x32xbf16>
    %82 = vector.shape_cast %81 : vector<64x32xbf16> to vector<4x16x32xbf16>
    %83 = vector.extract_strided_slice %34 {offsets = [0, 64], sizes = [64, 32], strides = [1, 1]} : vector<64x128xbf16> to vector<64x32xbf16>
    %84 = vector.shape_cast %83 : vector<64x32xbf16> to vector<4x16x32xbf16>
    %85 = vector.extract_strided_slice %36 {offsets = [0, 64], sizes = [64, 32], strides = [1, 1]} : vector<64x128xbf16> to vector<64x32xbf16>
    %86 = vector.shape_cast %85 : vector<64x32xbf16> to vector<4x16x32xbf16>
    "tpu.trace_start"() <{level = 10 : i32, message = "bqd,bkd->bqk"}> : () -> ()
    %cst_25 = arith.constant dense<0.000000e+00> : vector<4x16x16xf32>
    %87 = tpu.matmul %82, %84, %cst_25 {dimension_numbers = #tpu.dot_dimension_numbers<[2], [2], [1], [1], [0, 0, 0, 1, 1, 1], [0], [0]>} : vector<4x16x32xbf16>, vector<4x16x32xbf16>, vector<4x16x16xf32> -> vector<4x16x16xf32>
    "tpu.trace_stop"() : () -> ()
    %88 = vector.extract_strided_slice %14 {offsets = [0, 2, 0, 0], sizes = [4, 1, 16, 16], strides = [1, 1, 1, 1]} : vector<4x4x16x16xf32> to vector<4x1x16x16xf32>
    %89 = vector.shape_cast %88 : vector<4x1x16x16xf32> to vector<4x16x16xf32>
    %90 = arith.addf %87, %89 : vector<4x16x16xf32>
    %cst_26 = arith.constant dense<0xFF800000> : vector<4x16xf32>
    %91 = vector.multi_reduction <maximumf>, %90, %cst_26 [2] : vector<4x16x16xf32> to vector<4x16xf32>
    %92 = vector.shape_cast %91 : vector<4x16xf32> to vector<4x16x1xf32>
    %93 = vector.broadcast %92 : vector<4x16x1xf32> to vector<4x16x16xf32>
    %94 = arith.subf %90, %93 : vector<4x16x16xf32>
    %95 = math.exp %94 : vector<4x16x16xf32>
    %cst_27 = arith.constant dense<0.000000e+00> : vector<4x16xf32>
    %96 = vector.multi_reduction <add>, %95, %cst_27 [2] : vector<4x16x16xf32> to vector<4x16xf32>
    %97 = vector.shape_cast %96 : vector<4x16xf32> to vector<4x16x1xf32>
    %98 = vector.broadcast %97 : vector<4x16x1xf32> to vector<4x16x16xf32>
    %99 = arith.divf %95, %98 : vector<4x16x16xf32>
    %100 = arith.truncf %99 : vector<4x16x16xf32> to vector<4x16x16xbf16>
    "tpu.trace_start"() <{level = 10 : i32, message = "bqk,bkd->bqd"}> : () -> ()
    %cst_28 = arith.constant dense<0.000000e+00> : vector<4x16x32xf32>
    %101 = tpu.matmul %100, %86, %cst_28 {dimension_numbers = #tpu.dot_dimension_numbers<[2], [1], [1], [2], [0, 0, 0, 1, 1, 2], [0], [0]>} : vector<4x16x16xbf16>, vector<4x16x32xbf16>, vector<4x16x32xf32> -> vector<4x16x32xf32>
    "tpu.trace_stop"() : () -> ()
    %102 = vector.shape_cast %101 : vector<4x16x32xf32> to vector<64x32xf32>
    %103 = vector.extract_strided_slice %32 {offsets = [0, 96], sizes = [64, 32], strides = [1, 1]} : vector<64x128xbf16> to vector<64x32xbf16>
    %104 = vector.shape_cast %103 : vector<64x32xbf16> to vector<4x16x32xbf16>
    %105 = vector.extract_strided_slice %34 {offsets = [0, 96], sizes = [64, 32], strides = [1, 1]} : vector<64x128xbf16> to vector<64x32xbf16>
    %106 = vector.shape_cast %105 : vector<64x32xbf16> to vector<4x16x32xbf16>
    %107 = vector.extract_strided_slice %36 {offsets = [0, 96], sizes = [64, 32], strides = [1, 1]} : vector<64x128xbf16> to vector<64x32xbf16>
    %108 = vector.shape_cast %107 : vector<64x32xbf16> to vector<4x16x32xbf16>
    "tpu.trace_start"() <{level = 10 : i32, message = "bqd,bkd->bqk"}> : () -> ()
    %cst_29 = arith.constant dense<0.000000e+00> : vector<4x16x16xf32>
    %109 = tpu.matmul %104, %106, %cst_29 {dimension_numbers = #tpu.dot_dimension_numbers<[2], [2], [1], [1], [0, 0, 0, 1, 1, 1], [0], [0]>} : vector<4x16x32xbf16>, vector<4x16x32xbf16>, vector<4x16x16xf32> -> vector<4x16x16xf32>
    "tpu.trace_stop"() : () -> ()
    %110 = vector.extract_strided_slice %14 {offsets = [0, 3, 0, 0], sizes = [4, 1, 16, 16], strides = [1, 1, 1, 1]} : vector<4x4x16x16xf32> to vector<4x1x16x16xf32>
    %111 = vector.shape_cast %110 : vector<4x1x16x16xf32> to vector<4x16x16xf32>
    %112 = arith.addf %109, %111 : vector<4x16x16xf32>
    %cst_30 = arith.constant dense<0xFF800000> : vector<4x16xf32>
    %113 = vector.multi_reduction <maximumf>, %112, %cst_30 [2] : vector<4x16x16xf32> to vector<4x16xf32>
    %114 = vector.shape_cast %113 : vector<4x16xf32> to vector<4x16x1xf32>
    %115 = vector.broadcast %114 : vector<4x16x1xf32> to vector<4x16x16xf32>
    %116 = arith.subf %112, %115 : vector<4x16x16xf32>
    %117 = math.exp %116 : vector<4x16x16xf32>
    %cst_31 = arith.constant dense<0.000000e+00> : vector<4x16xf32>
    %118 = vector.multi_reduction <add>, %117, %cst_31 [2] : vector<4x16x16xf32> to vector<4x16xf32>
    %119 = vector.shape_cast %118 : vector<4x16xf32> to vector<4x16x1xf32>
    %120 = vector.broadcast %119 : vector<4x16x1xf32> to vector<4x16x16xf32>
    %121 = arith.divf %117, %120 : vector<4x16x16xf32>
    %122 = arith.truncf %121 : vector<4x16x16xf32> to vector<4x16x16xbf16>
    "tpu.trace_start"() <{level = 10 : i32, message = "bqk,bkd->bqd"}> : () -> ()
    %cst_32 = arith.constant dense<0.000000e+00> : vector<4x16x32xf32>
    %123 = tpu.matmul %122, %108, %cst_32 {dimension_numbers = #tpu.dot_dimension_numbers<[2], [1], [1], [2], [0, 0, 0, 1, 1, 2], [0], [0]>} : vector<4x16x16xbf16>, vector<4x16x32xbf16>, vector<4x16x32xf32> -> vector<4x16x32xf32>
    "tpu.trace_stop"() : () -> ()
    %124 = vector.shape_cast %123 : vector<4x16x32xf32> to vector<64x32xf32>
    %125 = tpu.concatenate %58, %80, %102, %124 in 1 : vector<64x32xf32>, vector<64x32xf32>, vector<64x32xf32>, vector<64x32xf32> -> vector<64x128xf32>
    %126 = arith.truncf %125 : vector<64x128xf32> to vector<64x128xbf16>
    %c0_33 = arith.constant 0 : index
    %c0_34 = arith.constant 0 : index
    %127 = vector.load %arg6[%c0_33, %c0_34] : memref<128x128xbf16, #tpu.memory_space<vmem>>, vector<128x128xbf16>
    %cst_35 = arith.constant dense<0.000000e+00> : vector<64x128xf32>
    %128 = tpu.matmul %126, %127, %cst_35 {dimension_numbers = #tpu.dot_dimension_numbers<[1], [0], [0], [1], [0, 0, 1, 1], [], []>} : vector<64x128xbf16>, vector<128x128xbf16>, vector<64x128xf32> -> vector<64x128xf32>
    %129 = arith.addf %2, %128 : vector<64x128xf32>
    %130 = arith.mulf %129, %129 : vector<64x128xf32>
    %cst_36 = arith.constant dense<0.000000e+00> : vector<64xf32>
    %131 = vector.multi_reduction <add>, %130, %cst_36 [1] : vector<64x128xf32> to vector<64xf32>
    %132 = vector.shape_cast %131 : vector<64xf32> to vector<64x1xf32>
    %cst_37 = arith.constant 1.280000e+02 : f32
    %133 = vector.broadcast %cst_37 : f32 to vector<64x1xf32>
    %134 = arith.divf %132, %133 : vector<64x1xf32>
    %cst_38 = arith.constant 9.99999997E-7 : f32
    %135 = vector.broadcast %cst_38 : f32 to vector<64x1xf32>
    %136 = arith.addf %134, %135 : vector<64x1xf32>
    %137 = math.rsqrt %136 : vector<64x1xf32>
    %138 = vector.broadcast %137 : vector<64x1xf32> to vector<64x128xf32>
    %139 = arith.mulf %129, %138 : vector<64x128xf32>
    %c0_39 = arith.constant 0 : index
    %c0_40 = arith.constant 0 : index
    %140 = vector.load %arg7[%c0_39, %c0_40] : memref<1x128xf32, #tpu.memory_space<vmem>>, vector<1x128xf32>
    %141 = vector.broadcast %140 : vector<1x128xf32> to vector<64x128xf32>
    %142 = arith.mulf %139, %141 : vector<64x128xf32>
    %143 = arith.truncf %142 : vector<64x128xf32> to vector<64x128xbf16>
    %c0_41 = arith.constant 0 : index
    %c0_42 = arith.constant 0 : index
    %144 = vector.load %arg8[%c0_41, %c0_42] : memref<128x256xbf16, #tpu.memory_space<vmem>>, vector<128x256xbf16>
    %cst_43 = arith.constant dense<0.000000e+00> : vector<64x256xf32>
    %145 = tpu.matmul %143, %144, %cst_43 {dimension_numbers = #tpu.dot_dimension_numbers<[1], [0], [0], [1], [0, 0, 1, 1], [], []>} : vector<64x128xbf16>, vector<128x256xbf16>, vector<64x256xf32> -> vector<64x256xf32>
    %cst_44 = arith.constant 0.000000e+00 : f32
    %146 = vector.broadcast %cst_44 : f32 to vector<64x256xf32>
    %147 = arith.maximumf %145, %146 : vector<64x256xf32>
    %148 = arith.truncf %147 : vector<64x256xf32> to vector<64x256xbf16>
    %c0_45 = arith.constant 0 : index
    %c0_46 = arith.constant 0 : index
    %149 = vector.load %arg9[%c0_45, %c0_46] : memref<256x128xbf16, #tpu.memory_space<vmem>>, vector<256x128xbf16>
    %cst_47 = arith.constant dense<0.000000e+00> : vector<64x128xf32>
    %150 = tpu.matmul %148, %149, %cst_47 {dimension_numbers = #tpu.dot_dimension_numbers<[1], [0], [0], [1], [0, 0, 1, 1], [], []>} : vector<64x256xbf16>, vector<256x128xbf16>, vector<64x128xf32> -> vector<64x128xf32>
    %151 = arith.addf %129, %150 : vector<64x128xf32>
    %152 = arith.mulf %151, %151 : vector<64x128xf32>
    %cst_48 = arith.constant dense<0.000000e+00> : vector<64xf32>
    %153 = vector.multi_reduction <add>, %152, %cst_48 [1] : vector<64x128xf32> to vector<64xf32>
    %154 = vector.shape_cast %153 : vector<64xf32> to vector<64x1xf32>
    %cst_49 = arith.constant 1.280000e+02 : f32
    %155 = vector.broadcast %cst_49 : f32 to vector<64x1xf32>
    %156 = arith.divf %154, %155 : vector<64x1xf32>
    %cst_50 = arith.constant 9.99999997E-7 : f32
    %157 = vector.broadcast %cst_50 : f32 to vector<64x1xf32>
    %158 = arith.addf %156, %157 : vector<64x1xf32>
    %159 = math.rsqrt %158 : vector<64x1xf32>
    %160 = vector.broadcast %159 : vector<64x1xf32> to vector<64x128xf32>
    %161 = arith.mulf %151, %160 : vector<64x128xf32>
    %c0_51 = arith.constant 0 : index
    %c0_52 = arith.constant 0 : index
    %162 = vector.load %arg10[%c0_51, %c0_52] : memref<1x128xf32, #tpu.memory_space<vmem>>, vector<1x128xf32>
    %163 = vector.broadcast %162 : vector<1x128xf32> to vector<64x128xf32>
    %164 = arith.mulf %161, %163 : vector<64x128xf32>
    %165 = vector.shape_cast %164 : vector<64x128xf32> to vector<4x16x128xf32>
    %166 = arith.truncf %165 : vector<4x16x128xf32> to vector<4x16x128xbf16>
    %c0_53 = arith.constant 0 : index
    %c0_54 = arith.constant 0 : index
    %c0_55 = arith.constant 0 : index
    %167 = vector.load %arg11[%c0_53, %c0_54, %c0_55] : memref<4x16x128xbf16, #tpu.memory_space<vmem>>, vector<4x16x128xbf16>
    tpu.vector_store %arg11[%c0_53, %c0_54, %c0_55], %166 {strides = array<i32>} : memref<4x16x128xbf16, #tpu.memory_space<vmem>>, vector<4x16x128xbf16>,
    return
  }
  func.func @transform_0(%arg0: i32) -> (i32, i32, i32) {
    %c0_i32 = arith.constant 0 : i32
    %c0_i32_0 = arith.constant 0 : i32
    %c0_i32_1 = arith.constant 0 : i32
    return %arg0, %c0_i32, %c0_i32_0 : i32, i32, i32
  }
  func.func @transform_1(%arg0: i32) -> (i32, i32, i32) {
    %c0_i32 = arith.constant 0 : i32
    %c0_i32_0 = arith.constant 0 : i32
    %c0_i32_1 = arith.constant 0 : i32
    return %arg0, %c0_i32, %c0_i32_0 : i32, i32, i32
  }
  func.func @transform_2(%arg0: i32) -> (i32, i32, i32) {
    %c0_i32 = arith.constant 0 : i32
    %c0_i32_0 = arith.constant 0 : i32
    %c0_i32_1 = arith.constant 0 : i32
    %c0_i32_2 = arith.constant 0 : i32
    return %c0_i32, %c0_i32_0, %c0_i32_1 : i32, i32, i32
  }
  func.func @transform_3(%arg0: i32) -> (i32, i32) {
    %c0_i32 = arith.constant 0 : i32
    %c0_i32_0 = arith.constant 0 : i32
    %c0_i32_1 = arith.constant 0 : i32
    return %c0_i32, %c0_i32_0 : i32, i32
  }
  func.func @transform_4(%arg0: i32) -> (i32, i32) {
    %c0_i32 = arith.constant 0 : i32
    %c0_i32_0 = arith.constant 0 : i32
    %c0_i32_1 = arith.constant 0 : i32
    return %c0_i32, %c0_i32_0 : i32, i32
  }
  func.func @transform_5(%arg0: i32) -> (i32, i32) {
    %c0_i32 = arith.constant 0 : i32
    %c0_i32_0 = arith.constant 0 : i32
    %c0_i32_1 = arith.constant 0 : i32
    return %c0_i32, %c0_i32_0 : i32, i32
  }
  func.func @transform_6(%arg0: i32) -> (i32, i32) {
    %c0_i32 = arith.constant 0 : i32
    %c0_i32_0 = arith.constant 0 : i32
    %c0_i32_1 = arith.constant 0 : i32
    return %c0_i32, %c0_i32_0 : i32, i32
  }
  func.func @transform_7(%arg0: i32) -> (i32, i32) {
    %c0_i32 = arith.constant 0 : i32
    %c0_i32_0 = arith.constant 0 : i32
    %c0_i32_1 = arith.constant 0 : i32
    return %c0_i32, %c0_i32_0 : i32, i32
  }
  func.func @transform_8(%arg0: i32) -> (i32, i32) {
    %c0_i32 = arith.constant 0 : i32
    %c0_i32_0 = arith.constant 0 : i32
    %c0_i32_1 = arith.constant 0 : i32
    return %c0_i32, %c0_i32_0 : i32, i32
  }
  func.func @transform_9(%arg0: i32) -> (i32, i32) {
    %c0_i32 = arith.constant 0 : i32
    %c0_i32_0 = arith.constant 0 : i32
    %c0_i32_1 = arith.constant 0 : i32
    return %c0_i32, %c0_i32_0 : i32, i32
  }
  func.func @transform_10(%arg0: i32) -> (i32, i32, i32) {
    %c0_i32 = arith.constant 0 : i32
    %c0_i32_0 = arith.constant 0 : i32
    %c0_i32_1 = arith.constant 0 : i32
    return %arg0, %c0_i32, %c0_i32_0 : i32, i32, i32
  }
}

module attributes {stable_mosaic.version = 11 : i64} {
  func.func @_fid_t5_encoder_block_kernel(%arg0: i32, %arg1: memref<4x16x128xbf16, #tpu.memory_space<vmem>>, %arg2: memref<4x1x16xf32, #tpu.memory_space<vmem>>, %arg3: memref<4x16x16xbf16, #tpu.memory_space<vmem>>, %arg4: memref<1x128xf32, #tpu.memory_space<vmem>>, %arg5: memref<128x384xbf16, #tpu.memory_space<vmem>>, %arg6: memref<128x128xbf16, #tpu.memory_space<vmem>>, %arg7: memref<1x128xf32, #tpu.memory_space<vmem>>, %arg8: memref<128x256xbf16, #tpu.memory_space<vmem>>, %arg9: memref<256x128xbf16, #tpu.memory_space<vmem>>, %arg10: memref<1x128xf32, #tpu.memory_space<vmem>>, %arg11: memref<4x16x128xbf16, #tpu.memory_space<vmem>>) attributes {dimension_semantics = [#tpu.dimension_semantics<parallel>], iteration_bounds = array<i64: 2>, scalar_prefetch = 0 : i64, scratch_operands = 0 : i64, tpu.core_type = #tpu.core_type<tc>, window_params = [{transform_indices = @transform_0, window_bounds = array<i64: 4, 16, 128>}, {transform_indices = @transform_1, window_bounds = array<i64: 4, 1, 16>}, {pipeline_mode = #tpu.pipeline_mode<synchronous>, transform_indices = @transform_2, window_bounds = array<i64: 4, 16, 16>}, {pipeline_mode = #tpu.pipeline_mode<synchronous>, transform_indices = @transform_3, window_bounds = array<i64: 1, 128>}, {pipeline_mode = #tpu.pipeline_mode<synchronous>, transform_indices = @transform_4, window_bounds = array<i64: 128, 384>}, {pipeline_mode = #tpu.pipeline_mode<synchronous>, transform_indices = @transform_5, window_bounds = array<i64: 128, 128>}, {pipeline_mode = #tpu.pipeline_mode<synchronous>, transform_indices = @transform_6, window_bounds = array<i64: 1, 128>}, {pipeline_mode = #tpu.pipeline_mode<synchronous>, transform_indices = @transform_7, window_bounds = array<i64: 128, 256>}, {pipeline_mode = #tpu.pipeline_mode<synchronous>, transform_indices = @transform_8, window_bounds = array<i64: 256, 128>}, {pipeline_mode = #tpu.pipeline_mode<synchronous>, transform_indices = @transform_9, window_bounds = array<i64: 1, 128>}, {transform_indices = @transform_10, window_bounds = array<i64: 4, 16, 128>}]} {
    %c0 = arith.constant 0 : index
    %c0_0 = arith.constant 0 : index
    %c0_1 = arith.constant 0 : index
    %0 = vector.load %arg1[%c0, %c0_0, %c0_1] : memref<4x16x128xbf16, #tpu.memory_space<vmem>>, vector<4x16x128xbf16>
    %1 = arith.extf %0 : vector<4x16x128xbf16> to vector<4x16x128xf32>
    %2 = vector.shape_cast %1 : vector<4x16x128xf32> to vector<64x128xf32>
    %c0_2 = arith.constant 0 : index
    %c0_3 = arith.constant 0 : index
    %c0_4 = arith.constant 0 : index
    %3 = vector.load %arg2[%c0_2, %c0_3, %c0_4] : memref<4x1x16xf32, #tpu.memory_space<vmem>>, vector<4x1x16xf32>
    %cst = arith.constant 1.000000e+00 : f32
    %4 = vector.broadcast %cst : f32 to vector<4x1x16xf32>
    %5 = arith.subf %4, %3 : vector<4x1x16xf32>
    %cst_5 = arith.constant -1.000000e+09 : f32
    %6 = vector.broadcast %cst_5 : f32 to vector<4x1x16xf32>
    %7 = arith.mulf %5, %6 : vector<4x1x16xf32>
    %c0_6 = arith.constant 0 : index
    %c0_7 = arith.constant 0 : index
    %c0_8 = arith.constant 0 : index
    %8 = vector.load %arg3[%c0_6, %c0_7, %c0_8] : memref<4x16x16xbf16, #tpu.memory_space<vmem>>, vector<4x16x16xbf16>
    %9 = arith.extf %8 : vector<4x16x16xbf16> to vector<4x16x16xf32>
    %10 = vector.shape_cast %9 : vector<4x16x16xf32> to vector<1x4x16x16xf32>
    %11 = vector.shape_cast %7 : vector<4x1x16xf32> to vector<4x1x1x16xf32>
    %12 = vector.broadcast %10 : vector<1x4x16x16xf32> to vector<4x4x16x16xf32>
    %13 = vector.broadcast %11 : vector<4x1x1x16xf32> to vector<4x4x16x16xf32>
    %14 = arith.addf %12, %13 : vector<4x4x16x16xf32>
    %15 = arith.mulf %2, %2 : vector<64x128xf32>
    %cst_9 = arith.constant dense<0.000000e+00> : vector<64xf32>
    %16 = vector.multi_reduction <add>, %15, %cst_9 [1] : vector<64x128xf32> to vector<64xf32>
    %17 = vector.shape_cast %16 : vector<64xf32> to vector<64x1xf32>
    %cst_10 = arith.constant 1.280000e+02 : f32
    %18 = vector.broadcast %cst_10 : f32 to vector<64x1xf32>
    %19 = arith.divf %17, %18 : vector<64x1xf32>
    %cst_11 = arith.constant 9.99999997E-7 : f32
    %20 = vector.broadcast %cst_11 : f32 to vector<64x1xf32>
    %21 = arith.addf %19, %20 : vector<64x1xf32>
    %22 = math.rsqrt %21 : vector<64x1xf32>
    %23 = vector.broadcast %22 : vector<64x1xf32> to vector<64x128xf32>
    %24 = arith.mulf %2, %23 : vector<64x128xf32>
    %c0_12 = arith.constant 0 : index
    %c0_13 = arith.constant 0 : index
    %25 = vector.load %arg4[%c0_12, %c0_13] : memref<1x128xf32, #tpu.memory_space<vmem>>, vector<1x128xf32>
    %26 = vector.broadcast %25 : vector<1x128xf32> to vector<64x128xf32>
    %27 = arith.mulf %24, %26 : vector<64x128xf32>
    %28 = arith.truncf %27 : vector<64x128xf32> to vector<64x128xbf16>
    %c0_14 = arith.constant 0 : index
    %c0_15 = arith.constant 0 : index
    %29 = vector.load %arg5[%c0_14, %c0_15] : memref<128x384xbf16, #tpu.memory_space<vmem>>, vector<128x384xbf16>
    %cst_16 = arith.constant dense<0.000000e+00> : vector<64x384xf32>
    %30 = tpu.matmul %28, %29, %cst_16 {dimension_numbers = #tpu.dot_dimension_numbers<[1], [0], [0], [1], [0, 0, 1, 1], [], []>} : vector<64x128xbf16>, vector<128x384xbf16>, vector<64x384xf32> -> vector<64x384xf32>
    %31 = vector.extract_strided_slice %30 {offsets = [0, 0], sizes = [64, 128], strides = [1, 1]} : vector<64x384xf32> to vector<64x128xf32>
    %32 = arith.truncf %31 : vector<64x128xf32> to vector<64x128xbf16>
    %33 = vector.extract_strided_slice %30 {offsets = [0, 128], sizes = [64, 128], strides = [1, 1]} : vector<64x384xf32> to vector<64x128xf32>
    %34 = arith.truncf %33 : vector<64x128xf32> to vector<64x128xbf16>
    %35 = vector.extract_strided_slice %30 {offsets = [0, 256], sizes = [64, 128], strides = [1, 1]} : vector<64x384xf32> to vector<64x128xf32>
    %36 = arith.truncf %35 : vector<64x128xf32> to vector<64x128xbf16>
    %37 = vector.extract_strided_slice %32 {offsets = [0, 0], sizes = [64, 32], strides = [1, 1]} : vector<64x128xbf16> to vector<64x32xbf16>
    %38 = vector.shape_cast %37 : vector<64x32xbf16> to vector<4x16x32xbf16>
    %39 = vector.extract_strided_slice %34 {offsets = [0, 0], sizes = [64, 32], strides = [1, 1]} : vector<64x128xbf16> to vector<64x32xbf16>
    %40 = vector.shape_cast %39 : vector<64x32xbf16> to vector<4x16x32xbf16>
    %41 = vector.extract_strided_slice %36 {offsets = [0, 0], sizes = [64, 32], strides = [1, 1]} : vector<64x128xbf16> to vector<64x32xbf16>
    %42 = vector.shape_cast %41 : vector<64x32xbf16> to vector<4x16x32xbf16>
    "tpu.trace_start"() <{level = 10 : i32, message = "bqd,bkd->bqk"}> : () -> ()
    %cst_17 = arith.constant dense<0.000000e+00> : vector<4x16x16xf32>
    %43 = tpu.matmul %38, %40, %cst_17 {dimension_numbers = #tpu.dot_dimension_numbers<[2], [2], [1], [1], [0, 0, 0, 1, 1, 1], [0], [0]>} : vector<4x16x32xbf16>, vector<4x16x32xbf16>, vector<4x16x16xf32> -> vector<4x16x16xf32>
    "tpu.trace_stop"() : () -> ()
    %44 = vector.extract_strided_slice %14 {offsets = [0, 0, 0, 0], sizes = [4, 1, 16, 16], strides = [1, 1, 1, 1]} : vector<4x4x16x16xf32> to vector<4x1x16x16xf32>
    %45 = vector.shape_cast %44 : vector<4x1x16x16xf32> to vector<4x16x16xf32>
    %46 = arith.addf %43, %45 : vector<4x16x16xf32>
    %cst_18 = arith.constant dense<0xFF800000> : vector<4x16xf32>
    %47 = vector.multi_reduction <maximumf>, %46, %cst_18 [2] : vector<4x16x16xf32> to vector<4x16xf32>
    %48 = vector.shape_cast %47 : vector<4x16xf32> to vector<4x16x1xf32>
    %49 = vector.broadcast %48 : vector<4x16x1xf32> to vector<4x16x16xf32>
    %50 = arith.subf %46, %49 : vector<4x16x16xf32>
    %51 = math.exp %50 : vector<4x16x16xf32>
    %cst_19 = arith.constant dense<0.000000e+00> : vector<4x16xf32>
    %52 = vector.multi_reduction <add>, %51, %cst_19 [2] : vector<4x16x16xf32> to vector<4x16xf32>
    %53 = vector.shape_cast %52 : vector<4x16xf32> to vector<4x16x1xf32>
    %54 = vector.broadcast %53 : vector<4x16x1xf32> to vector<4x16x16xf32>
    %55 = arith.divf %51, %54 : vector<4x16x16xf32>
    %56 = arith.truncf %55 : vector<4x16x16xf32> to vector<4x16x16xbf16>
    "tpu.trace_start"() <{level = 10 : i32, message = "bqk,bkd->bqd"}> : () -> ()
    %cst_20 = arith.constant dense<0.000000e+00> : vector<4x16x32xf32>
    %57 = tpu.matmul %56, %42, %cst_20 {dimension_numbers = #tpu.dot_dimension_numbers<[2], [1], [1], [2], [0, 0, 0, 1, 1, 2], [0], [0]>} : vector<4x16x16xbf16>, vector<4x16x32xbf16>, vector<4x16x32xf32> -> vector<4x16x32xf32>
    "tpu.trace_stop"() : () -> ()
    %58 = vector.shape_cast %57 : vector<4x16x32xf32> to vector<64x32xf32>
    %59 = vector.extract_strided_slice %32 {offsets = [0, 32], sizes = [64, 32], strides = [1, 1]} : vector<64x128xbf16> to vector<64x32xbf16>
    %60 = vector.shape_cast %59 : vector<64x32xbf16> to vector<4x16x32xbf16>
    %61 = vector.extract_strided_slice %34 {offsets = [0, 32], sizes = [64, 32], strides = [1, 1]} : vector<64x128xbf16> to vector<64x32xbf16>
    %62 = vector.shape_cast %61 : vector<64x32xbf16> to vector<4x16x32xbf16>
    %63 = vector.extract_strided_slice %36 {offsets = [0, 32], sizes = [64, 32], strides = [1, 1]} : vector<64x128xbf16> to vector<64x32xbf16>
    %64 = vector.shape_cast %63 : vector<64x32xbf16> to vector<4x16x32xbf16>
    "tpu.trace_start"() <{level = 10 : i32, message = "bqd,bkd->bqk"}> : () -> ()
    %cst_21 = arith.constant dense<0.000000e+00> : vector<4x16x16xf32>
    %65 = tpu.matmul %60, %62, %cst_21 {dimension_numbers = #tpu.dot_dimension_numbers<[2], [2], [1], [1], [0, 0, 0, 1, 1, 1], [0], [0]>} : vector<4x16x32xbf16>, vector<4x16x32xbf16>, vector<4x16x16xf32> -> vector<4x16x16xf32>
    "tpu.trace_stop"() : () -> ()
    %66 = vector.extract_strided_slice %14 {offsets = [0, 1, 0, 0], sizes = [4, 1, 16, 16], strides = [1, 1, 1, 1]} : vector<4x4x16x16xf32> to vector<4x1x16x16xf32>
    %67 = vector.shape_cast %66 : vector<4x1x16x16xf32> to vector<4x16x16xf32>
    %68 = arith.addf %65, %67 : vector<4x16x16xf32>
    %cst_22 = arith.constant dense<0xFF800000> : vector<4x16xf32>
    %69 = vector.multi_reduction <maximumf>, %68, %cst_22 [2] : vector<4x16x16xf32> to vector<4x16xf32>
    %70 = vector.shape_cast %69 : vector<4x16xf32> to vector<4x16x1xf32>
    %71 = vector.broadcast %70 : vector<4x16x1xf32> to vector<4x16x16xf32>
    %72 = arith.subf %68, %71 : vector<4x16x16xf32>
    %73 = math.exp %72 : vector<4x16x16xf32>
    %cst_23 = arith.constant dense<0.000000e+00> : vector<4x16xf32>
    %74 = vector.multi_reduction <add>, %73, %cst_23 [2] : vector<4x16x16xf32> to vector<4x16xf32>
    %75 = vector.shape_cast %74 : vector<4x16xf32> to vector<4x16x1xf32>
    %76 = vector.broadcast %75 : vector<4x16x1xf32> to vector<4x16x16xf32>
    %77 = arith.divf %73, %76 : vector<4x16x16xf32>
    %78 = arith.truncf %77 : vector<4x16x16xf32> to vector<4x16x16xbf16>
    "tpu.trace_start"() <{level = 10 : i32, message = "bqk,bkd->bqd"}> : () -> ()
    %cst_24 = arith.constant dense<0.000000e+00> : vector<4x16x32xf32>
    %79 = tpu.matmul %78, %64, %cst_24 {dimension_numbers = #tpu.dot_dimension_numbers<[2], [1], [1], [2], [0, 0, 0, 1, 1, 2], [0], [0]>} : vector<4x16x16xbf16>, vector<4x16x32xbf16>, vector<4x16x32xf32> -> vector<4x16x32xf32>
    "tpu.trace_stop"() : () -> ()
    %80 = vector.shape_cast %79 : vector<4x16x32xf32> to vector<64x32xf32>
    %81 = vector.extract_strided_slice %32 {offsets = [0, 64], sizes = [64, 32], strides = [1, 1]} : vector<64x128xbf16> to vector<64x32xbf16>
    %82 = vector.shape_cast %81 : vector<64x32xbf16> to vector<4x16x32xbf16>
    %83 = vector.extract_strided_slice %34 {offsets = [0, 64], sizes = [64, 32], strides = [1, 1]} : vector<64x128xbf16> to vector<64x32xbf16>
    %84 = vector.shape_cast %83 : vector<64x32xbf16> to vector<4x16x32xbf16>
    %85 = vector.extract_strided_slice %36 {offsets = [0, 64], sizes = [64, 32], strides = [1, 1]} : vector<64x128xbf16> to vector<64x32xbf16>
    %86 = vector.shape_cast %85 : vector<64x32xbf16> to vector<4x16x32xbf16>
    "tpu.trace_start"() <{level = 10 : i32, message = "bqd,bkd->bqk"}> : () -> ()
    %cst_25 = arith.constant dense<0.000000e+00> : vector<4x16x16xf32>
    %87 = tpu.matmul %82, %84, %cst_25 {dimension_numbers = #tpu.dot_dimension_numbers<[2], [2], [1], [1], [0, 0, 0, 1, 1, 1], [0], [0]>} : vector<4x16x32xbf16>, vector<4x16x32xbf16>, vector<4x16x16xf32> -> vector<4x16x16xf32>
    "tpu.trace_stop"() : () -> ()
    %88 = vector.extract_strided_slice %14 {offsets = [0, 2, 0, 0], sizes = [4, 1, 16, 16], strides = [1, 1, 1, 1]} : vector<4x4x16x16xf32> to vector<4x1x16x16xf32>
    %89 = vector.shape_cast %88 : vector<4x1x16x16xf32> to vector<4x16x16xf32>
    %90 = arith.addf %87, %89 : vector<4x16x16xf32>
    %cst_26 = arith.constant dense<0xFF800000> : vector<4x16xf32>
    %91 = vector.multi_reduction <maximumf>, %90, %cst_26 [2] : vector<4x16x16xf32> to vector<4x16xf32>
    %92 = vector.shape_cast %91 : vector<4x16xf32> to vector<4x16x1xf32>
    %93 = vector.broadcast %92 : vector<4x16x1xf32> to vector<4x16x16xf32>
    %94 = arith.subf %90, %93 : vector<4x16x16xf32>
    %95 = math.exp %94 : vector<4x16x16xf32>
    %cst_27 = arith.constant dense<0.000000e+00> : vector<4x16xf32>
    %96 = vector.multi_reduction <add>, %95, %cst_27 [2] : vector<4x16x16xf32> to vector<4x16xf32>
    %97 = vector.shape_cast %96 : vector<4x16xf32> to vector<4x16x1xf32>
    %98 = vector.broadcast %97 : vector<4x16x1xf32> to vector<4x16x16xf32>
    %99 = arith.divf %95, %98 : vector<4x16x16xf32>
    %100 = arith.truncf %99 : vector<4x16x16xf32> to vector<4x16x16xbf16>
    "tpu.trace_start"() <{level = 10 : i32, message = "bqk,bkd->bqd"}> : () -> ()
    %cst_28 = arith.constant dense<0.000000e+00> : vector<4x16x32xf32>
    %101 = tpu.matmul %100, %86, %cst_28 {dimension_numbers = #tpu.dot_dimension_numbers<[2], [1], [1], [2], [0, 0, 0, 1, 1, 2], [0], [0]>} : vector<4x16x16xbf16>, vector<4x16x32xbf16>, vector<4x16x32xf32> -> vector<4x16x32xf32>
    "tpu.trace_stop"() : () -> ()
    %102 = vector.shape_cast %101 : vector<4x16x32xf32> to vector<64x32xf32>
    %103 = vector.extract_strided_slice %32 {offsets = [0, 96], sizes = [64, 32], strides = [1, 1]} : vector<64x128xbf16> to vector<64x32xbf16>
    %104 = vector.shape_cast %103 : vector<64x32xbf16> to vector<4x16x32xbf16>
    %105 = vector.extract_strided_slice %34 {offsets = [0, 96], sizes = [64, 32], strides = [1, 1]} : vector<64x128xbf16> to vector<64x32xbf16>
    %106 = vector.shape_cast %105 : vector<64x32xbf16> to vector<4x16x32xbf16>
    %107 = vector.extract_strided_slice %36 {offsets = [0, 96], sizes = [64, 32], strides = [1, 1]} : vector<64x128xbf16> to vector<64x32xbf16>
    %108 = vector.shape_cast %107 : vector<64x32xbf16> to vector<4x16x32xbf16>
    "tpu.trace_start"() <{level = 10 : i32, message = "bqd,bkd->bqk"}> : () -> ()
    %cst_29 = arith.constant dense<0.000000e+00> : vector<4x16x16xf32>
    %109 = tpu.matmul %104, %106, %cst_29 {dimension_numbers = #tpu.dot_dimension_numbers<[2], [2], [1], [1], [0, 0, 0, 1, 1, 1], [0], [0]>} : vector<4x16x32xbf16>, vector<4x16x32xbf16>, vector<4x16x16xf32> -> vector<4x16x16xf32>
    "tpu.trace_stop"() : () -> ()
    %110 = vector.extract_strided_slice %14 {offsets = [0, 3, 0, 0], sizes = [4, 1, 16, 16], strides = [1, 1, 1, 1]} : vector<4x4x16x16xf32> to vector<4x1x16x16xf32>
    %111 = vector.shape_cast %110 : vector<4x1x16x16xf32> to vector<4x16x16xf32>
    %112 = arith.addf %109, %111 : vector<4x16x16xf32>
    %cst_30 = arith.constant dense<0xFF800000> : vector<4x16xf32>
    %113 = vector.multi_reduction <maximumf>, %112, %cst_30 [2] : vector<4x16x16xf32> to vector<4x16xf32>
    %114 = vector.shape_cast %113 : vector<4x16xf32> to vector<4x16x1xf32>
    %115 = vector.broadcast %114 : vector<4x16x1xf32> to vector<4x16x16xf32>
    %116 = arith.subf %112, %115 : vector<4x16x16xf32>
    %117 = math.exp %116 : vector<4x16x16xf32>
    %cst_31 = arith.constant dense<0.000000e+00> : vector<4x16xf32>
    %118 = vector.multi_reduction <add>, %117, %cst_31 [2] : vector<4x16x16xf32> to vector<4x16xf32>
    %119 = vector.shape_cast %118 : vector<4x16xf32> to vector<4x16x1xf32>
    %120 = vector.broadcast %119 : vector<4x16x1xf32> to vector<4x16x16xf32>
    %121 = arith.divf %117, %120 : vector<4x16x16xf32>
    %122 = arith.truncf %121 : vector<4x16x16xf32> to vector<4x16x16xbf16>
    "tpu.trace_start"() <{level = 10 : i32, message = "bqk,bkd->bqd"}> : () -> ()
    %cst_32 = arith.constant dense<0.000000e+00> : vector<4x16x32xf32>
    %123 = tpu.matmul %122, %108, %cst_32 {dimension_numbers = #tpu.dot_dimension_numbers<[2], [1], [1], [2], [0, 0, 0, 1, 1, 2], [0], [0]>} : vector<4x16x16xbf16>, vector<4x16x32xbf16>, vector<4x16x32xf32> -> vector<4x16x32xf32>
    "tpu.trace_stop"() : () -> ()
    %124 = vector.shape_cast %123 : vector<4x16x32xf32> to vector<64x32xf32>
    %125 = tpu.concatenate %58, %80, %102, %124 in 1 : vector<64x32xf32>, vector<64x32xf32>, vector<64x32xf32>, vector<64x32xf32> -> vector<64x128xf32>
    %126 = arith.truncf %125 : vector<64x128xf32> to vector<64x128xbf16>
    %c0_33 = arith.constant 0 : index
    %c0_34 = arith.constant 0 : index
    %127 = vector.load %arg6[%c0_33, %c0_34] : memref<128x128xbf16, #tpu.memory_space<vmem>>, vector<128x128xbf16>
    %cst_35 = arith.constant dense<0.000000e+00> : vector<64x128xf32>
    %128 = tpu.matmul %126, %127, %cst_35 {dimension_numbers = #tpu.dot_dimension_numbers<[1], [0], [0], [1], [0, 0, 1, 1], [], []>} : vector<64x128xbf16>, vector<128x128xbf16>, vector<64x128xf32> -> vector<64x128xf32>
    %129 = arith.addf %2, %128 : vector<64x128xf32>
    %130 = arith.mulf %129, %129 : vector<64x128xf32>
    %cst_36 = arith.constant dense<0.000000e+00> : vector<64xf32>
    %131 = vector.multi_reduction <add>, %130, %cst_36 [1] : vector<64x128xf32> to vector<64xf32>
    %132 = vector.shape_cast %131 : vector<64xf32> to vector<64x1xf32>
    %cst_37 = arith.constant 1.280000e+02 : f32
    %133 = vector.broadcast %cst_37 : f32 to vector<64x1xf32>
    %134 = arith.divf %132, %133 : vector<64x1xf32>
    %cst_38 = arith.constant 9.99999997E-7 : f32
    %135 = vector.broadcast %cst_38 : f32 to vector<64x1xf32>
    %136 = arith.addf %134, %135 : vector<64x1xf32>
    %137 = math.rsqrt %136 : vector<64x1xf32>
    %138 = vector.broadcast %137 : vector<64x1xf32> to vector<64x128xf32>
    %139 = arith.mulf %129, %138 : vector<64x128xf32>
    %c0_39 = arith.constant 0 : index
    %c0_40 = arith.constant 0 : index
    %140 = vector.load %arg7[%c0_39, %c0_40] : memref<1x128xf32, #tpu.memory_space<vmem>>, vector<1x128xf32>
    %141 = vector.broadcast %140 : vector<1x128xf32> to vector<64x128xf32>
    %142 = arith.mulf %139, %141 : vector<64x128xf32>
    %143 = arith.truncf %142 : vector<64x128xf32> to vector<64x128xbf16>
    %c0_41 = arith.constant 0 : index
    %c0_42 = arith.constant 0 : index
    %144 = vector.load %arg8[%c0_41, %c0_42] : memref<128x256xbf16, #tpu.memory_space<vmem>>, vector<128x256xbf16>
    %cst_43 = arith.constant dense<0.000000e+00> : vector<64x256xf32>
    %145 = tpu.matmul %143, %144, %cst_43 {dimension_numbers = #tpu.dot_dimension_numbers<[1], [0], [0], [1], [0, 0, 1, 1], [], []>} : vector<64x128xbf16>, vector<128x256xbf16>, vector<64x256xf32> -> vector<64x256xf32>
    %cst_44 = arith.constant 0.000000e+00 : f32
    %146 = vector.broadcast %cst_44 : f32 to vector<64x256xf32>
    %147 = arith.maximumf %145, %146 : vector<64x256xf32>
    %148 = arith.truncf %147 : vector<64x256xf32> to vector<64x256xbf16>
    %c0_45 = arith.constant 0 : index
    %c0_46 = arith.constant 0 : index
    %149 = vector.load %arg9[%c0_45, %c0_46] : memref<256x128xbf16, #tpu.memory_space<vmem>>, vector<256x128xbf16>
    %cst_47 = arith.constant dense<0.000000e+00> : vector<64x128xf32>
    %150 = tpu.matmul %148, %149, %cst_47 {dimension_numbers = #tpu.dot_dimension_numbers<[1], [0], [0], [1], [0, 0, 1, 1], [], []>} : vector<64x256xbf16>, vector<256x128xbf16>, vector<64x128xf32> -> vector<64x128xf32>
    %151 = arith.addf %129, %150 : vector<64x128xf32>
    %152 = arith.mulf %151, %151 : vector<64x128xf32>
    %cst_48 = arith.constant dense<0.000000e+00> : vector<64xf32>
    %153 = vector.multi_reduction <add>, %152, %cst_48 [1] : vector<64x128xf32> to vector<64xf32>
    %154 = vector.shape_cast %153 : vector<64xf32> to vector<64x1xf32>
    %cst_49 = arith.constant 1.280000e+02 : f32
    %155 = vector.broadcast %cst_49 : f32 to vector<64x1xf32>
    %156 = arith.divf %154, %155 : vector<64x1xf32>
    %cst_50 = arith.constant 9.99999997E-7 : f32
    %157 = vector.broadcast %cst_50 : f32 to vector<64x1xf32>
    %158 = arith.addf %156, %157 : vector<64x1xf32>
    %159 = math.rsqrt %158 : vector<64x1xf32>
    %160 = vector.broadcast %159 : vector<64x1xf32> to vector<64x128xf32>
    %161 = arith.mulf %151, %160 : vector<64x128xf32>
    %c0_51 = arith.constant 0 : index
    %c0_52 = arith.constant 0 : index
    %162 = vector.load %arg10[%c0_51, %c0_52] : memref<1x128xf32, #tpu.memory_space<vmem>>, vector<1x128xf32>
    %163 = vector.broadcast %162 : vector<1x128xf32> to vector<64x128xf32>
    %164 = arith.mulf %161, %163 : vector<64x128xf32>
    %165 = vector.shape_cast %164 : vector<64x128xf32> to vector<4x16x128xf32>
    %166 = arith.truncf %165 : vector<4x16x128xf32> to vector<4x16x128xbf16>
    %c0_53 = arith.constant 0 : index
    %c0_54 = arith.constant 0 : index
    %c0_55 = arith.constant 0 : index
    %167 = vector.load %arg11[%c0_53, %c0_54, %c0_55] : memref<4x16x128xbf16, #tpu.memory_space<vmem>>, vector<4x16x128xbf16>
    tpu.vector_store %arg11[%c0_53, %c0_54, %c0_55], %166 {strides = array<i32>} : memref<4x16x128xbf16, #tpu.memory_space<vmem>>, vector<4x16x128xbf16>,
    return
  }
  func.func @transform_0(%arg0: i32) -> (i32, i32, i32) {
    %c0_i32 = arith.constant 0 : i32
    %c0_i32_0 = arith.constant 0 : i32
    %c0_i32_1 = arith.constant 0 : i32
    return %arg0, %c0_i32, %c0_i32_0 : i32, i32, i32
  }
  func.func @transform_1(%arg0: i32) -> (i32, i32, i32) {
    %c0_i32 = arith.constant 0 : i32
    %c0_i32_0 = arith.constant 0 : i32
    %c0_i32_1 = arith.constant 0 : i32
    return %arg0, %c0_i32, %c0_i32_0 : i32, i32, i32
  }
  func.func @transform_2(%arg0: i32) -> (i32, i32, i32) {
    %c0_i32 = arith.constant 0 : i32
    %c0_i32_0 = arith.constant 0 : i32
    %c0_i32_1 = arith.constant 0 : i32
    %c0_i32_2 = arith.constant 0 : i32
    return %c0_i32, %c0_i32_0, %c0_i32_1 : i32, i32, i32
  }
  func.func @transform_3(%arg0: i32) -> (i32, i32) {
    %c0_i32 = arith.constant 0 : i32
    %c0_i32_0 = arith.constant 0 : i32
    %c0_i32_1 = arith.constant 0 : i32
    return %c0_i32, %c0_i32_0 : i32, i32
  }
  func.func @transform_4(%arg0: i32) -> (i32, i32) {
    %c0_i32 = arith.constant 0 : i32
    %c0_i32_0 = arith.constant 0 : i32
    %c0_i32_1 = arith.constant 0 : i32
    return %c0_i32, %c0_i32_0 : i32, i32
  }
  func.func @transform_5(%arg0: i32) -> (i32, i32) {
    %c0_i32 = arith.constant 0 : i32
    %c0_i32_0 = arith.constant 0 : i32
    %c0_i32_1 = arith.constant 0 : i32
    return %c0_i32, %c0_i32_0 : i32, i32
  }
  func.func @transform_6(%arg0: i32) -> (i32, i32) {
    %c0_i32 = arith.constant 0 : i32
    %c0_i32_0 = arith.constant 0 : i32
    %c0_i32_1 = arith.constant 0 : i32
    return %c0_i32, %c0_i32_0 : i32, i32
  }
  func.func @transform_7(%arg0: i32) -> (i32, i32) {
    %c0_i32 = arith.constant 0 : i32
    %c0_i32_0 = arith.constant 0 : i32
    %c0_i32_1 = arith.constant 0 : i32
    return %c0_i32, %c0_i32_0 : i32, i32
  }
  func.func @transform_8(%arg0: i32) -> (i32, i32) {
    %c0_i32 = arith.constant 0 : i32
    %c0_i32_0 = arith.constant 0 : i32
    %c0_i32_1 = arith.constant 0 : i32
    return %c0_i32, %c0_i32_0 : i32, i32
  }
  func.func @transform_9(%arg0: i32) -> (i32, i32) {
    %c0_i32 = arith.constant 0 : i32
    %c0_i32_0 = arith.constant 0 : i32
    %c0_i32_1 = arith.constant 0 : i32
    return %c0_i32, %c0_i32_0 : i32, i32
  }
  func.func @transform_10(%arg0: i32) -> (i32, i32, i32) {
    %c0_i32 = arith.constant 0 : i32
    %c0_i32_0 = arith.constant 0 : i32
    %c0_i32_1 = arith.constant 0 : i32
    return %arg0, %c0_i32, %c0_i32_0 : i32, i32, i32
  }
}

</mosaic_0001>

<llo_original>
// kernel: tpu_custom_call.1
$region0: #{tpu_custom_call.1}
  #allocation0 [shape = 'u32[]', space=smem, size = 0x4, offset = 0x4, fixed_abs, tag = 'smem constant byte address 0x4 - core index']
  #allocation1 [shape = 'u32[144,128]{1,0:T(1,128)}', space=vmem, size = 0x12000, scoped, tag = 'internal scratch']
  %s0 = inlined_call_operand.hbm [shape: bf16[8,16,128], index: 0, kind: input, shape index: {}]
  %s1 = inlined_call_operand.hbm [shape: f32[8,1,16], index: 1, kind: input, shape index: {}]
  %s2 = inlined_call_operand.hbm [shape: bf16[4,16,16], index: 2, kind: input, shape index: {}]
  %s3 = inlined_call_operand.vmem [shape: f32[1,128], index: 3, kind: input, shape index: {}]
  %s4 = inlined_call_operand.hbm [shape: bf16[128,384], index: 4, kind: input, shape index: {}]
  %s5 = inlined_call_operand.hbm [shape: bf16[128,128], index: 5, kind: input, shape index: {}]
  %s6 = inlined_call_operand.vmem [shape: f32[1,128], index: 6, kind: input, shape index: {}]
  %s7 = inlined_call_operand.hbm [shape: bf16[128,256], index: 7, kind: input, shape index: {}]
  %s8 = inlined_call_operand.hbm [shape: bf16[256,128], index: 8, kind: input, shape index: {}]
  %s9 = inlined_call_operand.vmem [shape: f32[1,128], index: 9, kind: input, shape index: {}]
  %s10 = inlined_call_operand.hbm [shape: bf16[8,16,128], index: 10, kind: output, shape index: {}]
  %s11 = sld [smem:[#allocation0]]
  $region101: #{tpu_custom_call.1} parent=0
    _
  %s13 = ssub.s32 1, %s11
  %s14 = scalar_select 0, %s13, %s11
  $region1: #{tpu_custom_call.1} parent=0
    #allocation2 [shape = 'u8[32768]{0}', space=vmem, size = 0x8000, scoped, tag = 'input window, operand 0']
    #allocation3 [shape = 's32[2]{0}', space=sflag, size = 0x8, scoped, tag = 'scoped memory for tpu_custom_call.1']
    #allocation4 [shape = 's32[2]{0}', space=sflag, size = 0x8, scoped, tag = 'scoped memory for tpu_custom_call.1']
    #allocation5 [shape = 'u8[4096]{0}', space=vmem, size = 0x1000, scoped, tag = 'input window, operand 1']
    #allocation6 [shape = 's32[2]{0}', space=sflag, size = 0x8, scoped, tag = 'scoped memory for tpu_custom_call.1']
    #allocation7 [shape = 'u8[16384]{0}', space=vmem, size = 0x4000, scoped, tag = 'input window, operand 2, single buffered']
    #allocation8 [shape = 'u8[98304]{0}', space=vmem, size = 0x18000, scoped, tag = 'input window, operand 4, single buffered']
    #allocation9 [shape = 's32[1]{0}', space=sflag, size = 0x4, scoped, tag = 'scoped memory for tpu_custom_call.1']
    #allocation10 [shape = 'u8[32768]{0}', space=vmem, size = 0x8000, scoped, tag = 'input window, operand 5, single buffered']
    #allocation11 [shape = 'u8[65536]{0}', space=vmem, size = 0x10000, scoped, tag = 'input window, operand 7, single buffered']
    #allocation12 [shape = 's32[1]{0}', space=sflag, size = 0x4, scoped, tag = 'scoped memory for tpu_custom_call.1']
    #allocation13 [shape = 'u8[65536]{0}', space=vmem, size = 0x10000, scoped, tag = 'input window, operand 8, single buffered']
    #allocation14 [shape = 'u8[32768]{0}', space=vmem, size = 0x8000, scoped, tag = 'output window, operand 0']
    %15 = vsyncpa [#allocation3], 0
    %s16 = scalar_lea.sflag [#allocation3], 1
    %17 = vsyncpa %s16, 0
    %18 = vsyncpa [#allocation6], 0
    %s19 = scalar_lea.sflag [#allocation6], 1
    %20 = vsyncpa %s19, 0
    %21 = vsyncpa [#allocation9], 0
    %22 = vsyncpa [#allocation12], 0
    %23 = vsyncpa [#allocation4], 0
    %s24 = scalar_lea.sflag [#allocation4], 1
    %25 = vsyncpa %s24, 0
    loop: start=0, step=1, limit=4
    $region2: #{tpu_custom_call.1} parent=1 // loop_pre_header
      _
    $region3: #{tpu_custom_call.1} parent=1 // loop_header
      %s27 = sphi 0, %s31
      %p28 = scmp.ge.s32.totalorder %s27, 4
      %s37 = sphi 0, %s39
      %s40 = sphi 0, %s37
      %s41 = sphi 0, %s40
      %s57 = sphi 0, %s41
      %s63 = sphi 0, %s65
      %s66 = sphi 0, %s63
      %s67 = sphi 0, %s66
      %s83 = sphi 0, %s67
      %s87 = sphi 0, %s87
      %s89 = sphi 0, %s87
      %s90 = sphi 0, %s89
      %s104 = sphi 0, %s90
      %s108 = sphi 0, %s108
      %s110 = sphi 0, %s108
      %s111 = sphi 0, %s110
      %s125 = sphi 0, %s111
      %s129 = sphi 0, %s129
      %s131 = sphi 0, %s129
      %s132 = sphi 0, %s131
      %s146 = sphi 0, %s132
      %s150 = sphi 0, %s150
      %s152 = sphi 0, %s150
      %s153 = sphi 0, %s152
      %s167 = sphi 0, %s153
      %s171 = sphi 0, %s171
      %s173 = sphi 0, %s171
      %s174 = sphi 0, %s173
      %s188 = sphi 0, %s174
      %s192 = sphi 0, %s192
      %s194 = sphi 0, %s192
      %s195 = sphi 0, %s194
      %s209 = sphi 0, %s195
      %s213 = sphi 0, %s213
      %s215 = sphi 0, %s213
      %s216 = sphi 0, %s215
      %s230 = sphi 0, %s216
      %s234 = sphi 0, %s234
      %s236 = sphi 0, %s234
      %s237 = sphi 0, %s236
      %s251 = sphi 0, %s237
      %s257 = sphi 0, %s259
      %s260 = sphi 0, %s257
      %s261 = sphi 0, %s260
      %s277 = sphi 0, %s261
    $region4: #{tpu_custom_call.1} parent=1 // loop_header_branch
      %30 = sbr.rel (%p28) target = $region8
    $region5: #{tpu_custom_call.1} parent=1 // loop_body
      %s32 = ssub.s32 %s27, 1
      %s33 = ssub.s32 %s27, 2
      %s34 = sadd.s32 %s27, 1
      %s35 = ssub.s32 %s27, %s34
      %p36 = scmp.eq.s32.totalorder %s35, 0
      %s38 = sadd.s32 %s37, 1
      %s39 = scalar_select %p36, %s37, %s38
      %p42 = pneg %p36
      %p43 = scmp.eq.s32.totalorder %s27, 1
      %p44 = por %p42, %p43
      %p45 = scmp.ne.s32.totalorder %s37, %s40
      %p46 = scmp.eq.s32.totalorder %s27, 0
      %p47 = por %p45, %p46
      %p48 = scmp.ne.s32.totalorder %s37, %s40
      %p49 = scmp.eq.s32.totalorder %s32, 1
      %p50 = por %p48, %p49
      %p51 = scmp.ne.s32.totalorder %s40, %s41
      %p52 = scmp.eq.s32.totalorder %s32, 0
      %p53 = por %p51, %p52
      %p54 = scmp.ne.s32.totalorder %s40, %s41
      %p55 = scmp.eq.s32.totalorder %s33, 1
      %p56 = por %p54, %p55
      %p58 = scmp.ne.s32.totalorder %s41, %s57
      %p59 = scmp.eq.s32.totalorder %s33, 0
      %p60 = por %p58, %p59
      %s61 = ssub.s32 %s27, %s34
      %p62 = scmp.eq.s32.totalorder %s61, 0
      %s64 = sadd.s32 %s63, 1
      %s65 = scalar_select %p62, %s63, %s64
      %p68 = pneg %p62
      %p69 = scmp.eq.s32.totalorder %s27, 1
      %p70 = por %p68, %p69
      %p71 = scmp.ne.s32.totalorder %s63, %s66
      %p72 = scmp.eq.s32.totalorder %s27, 0
      %p73 = por %p71, %p72
      %p74 = scmp.ne.s32.totalorder %s63, %s66
      %p75 = scmp.eq.s32.totalorder %s32, 1
      %p76 = por %p74, %p75
      %p77 = scmp.ne.s32.totalorder %s66, %s67
      %p78 = scmp.eq.s32.totalorder %s32, 0
      %p79 = por %p77, %p78
      %p80 = scmp.ne.s32.totalorder %s66, %s67
      %p81 = scmp.eq.s32.totalorder %s33, 1
      %p82 = por %p80, %p81
      %p84 = scmp.ne.s32.totalorder %s67, %s83
      %p85 = scmp.eq.s32.totalorder %s33, 0
      %p86 = por %p84, %p85
      %s88 = sadd.s32 %s87, 1
      %p91 = scmp.eq.s32.totalorder %s27, 1
      %p92 = scmp.ne.s32.totalorder %s87, %s89
      %p93 = scmp.eq.s32.totalorder %s27, 0
      %p94 = por %p92, %p93
      %p95 = scmp.ne.s32.totalorder %s87, %s89
      %p96 = scmp.eq.s32.totalorder %s32, 1
      %p97 = por %p95, %p96
      %p98 = scmp.ne.s32.totalorder %s89, %s90
      %p99 = scmp.eq.s32.totalorder %s32, 0
      %p100 = por %p98, %p99
      %p101 = scmp.ne.s32.totalorder %s89, %s90
      %p102 = scmp.eq.s32.totalorder %s33, 1
      %p103 = por %p101, %p102
      %p105 = scmp.ne.s32.totalorder %s90, %s104
      %p106 = scmp.eq.s32.totalorder %s33, 0
      %p107 = por %p105, %p106
      %s109 = sadd.s32 %s108, 1
      %p112 = scmp.eq.s32.totalorder %s27, 1
      %p113 = scmp.ne.s32.totalorder %s108, %s110
      %p114 = scmp.eq.s32.totalorder %s27, 0
      %p115 = por %p113, %p114
      %p116 = scmp.ne.s32.totalorder %s108, %s110
      %p117 = scmp.eq.s32.totalorder %s32, 1
      %p118 = por %p116, %p117
      %p119 = scmp.ne.s32.totalorder %s110, %s111
      %p120 = scmp.eq.s32.totalorder %s32, 0
      %p121 = por %p119, %p120
      %p122 = scmp.ne.s32.totalorder %s110, %s111
      %p123 = scmp.eq.s32.totalorder %s33, 1
      %p124 = por %p122, %p123
      %p126 = scmp.ne.s32.totalorder %s111, %s125
      %p127 = scmp.eq.s32.totalorder %s33, 0
      %p128 = por %p126, %p127
      %s130 = sadd.s32 %s129, 1
      %p133 = scmp.eq.s32.totalorder %s27, 1
      %p134 = scmp.ne.s32.totalorder %s129, %s131
      %p135 = scmp.eq.s32.totalorder %s27, 0
      %p136 = por %p134, %p135
      %p137 = scmp.ne.s32.totalorder %s129, %s131
      %p138 = scmp.eq.s32.totalorder %s32, 1
      %p139 = por %p137, %p138
      %p140 = scmp.ne.s32.totalorder %s131, %s132
      %p141 = scmp.eq.s32.totalorder %s32, 0
      %p142 = por %p140, %p141
      %p143 = scmp.ne.s32.totalorder %s131, %s132
      %p144 = scmp.eq.s32.totalorder %s33, 1
      %p145 = por %p143, %p144
      %p147 = scmp.ne.s32.totalorder %s132, %s146
      %p148 = scmp.eq.s32.totalorder %s33, 0
      %p149 = por %p147, %p148
      %s151 = sadd.s32 %s150, 1
      %p154 = scmp.eq.s32.totalorder %s27, 1
      %p155 = scmp.ne.s32.totalorder %s150, %s152
      %p156 = scmp.eq.s32.totalorder %s27, 0
      %p157 = por %p155, %p156
      %p158 = scmp.ne.s32.totalorder %s150, %s152
      %p159 = scmp.eq.s32.totalorder %s32, 1
      %p160 = por %p158, %p159
      %p161 = scmp.ne.s32.totalorder %s152, %s153
      %p162 = scmp.eq.s32.totalorder %s32, 0
      %p163 = por %p161, %p162
      %p164 = scmp.ne.s32.totalorder %s152, %s153
      %p165 = scmp.eq.s32.totalorder %s33, 1
      %p166 = por %p164, %p165
      %p168 = scmp.ne.s32.totalorder %s153, %s167
      %p169 = scmp.eq.s32.totalorder %s33, 0
      %p170 = por %p168, %p169
      %s172 = sadd.s32 %s171, 1
      %p175 = scmp.eq.s32.totalorder %s27, 1
      %p176 = scmp.ne.s32.totalorder %s171, %s173
      %p177 = scmp.eq.s32.totalorder %s27, 0
      %p178 = por %p176, %p177
      %p179 = scmp.ne.s32.totalorder %s171, %s173
      %p180 = scmp.eq.s32.totalorder %s32, 1
      %p181 = por %p179, %p180
      %p182 = scmp.ne.s32.totalorder %s173, %s174
      %p183 = scmp.eq.s32.totalorder %s32, 0
      %p184 = por %p182, %p183
      %p185 = scmp.ne.s32.totalorder %s173, %s174
      %p186 = scmp.eq.s32.totalorder %s33, 1
      %p187 = por %p185, %p186
      %p189 = scmp.ne.s32.totalorder %s174, %s188
      %p190 = scmp.eq.s32.totalorder %s33, 0
      %p191 = por %p189, %p190
      %s193 = sadd.s32 %s192, 1
      %p196 = scmp.eq.s32.totalorder %s27, 1
      %p197 = scmp.ne.s32.totalorder %s192, %s194
      %p198 = scmp.eq.s32.totalorder %s27, 0
      %p199 = por %p197, %p198
      %p200 = scmp.ne.s32.totalorder %s192, %s194
      %p201 = scmp.eq.s32.totalorder %s32, 1
      %p202 = por %p200, %p201
      %p203 = scmp.ne.s32.totalorder %s194, %s195
      %p204 = scmp.eq.s32.totalorder %s32, 0
      %p205 = por %p203, %p204
      %p206 = scmp.ne.s32.totalorder %s194, %s195
      %p207 = scmp.eq.s32.totalorder %s33, 1
      %p208 = por %p206, %p207
      %p210 = scmp.ne.s32.totalorder %s195, %s209
      %p211 = scmp.eq.s32.totalorder %s33, 0
      %p212 = por %p210, %p211
      %s214 = sadd.s32 %s213, 1
      %p217 = scmp.eq.s32.totalorder %s27, 1
      %p218 = scmp.ne.s32.totalorder %s213, %s215
      %p219 = scmp.eq.s32.totalorder %s27, 0
      %p220 = por %p218, %p219
      %p221 = scmp.ne.s32.totalorder %s213, %s215
      %p222 = scmp.eq.s32.totalorder %s32, 1
      %p223 = por %p221, %p222
      %p224 = scmp.ne.s32.totalorder %s215, %s216
      %p225 = scmp.eq.s32.totalorder %s32, 0
      %p226 = por %p224, %p225
      %p227 = scmp.ne.s32.totalorder %s215, %s216
      %p228 = scmp.eq.s32.totalorder %s33, 1
      %p229 = por %p227, %p228
      %p231 = scmp.ne.s32.totalorder %s216, %s230
      %p232 = scmp.eq.s32.totalorder %s33, 0
      %p233 = por %p231, %p232
      %s235 = sadd.s32 %s234, 1
      %p238 = scmp.eq.s32.totalorder %s27, 1
      %p239 = scmp.ne.s32.totalorder %s234, %s236
      %p240 = scmp.eq.s32.totalorder %s27, 0
      %p241 = por %p239, %p240
      %p242 = scmp.ne.s32.totalorder %s234, %s236
      %p243 = scmp.eq.s32.totalorder %s32, 1
      %p244 = por %p242, %p243
      %p245 = scmp.ne.s32.totalorder %s236, %s237
      %p246 = scmp.eq.s32.totalorder %s32, 0
      %p247 = por %p245, %p246
      %p248 = scmp.ne.s32.totalorder %s236, %s237
      %p249 = scmp.eq.s32.totalorder %s33, 1
      %p250 = por %p248, %p249
      %p252 = scmp.ne.s32.totalorder %s237, %s251
      %p253 = scmp.eq.s32.totalorder %s33, 0
      %p254 = por %p252, %p253
      %s255 = ssub.s32 %s27, %s34
      %p256 = scmp.eq.s32.totalorder %s255, 0
      %s258 = sadd.s32 %s257, 1
      %s259 = scalar_select %p256, %s257, %s258
      %p262 = pneg %p256
      %p263 = scmp.eq.s32.totalorder %s27, 1
      %p264 = por %p262, %p263
      %p265 = scmp.ne.s32.totalorder %s257, %s260
      %p266 = scmp.eq.s32.totalorder %s27, 0
      %p267 = por %p265, %p266
      %p268 = scmp.ne.s32.totalorder %s257, %s260
      %p269 = scmp.eq.s32.totalorder %s32, 1
      %p270 = por %p268, %p269
      %p271 = scmp.ne.s32.totalorder %s260, %s261
      %p272 = scmp.eq.s32.totalorder %s32, 0
      %p273 = por %p271, %p272
      %p274 = scmp.ne.s32.totalorder %s260, %s261
      %p275 = scmp.eq.s32.totalorder %s33, 1
      %p276 = por %p274, %p275
      %p278 = scmp.ne.s32.totalorder %s261, %s277
      %p279 = scmp.eq.s32.totalorder %s33, 0
      %p280 = por %p278, %p279
      %p281 = scmp.le.s32.totalorder 1, %s27
      %p282 = scmp.lt.s32.totalorder %s27, 3
      %p283 = pnand %p281, %p282
      %p284 = pneg %p283
      // Predicated region
      $region9: #{tpu_custom_call.1} parent=5 // pred_check
        _
      $region10: #{tpu_custom_call.1} parent=5 // pred_check_branch
        %286 = sbr.rel (%p283) target = $region12
      $region11: #{tpu_custom_call.1} parent=5 // pred_region
        %s287 = ssub.s32 %s27, 1
        // Predicated region
        $region13: #{tpu_custom_call.1} parent=11 // pred_check
          %p288 = pneg %p100
        $region14: #{tpu_custom_call.1} parent=11 // pred_check_branch
          %290 = sbr.rel (%p288) target = $region16
        $region15: #{tpu_custom_call.1} parent=11 // pred_region
          %s292 = ssub.s32 512, 512
          %293 = vsyncadd [#allocation6], %s292
          %s294 = sshll.u32 [#allocation7], 4
          %s295 = int_to_ptr.vmem [resolvable:$true] %s294
          %300 = dma.hbm_to_vmem [thread:$0]  %s2, 512, %s295, [#allocation6], 64, 64, 4
        $region16: #{tpu_custom_call.1} parent=11 // pred_fallthru
          _
        // Predicated region
        $region17: #{tpu_custom_call.1} parent=11 // pred_check
          %p301 = pneg %p121
        $region18: #{tpu_custom_call.1} parent=11 // pred_check_branch
          %303 = sbr.rel (%p301) target = $region20
        $region19: #{tpu_custom_call.1} parent=11 // pred_region
          _
        $region20: #{tpu_custom_call.1} parent=11 // pred_fallthru
          _
        // Predicated region
        $region21: #{tpu_custom_call.1} parent=11 // pred_check
          %p304 = pneg %p142
        $region22: #{tpu_custom_call.1} parent=11 // pred_check_branch
          %306 = sbr.rel (%p304) target = $region24
        $region23: #{tpu_custom_call.1} parent=11 // pred_region
          %s308 = ssub.s32 3072, 3072
          %309 = vsyncadd [#allocation9], %s308
          %s310 = sshll.u32 [#allocation8], 4
          %s311 = int_to_ptr.vmem [resolvable:$true] %s310
          %316 = dma.hbm_to_vmem [thread:$0]  %s4, 3072, %s311, [#allocation9], 192, 192, 12
        $region24: #{tpu_custom_call.1} parent=11 // pred_fallthru
          _
        // Predicated region
        $region25: #{tpu_custom_call.1} parent=11 // pred_check
          %p317 = pneg %p163
        $region26: #{tpu_custom_call.1} parent=11 // pred_check_branch
          %319 = sbr.rel (%p317) target = $region28
        $region27: #{tpu_custom_call.1} parent=11 // pred_region
          %s321 = ssub.s32 1024, 1024
          %322 = vsyncadd [#allocation9], %s321
          %s323 = sshll.u32 [#allocation10], 4
          %s324 = int_to_ptr.vmem [resolvable:$true] %s323
          %329 = dma.hbm_to_vmem [thread:$0]  %s5, 1024, %s324, [#allocation9], 64, 64, 4
        $region28: #{tpu_custom_call.1} parent=11 // pred_fallthru
          _
        // Predicated region
        $region29: #{tpu_custom_call.1} parent=11 // pred_check
          %p330 = pneg %p184
        $region30: #{tpu_custom_call.1} parent=11 // pred_check_branch
          %332 = sbr.rel (%p330) target = $region32
        $region31: #{tpu_custom_call.1} parent=11 // pred_region
          _
        $region32: #{tpu_custom_call.1} parent=11 // pred_fallthru
          _
        // Predicated region
        $region33: #{tpu_custom_call.1} parent=11 // pred_check
          %p333 = pneg %p205
        $region34: #{tpu_custom_call.1} parent=11 // pred_check_branch
          %335 = sbr.rel (%p333) target = $region36
        $region35: #{tpu_custom_call.1} parent=11 // pred_region
          %s337 = ssub.s32 2048, 2048
          %338 = vsyncadd [#allocation12], %s337
          %s339 = sshll.u32 [#allocation11], 4
          %s340 = int_to_ptr.vmem [resolvable:$true] %s339
          %345 = dma.hbm_to_vmem [thread:$0]  %s7, 2048, %s340, [#allocation12], 128, 128, 8
        $region36: #{tpu_custom_call.1} parent=11 // pred_fallthru
          _
        // Predicated region
        $region37: #{tpu_custom_call.1} parent=11 // pred_check
          %p346 = pneg %p226
        $region38: #{tpu_custom_call.1} parent=11 // pred_check_branch
          %348 = sbr.rel (%p346) target = $region40
        $region39: #{tpu_custom_call.1} parent=11 // pred_region
          %s350 = ssub.s32 2048, 2048
          %351 = vsyncadd [#allocation12], %s350
          %s352 = sshll.u32 [#allocation13], 4
          %s353 = int_to_ptr.vmem [resolvable:$true] %s352
          %358 = dma.hbm_to_vmem [thread:$0]  %s8, 2048, %s353, [#allocation12], 64, 64, 4
        $region40: #{tpu_custom_call.1} parent=11 // pred_fallthru
          _
        // Predicated region
        $region41: #{tpu_custom_call.1} parent=11 // pred_check
          %p359 = pneg %p247
        $region42: #{tpu_custom_call.1} parent=11 // pred_check_branch
          %361 = sbr.rel (%p359) target = $region44
        $region43: #{tpu_custom_call.1} parent=11 // pred_region
          _
        $region44: #{tpu_custom_call.1} parent=11 // pred_fallthru
          _
      $region12: #{tpu_custom_call.1} parent=5 // pred_fallthru
        _
      %p362 = scmp.lt.s32.totalorder %s27, 2
      // Predicated region
      $region45: #{tpu_custom_call.1} parent=5 // pred_check
        %p363 = pneg %p362
      $region46: #{tpu_custom_call.1} parent=5 // pred_check_branch
        %365 = sbr.rel (%p363) target = $region48
      $region47: #{tpu_custom_call.1} parent=5 // pred_region
        // Predicated region
        $region49: #{tpu_custom_call.1} parent=47 // pred_check
          %p366 = pneg %p47
        $region50: #{tpu_custom_call.1} parent=47 // pred_check_branch
          %368 = sbr.rel (%p366) target = $region52
        $region51: #{tpu_custom_call.1} parent=47 // pred_region
          %s369 = sand.u32 %s37, 1
          %s370 = scalar_lea.sflag [#allocation3], %s369
          %s371 = sand.u32 %s37, 1
          %s372 = smul.addr %s371, 32
          %s373 = scalar_lea.vmem [#allocation2], %s372
          %s374 = smul.u32 4, %s27
          %s376 = ssub.s32 512, 512
          %377 = vsyncadd %s370, %s376
          %s378 = smul.addr %s374, 2
          %s379 = smul.addr %s378, 64
          %s380 = scalar_lea.hbm %s0, %s379
          %s381 = sshll.u32 %s373, 4
          %s382 = int_to_ptr.vmem [resolvable:$true] %s381
          %387 = dma.hbm_to_vmem [thread:$0]  %s380, 512, %s382, %s370, 64, 64, 4
        $region52: #{tpu_custom_call.1} parent=47 // pred_fallthru
          _
        // Predicated region
        $region53: #{tpu_custom_call.1} parent=47 // pred_check
          %p388 = pneg %p73
        $region54: #{tpu_custom_call.1} parent=47 // pred_check_branch
          %390 = sbr.rel (%p388) target = $region56
        $region55: #{tpu_custom_call.1} parent=47 // pred_region
          %s391 = sand.u32 %s27, 1
          %s392 = scalar_lea.sflag [#allocation6], %s391
          %s393 = sand.u32 %s63, 1
          %s394 = smul.addr %s393, 4
          %s395 = scalar_lea.vmem [#allocation5], %s394
          %s396 = smul.u32 4, %s27
          %s398 = ssub.s32 64, 64
          %399 = vsyncadd %s392, %s398
          %s400 = smul.addr %s396, 16
          %s401 = scalar_lea.hbm %s1, %s400
          %s402 = sshll.u32 %s395, 4
          %s403 = int_to_ptr.vmem [resolvable:$true] %s402
          %408 = dma.hbm_to_vmem [thread:$0]  %s401, 64, %s403, %s392, 16, 16, 1
        $region56: #{tpu_custom_call.1} parent=47 // pred_fallthru
          _
      $region48: #{tpu_custom_call.1} parent=5 // pred_fallthru
        _
      %p409 = scmp.le.s32.totalorder 1, %s27
      %p410 = scmp.lt.s32.totalorder %s27, 3
      %p411 = pnand %p409, %p410
      %p412 = pneg %p411
      // Predicated region
      $region57: #{tpu_custom_call.1} parent=5 // pred_check
        _
      $region58: #{tpu_custom_call.1} parent=5 // pred_check_branch
        %414 = sbr.rel (%p411) target = $region60
      $region59: #{tpu_custom_call.1} parent=5 // pred_region
        %s415 = ssub.s32 %s27, 1
        %s416 = sand.u32 %s40, 1
        %s417 = scalar_lea.sflag [#allocation3], %s416
        %s418 = sand.u32 %s40, 1
        %s419 = smul.addr %s418, 32
        %s420 = scalar_lea.vmem [#allocation2], %s419
        // Predicated region
        $region61: #{tpu_custom_call.1} parent=59 // pred_check
          %p421 = pneg %p53
        $region62: #{tpu_custom_call.1} parent=59 // pred_check_branch
          %423 = sbr.rel (%p421) target = $region64
        $region63: #{tpu_custom_call.1} parent=59 // pred_region
          %424 = dma.done %s417, 512
        $region64: #{tpu_custom_call.1} parent=59 // pred_fallthru
          _
        %s425 = sand.u32 %s32, 1
        %s426 = scalar_lea.sflag [#allocation6], %s425
        %s427 = sand.u32 %s66, 1
        %s428 = smul.addr %s427, 4
        %s429 = scalar_lea.vmem [#allocation5], %s428
        // Predicated region
        $region65: #{tpu_custom_call.1} parent=59 // pred_check
          %p430 = pneg %p79
        $region66: #{tpu_custom_call.1} parent=59 // pred_check_branch
          %432 = sbr.rel (%p430) target = $region68
        $region67: #{tpu_custom_call.1} parent=59 // pred_region
          %433 = dma.done %s426, 64
        $region68: #{tpu_custom_call.1} parent=59 // pred_fallthru
          _
        // Predicated region
        $region69: #{tpu_custom_call.1} parent=59 // pred_check
          %p434 = pneg %p100
        $region70: #{tpu_custom_call.1} parent=59 // pred_check_branch
          %436 = sbr.rel (%p434) target = $region72
        $region71: #{tpu_custom_call.1} parent=59 // pred_region
          %437 = dma.done [#allocation6], 512
        $region72: #{tpu_custom_call.1} parent=59 // pred_fallthru
          _
        // Predicated region
        $region73: #{tpu_custom_call.1} parent=59 // pred_check
          %p438 = pneg %p142
        $region74: #{tpu_custom_call.1} parent=59 // pred_check_branch
          %440 = sbr.rel (%p438) target = $region76
        $region75: #{tpu_custom_call.1} parent=59 // pred_region
          %441 = dma.done [#allocation9], 3072
        $region76: #{tpu_custom_call.1} parent=59 // pred_fallthru
          _
        // Predicated region
        $region77: #{tpu_custom_call.1} parent=59 // pred_check
          %p442 = pneg %p163
        $region78: #{tpu_custom_call.1} parent=59 // pred_check_branch
          %444 = sbr.rel (%p442) target = $region80
        $region79: #{tpu_custom_call.1} parent=59 // pred_region
          %445 = dma.done [#allocation9], 1024
        $region80: #{tpu_custom_call.1} parent=59 // pred_fallthru
          _
        // Predicated region
        $region81: #{tpu_custom_call.1} parent=59 // pred_check
          %p446 = pneg %p205
        $region82: #{tpu_custom_call.1} parent=59 // pred_check_branch
          %448 = sbr.rel (%p446) target = $region84
        $region83: #{tpu_custom_call.1} parent=59 // pred_region
          %449 = dma.done [#allocation12], 2048
        $region84: #{tpu_custom_call.1} parent=59 // pred_fallthru
          _
        // Predicated region
        $region85: #{tpu_custom_call.1} parent=59 // pred_check
          %p450 = pneg %p226
        $region86: #{tpu_custom_call.1} parent=59 // pred_check_branch
          %452 = sbr.rel (%p450) target = $region88
        $region87: #{tpu_custom_call.1} parent=59 // pred_region
          %453 = dma.done [#allocation12], 2048
        $region88: #{tpu_custom_call.1} parent=59 // pred_fallthru
          _
        %s454 = sand.u32 %s40, 1
        %s455 = scalar_lea.sflag [#allocation3], %s454
        %s456 = sand.u32 %s40, 1
        %s457 = smul.addr %s456, 32
        %s458 = scalar_lea.vmem [#allocation2], %s457
        %p459 = pneg %p53
        %p460 = pneg %p50
        %s461 = sand.u32 %s32, 1
        %s462 = scalar_lea.sflag [#allocation6], %s461
        %s463 = sand.u32 %s66, 1
        %s464 = smul.addr %s463, 4
        %s465 = scalar_lea.vmem [#allocation5], %s464
        %p466 = pneg %p79
        %p467 = pneg %p76
        %p468 = pneg %p100
        %p469 = pneg %p97
        %p470 = pneg %p121
        %p471 = pneg %p118
        %p472 = pneg %p142
        %p473 = pneg %p139
        %p474 = pneg %p163
        %p475 = pneg %p160
        %p476 = pneg %p184
        %p477 = pneg %p181
        %p478 = pneg %p205
        %p479 = pneg %p202
        %p480 = pneg %p226
        %p481 = pneg %p223
        %p482 = pneg %p247
        %p483 = pneg %p244
        %p484 = pneg %p273
        %p485 = pneg %p270
        %s486 = sand.u32 %s260, 1
        %s487 = scalar_lea.sflag [#allocation4], %s486
        %s488 = sand.u32 %s260, 1
        %s489 = smul.addr %s488, 32
        %s490 = scalar_lea.vmem [#allocation14], %s489
        %s491 = smul.u32 4, %s32
        %s492 = smul.u32 4, %s32
        %s493 = smul.u32 4, %s32
        %v495 = vld [vmem:[%s420] sm:$0xf]
        %v496 = vld [vmem:[%s420 + $0x4] sm:$0xf]
        %v497 = vld [vmem:[%s420 + $0x8] sm:$0xf]
        %v498 = vld [vmem:[%s420 + $0xc] sm:$0xf]
        %v499 = vld [vmem:[%s420 + $0x10] sm:$0xf]
        %v500 = vld [vmem:[%s420 + $0x14] sm:$0xf]
        %v501 = vld [vmem:[%s420 + $0x18] sm:$0xf]
        %v502 = vld [vmem:[%s420 + $0x1c] sm:$0xf]
        %v503 = vunpack.c.l.bf16 %v495
        %v504 = vunpack.c.l.bf16 %v496
        %v505 = vunpack.c.l.bf16 %v497
        %v506 = vunpack.c.l.bf16 %v498
        %v507 = vunpack.c.l.bf16 %v499
        %v508 = vunpack.c.l.bf16 %v500
        %v509 = vunpack.c.l.bf16 %v501
        %v510 = vunpack.c.l.bf16 %v502
        %v511 = vld [vmem:[%s429] sm:$0x1]
        %v512 = vld [vmem:[%s429 + $0x1] sm:$0x1]
        %v513 = vld [vmem:[%s429 + $0x2] sm:$0x1]
        %v514 = vld [vmem:[%s429 + $0x3] sm:$0x1]
        %v515 = vsub.f32 1.0, %v511
        %v516 = vsub.f32 1.0, %v512
        %v517 = vsub.f32 1.0, %v513
        %v518 = vsub.f32 1.0, %v514
        %v519 = vmul.f32 %v515, -1e+09
        %v520 = vmul.f32 %v516, -1e+09
        %v521 = vmul.f32 %v517, -1e+09
        %v522 = vmul.f32 %v518, -1e+09
        %v523 = vld [vmem:[#allocation7] sm:$0xf]
        %v524 = vld [vmem:[#allocation7 + $0x4] sm:$0xf]
        %v525 = vld [vmem:[#allocation7 + $0x8] sm:$0xf]
        %v526 = vld [vmem:[#allocation7 + $0xc] sm:$0xf]
        %v527 = vld [vmem:[#allocation7 + $0x10] sm:$0xf]
        %v528 = vld [vmem:[#allocation7 + $0x14] sm:$0xf]
        %v529 = vld [vmem:[#allocation7 + $0x18] sm:$0xf]
        %v530 = vld [vmem:[#allocation7 + $0x1c] sm:$0xf]
        %v531 = vunpack.c.l.bf16 %v523
        %v532 = vunpack.c.l.bf16 %v524
        %v533 = vunpack.c.l.bf16 %v525
        %v534 = vunpack.c.l.bf16 %v526
        %v535 = vunpack.c.l.bf16 %v527
        %v536 = vunpack.c.l.bf16 %v528
        %v537 = vunpack.c.l.bf16 %v529
        %v538 = vunpack.c.l.bf16 %v530
        %v543 = vlaneseq
        %v544 = vshrl.u32 %v543, 7
        %v545 = vsub.s32 0, %v544
        %v546 = vrot.slane %v519, %v545
        %v547 = vlaneseq
        %v548 = vshrl.u32 %v547, 7
        %v549 = vsub.s32 0, %v548
        %v550 = vrot.slane %v520, %v549
        %v551 = vlaneseq
        %v552 = vshrl.u32 %v551, 7
        %v553 = vsub.s32 0, %v552
        %v554 = vrot.slane %v521, %v553
        %v555 = vlaneseq
        %v556 = vshrl.u32 %v555, 7
        %v557 = vsub.s32 0, %v556
        %v558 = vrot.slane %v522, %v557
        %v563 = vadd.f32 %v531, %v546
        %v564 = vadd.f32 %v532, %v546
        %v565 = vadd.f32 %v533, %v546
        %v566 = vadd.f32 %v534, %v546
        %v567 = vadd.f32 %v535, %v546
        %v568 = vadd.f32 %v536, %v546
        %v569 = vadd.f32 %v537, %v546
        %v570 = vadd.f32 %v538, %v546
        %v571 = vadd.f32 %v531, %v550
        %v572 = vadd.f32 %v532, %v550
        %v573 = vadd.f32 %v533, %v550
        %v574 = vadd.f32 %v534, %v550
        %v575 = vadd.f32 %v535, %v550
        %v576 = vadd.f32 %v536, %v550
        %v577 = vadd.f32 %v537, %v550
        %v578 = vadd.f32 %v538, %v550
        %v579 = vadd.f32 %v531, %v554
        %v580 = vadd.f32 %v532, %v554
        %v581 = vadd.f32 %v533, %v554
        %v582 = vadd.f32 %v534, %v554
        %v583 = vadd.f32 %v535, %v554
        %v584 = vadd.f32 %v536, %v554
        %v585 = vadd.f32 %v537, %v554
        %v586 = vadd.f32 %v538, %v554
        %v587 = vadd.f32 %v531, %v558
        %v588 = vadd.f32 %v532, %v558
        %v589 = vadd.f32 %v533, %v558
        %v590 = vadd.f32 %v534, %v558
        %v591 = vadd.f32 %v535, %v558
        %v592 = vadd.f32 %v536, %v558
        %v593 = vadd.f32 %v537, %v558
        %v594 = vadd.f32 %v538, %v558
        %v595 = vmul.f32 %v503, %v503
        %v596 = vmul.f32 %v504, %v504
        %v597 = vmul.f32 %v505, %v505
        %v598 = vmul.f32 %v506, %v506
        %v599 = vmul.f32 %v507, %v507
        %v600 = vmul.f32 %v508, %v508
        %v601 = vmul.f32 %v509, %v509
        %v602 = vmul.f32 %v510, %v510
        %603 = vadd.xlane.f32.xlu0 %v595
        %v604 = vpop.xlane.xlu0 %603
        %605 = vadd.xlane.f32.xlu0 %v596
        %v606 = vpop.xlane.xlu0 %605
        %607 = vadd.xlane.f32.xlu0 %v597
        %v608 = vpop.xlane.xlu0 %607
        %609 = vadd.xlane.f32.xlu0 %v598
        %v610 = vpop.xlane.xlu0 %609
        %611 = vadd.xlane.f32.xlu0 %v599
        %v612 = vpop.xlane.xlu0 %611
        %613 = vadd.xlane.f32.xlu0 %v600
        %v614 = vpop.xlane.xlu0 %613
        %615 = vadd.xlane.f32.xlu0 %v601
        %v616 = vpop.xlane.xlu0 %615
        %617 = vadd.xlane.f32.xlu0 %v602
        %v618 = vpop.xlane.xlu0 %617
        %v619 = vrcp.pop 128.0
        %v620 = vmul.f32 %v604, %v619
        %v621 = vmul.f32 %v606, %v619
        %v622 = vmul.f32 %v608, %v619
        %v623 = vmul.f32 %v610, %v619
        %v624 = vmul.f32 %v612, %v619
        %v625 = vmul.f32 %v614, %v619
        %v626 = vmul.f32 %v616, %v619
        %v627 = vmul.f32 %v618, %v619
        %v628 = vadd.f32 %v620, 1e-06
        %v629 = vadd.f32 %v621, 1e-06
        %v630 = vadd.f32 %v622, 1e-06
        %v631 = vadd.f32 %v623, 1e-06
        %v632 = vadd.f32 %v624, 1e-06
        %v633 = vadd.f32 %v625, 1e-06
        %v634 = vadd.f32 %v626, 1e-06
        %v635 = vadd.f32 %v627, 1e-06
        %v636 = vrsqrt.pop %v628
        %v637 = vrsqrt.pop %v629
        %v638 = vrsqrt.pop %v630
        %v639 = vrsqrt.pop %v631
        %v640 = vrsqrt.pop %v632
        %v641 = vrsqrt.pop %v633
        %v642 = vrsqrt.pop %v634
        %v643 = vrsqrt.pop %v635
        %v644 = vmul.f32 %v503, %v636
        %v645 = vmul.f32 %v504, %v637
        %v646 = vmul.f32 %v505, %v638
        %v647 = vmul.f32 %v506, %v639
        %v648 = vmul.f32 %v507, %v640
        %v649 = vmul.f32 %v508, %v641
        %v650 = vmul.f32 %v509, %v642
        %v651 = vmul.f32 %v510, %v643
        %v652 = vld [vmem:[%s3] sm:$0x1]
        %v654 = vlaneseq
        %v655 = vshrl.u32 %v654, 7
        %v656 = vsub.s32 0, %v655
        %v657 = vrot.slane %v652, %v656
        %v659 = vmul.f32 %v644, %v657
        %v660 = vmul.f32 %v645, %v657
        %v661 = vmul.f32 %v646, %v657
        %v662 = vmul.f32 %v647, %v657
        %v663 = vmul.f32 %v648, %v657
        %v664 = vmul.f32 %v649, %v657
        %v665 = vmul.f32 %v650, %v657
        %v666 = vmul.f32 %v651, %v657
        %v667 = vpack.c.bf16 %v660, %v659
        %v668 = vpack.c.bf16 %v662, %v661
        %v669 = vpack.c.bf16 %v664, %v663
        %v670 = vpack.c.bf16 %v666, %v665
        %v671 = vld [vmem:[#allocation8] sm:$0xff]
        %v672 = vld [vmem:[#allocation8 + $0x8] sm:$0xf]
        %v673 = vld [vmem:[#allocation8 + $0xc] sm:$0xff]
        %v674 = vld [vmem:[#allocation8 + $0x14] sm:$0xf]
        %v675 = vld [vmem:[#allocation8 + $0x18] sm:$0xff]
        %v676 = vld [vmem:[#allocation8 + $0x20] sm:$0xf]
        %v677 = vld [vmem:[#allocation8 + $0x24] sm:$0xff]
        %v678 = vld [vmem:[#allocation8 + $0x2c] sm:$0xf]
        %v679 = vld [vmem:[#allocation8 + $0x30] sm:$0xff]
        %v680 = vld [vmem:[#allocation8 + $0x38] sm:$0xf]
        %v681 = vld [vmem:[#allocation8 + $0x3c] sm:$0xff]
        %v682 = vld [vmem:[#allocation8 + $0x44] sm:$0xf]
        %v683 = vld [vmem:[#allocation8 + $0x48] sm:$0xff]
        %v684 = vld [vmem:[#allocation8 + $0x50] sm:$0xf]
        %v685 = vld [vmem:[#allocation8 + $0x54] sm:$0xff]
        %v686 = vld [vmem:[#allocation8 + $0x5c] sm:$0xf]
        %v687 = vld [vmem:[#allocation8 + $0x60] sm:$0xff]
        %v688 = vld [vmem:[#allocation8 + $0x68] sm:$0xf]
        %v689 = vld [vmem:[#allocation8 + $0x6c] sm:$0xff]
        %v690 = vld [vmem:[#allocation8 + $0x74] sm:$0xf]
        %v691 = vld [vmem:[#allocation8 + $0x78] sm:$0xff]
        %v692 = vld [vmem:[#allocation8 + $0x80] sm:$0xf]
        %v693 = vld [vmem:[#allocation8 + $0x84] sm:$0xff]
        %v694 = vld [vmem:[#allocation8 + $0x8c] sm:$0xf]
        %v695 = vld [vmem:[#allocation8 + $0x90] sm:$0xff]
        %v696 = vld [vmem:[#allocation8 + $0x98] sm:$0xf]
        %v697 = vld [vmem:[#allocation8 + $0x9c] sm:$0xff]
        %v698 = vld [vmem:[#allocation8 + $0xa4] sm:$0xf]
        %v699 = vld [vmem:[#allocation8 + $0xa8] sm:$0xff]
        %v700 = vld [vmem:[#allocation8 + $0xb0] sm:$0xf]
        %v701 = vld [vmem:[#allocation8 + $0xb4] sm:$0xff]
        %v702 = vld [vmem:[#allocation8 + $0xbc] sm:$0xf]
        %v735 = vunpack.c.l.b16 %v671
        %v736 = vunpack.c.h.b16 %v671
        %v737 = vunpack.c.l.b16 %v672
        %v738 = vunpack.c.l.b16 %v673
        %v739 = vunpack.c.h.b16 %v673
        %v740 = vunpack.c.l.b16 %v674
        %v741 = vunpack.c.l.b16 %v675
        %v742 = vunpack.c.h.b16 %v675
        %v743 = vunpack.c.l.b16 %v676
        %v744 = vunpack.c.l.b16 %v677
        %v745 = vunpack.c.h.b16 %v677
        %v746 = vunpack.c.l.b16 %v678
        %v747 = vunpack.c.l.b16 %v679
        %v748 = vunpack.c.h.b16 %v679
        %v749 = vunpack.c.l.b16 %v680
        %v750 = vunpack.c.l.b16 %v681
        %v751 = vunpack.c.h.b16 %v681
        %v752 = vunpack.c.l.b16 %v682
        %v753 = vunpack.c.l.b16 %v683
        %v754 = vunpack.c.h.b16 %v683
        %v755 = vunpack.c.l.b16 %v684
        %v756 = vunpack.c.l.b16 %v685
        %v757 = vunpack.c.h.b16 %v685
        %v758 = vunpack.c.l.b16 %v686
        %v759 = vunpack.c.l.b16 %v687
        %v760 = vunpack.c.h.b16 %v687
        %v761 = vunpack.c.l.b16 %v688
        %v762 = vunpack.c.l.b16 %v689
        %v763 = vunpack.c.h.b16 %v689
        %v764 = vunpack.c.l.b16 %v690
        %v765 = vunpack.c.l.b16 %v691
        %v766 = vunpack.c.h.b16 %v691
        %v767 = vunpack.c.l.b16 %v692
        %v768 = vunpack.c.l.b16 %v693
        %v769 = vunpack.c.h.b16 %v693
        %v770 = vunpack.c.l.b16 %v694
        %v771 = vunpack.c.l.b16 %v695
        %v772 = vunpack.c.h.b16 %v695
        %v773 = vunpack.c.l.b16 %v696
        %v774 = vunpack.c.l.b16 %v697
        %v775 = vunpack.c.h.b16 %v697
        %v776 = vunpack.c.l.b16 %v698
        %v777 = vunpack.c.l.b16 %v699
        %v778 = vunpack.c.h.b16 %v699
        %v779 = vunpack.c.l.b16 %v700
        %v780 = vunpack.c.l.b16 %v701
        %v781 = vunpack.c.h.b16 %v701
        %v782 = vunpack.c.l.b16 %v702
        %v783 = vpack.c.b16 %v738, %v735
        %v784 = vpack.c.b16 %v739, %v736
        %v785 = vpack.c.b16 %v740, %v737
        %v786 = vpack.c.b16 %v744, %v741
        %v787 = vpack.c.b16 %v745, %v742
        %v788 = vpack.c.b16 %v746, %v743
        %v789 = vpack.c.b16 %v750, %v747
        %v790 = vpack.c.b16 %v751, %v748
        %v791 = vpack.c.b16 %v752, %v749
        %v792 = vpack.c.b16 %v756, %v753
        %v793 = vpack.c.b16 %v757, %v754
        %v794 = vpack.c.b16 %v758, %v755
        %v795 = vpack.c.b16 %v762, %v759
        %v796 = vpack.c.b16 %v763, %v760
        %v797 = vpack.c.b16 %v764, %v761
        %v798 = vpack.c.b16 %v768, %v765
        %v799 = vpack.c.b16 %v769, %v766
        %v800 = vpack.c.b16 %v770, %v767
        %v801 = vpack.c.b16 %v774, %v771
        %v802 = vpack.c.b16 %v775, %v772
        %v803 = vpack.c.b16 %v776, %v773
        %v804 = vpack.c.b16 %v780, %v777
        %v805 = vpack.c.b16 %v781, %v778
        %v806 = vpack.c.b16 %v782, %v779
        %831 = vmatprep.subr.bf16.mxu0 %v784
        %832 = vmatpush1.bf16.msra.mxu0 %v783
        %833 = vmatprep.subr.bf16.mxu0 %v787
        %834 = vmatpush1.bf16.msra.mxu0 %v786
        %835 = vmatprep.subr.bf16.mxu0 %v790
        %836 = vmatpush1.bf16.msra.mxu0 %v789
        %837 = vmatprep.subr.bf16.mxu0 %v793
        %838 = vmatpush1.bf16.msra.mxu0 %v792
        %839 = vmatprep.subr.bf16.mxu0 %v796
        %840 = vmatpush1.bf16.msra.mxu0 %v795
        %841 = vmatprep.subr.bf16.mxu0 %v799
        %842 = vmatpush1.bf16.msra.mxu0 %v798
        %843 = vmatprep.subr.bf16.mxu0 %v802
        %844 = vmatpush1.bf16.msra.mxu0 %v801
        %845 = vmatprep.subr.bf16.mxu0 %v805
        %846 = vmatpush1.bf16.msra.mxu0 %v804
        %847 = vmatprep.subr.bf16.mxu0 0
        %848 = vmatpush1.bf16.msra.mxu0 0
        %849 = vmatprep.subr.bf16.mxu0 0
        %850 = vmatpush1.bf16.msra.mxu0 0
        %851 = vmatprep.subr.bf16.mxu0 0
        %852 = vmatpush1.bf16.msra.mxu0 0
        %853 = vmatprep.subr.bf16.mxu0 0
        %854 = vmatpush1.bf16.msra.mxu0 0
        %855 = vmatprep.subr.bf16.mxu0 0
        %856 = vmatpush1.bf16.msra.mxu0 0
        %857 = vmatprep.subr.bf16.mxu0 0
        %858 = vmatpush1.bf16.msra.mxu0 0
        %859 = vmatprep.subr.bf16.mxu0 0
        %860 = vmatpush1.bf16.msra.mxu0 0
        %861 = vmatprep.subr.bf16.mxu0 0
        %862 = vmatpush1.bf16.msra.mxu0 0
        %863 = vmatprep.mubr.bf16.mxu0 0
        %864 = vmatmul.mubr.bf16.gmra.mrb[0].mxu0 %v667
        %v865 = vpop.f32.mrb[0].mxu0
        %v866 = vadd.f32 0.0, %v865
        %v867 = vpop.f32.mrb[0].mxu0
        %v868 = vadd.f32 0.0, %v867
        %v869 = vpop.f32.mrb[0].mxu0
        %v870 = vadd.f32 0.0, %v869
        %v871 = vpop.f32.mrb[0].mxu0
        %v872 = vadd.f32 0.0, %v871
        %873 = vmatprep.mubr.bf16.mxu0 0
        %874 = vmatmul.mubr.bf16.gmra.mrb[0].mxu0 %v668
        %v875 = vpop.f32.mrb[0].mxu0
        %v876 = vadd.f32 0.0, %v875
        %v877 = vpop.f32.mrb[0].mxu0
        %v878 = vadd.f32 0.0, %v877
        %v879 = vpop.f32.mrb[0].mxu0
        %v880 = vadd.f32 0.0, %v879
        %v881 = vpop.f32.mrb[0].mxu0
        %v882 = vadd.f32 0.0, %v881
        %883 = vmatprep.mubr.bf16.mxu0 0
        %884 = vmatmul.mubr.bf16.gmra.mrb[0].mxu0 %v669
        %v885 = vpop.f32.mrb[0].mxu0
        %v886 = vadd.f32 0.0, %v885
        %v887 = vpop.f32.mrb[0].mxu0
        %v888 = vadd.f32 0.0, %v887
        %v889 = vpop.f32.mrb[0].mxu0
        %v890 = vadd.f32 0.0, %v889
        %v891 = vpop.f32.mrb[0].mxu0
        %v892 = vadd.f32 0.0, %v891
        %893 = vmatprep.mubr.bf16.mxu0 0
        %894 = vmatmul.mubr.bf16.gmra.mrb[0].mxu0 %v670
        %v895 = vpop.f32.mrb[0].mxu0
        %v896 = vadd.f32 0.0, %v895
        %v897 = vpop.f32.mrb[0].mxu0
        %v898 = vadd.f32 0.0, %v897
        %v899 = vpop.f32.mrb[0].mxu0
        %v900 = vadd.f32 0.0, %v899
        %v901 = vpop.f32.mrb[0].mxu0
        %v902 = vadd.f32 0.0, %v901
        %903 = vdwg.mxu0
        %904 = vmatprep.subr.bf16.mxu0 0
        %905 = vmatpush1.bf16.msra.mxu0 %v785
        %906 = vmatprep.subr.bf16.mxu0 0
        %907 = vmatpush1.bf16.msra.mxu0 %v788
        %908 = vmatprep.subr.bf16.mxu0 0
        %909 = vmatpush1.bf16.msra.mxu0 %v791
        %910 = vmatprep.subr.bf16.mxu0 0
        %911 = vmatpush1.bf16.msra.mxu0 %v794
        %912 = vmatprep.subr.bf16.mxu0 0
        %913 = vmatpush1.bf16.msra.mxu0 %v797
        %914 = vmatprep.subr.bf16.mxu0 0
        %915 = vmatpush1.bf16.msra.mxu0 %v800
        %916 = vmatprep.subr.bf16.mxu0 0
        %917 = vmatpush1.bf16.msra.mxu0 %v803
        %918 = vmatprep.subr.bf16.mxu0 0
        %919 = vmatpush1.bf16.msra.mxu0 %v806
        %920 = vmatprep.subr.bf16.mxu0 0
        %921 = vmatpush1.bf16.msra.mxu0 0
        %922 = vmatprep.subr.bf16.mxu0 0
        %923 = vmatpush1.bf16.msra.mxu0 0
        %924 = vmatprep.subr.bf16.mxu0 0
        %925 = vmatpush1.bf16.msra.mxu0 0
        %926 = vmatprep.subr.bf16.mxu0 0
        %927 = vmatpush1.bf16.msra.mxu0 0
        %928 = vmatprep.subr.bf16.mxu0 0
        %929 = vmatpush1.bf16.msra.mxu0 0
        %930 = vmatprep.subr.bf16.mxu0 0
        %931 = vmatpush1.bf16.msra.mxu0 0
        %932 = vmatprep.subr.bf16.mxu0 0
        %933 = vmatpush1.bf16.msra.mxu0 0
        %934 = vmatprep.subr.bf16.mxu0 0
        %935 = vmatpush1.bf16.msra.mxu0 0
        %936 = vmatprep.mubr.bf16.mxu0 0
        %937 = vmatmul.mubr.bf16.gmra.mrb[0].mxu0 %v667
        %v938 = vpop.f32.mrb[0].mxu0
        %v939 = vadd.f32 0.0, %v938
        %v940 = vpop.f32.mrb[0].mxu0
        %v941 = vpop.f32.mrb[0].mxu0
        %v942 = vadd.f32 0.0, %v941
        %v943 = vpop.f32.mrb[0].mxu0
        %944 = vmatprep.mubr.bf16.mxu0 0
        %945 = vmatmul.mubr.bf16.gmra.mrb[0].mxu0 %v668
        %v946 = vpop.f32.mrb[0].mxu0
        %v947 = vadd.f32 0.0, %v946
        %v948 = vpop.f32.mrb[0].mxu0
        %v949 = vpop.f32.mrb[0].mxu0
        %v950 = vadd.f32 0.0, %v949
        %v951 = vpop.f32.mrb[0].mxu0
        %952 = vmatprep.mubr.bf16.mxu0 0
        %953 = vmatmul.mubr.bf16.gmra.mrb[0].mxu0 %v669
        %v954 = vpop.f32.mrb[0].mxu0
        %v955 = vadd.f32 0.0, %v954
        %v956 = vpop.f32.mrb[0].mxu0
        %v957 = vpop.f32.mrb[0].mxu0
        %v958 = vadd.f32 0.0, %v957
        %v959 = vpop.f32.mrb[0].mxu0
        %960 = vmatprep.mubr.bf16.mxu0 0
        %961 = vmatmul.mubr.bf16.gmra.mrb[0].mxu0 %v670
        %v962 = vpop.f32.mrb[0].mxu0
        %v963 = vadd.f32 0.0, %v962
        %v964 = vpop.f32.mrb[0].mxu0
        %v965 = vpop.f32.mrb[0].mxu0
        %v966 = vadd.f32 0.0, %v965
        %v967 = vpop.f32.mrb[0].mxu0
        %968 = vdwg.mxu0
        %v969 = vpack.c.bf16 %v870, %v866
        %v970 = vpack.c.bf16 %v880, %v876
        %v971 = vpack.c.bf16 %v890, %v886
        %v972 = vpack.c.bf16 %v900, %v896
        %v973 = vpack.c.bf16 %v872, %v868
        %v974 = vpack.c.bf16 %v882, %v878
        %v975 = vpack.c.bf16 %v892, %v888
        %v976 = vpack.c.bf16 %v902, %v898
        %v977 = vpack.c.bf16 %v942, %v939
        %v978 = vpack.c.bf16 %v950, %v947
        %v979 = vpack.c.bf16 %v958, %v955
        %v980 = vpack.c.bf16 %v966, %v963
        %vm981 = vcmask 261120
        %v983 = vsel %vm981, %v969, 0
        %v986 = vsel %vm981, %v973, 0
        %988 = vmatprep.subr.bf16.mxu0 0
        %989 = vmatpush1.bf16.xpose.msra.mxu0 %v986
        %990 = vmatprep.subr.bf16.mxu0 0
        %991 = vmatpush1.bf16.xpose.msra.mxu0 0
        %992 = vmatprep.subr.bf16.mxu0 0
        %993 = vmatpush1.bf16.xpose.msra.mxu0 0
        %994 = vmatprep.subr.bf16.mxu0 0
        %995 = vmatpush1.bf16.xpose.msra.mxu0 0
        %996 = vmatprep.subr.bf16.mxu0 0
        %997 = vmatpush1.bf16.xpose.msra.mxu0 0
        %998 = vmatprep.subr.bf16.mxu0 0
        %999 = vmatpush1.bf16.xpose.msra.mxu0 0
        %1000 = vmatprep.subr.bf16.mxu0 0
        %1001 = vmatpush1.bf16.xpose.msra.mxu0 0
        %1002 = vmatprep.subr.bf16.mxu0 0
        %1003 = vmatpush1.bf16.xpose.msra.mxu0 0
        %1004 = vmatprep.subr.bf16.mxu0 0
        %1005 = vmatpush1.bf16.xpose.msra.mxu0 0
        %1006 = vmatprep.subr.bf16.mxu0 0
        %1007 = vmatpush1.bf16.xpose.msra.mxu0 0
        %1008 = vmatprep.subr.bf16.mxu0 0
        %1009 = vmatpush1.bf16.xpose.msra.mxu0 0
        %1010 = vmatprep.subr.bf16.mxu0 0
        %1011 = vmatpush1.bf16.xpose.msra.mxu0 0
        %1012 = vmatprep.subr.bf16.mxu0 0
        %1013 = vmatpush1.bf16.xpose.msra.mxu0 0
        %1014 = vmatprep.subr.bf16.mxu0 0
        %1015 = vmatpush1.bf16.xpose.msra.mxu0 0
        %1016 = vmatprep.subr.bf16.mxu0 0
        %1017 = vmatpush1.bf16.xpose.msra.mxu0 0
        %1018 = vmatprep.subr.bf16.mxu0 0
        %1019 = vmatpush1.bf16.xpose.msra.mxu0 0
        %1020 = vmatprep.mubr.bf16.mxu0 0
        %1021 = vmatmul.mubr.bf16.gmra.mrb[0].mxu0 %v983
        %v1022 = vpop.f32.mrb[0].mxu0
        %v1023 = vadd.f32 %v563, %v1022
        %v1024 = vpop.f32.mrb[0].mxu0
        %v1025 = vpop.f32.mrb[0].mxu0
        %v1026 = vadd.f32 %v564, %v1025
        %v1027 = vpop.f32.mrb[0].mxu0
        %1028 = vdwg.mxu0
        %v1030 = vsel %vm981, %v970, 0
        %v1033 = vsel %vm981, %v974, 0
        %1035 = vmatprep.subr.bf16.mxu0 0
        %1036 = vmatpush1.bf16.xpose.msra.mxu0 %v1033
        %1037 = vmatprep.subr.bf16.mxu0 0
        %1038 = vmatpush1.bf16.xpose.msra.mxu0 0
        %1039 = vmatprep.subr.bf16.mxu0 0
        %1040 = vmatpush1.bf16.xpose.msra.mxu0 0
        %1041 = vmatprep.subr.bf16.mxu0 0
        %1042 = vmatpush1.bf16.xpose.msra.mxu0 0
        %1043 = vmatprep.subr.bf16.mxu0 0
        %1044 = vmatpush1.bf16.xpose.msra.mxu0 0
        %1045 = vmatprep.subr.bf16.mxu0 0
        %1046 = vmatpush1.bf16.xpose.msra.mxu0 0
        %1047 = vmatprep.subr.bf16.mxu0 0
        %1048 = vmatpush1.bf16.xpose.msra.mxu0 0
        %1049 = vmatprep.subr.bf16.mxu0 0
        %1050 = vmatpush1.bf16.xpose.msra.mxu0 0
        %1051 = vmatprep.subr.bf16.mxu0 0
        %1052 = vmatpush1.bf16.xpose.msra.mxu0 0
        %1053 = vmatprep.subr.bf16.mxu0 0
        %1054 = vmatpush1.bf16.xpose.msra.mxu0 0
        %1055 = vmatprep.subr.bf16.mxu0 0
        %1056 = vmatpush1.bf16.xpose.msra.mxu0 0
        %1057 = vmatprep.subr.bf16.mxu0 0
        %1058 = vmatpush1.bf16.xpose.msra.mxu0 0
        %1059 = vmatprep.subr.bf16.mxu0 0
        %1060 = vmatpush1.bf16.xpose.msra.mxu0 0
        %1061 = vmatprep.subr.bf16.mxu0 0
        %1062 = vmatpush1.bf16.xpose.msra.mxu0 0
        %1063 = vmatprep.subr.bf16.mxu0 0
        %1064 = vmatpush1.bf16.xpose.msra.mxu0 0
        %1065 = vmatprep.subr.bf16.mxu0 0
        %1066 = vmatpush1.bf16.xpose.msra.mxu0 0
        %1067 = vmatprep.mubr.bf16.mxu0 0
        %1068 = vmatmul.mubr.bf16.gmra.mrb[0].mxu0 %v1030
        %v1069 = vpop.f32.mrb[0].mxu0
        %v1070 = vadd.f32 %v571, %v1069
        %v1071 = vpop.f32.mrb[0].mxu0
        %v1072 = vpop.f32.mrb[0].mxu0
        %v1073 = vadd.f32 %v572, %v1072
        %v1074 = vpop.f32.mrb[0].mxu0
        %1075 = vdwg.mxu0
        %v1077 = vsel %vm981, %v971, 0
        %v1080 = vsel %vm981, %v975, 0
        %1082 = vmatprep.subr.bf16.mxu0 0
        %1083 = vmatpush1.bf16.xpose.msra.mxu0 %v1080
        %1084 = vmatprep.subr.bf16.mxu0 0
        %1085 = vmatpush1.bf16.xpose.msra.mxu0 0
        %1086 = vmatprep.subr.bf16.mxu0 0
        %1087 = vmatpush1.bf16.xpose.msra.mxu0 0
        %1088 = vmatprep.subr.bf16.mxu0 0
        %1089 = vmatpush1.bf16.xpose.msra.mxu0 0
        %1090 = vmatprep.subr.bf16.mxu0 0
        %1091 = vmatpush1.bf16.xpose.msra.mxu0 0
        %1092 = vmatprep.subr.bf16.mxu0 0
        %1093 = vmatpush1.bf16.xpose.msra.mxu0 0
        %1094 = vmatprep.subr.bf16.mxu0 0
        %1095 = vmatpush1.bf16.xpose.msra.mxu0 0
        %1096 = vmatprep.subr.bf16.mxu0 0
        %1097 = vmatpush1.bf16.xpose.msra.mxu0 0
        %1098 = vmatprep.subr.bf16.mxu0 0
        %1099 = vmatpush1.bf16.xpose.msra.mxu0 0
        %1100 = vmatprep.subr.bf16.mxu0 0
        %1101 = vmatpush1.bf16.xpose.msra.mxu0 0
        %1102 = vmatprep.subr.bf16.mxu0 0
        %1103 = vmatpush1.bf16.xpose.msra.mxu0 0
        %1104 = vmatprep.subr.bf16.mxu0 0
        %1105 = vmatpush1.bf16.xpose.msra.mxu0 0
        %1106 = vmatprep.subr.bf16.mxu0 0
        %1107 = vmatpush1.bf16.xpose.msra.mxu0 0
        %1108 = vmatprep.subr.bf16.mxu0 0
        %1109 = vmatpush1.bf16.xpose.msra.mxu0 0
        %1110 = vmatprep.subr.bf16.mxu0 0
        %1111 = vmatpush1.bf16.xpose.msra.mxu0 0
        %1112 = vmatprep.subr.bf16.mxu0 0
        %1113 = vmatpush1.bf16.xpose.msra.mxu0 0
        %1114 = vmatprep.mubr.bf16.mxu0 0
        %1115 = vmatmul.mubr.bf16.gmra.mrb[0].mxu0 %v1077
        %v1116 = vpop.f32.mrb[0].mxu0
        %v1117 = vadd.f32 %v579, %v1116
        %v1118 = vpop.f32.mrb[0].mxu0
        %v1119 = vpop.f32.mrb[0].mxu0
        %v1120 = vadd.f32 %v580, %v1119
        %v1121 = vpop.f32.mrb[0].mxu0
        %1122 = vdwg.mxu0
        %v1124 = vsel %vm981, %v972, 0
        %v1127 = vsel %vm981, %v976, 0
        %1129 = vmatprep.subr.bf16.mxu0 0
        %1130 = vmatpush1.bf16.xpose.msra.mxu0 %v1127
        %1131 = vmatprep.subr.bf16.mxu0 0
        %1132 = vmatpush1.bf16.xpose.msra.mxu0 0
        %1133 = vmatprep.subr.bf16.mxu0 0
        %1134 = vmatpush1.bf16.xpose.msra.mxu0 0
        %1135 = vmatprep.subr.bf16.mxu0 0
        %1136 = vmatpush1.bf16.xpose.msra.mxu0 0
        %1137 = vmatprep.subr.bf16.mxu0 0
        %1138 = vmatpush1.bf16.xpose.msra.mxu0 0
        %1139 = vmatprep.subr.bf16.mxu0 0
        %1140 = vmatpush1.bf16.xpose.msra.mxu0 0
        %1141 = vmatprep.subr.bf16.mxu0 0
        %1142 = vmatpush1.bf16.xpose.msra.mxu0 0
        %1143 = vmatprep.subr.bf16.mxu0 0
        %1144 = vmatpush1.bf16.xpose.msra.mxu0 0
        %1145 = vmatprep.subr.bf16.mxu0 0
        %1146 = vmatpush1.bf16.xpose.msra.mxu0 0
        %1147 = vmatprep.subr.bf16.mxu0 0
        %1148 = vmatpush1.bf16.xpose.msra.mxu0 0
        %1149 = vmatprep.subr.bf16.mxu0 0
        %1150 = vmatpush1.bf16.xpose.msra.mxu0 0
        %1151 = vmatprep.subr.bf16.mxu0 0
        %1152 = vmatpush1.bf16.xpose.msra.mxu0 0
        %1153 = vmatprep.subr.bf16.mxu0 0
        %1154 = vmatpush1.bf16.xpose.msra.mxu0 0
        %1155 = vmatprep.subr.bf16.mxu0 0
        %1156 = vmatpush1.bf16.xpose.msra.mxu0 0
        %1157 = vmatprep.subr.bf16.mxu0 0
        %1158 = vmatpush1.bf16.xpose.msra.mxu0 0
        %1159 = vmatprep.subr.bf16.mxu0 0
        %1160 = vmatpush1.bf16.xpose.msra.mxu0 0
        %1161 = vmatprep.mubr.bf16.mxu0 0
        %1162 = vmatmul.mubr.bf16.gmra.mrb[0].mxu0 %v1124
        %v1163 = vpop.f32.mrb[0].mxu0
        %v1164 = vadd.f32 %v587, %v1163
        %v1165 = vpop.f32.mrb[0].mxu0
        %v1166 = vpop.f32.mrb[0].mxu0
        %v1167 = vadd.f32 %v588, %v1166
        %v1168 = vpop.f32.mrb[0].mxu0
        %1169 = vdwg.mxu0
        %vm1170 = vcmask 130048
        %v1171 = vsel %vm1170, %v1023, -inf
        %1172 = vmax.xlane.f32.xlu0 %v1171
        %v1173 = vpop.xlane.xlu0 %1172
        %v1174 = vsel %vm1170, %v1026, -inf
        %1175 = vmax.xlane.f32.xlu0 %v1174
        %v1176 = vpop.xlane.xlu0 %1175
        %v1177 = vsel %vm1170, %v1070, -inf
        %1178 = vmax.xlane.f32.xlu0 %v1177
        %v1179 = vpop.xlane.xlu0 %1178
        %v1180 = vsel %vm1170, %v1073, -inf
        %1181 = vmax.xlane.f32.xlu0 %v1180
        %v1182 = vpop.xlane.xlu0 %1181
        %v1183 = vsel %vm1170, %v1117, -inf
        %1184 = vmax.xlane.f32.xlu0 %v1183
        %v1185 = vpop.xlane.xlu0 %1184
        %v1186 = vsel %vm1170, %v1120, -inf
        %1187 = vmax.xlane.f32.xlu0 %v1186
        %v1188 = vpop.xlane.xlu0 %1187
        %v1189 = vsel %vm1170, %v1164, -inf
        %1190 = vmax.xlane.f32.xlu0 %v1189
        %v1191 = vpop.xlane.xlu0 %1190
        %v1192 = vsel %vm1170, %v1167, -inf
        %1193 = vmax.xlane.f32.xlu0 %v1192
        %v1194 = vpop.xlane.xlu0 %1193
        %v1195 = vsub.f32 %v1023, %v1173
        %v1196 = vsub.f32 %v1026, %v1176
        %v1197 = vsub.f32 %v1070, %v1179
        %v1198 = vsub.f32 %v1073, %v1182
        %v1199 = vsub.f32 %v1117, %v1185
        %v1200 = vsub.f32 %v1120, %v1188
        %v1201 = vsub.f32 %v1164, %v1191
        %v1202 = vsub.f32 %v1167, %v1194
        %v1203 = vmul.f32 %v1195, 1.442695
        %v1204 = vpow.pop %v1203
        %v1205 = vmul.f32 %v1196, 1.442695
        %v1206 = vpow.pop %v1205
        %v1207 = vmul.f32 %v1197, 1.442695
        %v1208 = vpow.pop %v1207
        %v1209 = vmul.f32 %v1198, 1.442695
        %v1210 = vpow.pop %v1209
        %v1211 = vmul.f32 %v1199, 1.442695
        %v1212 = vpow.pop %v1211
        %v1213 = vmul.f32 %v1200, 1.442695
        %v1214 = vpow.pop %v1213
        %v1215 = vmul.f32 %v1201, 1.442695
        %v1216 = vpow.pop %v1215
        %v1217 = vmul.f32 %v1202, 1.442695
        %v1218 = vpow.pop %v1217
        %v1219 = vsel %vm1170, %v1204, 0.0
        %1220 = vadd.xlane.f32.xlu0 %v1219
        %v1221 = vpop.xlane.xlu0 %1220
        %v1222 = vsel %vm1170, %v1206, 0.0
        %1223 = vadd.xlane.f32.xlu0 %v1222
        %v1224 = vpop.xlane.xlu0 %1223
        %v1225 = vsel %vm1170, %v1208, 0.0
        %1226 = vadd.xlane.f32.xlu0 %v1225
        %v1227 = vpop.xlane.xlu0 %1226
        %v1228 = vsel %vm1170, %v1210, 0.0
        %1229 = vadd.xlane.f32.xlu0 %v1228
        %v1230 = vpop.xlane.xlu0 %1229
        %v1231 = vsel %vm1170, %v1212, 0.0
        %1232 = vadd.xlane.f32.xlu0 %v1231
        %v1233 = vpop.xlane.xlu0 %1232
        %v1234 = vsel %vm1170, %v1214, 0.0
        %1235 = vadd.xlane.f32.xlu0 %v1234
        %v1236 = vpop.xlane.xlu0 %1235
        %v1237 = vsel %vm1170, %v1216, 0.0
        %1238 = vadd.xlane.f32.xlu0 %v1237
        %v1239 = vpop.xlane.xlu0 %1238
        %v1240 = vsel %vm1170, %v1218, 0.0
        %1241 = vadd.xlane.f32.xlu0 %v1240
        %v1242 = vpop.xlane.xlu0 %1241
        %v1243 = vrcp.pop %v1221
        %v1244 = vmul.f32 %v1204, %v1243
        %v1245 = vrcp.pop %v1224
        %v1246 = vmul.f32 %v1206, %v1245
        %v1247 = vrcp.pop %v1227
        %v1248 = vmul.f32 %v1208, %v1247
        %v1249 = vrcp.pop %v1230
        %v1250 = vmul.f32 %v1210, %v1249
        %v1251 = vrcp.pop %v1233
        %v1252 = vmul.f32 %v1212, %v1251
        %v1253 = vrcp.pop %v1236
        %v1254 = vmul.f32 %v1214, %v1253
        %v1255 = vrcp.pop %v1239
        %v1256 = vmul.f32 %v1216, %v1255
        %v1257 = vrcp.pop %v1242
        %v1258 = vmul.f32 %v1218, %v1257
        %v1259 = vpack.c.bf16 %v1246, %v1244
        %v1260 = vpack.c.bf16 %v1250, %v1248
        %v1261 = vpack.c.bf16 %v1254, %v1252
        %v1262 = vpack.c.bf16 %v1258, %v1256
        %v1264 = vsel %vm1170, %v1259, 0
        %1266 = vmatprep.subr.bf16.mxu0 0
        %1267 = vmatpush1.bf16.msra.mxu0 %v977
        %1268 = vmatprep.subr.bf16.mxu0 0
        %1269 = vmatpush1.bf16.msra.mxu0 0
        %1270 = vmatprep.subr.bf16.mxu0 0
        %1271 = vmatpush1.bf16.msra.mxu0 0
        %1272 = vmatprep.subr.bf16.mxu0 0
        %1273 = vmatpush1.bf16.msra.mxu0 0
        %1274 = vmatprep.subr.bf16.mxu0 0
        %1275 = vmatpush1.bf16.msra.mxu0 0
        %1276 = vmatprep.subr.bf16.mxu0 0
        %1277 = vmatpush1.bf16.msra.mxu0 0
        %1278 = vmatprep.subr.bf16.mxu0 0
        %1279 = vmatpush1.bf16.msra.mxu0 0
        %1280 = vmatprep.subr.bf16.mxu0 0
        %1281 = vmatpush1.bf16.msra.mxu0 0
        %1282 = vmatprep.subr.bf16.mxu0 0
        %1283 = vmatpush1.bf16.msra.mxu0 0
        %1284 = vmatprep.subr.bf16.mxu0 0
        %1285 = vmatpush1.bf16.msra.mxu0 0
        %1286 = vmatprep.subr.bf16.mxu0 0
        %1287 = vmatpush1.bf16.msra.mxu0 0
        %1288 = vmatprep.subr.bf16.mxu0 0
        %1289 = vmatpush1.bf16.msra.mxu0 0
        %1290 = vmatprep.subr.bf16.mxu0 0
        %1291 = vmatpush1.bf16.msra.mxu0 0
        %1292 = vmatprep.subr.bf16.mxu0 0
        %1293 = vmatpush1.bf16.msra.mxu0 0
        %1294 = vmatprep.subr.bf16.mxu0 0
        %1295 = vmatpush1.bf16.msra.mxu0 0
        %1296 = vmatprep.subr.bf16.mxu0 0
        %1297 = vmatpush1.bf16.msra.mxu0 0
        %1298 = vmatprep.mubr.bf16.mxu0 0
        %1299 = vmatmul.mubr.bf16.gmra.mrb[0].mxu0 %v1264
        %v1300 = vpop.f32.mrb[0].mxu0
        %v1301 = vadd.f32 0.0, %v1300
        %v1302 = vpop.f32.mrb[0].mxu0
        %v1303 = vpop.f32.mrb[0].mxu0
        %v1304 = vadd.f32 0.0, %v1303
        %v1305 = vpop.f32.mrb[0].mxu0
        %1306 = vdwg.mxu0
        %v1308 = vsel %vm1170, %v1260, 0
        %1310 = vmatprep.subr.bf16.mxu0 0
        %1311 = vmatpush1.bf16.msra.mxu0 %v978
        %1312 = vmatprep.subr.bf16.mxu0 0
        %1313 = vmatpush1.bf16.msra.mxu0 0
        %1314 = vmatprep.subr.bf16.mxu0 0
        %1315 = vmatpush1.bf16.msra.mxu0 0
        %1316 = vmatprep.subr.bf16.mxu0 0
        %1317 = vmatpush1.bf16.msra.mxu0 0
        %1318 = vmatprep.subr.bf16.mxu0 0
        %1319 = vmatpush1.bf16.msra.mxu0 0
        %1320 = vmatprep.subr.bf16.mxu0 0
        %1321 = vmatpush1.bf16.msra.mxu0 0
        %1322 = vmatprep.subr.bf16.mxu0 0
        %1323 = vmatpush1.bf16.msra.mxu0 0
        %1324 = vmatprep.subr.bf16.mxu0 0
        %1325 = vmatpush1.bf16.msra.mxu0 0
        %1326 = vmatprep.subr.bf16.mxu0 0
        %1327 = vmatpush1.bf16.msra.mxu0 0
        %1328 = vmatprep.subr.bf16.mxu0 0
        %1329 = vmatpush1.bf16.msra.mxu0 0
        %1330 = vmatprep.subr.bf16.mxu0 0
        %1331 = vmatpush1.bf16.msra.mxu0 0
        %1332 = vmatprep.subr.bf16.mxu0 0
        %1333 = vmatpush1.bf16.msra.mxu0 0
        %1334 = vmatprep.subr.bf16.mxu0 0
        %1335 = vmatpush1.bf16.msra.mxu0 0
        %1336 = vmatprep.subr.bf16.mxu0 0
        %1337 = vmatpush1.bf16.msra.mxu0 0
        %1338 = vmatprep.subr.bf16.mxu0 0
        %1339 = vmatpush1.bf16.msra.mxu0 0
        %1340 = vmatprep.subr.bf16.mxu0 0
        %1341 = vmatpush1.bf16.msra.mxu0 0
        %1342 = vmatprep.mubr.bf16.mxu0 0
        %1343 = vmatmul.mubr.bf16.gmra.mrb[0].mxu0 %v1308
        %v1344 = vpop.f32.mrb[0].mxu0
        %v1345 = vadd.f32 0.0, %v1344
        %v1346 = vpop.f32.mrb[0].mxu0
        %v1347 = vpop.f32.mrb[0].mxu0
        %v1348 = vadd.f32 0.0, %v1347
        %v1349 = vpop.f32.mrb[0].mxu0
        %1350 = vdwg.mxu0
        %v1352 = vsel %vm1170, %v1261, 0
        %1354 = vmatprep.subr.bf16.mxu0 0
        %1355 = vmatpush1.bf16.msra.mxu0 %v979
        %1356 = vmatprep.subr.bf16.mxu0 0
        %1357 = vmatpush1.bf16.msra.mxu0 0
        %1358 = vmatprep.subr.bf16.mxu0 0
        %1359 = vmatpush1.bf16.msra.mxu0 0
        %1360 = vmatprep.subr.bf16.mxu0 0
        %1361 = vmatpush1.bf16.msra.mxu0 0
        %1362 = vmatprep.subr.bf16.mxu0 0
        %1363 = vmatpush1.bf16.msra.mxu0 0
        %1364 = vmatprep.subr.bf16.mxu0 0
        %1365 = vmatpush1.bf16.msra.mxu0 0
        %1366 = vmatprep.subr.bf16.mxu0 0
        %1367 = vmatpush1.bf16.msra.mxu0 0
        %1368 = vmatprep.subr.bf16.mxu0 0
        %1369 = vmatpush1.bf16.msra.mxu0 0
        %1370 = vmatprep.subr.bf16.mxu0 0
        %1371 = vmatpush1.bf16.msra.mxu0 0
        %1372 = vmatprep.subr.bf16.mxu0 0
        %1373 = vmatpush1.bf16.msra.mxu0 0
        %1374 = vmatprep.subr.bf16.mxu0 0
        %1375 = vmatpush1.bf16.msra.mxu0 0
        %1376 = vmatprep.subr.bf16.mxu0 0
        %1377 = vmatpush1.bf16.msra.mxu0 0
        %1378 = vmatprep.subr.bf16.mxu0 0
        %1379 = vmatpush1.bf16.msra.mxu0 0
        %1380 = vmatprep.subr.bf16.mxu0 0
        %1381 = vmatpush1.bf16.msra.mxu0 0
        %1382 = vmatprep.subr.bf16.mxu0 0
        %1383 = vmatpush1.bf16.msra.mxu0 0
        %1384 = vmatprep.subr.bf16.mxu0 0
        %1385 = vmatpush1.bf16.msra.mxu0 0
        %1386 = vmatprep.mubr.bf16.mxu0 0
        %1387 = vmatmul.mubr.bf16.gmra.mrb[0].mxu0 %v1352
        %v1388 = vpop.f32.mrb[0].mxu0
        %v1389 = vadd.f32 0.0, %v1388
        %v1390 = vpop.f32.mrb[0].mxu0
        %v1391 = vpop.f32.mrb[0].mxu0
        %v1392 = vadd.f32 0.0, %v1391
        %v1393 = vpop.f32.mrb[0].mxu0
        %1394 = vdwg.mxu0
        %v1396 = vsel %vm1170, %v1262, 0
        %1398 = vmatprep.subr.bf16.mxu0 0
        %1399 = vmatpush1.bf16.msra.mxu0 %v980
        %1400 = vmatprep.subr.bf16.mxu0 0
        %1401 = vmatpush1.bf16.msra.mxu0 0
        %1402 = vmatprep.subr.bf16.mxu0 0
        %1403 = vmatpush1.bf16.msra.mxu0 0
        %1404 = vmatprep.subr.bf16.mxu0 0
        %1405 = vmatpush1.bf16.msra.mxu0 0
        %1406 = vmatprep.subr.bf16.mxu0 0
        %1407 = vmatpush1.bf16.msra.mxu0 0
        %1408 = vmatprep.subr.bf16.mxu0 0
        %1409 = vmatpush1.bf16.msra.mxu0 0
        %1410 = vmatprep.subr.bf16.mxu0 0
        %1411 = vmatpush1.bf16.msra.mxu0 0
        %1412 = vmatprep.subr.bf16.mxu0 0
        %1413 = vmatpush1.bf16.msra.mxu0 0
        %1414 = vmatprep.subr.bf16.mxu0 0
        %1415 = vmatpush1.bf16.msra.mxu0 0
        %1416 = vmatprep.subr.bf16.mxu0 0
        %1417 = vmatpush1.bf16.msra.mxu0 0
        %1418 = vmatprep.subr.bf16.mxu0 0
        %1419 = vmatpush1.bf16.msra.mxu0 0
        %1420 = vmatprep.subr.bf16.mxu0 0
        %1421 = vmatpush1.bf16.msra.mxu0 0
        %1422 = vmatprep.subr.bf16.mxu0 0
        %1423 = vmatpush1.bf16.msra.mxu0 0
        %1424 = vmatprep.subr.bf16.mxu0 0
        %1425 = vmatpush1.bf16.msra.mxu0 0
        %1426 = vmatprep.subr.bf16.mxu0 0
        %1427 = vmatpush1.bf16.msra.mxu0 0
        %1428 = vmatprep.subr.bf16.mxu0 0
        %1429 = vmatpush1.bf16.msra.mxu0 0
        %1430 = vmatprep.mubr.bf16.mxu0 0
        %1431 = vmatmul.mubr.bf16.gmra.mrb[0].mxu0 %v1396
        %v1432 = vpop.f32.mrb[0].mxu0
        %v1433 = vadd.f32 0.0, %v1432
        %v1434 = vpop.f32.mrb[0].mxu0
        %v1435 = vpop.f32.mrb[0].mxu0
        %v1436 = vadd.f32 0.0, %v1435
        %v1437 = vpop.f32.mrb[0].mxu0
        %1438 = vdwg.mxu0
        %1440 = vrot.lane.b32.xlu0 %v969, 96
        %v1441 = vpop.permute.xlu0 %1440
        %1443 = vrot.lane.b32.xlu0 %v973, 96
        %v1444 = vpop.permute.xlu0 %1443
        %v1446 = vsel %vm981, %v1441, 0
        %v1449 = vsel %vm981, %v1444, 0
        %1451 = vmatprep.subr.bf16.mxu0 0
        %1452 = vmatpush1.bf16.xpose.msra.mxu0 %v1449
        %1453 = vmatprep.subr.bf16.mxu0 0
        %1454 = vmatpush1.bf16.xpose.msra.mxu0 0
        %1455 = vmatprep.subr.bf16.mxu0 0
        %1456 = vmatpush1.bf16.xpose.msra.mxu0 0
        %1457 = vmatprep.subr.bf16.mxu0 0
        %1458 = vmatpush1.bf16.xpose.msra.mxu0 0
        %1459 = vmatprep.subr.bf16.mxu0 0
        %1460 = vmatpush1.bf16.xpose.msra.mxu0 0
        %1461 = vmatprep.subr.bf16.mxu0 0
        %1462 = vmatpush1.bf16.xpose.msra.mxu0 0
        %1463 = vmatprep.subr.bf16.mxu0 0
        %1464 = vmatpush1.bf16.xpose.msra.mxu0 0
        %1465 = vmatprep.subr.bf16.mxu0 0
        %1466 = vmatpush1.bf16.xpose.msra.mxu0 0
        %1467 = vmatprep.subr.bf16.mxu0 0
        %1468 = vmatpush1.bf16.xpose.msra.mxu0 0
        %1469 = vmatprep.subr.bf16.mxu0 0
        %1470 = vmatpush1.bf16.xpose.msra.mxu0 0
        %1471 = vmatprep.subr.bf16.mxu0 0
        %1472 = vmatpush1.bf16.xpose.msra.mxu0 0
        %1473 = vmatprep.subr.bf16.mxu0 0
        %1474 = vmatpush1.bf16.xpose.msra.mxu0 0
        %1475 = vmatprep.subr.bf16.mxu0 0
        %1476 = vmatpush1.bf16.xpose.msra.mxu0 0
        %1477 = vmatprep.subr.bf16.mxu0 0
        %1478 = vmatpush1.bf16.xpose.msra.mxu0 0
        %1479 = vmatprep.subr.bf16.mxu0 0
        %1480 = vmatpush1.bf16.xpose.msra.mxu0 0
        %1481 = vmatprep.subr.bf16.mxu0 0
        %1482 = vmatpush1.bf16.xpose.msra.mxu0 0
        %1483 = vmatprep.mubr.bf16.mxu0 0
        %1484 = vmatmul.mubr.bf16.gmra.mrb[0].mxu0 %v1446
        %v1485 = vpop.f32.mrb[0].mxu0
        %v1486 = vadd.f32 %v565, %v1485
        %v1487 = vpop.f32.mrb[0].mxu0
        %v1488 = vpop.f32.mrb[0].mxu0
        %v1489 = vadd.f32 %v566, %v1488
        %v1490 = vpop.f32.mrb[0].mxu0
        %1491 = vdwg.mxu0
        %1493 = vrot.lane.b32.xlu0 %v970, 96
        %v1494 = vpop.permute.xlu0 %1493
        %1496 = vrot.lane.b32.xlu0 %v974, 96
        %v1497 = vpop.permute.xlu0 %1496
        %v1499 = vsel %vm981, %v1494, 0
        %v1502 = vsel %vm981, %v1497, 0
        %1504 = vmatprep.subr.bf16.mxu0 0
        %1505 = vmatpush1.bf16.xpose.msra.mxu0 %v1502
        %1506 = vmatprep.subr.bf16.mxu0 0
        %1507 = vmatpush1.bf16.xpose.msra.mxu0 0
        %1508 = vmatprep.subr.bf16.mxu0 0
        %1509 = vmatpush1.bf16.xpose.msra.mxu0 0
        %1510 = vmatprep.subr.bf16.mxu0 0
        %1511 = vmatpush1.bf16.xpose.msra.mxu0 0
        %1512 = vmatprep.subr.bf16.mxu0 0
        %1513 = vmatpush1.bf16.xpose.msra.mxu0 0
        %1514 = vmatprep.subr.bf16.mxu0 0
        %1515 = vmatpush1.bf16.xpose.msra.mxu0 0
        %1516 = vmatprep.subr.bf16.mxu0 0
        %1517 = vmatpush1.bf16.xpose.msra.mxu0 0
        %1518 = vmatprep.subr.bf16.mxu0 0
        %1519 = vmatpush1.bf16.xpose.msra.mxu0 0
        %1520 = vmatprep.subr.bf16.mxu0 0
        %1521 = vmatpush1.bf16.xpose.msra.mxu0 0
        %1522 = vmatprep.subr.bf16.mxu0 0
        %1523 = vmatpush1.bf16.xpose.msra.mxu0 0
        %1524 = vmatprep.subr.bf16.mxu0 0
        %1525 = vmatpush1.bf16.xpose.msra.mxu0 0
        %1526 = vmatprep.subr.bf16.mxu0 0
        %1527 = vmatpush1.bf16.xpose.msra.mxu0 0
        %1528 = vmatprep.subr.bf16.mxu0 0
        %1529 = vmatpush1.bf16.xpose.msra.mxu0 0
        %1530 = vmatprep.subr.bf16.mxu0 0
        %1531 = vmatpush1.bf16.xpose.msra.mxu0 0
        %1532 = vmatprep.subr.bf16.mxu0 0
        %1533 = vmatpush1.bf16.xpose.msra.mxu0 0
        %1534 = vmatprep.subr.bf16.mxu0 0
        %1535 = vmatpush1.bf16.xpose.msra.mxu0 0
        %1536 = vmatprep.mubr.bf16.mxu0 0
        %1537 = vmatmul.mubr.bf16.gmra.mrb[0].mxu0 %v1499
        %v1538 = vpop.f32.mrb[0].mxu0
        %v1539 = vadd.f32 %v573, %v1538
        %v1540 = vpop.f32.mrb[0].mxu0
        %v1541 = vpop.f32.mrb[0].mxu0
        %v1542 = vadd.f32 %v574, %v1541
        %v1543 = vpop.f32.mrb[0].mxu0
        %1544 = vdwg.mxu0
        %1546 = vrot.lane.b32.xlu0 %v971, 96
        %v1547 = vpop.permute.xlu0 %1546
        %1549 = vrot.lane.b32.xlu0 %v975, 96
        %v1550 = vpop.permute.xlu0 %1549
        %v1552 = vsel %vm981, %v1547, 0
        %v1555 = vsel %vm981, %v1550, 0
        %1557 = vmatprep.subr.bf16.mxu0 0
        %1558 = vmatpush1.bf16.xpose.msra.mxu0 %v1555
        %1559 = vmatprep.subr.bf16.mxu0 0
        %1560 = vmatpush1.bf16.xpose.msra.mxu0 0
        %1561 = vmatprep.subr.bf16.mxu0 0
        %1562 = vmatpush1.bf16.xpose.msra.mxu0 0
        %1563 = vmatprep.subr.bf16.mxu0 0
        %1564 = vmatpush1.bf16.xpose.msra.mxu0 0
        %1565 = vmatprep.subr.bf16.mxu0 0
        %1566 = vmatpush1.bf16.xpose.msra.mxu0 0
        %1567 = vmatprep.subr.bf16.mxu0 0
        %1568 = vmatpush1.bf16.xpose.msra.mxu0 0
        %1569 = vmatprep.subr.bf16.mxu0 0
        %1570 = vmatpush1.bf16.xpose.msra.mxu0 0
        %1571 = vmatprep.subr.bf16.mxu0 0
        %1572 = vmatpush1.bf16.xpose.msra.mxu0 0
        %1573 = vmatprep.subr.bf16.mxu0 0
        %1574 = vmatpush1.bf16.xpose.msra.mxu0 0
        %1575 = vmatprep.subr.bf16.mxu0 0
        %1576 = vmatpush1.bf16.xpose.msra.mxu0 0
        %1577 = vmatprep.subr.bf16.mxu0 0
        %1578 = vmatpush1.bf16.xpose.msra.mxu0 0
        %1579 = vmatprep.subr.bf16.mxu0 0
        %1580 = vmatpush1.bf16.xpose.msra.mxu0 0
        %1581 = vmatprep.subr.bf16.mxu0 0
        %1582 = vmatpush1.bf16.xpose.msra.mxu0 0
        %1583 = vmatprep.subr.bf16.mxu0 0
        %1584 = vmatpush1.bf16.xpose.msra.mxu0 0
        %1585 = vmatprep.subr.bf16.mxu0 0
        %1586 = vmatpush1.bf16.xpose.msra.mxu0 0
        %1587 = vmatprep.subr.bf16.mxu0 0
        %1588 = vmatpush1.bf16.xpose.msra.mxu0 0
        %1589 = vmatprep.mubr.bf16.mxu0 0
        %1590 = vmatmul.mubr.bf16.gmra.mrb[0].mxu0 %v1552
        %v1591 = vpop.f32.mrb[0].mxu0
        %v1592 = vadd.f32 %v581, %v1591
        %v1593 = vpop.f32.mrb[0].mxu0
        %v1594 = vpop.f32.mrb[0].mxu0
        %v1595 = vadd.f32 %v582, %v1594
        %v1596 = vpop.f32.mrb[0].mxu0
        %1597 = vdwg.mxu0
        %1599 = vrot.lane.b32.xlu0 %v972, 96
        %v1600 = vpop.permute.xlu0 %1599
        %1602 = vrot.lane.b32.xlu0 %v976, 96
        %v1603 = vpop.permute.xlu0 %1602
        %v1605 = vsel %vm981, %v1600, 0
        %v1608 = vsel %vm981, %v1603, 0
        %1610 = vmatprep.subr.bf16.mxu0 0
        %1611 = vmatpush1.bf16.xpose.msra.mxu0 %v1608
        %1612 = vmatprep.subr.bf16.mxu0 0
        %1613 = vmatpush1.bf16.xpose.msra.mxu0 0
        %1614 = vmatprep.subr.bf16.mxu0 0
        %1615 = vmatpush1.bf16.xpose.msra.mxu0 0
        %1616 = vmatprep.subr.bf16.mxu0 0
        %1617 = vmatpush1.bf16.xpose.msra.mxu0 0
        %1618 = vmatprep.subr.bf16.mxu0 0
        %1619 = vmatpush1.bf16.xpose.msra.mxu0 0
        %1620 = vmatprep.subr.bf16.mxu0 0
        %1621 = vmatpush1.bf16.xpose.msra.mxu0 0
        %1622 = vmatprep.subr.bf16.mxu0 0
        %1623 = vmatpush1.bf16.xpose.msra.mxu0 0
        %1624 = vmatprep.subr.bf16.mxu0 0
        %1625 = vmatpush1.bf16.xpose.msra.mxu0 0
        %1626 = vmatprep.subr.bf16.mxu0 0
        %1627 = vmatpush1.bf16.xpose.msra.mxu0 0
        %1628 = vmatprep.subr.bf16.mxu0 0
        %1629 = vmatpush1.bf16.xpose.msra.mxu0 0
        %1630 = vmatprep.subr.bf16.mxu0 0
        %1631 = vmatpush1.bf16.xpose.msra.mxu0 0
        %1632 = vmatprep.subr.bf16.mxu0 0
        %1633 = vmatpush1.bf16.xpose.msra.mxu0 0
        %1634 = vmatprep.subr.bf16.mxu0 0
        %1635 = vmatpush1.bf16.xpose.msra.mxu0 0
        %1636 = vmatprep.subr.bf16.mxu0 0
        %1637 = vmatpush1.bf16.xpose.msra.mxu0 0
        %1638 = vmatprep.subr.bf16.mxu0 0
        %1639 = vmatpush1.bf16.xpose.msra.mxu0 0
        %1640 = vmatprep.subr.bf16.mxu0 0
        %1641 = vmatpush1.bf16.xpose.msra.mxu0 0
        %1642 = vmatprep.mubr.bf16.mxu0 0
        %1643 = vmatmul.mubr.bf16.gmra.mrb[0].mxu0 %v1605
        %v1644 = vpop.f32.mrb[0].mxu0
        %v1645 = vadd.f32 %v589, %v1644
        %v1646 = vpop.f32.mrb[0].mxu0
        %v1647 = vpop.f32.mrb[0].mxu0
        %v1648 = vadd.f32 %v590, %v1647
        %v1649 = vpop.f32.mrb[0].mxu0
        %1650 = vdwg.mxu0
        %v1651 = vsel %vm1170, %v1486, -inf
        %1652 = vmax.xlane.f32.xlu0 %v1651
        %v1653 = vpop.xlane.xlu0 %1652
        %v1654 = vsel %vm1170, %v1489, -inf
        %1655 = vmax.xlane.f32.xlu0 %v1654
        %v1656 = vpop.xlane.xlu0 %1655
        %v1657 = vsel %vm1170, %v1539, -inf
        %1658 = vmax.xlane.f32.xlu0 %v1657
        %v1659 = vpop.xlane.xlu0 %1658
        %v1660 = vsel %vm1170, %v1542, -inf
        %1661 = vmax.xlane.f32.xlu0 %v1660
        %v1662 = vpop.xlane.xlu0 %1661
        %v1663 = vsel %vm1170, %v1592, -inf
        %1664 = vmax.xlane.f32.xlu0 %v1663
        %v1665 = vpop.xlane.xlu0 %1664
        %v1666 = vsel %vm1170, %v1595, -inf
        %1667 = vmax.xlane.f32.xlu0 %v1666
        %v1668 = vpop.xlane.xlu0 %1667
        %v1669 = vsel %vm1170, %v1645, -inf
        %1670 = vmax.xlane.f32.xlu0 %v1669
        %v1671 = vpop.xlane.xlu0 %1670
        %v1672 = vsel %vm1170, %v1648, -inf
        %1673 = vmax.xlane.f32.xlu0 %v1672
        %v1674 = vpop.xlane.xlu0 %1673
        %v1675 = vsub.f32 %v1486, %v1653
        %v1676 = vsub.f32 %v1489, %v1656
        %v1677 = vsub.f32 %v1539, %v1659
        %v1678 = vsub.f32 %v1542, %v1662
        %v1679 = vsub.f32 %v1592, %v1665
        %v1680 = vsub.f32 %v1595, %v1668
        %v1681 = vsub.f32 %v1645, %v1671
        %v1682 = vsub.f32 %v1648, %v1674
        %v1683 = vmul.f32 %v1675, 1.442695
        %v1684 = vpow.pop %v1683
        %v1685 = vmul.f32 %v1676, 1.442695
        %v1686 = vpow.pop %v1685
        %v1687 = vmul.f32 %v1677, 1.442695
        %v1688 = vpow.pop %v1687
        %v1689 = vmul.f32 %v1678, 1.442695
        %v1690 = vpow.pop %v1689
        %v1691 = vmul.f32 %v1679, 1.442695
        %v1692 = vpow.pop %v1691
        %v1693 = vmul.f32 %v1680, 1.442695
        %v1694 = vpow.pop %v1693
        %v1695 = vmul.f32 %v1681, 1.442695
        %v1696 = vpow.pop %v1695
        %v1697 = vmul.f32 %v1682, 1.442695
        %v1698 = vpow.pop %v1697
        %v1699 = vsel %vm1170, %v1684, 0.0
        %1700 = vadd.xlane.f32.xlu0 %v1699
        %v1701 = vpop.xlane.xlu0 %1700
        %v1702 = vsel %vm1170, %v1686, 0.0
        %1703 = vadd.xlane.f32.xlu0 %v1702
        %v1704 = vpop.xlane.xlu0 %1703
        %v1705 = vsel %vm1170, %v1688, 0.0
        %1706 = vadd.xlane.f32.xlu0 %v1705
        %v1707 = vpop.xlane.xlu0 %1706
        %v1708 = vsel %vm1170, %v1690, 0.0
        %1709 = vadd.xlane.f32.xlu0 %v1708
        %v1710 = vpop.xlane.xlu0 %1709
        %v1711 = vsel %vm1170, %v1692, 0.0
        %1712 = vadd.xlane.f32.xlu0 %v1711
        %v1713 = vpop.xlane.xlu0 %1712
        %v1714 = vsel %vm1170, %v1694, 0.0
        %1715 = vadd.xlane.f32.xlu0 %v1714
        %v1716 = vpop.xlane.xlu0 %1715
        %v1717 = vsel %vm1170, %v1696, 0.0
        %1718 = vadd.xlane.f32.xlu0 %v1717
        %v1719 = vpop.xlane.xlu0 %1718
        %v1720 = vsel %vm1170, %v1698, 0.0
        %1721 = vadd.xlane.f32.xlu0 %v1720
        %v1722 = vpop.xlane.xlu0 %1721
        %v1723 = vrcp.pop %v1701
        %v1724 = vmul.f32 %v1684, %v1723
        %v1725 = vrcp.pop %v1704
        %v1726 = vmul.f32 %v1686, %v1725
        %v1727 = vrcp.pop %v1707
        %v1728 = vmul.f32 %v1688, %v1727
        %v1729 = vrcp.pop %v1710
        %v1730 = vmul.f32 %v1690, %v1729
        %v1731 = vrcp.pop %v1713
        %v1732 = vmul.f32 %v1692, %v1731
        %v1733 = vrcp.pop %v1716
        %v1734 = vmul.f32 %v1694, %v1733
        %v1735 = vrcp.pop %v1719
        %v1736 = vmul.f32 %v1696, %v1735
        %v1737 = vrcp.pop %v1722
        %v1738 = vmul.f32 %v1698, %v1737
        %v1739 = vpack.c.bf16 %v1726, %v1724
        %v1740 = vpack.c.bf16 %v1730, %v1728
        %v1741 = vpack.c.bf16 %v1734, %v1732
        %v1742 = vpack.c.bf16 %v1738, %v1736
        %1744 = vrot.lane.b32.xlu0 %v977, 96
        %v1745 = vpop.permute.xlu0 %1744
        %v1748 = vsel %vm1170, %v1739, 0
        %1750 = vmatprep.subr.bf16.mxu0 0
        %1751 = vmatpush1.bf16.msra.mxu0 %v1745
        %1752 = vmatprep.subr.bf16.mxu0 0
        %1753 = vmatpush1.bf16.msra.mxu0 0
        %1754 = vmatprep.subr.bf16.mxu0 0
        %1755 = vmatpush1.bf16.msra.mxu0 0
        %1756 = vmatprep.subr.bf16.mxu0 0
        %1757 = vmatpush1.bf16.msra.mxu0 0
        %1758 = vmatprep.subr.bf16.mxu0 0
        %1759 = vmatpush1.bf16.msra.mxu0 0
        %1760 = vmatprep.subr.bf16.mxu0 0
        %1761 = vmatpush1.bf16.msra.mxu0 0
        %1762 = vmatprep.subr.bf16.mxu0 0
        %1763 = vmatpush1.bf16.msra.mxu0 0
        %1764 = vmatprep.subr.bf16.mxu0 0
        %1765 = vmatpush1.bf16.msra.mxu0 0
        %1766 = vmatprep.subr.bf16.mxu0 0
        %1767 = vmatpush1.bf16.msra.mxu0 0
        %1768 = vmatprep.subr.bf16.mxu0 0
        %1769 = vmatpush1.bf16.msra.mxu0 0
        %1770 = vmatprep.subr.bf16.mxu0 0
        %1771 = vmatpush1.bf16.msra.mxu0 0
        %1772 = vmatprep.subr.bf16.mxu0 0
        %1773 = vmatpush1.bf16.msra.mxu0 0
        %1774 = vmatprep.subr.bf16.mxu0 0
        %1775 = vmatpush1.bf16.msra.mxu0 0
        %1776 = vmatprep.subr.bf16.mxu0 0
        %1777 = vmatpush1.bf16.msra.mxu0 0
        %1778 = vmatprep.subr.bf16.mxu0 0
        %1779 = vmatpush1.bf16.msra.mxu0 0
        %1780 = vmatprep.subr.bf16.mxu0 0
        %1781 = vmatpush1.bf16.msra.mxu0 0
        %1782 = vmatprep.mubr.bf16.mxu0 0
        %1783 = vmatmul.mubr.bf16.gmra.mrb[0].mxu0 %v1748
        %v1784 = vpop.f32.mrb[0].mxu0
        %v1785 = vadd.f32 0.0, %v1784
        %v1786 = vpop.f32.mrb[0].mxu0
        %v1787 = vpop.f32.mrb[0].mxu0
        %v1788 = vadd.f32 0.0, %v1787
        %v1789 = vpop.f32.mrb[0].mxu0
        %1790 = vdwg.mxu0
        %1792 = vrot.lane.b32.xlu0 %v978, 96
        %v1793 = vpop.permute.xlu0 %1792
        %v1796 = vsel %vm1170, %v1740, 0
        %1798 = vmatprep.subr.bf16.mxu0 0
        %1799 = vmatpush1.bf16.msra.mxu0 %v1793
        %1800 = vmatprep.subr.bf16.mxu0 0
        %1801 = vmatpush1.bf16.msra.mxu0 0
        %1802 = vmatprep.subr.bf16.mxu0 0
        %1803 = vmatpush1.bf16.msra.mxu0 0
        %1804 = vmatprep.subr.bf16.mxu0 0
        %1805 = vmatpush1.bf16.msra.mxu0 0
        %1806 = vmatprep.subr.bf16.mxu0 0
        %1807 = vmatpush1.bf16.msra.mxu0 0
        %1808 = vmatprep.subr.bf16.mxu0 0
        %1809 = vmatpush1.bf16.msra.mxu0 0
        %1810 = vmatprep.subr.bf16.mxu0 0
        %1811 = vmatpush1.bf16.msra.mxu0 0
        %1812 = vmatprep.subr.bf16.mxu0 0
        %1813 = vmatpush1.bf16.msra.mxu0 0
        %1814 = vmatprep.subr.bf16.mxu0 0
        %1815 = vmatpush1.bf16.msra.mxu0 0
        %1816 = vmatprep.subr.bf16.mxu0 0
        %1817 = vmatpush1.bf16.msra.mxu0 0
        %1818 = vmatprep.subr.bf16.mxu0 0
        %1819 = vmatpush1.bf16.msra.mxu0 0
        %1820 = vmatprep.subr.bf16.mxu0 0
        %1821 = vmatpush1.bf16.msra.mxu0 0
        %1822 = vmatprep.subr.bf16.mxu0 0
        %1823 = vmatpush1.bf16.msra.mxu0 0
        %1824 = vmatprep.subr.bf16.mxu0 0
        %1825 = vmatpush1.bf16.msra.mxu0 0
        %1826 = vmatprep.subr.bf16.mxu0 0
        %1827 = vmatpush1.bf16.msra.mxu0 0
        %1828 = vmatprep.subr.bf16.mxu0 0
        %1829 = vmatpush1.bf16.msra.mxu0 0
        %1830 = vmatprep.mubr.bf16.mxu0 0
        %1831 = vmatmul.mubr.bf16.gmra.mrb[0].mxu0 %v1796
        %v1832 = vpop.f32.mrb[0].mxu0
        %v1833 = vadd.f32 0.0, %v1832
        %v1834 = vpop.f32.mrb[0].mxu0
        %v1835 = vpop.f32.mrb[0].mxu0
        %v1836 = vadd.f32 0.0, %v1835
        %v1837 = vpop.f32.mrb[0].mxu0
        %1838 = vdwg.mxu0
        %1840 = vrot.lane.b32.xlu0 %v979, 96
        %v1841 = vpop.permute.xlu0 %1840
        %v1844 = vsel %vm1170, %v1741, 0
        %1846 = vmatprep.subr.bf16.mxu0 0
        %1847 = vmatpush1.bf16.msra.mxu0 %v1841
        %1848 = vmatprep.subr.bf16.mxu0 0
        %1849 = vmatpush1.bf16.msra.mxu0 0
        %1850 = vmatprep.subr.bf16.mxu0 0
        %1851 = vmatpush1.bf16.msra.mxu0 0
        %1852 = vmatprep.subr.bf16.mxu0 0
        %1853 = vmatpush1.bf16.msra.mxu0 0
        %1854 = vmatprep.subr.bf16.mxu0 0
        %1855 = vmatpush1.bf16.msra.mxu0 0
        %1856 = vmatprep.subr.bf16.mxu0 0
        %1857 = vmatpush1.bf16.msra.mxu0 0
        %1858 = vmatprep.subr.bf16.mxu0 0
        %1859 = vmatpush1.bf16.msra.mxu0 0
        %1860 = vmatprep.subr.bf16.mxu0 0
        %1861 = vmatpush1.bf16.msra.mxu0 0
        %1862 = vmatprep.subr.bf16.mxu0 0
        %1863 = vmatpush1.bf16.msra.mxu0 0
        %1864 = vmatprep.subr.bf16.mxu0 0
        %1865 = vmatpush1.bf16.msra.mxu0 0
        %1866 = vmatprep.subr.bf16.mxu0 0
        %1867 = vmatpush1.bf16.msra.mxu0 0
        %1868 = vmatprep.subr.bf16.mxu0 0
        %1869 = vmatpush1.bf16.msra.mxu0 0
        %1870 = vmatprep.subr.bf16.mxu0 0
        %1871 = vmatpush1.bf16.msra.mxu0 0
        %1872 = vmatprep.subr.bf16.mxu0 0
        %1873 = vmatpush1.bf16.msra.mxu0 0
        %1874 = vmatprep.subr.bf16.mxu0 0
        %1875 = vmatpush1.bf16.msra.mxu0 0
        %1876 = vmatprep.subr.bf16.mxu0 0
        %1877 = vmatpush1.bf16.msra.mxu0 0
        %1878 = vmatprep.mubr.bf16.mxu0 0
        %1879 = vmatmul.mubr.bf16.gmra.mrb[0].mxu0 %v1844
        %v1880 = vpop.f32.mrb[0].mxu0
        %v1881 = vadd.f32 0.0, %v1880
        %v1882 = vpop.f32.mrb[0].mxu0
        %v1883 = vpop.f32.mrb[0].mxu0
        %v1884 = vadd.f32 0.0, %v1883
        %v1885 = vpop.f32.mrb[0].mxu0
        %1886 = vdwg.mxu0
        %1888 = vrot.lane.b32.xlu0 %v980, 96
        %v1889 = vpop.permute.xlu0 %1888
        %v1892 = vsel %vm1170, %v1742, 0
        %1894 = vmatprep.subr.bf16.mxu0 0
        %1895 = vmatpush1.bf16.msra.mxu0 %v1889
        %1896 = vmatprep.subr.bf16.mxu0 0
        %1897 = vmatpush1.bf16.msra.mxu0 0
        %1898 = vmatprep.subr.bf16.mxu0 0
        %1899 = vmatpush1.bf16.msra.mxu0 0
        %1900 = vmatprep.subr.bf16.mxu0 0
        %1901 = vmatpush1.bf16.msra.mxu0 0
        %1902 = vmatprep.subr.bf16.mxu0 0
        %1903 = vmatpush1.bf16.msra.mxu0 0
        %1904 = vmatprep.subr.bf16.mxu0 0
        %1905 = vmatpush1.bf16.msra.mxu0 0
        %1906 = vmatprep.subr.bf16.mxu0 0
        %1907 = vmatpush1.bf16.msra.mxu0 0
        %1908 = vmatprep.subr.bf16.mxu0 0
        %1909 = vmatpush1.bf16.msra.mxu0 0
        %1910 = vmatprep.subr.bf16.mxu0 0
        %1911 = vmatpush1.bf16.msra.mxu0 0
        %1912 = vmatprep.subr.bf16.mxu0 0
        %1913 = vmatpush1.bf16.msra.mxu0 0
        %1914 = vmatprep.subr.bf16.mxu0 0
        %1915 = vmatpush1.bf16.msra.mxu0 0
        %1916 = vmatprep.subr.bf16.mxu0 0
        %1917 = vmatpush1.bf16.msra.mxu0 0
        %1918 = vmatprep.subr.bf16.mxu0 0
        %1919 = vmatpush1.bf16.msra.mxu0 0
        %1920 = vmatprep.subr.bf16.mxu0 0
        %1921 = vmatpush1.bf16.msra.mxu0 0
        %1922 = vmatprep.subr.bf16.mxu0 0
        %1923 = vmatpush1.bf16.msra.mxu0 0
        %1924 = vmatprep.subr.bf16.mxu0 0
        %1925 = vmatpush1.bf16.msra.mxu0 0
        %1926 = vmatprep.mubr.bf16.mxu0 0
        %1927 = vmatmul.mubr.bf16.gmra.mrb[0].mxu0 %v1892
        %v1928 = vpop.f32.mrb[0].mxu0
        %v1929 = vadd.f32 0.0, %v1928
        %v1930 = vpop.f32.mrb[0].mxu0
        %v1931 = vpop.f32.mrb[0].mxu0
        %v1932 = vadd.f32 0.0, %v1931
        %v1933 = vpop.f32.mrb[0].mxu0
        %1934 = vdwg.mxu0
        %1935 = vrot.lane.b32.xlu0 %v969, 64
        %v1936 = vpop.permute.xlu0 %1935
        %1937 = vrot.lane.b32.xlu0 %v973, 64
        %v1938 = vpop.permute.xlu0 %1937
        %v1940 = vsel %vm981, %v1936, 0
        %v1943 = vsel %vm981, %v1938, 0
        %1945 = vmatprep.subr.bf16.mxu0 0
        %1946 = vmatpush1.bf16.xpose.msra.mxu0 %v1943
        %1947 = vmatprep.subr.bf16.mxu0 0
        %1948 = vmatpush1.bf16.xpose.msra.mxu0 0
        %1949 = vmatprep.subr.bf16.mxu0 0
        %1950 = vmatpush1.bf16.xpose.msra.mxu0 0
        %1951 = vmatprep.subr.bf16.mxu0 0
        %1952 = vmatpush1.bf16.xpose.msra.mxu0 0
        %1953 = vmatprep.subr.bf16.mxu0 0
        %1954 = vmatpush1.bf16.xpose.msra.mxu0 0
        %1955 = vmatprep.subr.bf16.mxu0 0
        %1956 = vmatpush1.bf16.xpose.msra.mxu0 0
        %1957 = vmatprep.subr.bf16.mxu0 0
        %1958 = vmatpush1.bf16.xpose.msra.mxu0 0
        %1959 = vmatprep.subr.bf16.mxu0 0
        %1960 = vmatpush1.bf16.xpose.msra.mxu0 0
        %1961 = vmatprep.subr.bf16.mxu0 0
        %1962 = vmatpush1.bf16.xpose.msra.mxu0 0
        %1963 = vmatprep.subr.bf16.mxu0 0
        %1964 = vmatpush1.bf16.xpose.msra.mxu0 0
        %1965 = vmatprep.subr.bf16.mxu0 0
        %1966 = vmatpush1.bf16.xpose.msra.mxu0 0
        %1967 = vmatprep.subr.bf16.mxu0 0
        %1968 = vmatpush1.bf16.xpose.msra.mxu0 0
        %1969 = vmatprep.subr.bf16.mxu0 0
        %1970 = vmatpush1.bf16.xpose.msra.mxu0 0
        %1971 = vmatprep.subr.bf16.mxu0 0
        %1972 = vmatpush1.bf16.xpose.msra.mxu0 0
        %1973 = vmatprep.subr.bf16.mxu0 0
        %1974 = vmatpush1.bf16.xpose.msra.mxu0 0
        %1975 = vmatprep.subr.bf16.mxu0 0
        %1976 = vmatpush1.bf16.xpose.msra.mxu0 0
        %1977 = vmatprep.mubr.bf16.mxu0 0
        %1978 = vmatmul.mubr.bf16.gmra.mrb[0].mxu0 %v1940
        %v1979 = vpop.f32.mrb[0].mxu0
        %v1980 = vadd.f32 %v567, %v1979
        %v1981 = vpop.f32.mrb[0].mxu0
        %v1982 = vpop.f32.mrb[0].mxu0
        %v1983 = vadd.f32 %v568, %v1982
        %v1984 = vpop.f32.mrb[0].mxu0
        %1985 = vdwg.mxu0
        %1986 = vrot.lane.b32.xlu0 %v970, 64
        %v1987 = vpop.permute.xlu0 %1986
        %1988 = vrot.lane.b32.xlu0 %v974, 64
        %v1989 = vpop.permute.xlu0 %1988
        %v1991 = vsel %vm981, %v1987, 0
        %v1994 = vsel %vm981, %v1989, 0
        %1996 = vmatprep.subr.bf16.mxu0 0
        %1997 = vmatpush1.bf16.xpose.msra.mxu0 %v1994
        %1998 = vmatprep.subr.bf16.mxu0 0
        %1999 = vmatpush1.bf16.xpose.msra.mxu0 0
        %2000 = vmatprep.subr.bf16.mxu0 0
        %2001 = vmatpush1.bf16.xpose.msra.mxu0 0
        %2002 = vmatprep.subr.bf16.mxu0 0
        %2003 = vmatpush1.bf16.xpose.msra.mxu0 0
        %2004 = vmatprep.subr.bf16.mxu0 0
        %2005 = vmatpush1.bf16.xpose.msra.mxu0 0
        %2006 = vmatprep.subr.bf16.mxu0 0
        %2007 = vmatpush1.bf16.xpose.msra.mxu0 0
        %2008 = vmatprep.subr.bf16.mxu0 0
        %2009 = vmatpush1.bf16.xpose.msra.mxu0 0
        %2010 = vmatprep.subr.bf16.mxu0 0
        %2011 = vmatpush1.bf16.xpose.msra.mxu0 0
        %2012 = vmatprep.subr.bf16.mxu0 0
        %2013 = vmatpush1.bf16.xpose.msra.mxu0 0
        %2014 = vmatprep.subr.bf16.mxu0 0
        %2015 = vmatpush1.bf16.xpose.msra.mxu0 0
        %2016 = vmatprep.subr.bf16.mxu0 0
        %2017 = vmatpush1.bf16.xpose.msra.mxu0 0
        %2018 = vmatprep.subr.bf16.mxu0 0
        %2019 = vmatpush1.bf16.xpose.msra.mxu0 0
        %2020 = vmatprep.subr.bf16.mxu0 0
        %2021 = vmatpush1.bf16.xpose.msra.mxu0 0
        %2022 = vmatprep.subr.bf16.mxu0 0
        %2023 = vmatpush1.bf16.xpose.msra.mxu0 0
        %2024 = vmatprep.subr.bf16.mxu0 0
        %2025 = vmatpush1.bf16.xpose.msra.mxu0 0
        %2026 = vmatprep.subr.bf16.mxu0 0
        %2027 = vmatpush1.bf16.xpose.msra.mxu0 0
        %2028 = vmatprep.mubr.bf16.mxu0 0
        %2029 = vmatmul.mubr.bf16.gmra.mrb[0].mxu0 %v1991
        %v2030 = vpop.f32.mrb[0].mxu0
        %v2031 = vadd.f32 %v575, %v2030
        %v2032 = vpop.f32.mrb[0].mxu0
        %v2033 = vpop.f32.mrb[0].mxu0
        %v2034 = vadd.f32 %v576, %v2033
        %v2035 = vpop.f32.mrb[0].mxu0
        %2036 = vdwg.mxu0
        %2037 = vrot.lane.b32.xlu0 %v971, 64
        %v2038 = vpop.permute.xlu0 %2037
        %2039 = vrot.lane.b32.xlu0 %v975, 64
        %v2040 = vpop.permute.xlu0 %2039
        %v2042 = vsel %vm981, %v2038, 0
        %v2045 = vsel %vm981, %v2040, 0
        %2047 = vmatprep.subr.bf16.mxu0 0
        %2048 = vmatpush1.bf16.xpose.msra.mxu0 %v2045
        %2049 = vmatprep.subr.bf16.mxu0 0
        %2050 = vmatpush1.bf16.xpose.msra.mxu0 0
        %2051 = vmatprep.subr.bf16.mxu0 0
        %2052 = vmatpush1.bf16.xpose.msra.mxu0 0
        %2053 = vmatprep.subr.bf16.mxu0 0
        %2054 = vmatpush1.bf16.xpose.msra.mxu0 0
        %2055 = vmatprep.subr.bf16.mxu0 0
        %2056 = vmatpush1.bf16.xpose.msra.mxu0 0
        %2057 = vmatprep.subr.bf16.mxu0 0
        %2058 = vmatpush1.bf16.xpose.msra.mxu0 0
        %2059 = vmatprep.subr.bf16.mxu0 0
        %2060 = vmatpush1.bf16.xpose.msra.mxu0 0
        %2061 = vmatprep.subr.bf16.mxu0 0
        %2062 = vmatpush1.bf16.xpose.msra.mxu0 0
        %2063 = vmatprep.subr.bf16.mxu0 0
        %2064 = vmatpush1.bf16.xpose.msra.mxu0 0
        %2065 = vmatprep.subr.bf16.mxu0 0
        %2066 = vmatpush1.bf16.xpose.msra.mxu0 0
        %2067 = vmatprep.subr.bf16.mxu0 0
        %2068 = vmatpush1.bf16.xpose.msra.mxu0 0
        %2069 = vmatprep.subr.bf16.mxu0 0
        %2070 = vmatpush1.bf16.xpose.msra.mxu0 0
        %2071 = vmatprep.subr.bf16.mxu0 0
        %2072 = vmatpush1.bf16.xpose.msra.mxu0 0
        %2073 = vmatprep.subr.bf16.mxu0 0
        %2074 = vmatpush1.bf16.xpose.msra.mxu0 0
        %2075 = vmatprep.subr.bf16.mxu0 0
        %2076 = vmatpush1.bf16.xpose.msra.mxu0 0
        %2077 = vmatprep.subr.bf16.mxu0 0
        %2078 = vmatpush1.bf16.xpose.msra.mxu0 0
        %2079 = vmatprep.mubr.bf16.mxu0 0
        %2080 = vmatmul.mubr.bf16.gmra.mrb[0].mxu0 %v2042
        %v2081 = vpop.f32.mrb[0].mxu0
        %v2082 = vadd.f32 %v583, %v2081
        %v2083 = vpop.f32.mrb[0].mxu0
        %v2084 = vpop.f32.mrb[0].mxu0
        %v2085 = vadd.f32 %v584, %v2084
        %v2086 = vpop.f32.mrb[0].mxu0
        %2087 = vdwg.mxu0
        %2088 = vrot.lane.b32.xlu0 %v972, 64
        %v2089 = vpop.permute.xlu0 %2088
        %2090 = vrot.lane.b32.xlu0 %v976, 64
        %v2091 = vpop.permute.xlu0 %2090
        %v2093 = vsel %vm981, %v2089, 0
        %v2096 = vsel %vm981, %v2091, 0
        %2098 = vmatprep.subr.bf16.mxu0 0
        %2099 = vmatpush1.bf16.xpose.msra.mxu0 %v2096
        %2100 = vmatprep.subr.bf16.mxu0 0
        %2101 = vmatpush1.bf16.xpose.msra.mxu0 0
        %2102 = vmatprep.subr.bf16.mxu0 0
        %2103 = vmatpush1.bf16.xpose.msra.mxu0 0
        %2104 = vmatprep.subr.bf16.mxu0 0
        %2105 = vmatpush1.bf16.xpose.msra.mxu0 0
        %2106 = vmatprep.subr.bf16.mxu0 0
        %2107 = vmatpush1.bf16.xpose.msra.mxu0 0
        %2108 = vmatprep.subr.bf16.mxu0 0
        %2109 = vmatpush1.bf16.xpose.msra.mxu0 0
        %2110 = vmatprep.subr.bf16.mxu0 0
        %2111 = vmatpush1.bf16.xpose.msra.mxu0 0
        %2112 = vmatprep.subr.bf16.mxu0 0
        %2113 = vmatpush1.bf16.xpose.msra.mxu0 0
        %2114 = vmatprep.subr.bf16.mxu0 0
        %2115 = vmatpush1.bf16.xpose.msra.mxu0 0
        %2116 = vmatprep.subr.bf16.mxu0 0
        %2117 = vmatpush1.bf16.xpose.msra.mxu0 0
        %2118 = vmatprep.subr.bf16.mxu0 0
        %2119 = vmatpush1.bf16.xpose.msra.mxu0 0
        %2120 = vmatprep.subr.bf16.mxu0 0
        %2121 = vmatpush1.bf16.xpose.msra.mxu0 0
        %2122 = vmatprep.subr.bf16.mxu0 0
        %2123 = vmatpush1.bf16.xpose.msra.mxu0 0
        %2124 = vmatprep.subr.bf16.mxu0 0
        %2125 = vmatpush1.bf16.xpose.msra.mxu0 0
        %2126 = vmatprep.subr.bf16.mxu0 0
        %2127 = vmatpush1.bf16.xpose.msra.mxu0 0
        %2128 = vmatprep.subr.bf16.mxu0 0
        %2129 = vmatpush1.bf16.xpose.msra.mxu0 0
        %2130 = vmatprep.mubr.bf16.mxu0 0
        %2131 = vmatmul.mubr.bf16.gmra.mrb[0].mxu0 %v2093
        %v2132 = vpop.f32.mrb[0].mxu0
        %v2133 = vadd.f32 %v591, %v2132
        %v2134 = vpop.f32.mrb[0].mxu0
        %v2135 = vpop.f32.mrb[0].mxu0
        %v2136 = vadd.f32 %v592, %v2135
        %v2137 = vpop.f32.mrb[0].mxu0
        %2138 = vdwg.mxu0
        %v2139 = vsel %vm1170, %v1980, -inf
        %2140 = vmax.xlane.f32.xlu0 %v2139
        %v2141 = vpop.xlane.xlu0 %2140
        %v2142 = vsel %vm1170, %v1983, -inf
        %2143 = vmax.xlane.f32.xlu0 %v2142
        %v2144 = vpop.xlane.xlu0 %2143
        %v2145 = vsel %vm1170, %v2031, -inf
        %2146 = vmax.xlane.f32.xlu0 %v2145
        %v2147 = vpop.xlane.xlu0 %2146
        %v2148 = vsel %vm1170, %v2034, -inf
        %2149 = vmax.xlane.f32.xlu0 %v2148
        %v2150 = vpop.xlane.xlu0 %2149
        %v2151 = vsel %vm1170, %v2082, -inf
        %2152 = vmax.xlane.f32.xlu0 %v2151
        %v2153 = vpop.xlane.xlu0 %2152
        %v2154 = vsel %vm1170, %v2085, -inf
        %2155 = vmax.xlane.f32.xlu0 %v2154
        %v2156 = vpop.xlane.xlu0 %2155
        %v2157 = vsel %vm1170, %v2133, -inf
        %2158 = vmax.xlane.f32.xlu0 %v2157
        %v2159 = vpop.xlane.xlu0 %2158
        %v2160 = vsel %vm1170, %v2136, -inf
        %2161 = vmax.xlane.f32.xlu0 %v2160
        %v2162 = vpop.xlane.xlu0 %2161
        %v2163 = vsub.f32 %v1980, %v2141
        %v2164 = vsub.f32 %v1983, %v2144
        %v2165 = vsub.f32 %v2031, %v2147
        %v2166 = vsub.f32 %v2034, %v2150
        %v2167 = vsub.f32 %v2082, %v2153
        %v2168 = vsub.f32 %v2085, %v2156
        %v2169 = vsub.f32 %v2133, %v2159
        %v2170 = vsub.f32 %v2136, %v2162
        %v2171 = vmul.f32 %v2163, 1.442695
        %v2172 = vpow.pop %v2171
        %v2173 = vmul.f32 %v2164, 1.442695
        %v2174 = vpow.pop %v2173
        %v2175 = vmul.f32 %v2165, 1.442695
        %v2176 = vpow.pop %v2175
        %v2177 = vmul.f32 %v2166, 1.442695
        %v2178 = vpow.pop %v2177
        %v2179 = vmul.f32 %v2167, 1.442695
        %v2180 = vpow.pop %v2179
        %v2181 = vmul.f32 %v2168, 1.442695
        %v2182 = vpow.pop %v2181
        %v2183 = vmul.f32 %v2169, 1.442695
        %v2184 = vpow.pop %v2183
        %v2185 = vmul.f32 %v2170, 1.442695
        %v2186 = vpow.pop %v2185
        %v2187 = vsel %vm1170, %v2172, 0.0
        %2188 = vadd.xlane.f32.xlu0 %v2187
        %v2189 = vpop.xlane.xlu0 %2188
        %v2190 = vsel %vm1170, %v2174, 0.0
        %2191 = vadd.xlane.f32.xlu0 %v2190
        %v2192 = vpop.xlane.xlu0 %2191
        %v2193 = vsel %vm1170, %v2176, 0.0
        %2194 = vadd.xlane.f32.xlu0 %v2193
        %v2195 = vpop.xlane.xlu0 %2194
        %v2196 = vsel %vm1170, %v2178, 0.0
        %2197 = vadd.xlane.f32.xlu0 %v2196
        %v2198 = vpop.xlane.xlu0 %2197
        %v2199 = vsel %vm1170, %v2180, 0.0
        %2200 = vadd.xlane.f32.xlu0 %v2199
        %v2201 = vpop.xlane.xlu0 %2200
        %v2202 = vsel %vm1170, %v2182, 0.0
        %2203 = vadd.xlane.f32.xlu0 %v2202
        %v2204 = vpop.xlane.xlu0 %2203
        %v2205 = vsel %vm1170, %v2184, 0.0
        %2206 = vadd.xlane.f32.xlu0 %v2205
        %v2207 = vpop.xlane.xlu0 %2206
        %v2208 = vsel %vm1170, %v2186, 0.0
        %2209 = vadd.xlane.f32.xlu0 %v2208
        %v2210 = vpop.xlane.xlu0 %2209
        %v2211 = vrcp.pop %v2189
        %v2212 = vmul.f32 %v2172, %v2211
        %v2213 = vrcp.pop %v2192
        %v2214 = vmul.f32 %v2174, %v2213
        %v2215 = vrcp.pop %v2195
        %v2216 = vmul.f32 %v2176, %v2215
        %v2217 = vrcp.pop %v2198
        %v2218 = vmul.f32 %v2178, %v2217
        %v2219 = vrcp.pop %v2201
        %v2220 = vmul.f32 %v2180, %v2219
        %v2221 = vrcp.pop %v2204
        %v2222 = vmul.f32 %v2182, %v2221
        %v2223 = vrcp.pop %v2207
        %v2224 = vmul.f32 %v2184, %v2223
        %v2225 = vrcp.pop %v2210
        %v2226 = vmul.f32 %v2186, %v2225
        %v2227 = vpack.c.bf16 %v2214, %v2212
        %v2228 = vpack.c.bf16 %v2218, %v2216
        %v2229 = vpack.c.bf16 %v2222, %v2220
        %v2230 = vpack.c.bf16 %v2226, %v2224
        %2231 = vrot.lane.b32.xlu0 %v977, 64
        %v2232 = vpop.permute.xlu0 %2231
        %v2235 = vsel %vm1170, %v2227, 0
        %2237 = vmatprep.subr.bf16.mxu0 0
        %2238 = vmatpush1.bf16.msra.mxu0 %v2232
        %2239 = vmatprep.subr.bf16.mxu0 0
        %2240 = vmatpush1.bf16.msra.mxu0 0
        %2241 = vmatprep.subr.bf16.mxu0 0
        %2242 = vmatpush1.bf16.msra.mxu0 0
        %2243 = vmatprep.subr.bf16.mxu0 0
        %2244 = vmatpush1.bf16.msra.mxu0 0
        %2245 = vmatprep.subr.bf16.mxu0 0
        %2246 = vmatpush1.bf16.msra.mxu0 0
        %2247 = vmatprep.subr.bf16.mxu0 0
        %2248 = vmatpush1.bf16.msra.mxu0 0
        %2249 = vmatprep.subr.bf16.mxu0 0
        %2250 = vmatpush1.bf16.msra.mxu0 0
        %2251 = vmatprep.subr.bf16.mxu0 0
        %2252 = vmatpush1.bf16.msra.mxu0 0
        %2253 = vmatprep.subr.bf16.mxu0 0
        %2254 = vmatpush1.bf16.msra.mxu0 0
        %2255 = vmatprep.subr.bf16.mxu0 0
        %2256 = vmatpush1.bf16.msra.mxu0 0
        %2257 = vmatprep.subr.bf16.mxu0 0
        %2258 = vmatpush1.bf16.msra.mxu0 0
        %2259 = vmatprep.subr.bf16.mxu0 0
        %2260 = vmatpush1.bf16.msra.mxu0 0
        %2261 = vmatprep.subr.bf16.mxu0 0
        %2262 = vmatpush1.bf16.msra.mxu0 0
        %2263 = vmatprep.subr.bf16.mxu0 0
        %2264 = vmatpush1.bf16.msra.mxu0 0
        %2265 = vmatprep.subr.bf16.mxu0 0
        %2266 = vmatpush1.bf16.msra.mxu0 0
        %2267 = vmatprep.subr.bf16.mxu0 0
        %2268 = vmatpush1.bf16.msra.mxu0 0
        %2269 = vmatprep.mubr.bf16.mxu0 0
        %2270 = vmatmul.mubr.bf16.gmra.mrb[0].mxu0 %v2235
        %v2271 = vpop.f32.mrb[0].mxu0
        %v2272 = vadd.f32 0.0, %v2271
        %v2273 = vpop.f32.mrb[0].mxu0
        %v2274 = vpop.f32.mrb[0].mxu0
        %v2275 = vadd.f32 0.0, %v2274
        %v2276 = vpop.f32.mrb[0].mxu0
        %2277 = vdwg.mxu0
        %2278 = vrot.lane.b32.xlu0 %v978, 64
        %v2279 = vpop.permute.xlu0 %2278
        %v2282 = vsel %vm1170, %v2228, 0
        %2284 = vmatprep.subr.bf16.mxu0 0
        %2285 = vmatpush1.bf16.msra.mxu0 %v2279
        %2286 = vmatprep.subr.bf16.mxu0 0
        %2287 = vmatpush1.bf16.msra.mxu0 0
        %2288 = vmatprep.subr.bf16.mxu0 0
        %2289 = vmatpush1.bf16.msra.mxu0 0
        %2290 = vmatprep.subr.bf16.mxu0 0
        %2291 = vmatpush1.bf16.msra.mxu0 0
        %2292 = vmatprep.subr.bf16.mxu0 0
        %2293 = vmatpush1.bf16.msra.mxu0 0
        %2294 = vmatprep.subr.bf16.mxu0 0
        %2295 = vmatpush1.bf16.msra.mxu0 0
        %2296 = vmatprep.subr.bf16.mxu0 0
        %2297 = vmatpush1.bf16.msra.mxu0 0
        %2298 = vmatprep.subr.bf16.mxu0 0
        %2299 = vmatpush1.bf16.msra.mxu0 0
        %2300 = vmatprep.subr.bf16.mxu0 0
        %2301 = vmatpush1.bf16.msra.mxu0 0
        %2302 = vmatprep.subr.bf16.mxu0 0
        %2303 = vmatpush1.bf16.msra.mxu0 0
        %2304 = vmatprep.subr.bf16.mxu0 0
        %2305 = vmatpush1.bf16.msra.mxu0 0
        %2306 = vmatprep.subr.bf16.mxu0 0
        %2307 = vmatpush1.bf16.msra.mxu0 0
        %2308 = vmatprep.subr.bf16.mxu0 0
        %2309 = vmatpush1.bf16.msra.mxu0 0
        %2310 = vmatprep.subr.bf16.mxu0 0
        %2311 = vmatpush1.bf16.msra.mxu0 0
        %2312 = vmatprep.subr.bf16.mxu0 0
        %2313 = vmatpush1.bf16.msra.mxu0 0
        %2314 = vmatprep.subr.bf16.mxu0 0
        %2315 = vmatpush1.bf16.msra.mxu0 0
        %2316 = vmatprep.mubr.bf16.mxu0 0
        %2317 = vmatmul.mubr.bf16.gmra.mrb[0].mxu0 %v2282
        %v2318 = vpop.f32.mrb[0].mxu0
        %v2319 = vadd.f32 0.0, %v2318
        %v2320 = vpop.f32.mrb[0].mxu0
        %v2321 = vpop.f32.mrb[0].mxu0
        %v2322 = vadd.f32 0.0, %v2321
        %v2323 = vpop.f32.mrb[0].mxu0
        %2324 = vdwg.mxu0
        %2325 = vrot.lane.b32.xlu0 %v979, 64
        %v2326 = vpop.permute.xlu0 %2325
        %v2329 = vsel %vm1170, %v2229, 0
        %2331 = vmatprep.subr.bf16.mxu0 0
        %2332 = vmatpush1.bf16.msra.mxu0 %v2326
        %2333 = vmatprep.subr.bf16.mxu0 0
        %2334 = vmatpush1.bf16.msra.mxu0 0
        %2335 = vmatprep.subr.bf16.mxu0 0
        %2336 = vmatpush1.bf16.msra.mxu0 0
        %2337 = vmatprep.subr.bf16.mxu0 0
        %2338 = vmatpush1.bf16.msra.mxu0 0
        %2339 = vmatprep.subr.bf16.mxu0 0
        %2340 = vmatpush1.bf16.msra.mxu0 0
        %2341 = vmatprep.subr.bf16.mxu0 0
        %2342 = vmatpush1.bf16.msra.mxu0 0
        %2343 = vmatprep.subr.bf16.mxu0 0
        %2344 = vmatpush1.bf16.msra.mxu0 0
        %2345 = vmatprep.subr.bf16.mxu0 0
        %2346 = vmatpush1.bf16.msra.mxu0 0
        %2347 = vmatprep.subr.bf16.mxu0 0
        %2348 = vmatpush1.bf16.msra.mxu0 0
        %2349 = vmatprep.subr.bf16.mxu0 0
        %2350 = vmatpush1.bf16.msra.mxu0 0
        %2351 = vmatprep.subr.bf16.mxu0 0
        %2352 = vmatpush1.bf16.msra.mxu0 0
        %2353 = vmatprep.subr.bf16.mxu0 0
        %2354 = vmatpush1.bf16.msra.mxu0 0
        %2355 = vmatprep.subr.bf16.mxu0 0
        %2356 = vmatpush1.bf16.msra.mxu0 0
        %2357 = vmatprep.subr.bf16.mxu0 0
        %2358 = vmatpush1.bf16.msra.mxu0 0
        %2359 = vmatprep.subr.bf16.mxu0 0
        %2360 = vmatpush1.bf16.msra.mxu0 0
        %2361 = vmatprep.subr.bf16.mxu0 0
        %2362 = vmatpush1.bf16.msra.mxu0 0
        %2363 = vmatprep.mubr.bf16.mxu0 0
        %2364 = vmatmul.mubr.bf16.gmra.mrb[0].mxu0 %v2329
        %v2365 = vpop.f32.mrb[0].mxu0
        %v2366 = vadd.f32 0.0, %v2365
        %v2367 = vpop.f32.mrb[0].mxu0
        %v2368 = vpop.f32.mrb[0].mxu0
        %v2369 = vadd.f32 0.0, %v2368
        %v2370 = vpop.f32.mrb[0].mxu0
        %2371 = vdwg.mxu0
        %2372 = vrot.lane.b32.xlu0 %v980, 64
        %v2373 = vpop.permute.xlu0 %2372
        %v2376 = vsel %vm1170, %v2230, 0
        %2378 = vmatprep.subr.bf16.mxu0 0
        %2379 = vmatpush1.bf16.msra.mxu0 %v2373
        %2380 = vmatprep.subr.bf16.mxu0 0
        %2381 = vmatpush1.bf16.msra.mxu0 0
        %2382 = vmatprep.subr.bf16.mxu0 0
        %2383 = vmatpush1.bf16.msra.mxu0 0
        %2384 = vmatprep.subr.bf16.mxu0 0
        %2385 = vmatpush1.bf16.msra.mxu0 0
        %2386 = vmatprep.subr.bf16.mxu0 0
        %2387 = vmatpush1.bf16.msra.mxu0 0
        %2388 = vmatprep.subr.bf16.mxu0 0
        %2389 = vmatpush1.bf16.msra.mxu0 0
        %2390 = vmatprep.subr.bf16.mxu0 0
        %2391 = vmatpush1.bf16.msra.mxu0 0
        %2392 = vmatprep.subr.bf16.mxu0 0
        %2393 = vmatpush1.bf16.msra.mxu0 0
        %2394 = vmatprep.subr.bf16.mxu0 0
        %2395 = vmatpush1.bf16.msra.mxu0 0
        %2396 = vmatprep.subr.bf16.mxu0 0
        %2397 = vmatpush1.bf16.msra.mxu0 0
        %2398 = vmatprep.subr.bf16.mxu0 0
        %2399 = vmatpush1.bf16.msra.mxu0 0
        %2400 = vmatprep.subr.bf16.mxu0 0
        %2401 = vmatpush1.bf16.msra.mxu0 0
        %2402 = vmatprep.subr.bf16.mxu0 0
        %2403 = vmatpush1.bf16.msra.mxu0 0
        %2404 = vmatprep.subr.bf16.mxu0 0
        %2405 = vmatpush1.bf16.msra.mxu0 0
        %2406 = vmatprep.subr.bf16.mxu0 0
        %2407 = vmatpush1.bf16.msra.mxu0 0
        %2408 = vmatprep.subr.bf16.mxu0 0
        %2409 = vmatpush1.bf16.msra.mxu0 0
        %2410 = vmatprep.mubr.bf16.mxu0 0
        %2411 = vmatmul.mubr.bf16.gmra.mrb[0].mxu0 %v2376
        %v2412 = vpop.f32.mrb[0].mxu0
        %v2413 = vadd.f32 0.0, %v2412
        %v2414 = vpop.f32.mrb[0].mxu0
        %v2415 = vpop.f32.mrb[0].mxu0
        %v2416 = vadd.f32 0.0, %v2415
        %v2417 = vpop.f32.mrb[0].mxu0
        %2418 = vdwg.mxu0
        %2419 = vrot.lane.b32.xlu0 %v969, 32
        %v2420 = vpop.permute.xlu0 %2419
        %2421 = vrot.lane.b32.xlu0 %v973, 32
        %v2422 = vpop.permute.xlu0 %2421
        %v2424 = vsel %vm981, %v2420, 0
        %v2427 = vsel %vm981, %v2422, 0
        %2429 = vmatprep.subr.bf16.mxu0 0
        %2430 = vmatpush1.bf16.xpose.msra.mxu0 %v2427
        %2431 = vmatprep.subr.bf16.mxu0 0
        %2432 = vmatpush1.bf16.xpose.msra.mxu0 0
        %2433 = vmatprep.subr.bf16.mxu0 0
        %2434 = vmatpush1.bf16.xpose.msra.mxu0 0
        %2435 = vmatprep.subr.bf16.mxu0 0
        %2436 = vmatpush1.bf16.xpose.msra.mxu0 0
        %2437 = vmatprep.subr.bf16.mxu0 0
        %2438 = vmatpush1.bf16.xpose.msra.mxu0 0
        %2439 = vmatprep.subr.bf16.mxu0 0
        %2440 = vmatpush1.bf16.xpose.msra.mxu0 0
        %2441 = vmatprep.subr.bf16.mxu0 0
        %2442 = vmatpush1.bf16.xpose.msra.mxu0 0
        %2443 = vmatprep.subr.bf16.mxu0 0
        %2444 = vmatpush1.bf16.xpose.msra.mxu0 0
        %2445 = vmatprep.subr.bf16.mxu0 0
        %2446 = vmatpush1.bf16.xpose.msra.mxu0 0
        %2447 = vmatprep.subr.bf16.mxu0 0
        %2448 = vmatpush1.bf16.xpose.msra.mxu0 0
        %2449 = vmatprep.subr.bf16.mxu0 0
        %2450 = vmatpush1.bf16.xpose.msra.mxu0 0
        %2451 = vmatprep.subr.bf16.mxu0 0
        %2452 = vmatpush1.bf16.xpose.msra.mxu0 0
        %2453 = vmatprep.subr.bf16.mxu0 0
        %2454 = vmatpush1.bf16.xpose.msra.mxu0 0
        %2455 = vmatprep.subr.bf16.mxu0 0
        %2456 = vmatpush1.bf16.xpose.msra.mxu0 0
        %2457 = vmatprep.subr.bf16.mxu0 0
        %2458 = vmatpush1.bf16.xpose.msra.mxu0 0
        %2459 = vmatprep.subr.bf16.mxu0 0
        %2460 = vmatpush1.bf16.xpose.msra.mxu0 0
        %2461 = vmatprep.mubr.bf16.mxu0 0
        %2462 = vmatmul.mubr.bf16.gmra.mrb[0].mxu0 %v2424
        %v2463 = vpop.f32.mrb[0].mxu0
        %v2464 = vadd.f32 %v569, %v2463
        %v2465 = vpop.f32.mrb[0].mxu0
        %v2466 = vpop.f32.mrb[0].mxu0
        %v2467 = vadd.f32 %v570, %v2466
        %v2468 = vpop.f32.mrb[0].mxu0
        %2469 = vdwg.mxu0
        %2470 = vrot.lane.b32.xlu0 %v970, 32
        %v2471 = vpop.permute.xlu0 %2470
        %2472 = vrot.lane.b32.xlu0 %v974, 32
        %v2473 = vpop.permute.xlu0 %2472
        %v2475 = vsel %vm981, %v2471, 0
        %v2478 = vsel %vm981, %v2473, 0
        %2480 = vmatprep.subr.bf16.mxu0 0
        %2481 = vmatpush1.bf16.xpose.msra.mxu0 %v2478
        %2482 = vmatprep.subr.bf16.mxu0 0
        %2483 = vmatpush1.bf16.xpose.msra.mxu0 0
        %2484 = vmatprep.subr.bf16.mxu0 0
        %2485 = vmatpush1.bf16.xpose.msra.mxu0 0
        %2486 = vmatprep.subr.bf16.mxu0 0
        %2487 = vmatpush1.bf16.xpose.msra.mxu0 0
        %2488 = vmatprep.subr.bf16.mxu0 0
        %2489 = vmatpush1.bf16.xpose.msra.mxu0 0
        %2490 = vmatprep.subr.bf16.mxu0 0
        %2491 = vmatpush1.bf16.xpose.msra.mxu0 0
        %2492 = vmatprep.subr.bf16.mxu0 0
        %2493 = vmatpush1.bf16.xpose.msra.mxu0 0
        %2494 = vmatprep.subr.bf16.mxu0 0
        %2495 = vmatpush1.bf16.xpose.msra.mxu0 0
        %2496 = vmatprep.subr.bf16.mxu0 0
        %2497 = vmatpush1.bf16.xpose.msra.mxu0 0
        %2498 = vmatprep.subr.bf16.mxu0 0
        %2499 = vmatpush1.bf16.xpose.msra.mxu0 0
        %2500 = vmatprep.subr.bf16.mxu0 0
        %2501 = vmatpush1.bf16.xpose.msra.mxu0 0
        %2502 = vmatprep.subr.bf16.mxu0 0
        %2503 = vmatpush1.bf16.xpose.msra.mxu0 0
        %2504 = vmatprep.subr.bf16.mxu0 0
        %2505 = vmatpush1.bf16.xpose.msra.mxu0 0
        %2506 = vmatprep.subr.bf16.mxu0 0
        %2507 = vmatpush1.bf16.xpose.msra.mxu0 0
        %2508 = vmatprep.subr.bf16.mxu0 0
        %2509 = vmatpush1.bf16.xpose.msra.mxu0 0
        %2510 = vmatprep.subr.bf16.mxu0 0
        %2511 = vmatpush1.bf16.xpose.msra.mxu0 0
        %2512 = vmatprep.mubr.bf16.mxu0 0
        %2513 = vmatmul.mubr.bf16.gmra.mrb[0].mxu0 %v2475
        %v2514 = vpop.f32.mrb[0].mxu0
        %v2515 = vadd.f32 %v577, %v2514
        %v2516 = vpop.f32.mrb[0].mxu0
        %v2517 = vpop.f32.mrb[0].mxu0
        %v2518 = vadd.f32 %v578, %v2517
        %v2519 = vpop.f32.mrb[0].mxu0
        %2520 = vdwg.mxu0
        %2521 = vrot.lane.b32.xlu0 %v971, 32
        %v2522 = vpop.permute.xlu0 %2521
        %2523 = vrot.lane.b32.xlu0 %v975, 32
        %v2524 = vpop.permute.xlu0 %2523
        %v2526 = vsel %vm981, %v2522, 0
        %v2529 = vsel %vm981, %v2524, 0
        %2531 = vmatprep.subr.bf16.mxu0 0
        %2532 = vmatpush1.bf16.xpose.msra.mxu0 %v2529
        %2533 = vmatprep.subr.bf16.mxu0 0
        %2534 = vmatpush1.bf16.xpose.msra.mxu0 0
        %2535 = vmatprep.subr.bf16.mxu0 0
        %2536 = vmatpush1.bf16.xpose.msra.mxu0 0
        %2537 = vmatprep.subr.bf16.mxu0 0
        %2538 = vmatpush1.bf16.xpose.msra.mxu0 0
        %2539 = vmatprep.subr.bf16.mxu0 0
        %2540 = vmatpush1.bf16.xpose.msra.mxu0 0
        %2541 = vmatprep.subr.bf16.mxu0 0
        %2542 = vmatpush1.bf16.xpose.msra.mxu0 0
        %2543 = vmatprep.subr.bf16.mxu0 0
        %2544 = vmatpush1.bf16.xpose.msra.mxu0 0
        %2545 = vmatprep.subr.bf16.mxu0 0
        %2546 = vmatpush1.bf16.xpose.msra.mxu0 0
        %2547 = vmatprep.subr.bf16.mxu0 0
        %2548 = vmatpush1.bf16.xpose.msra.mxu0 0
        %2549 = vmatprep.subr.bf16.mxu0 0
        %2550 = vmatpush1.bf16.xpose.msra.mxu0 0
        %2551 = vmatprep.subr.bf16.mxu0 0
        %2552 = vmatpush1.bf16.xpose.msra.mxu0 0
        %2553 = vmatprep.subr.bf16.mxu0 0
        %2554 = vmatpush1.bf16.xpose.msra.mxu0 0
        %2555 = vmatprep.subr.bf16.mxu0 0
        %2556 = vmatpush1.bf16.xpose.msra.mxu0 0
        %2557 = vmatprep.subr.bf16.mxu0 0
        %2558 = vmatpush1.bf16.xpose.msra.mxu0 0
        %2559 = vmatprep.subr.bf16.mxu0 0
        %2560 = vmatpush1.bf16.xpose.msra.mxu0 0
        %2561 = vmatprep.subr.bf16.mxu0 0
        %2562 = vmatpush1.bf16.xpose.msra.mxu0 0
        %2563 = vmatprep.mubr.bf16.mxu0 0
        %2564 = vmatmul.mubr.bf16.gmra.mrb[0].mxu0 %v2526
        %v2565 = vpop.f32.mrb[0].mxu0
        %v2566 = vadd.f32 %v585, %v2565
        %v2567 = vpop.f32.mrb[0].mxu0
        %v2568 = vpop.f32.mrb[0].mxu0
        %v2569 = vadd.f32 %v586, %v2568
        %v2570 = vpop.f32.mrb[0].mxu0
        %2571 = vdwg.mxu0
        %2572 = vrot.lane.b32.xlu0 %v972, 32
        %v2573 = vpop.permute.xlu0 %2572
        %2574 = vrot.lane.b32.xlu0 %v976, 32
        %v2575 = vpop.permute.xlu0 %2574
        %v2577 = vsel %vm981, %v2573, 0
        %v2580 = vsel %vm981, %v2575, 0
        %2582 = vmatprep.subr.bf16.mxu0 0
        %2583 = vmatpush1.bf16.xpose.msra.mxu0 %v2580
        %2584 = vmatprep.subr.bf16.mxu0 0
        %2585 = vmatpush1.bf16.xpose.msra.mxu0 0
        %2586 = vmatprep.subr.bf16.mxu0 0
        %2587 = vmatpush1.bf16.xpose.msra.mxu0 0
        %2588 = vmatprep.subr.bf16.mxu0 0
        %2589 = vmatpush1.bf16.xpose.msra.mxu0 0
        %2590 = vmatprep.subr.bf16.mxu0 0
        %2591 = vmatpush1.bf16.xpose.msra.mxu0 0
        %2592 = vmatprep.subr.bf16.mxu0 0
        %2593 = vmatpush1.bf16.xpose.msra.mxu0 0
        %2594 = vmatprep.subr.bf16.mxu0 0
        %2595 = vmatpush1.bf16.xpose.msra.mxu0 0
        %2596 = vmatprep.subr.bf16.mxu0 0
        %2597 = vmatpush1.bf16.xpose.msra.mxu0 0
        %2598 = vmatprep.subr.bf16.mxu0 0
        %2599 = vmatpush1.bf16.xpose.msra.mxu0 0
        %2600 = vmatprep.subr.bf16.mxu0 0
        %2601 = vmatpush1.bf16.xpose.msra.mxu0 0
        %2602 = vmatprep.subr.bf16.mxu0 0
        %2603 = vmatpush1.bf16.xpose.msra.mxu0 0
        %2604 = vmatprep.subr.bf16.mxu0 0
        %2605 = vmatpush1.bf16.xpose.msra.mxu0 0
        %2606 = vmatprep.subr.bf16.mxu0 0
        %2607 = vmatpush1.bf16.xpose.msra.mxu0 0
        %2608 = vmatprep.subr.bf16.mxu0 0
        %2609 = vmatpush1.bf16.xpose.msra.mxu0 0
        %2610 = vmatprep.subr.bf16.mxu0 0
        %2611 = vmatpush1.bf16.xpose.msra.mxu0 0
        %2612 = vmatprep.subr.bf16.mxu0 0
        %2613 = vmatpush1.bf16.xpose.msra.mxu0 0
        %2614 = vmatprep.mubr.bf16.mxu0 0
        %2615 = vmatmul.mubr.bf16.gmra.mrb[0].mxu0 %v2577
        %v2616 = vpop.f32.mrb[0].mxu0
        %v2617 = vadd.f32 %v593, %v2616
        %v2618 = vpop.f32.mrb[0].mxu0
        %v2619 = vpop.f32.mrb[0].mxu0
        %v2620 = vadd.f32 %v594, %v2619
        %v2621 = vpop.f32.mrb[0].mxu0
        %2622 = vdwg.mxu0
        %v2623 = vsel %vm1170, %v2464, -inf
        %2624 = vmax.xlane.f32.xlu0 %v2623
        %v2625 = vpop.xlane.xlu0 %2624
        %v2626 = vsel %vm1170, %v2467, -inf
        %2627 = vmax.xlane.f32.xlu0 %v2626
        %v2628 = vpop.xlane.xlu0 %2627
        %v2629 = vsel %vm1170, %v2515, -inf
        %2630 = vmax.xlane.f32.xlu0 %v2629
        %v2631 = vpop.xlane.xlu0 %2630
        %v2632 = vsel %vm1170, %v2518, -inf
        %2633 = vmax.xlane.f32.xlu0 %v2632
        %v2634 = vpop.xlane.xlu0 %2633
        %v2635 = vsel %vm1170, %v2566, -inf
        %2636 = vmax.xlane.f32.xlu0 %v2635
        %v2637 = vpop.xlane.xlu0 %2636
        %v2638 = vsel %vm1170, %v2569, -inf
        %2639 = vmax.xlane.f32.xlu0 %v2638
        %v2640 = vpop.xlane.xlu0 %2639
        %v2641 = vsel %vm1170, %v2617, -inf
        %2642 = vmax.xlane.f32.xlu0 %v2641
        %v2643 = vpop.xlane.xlu0 %2642
        %v2644 = vsel %vm1170, %v2620, -inf
        %2645 = vmax.xlane.f32.xlu0 %v2644
        %v2646 = vpop.xlane.xlu0 %2645
        %v2647 = vsub.f32 %v2464, %v2625
        %v2648 = vsub.f32 %v2467, %v2628
        %v2649 = vsub.f32 %v2515, %v2631
        %v2650 = vsub.f32 %v2518, %v2634
        %v2651 = vsub.f32 %v2566, %v2637
        %v2652 = vsub.f32 %v2569, %v2640
        %v2653 = vsub.f32 %v2617, %v2643
        %v2654 = vsub.f32 %v2620, %v2646
        %v2655 = vmul.f32 %v2647, 1.442695
        %v2656 = vpow.pop %v2655
        %v2657 = vmul.f32 %v2648, 1.442695
        %v2658 = vpow.pop %v2657
        %v2659 = vmul.f32 %v2649, 1.442695
        %v2660 = vpow.pop %v2659
        %v2661 = vmul.f32 %v2650, 1.442695
        %v2662 = vpow.pop %v2661
        %v2663 = vmul.f32 %v2651, 1.442695
        %v2664 = vpow.pop %v2663
        %v2665 = vmul.f32 %v2652, 1.442695
        %v2666 = vpow.pop %v2665
        %v2667 = vmul.f32 %v2653, 1.442695
        %v2668 = vpow.pop %v2667
        %v2669 = vmul.f32 %v2654, 1.442695
        %v2670 = vpow.pop %v2669
        %v2671 = vsel %vm1170, %v2656, 0.0
        %2672 = vadd.xlane.f32.xlu0 %v2671
        %v2673 = vpop.xlane.xlu0 %2672
        %v2674 = vsel %vm1170, %v2658, 0.0
        %2675 = vadd.xlane.f32.xlu0 %v2674
        %v2676 = vpop.xlane.xlu0 %2675
        %v2677 = vsel %vm1170, %v2660, 0.0
        %2678 = vadd.xlane.f32.xlu0 %v2677
        %v2679 = vpop.xlane.xlu0 %2678
        %v2680 = vsel %vm1170, %v2662, 0.0
        %2681 = vadd.xlane.f32.xlu0 %v2680
        %v2682 = vpop.xlane.xlu0 %2681
        %v2683 = vsel %vm1170, %v2664, 0.0
        %2684 = vadd.xlane.f32.xlu0 %v2683
        %v2685 = vpop.xlane.xlu0 %2684
        %v2686 = vsel %vm1170, %v2666, 0.0
        %2687 = vadd.xlane.f32.xlu0 %v2686
        %v2688 = vpop.xlane.xlu0 %2687
        %v2689 = vsel %vm1170, %v2668, 0.0
        %2690 = vadd.xlane.f32.xlu0 %v2689
        %v2691 = vpop.xlane.xlu0 %2690
        %v2692 = vsel %vm1170, %v2670, 0.0
        %2693 = vadd.xlane.f32.xlu0 %v2692
        %v2694 = vpop.xlane.xlu0 %2693
        %v2695 = vrcp.pop %v2673
        %v2696 = vmul.f32 %v2656, %v2695
        %v2697 = vrcp.pop %v2676
        %v2698 = vmul.f32 %v2658, %v2697
        %v2699 = vrcp.pop %v2679
        %v2700 = vmul.f32 %v2660, %v2699
        %v2701 = vrcp.pop %v2682
        %v2702 = vmul.f32 %v2662, %v2701
        %v2703 = vrcp.pop %v2685
        %v2704 = vmul.f32 %v2664, %v2703
        %v2705 = vrcp.pop %v2688
        %v2706 = vmul.f32 %v2666, %v2705
        %v2707 = vrcp.pop %v2691
        %v2708 = vmul.f32 %v2668, %v2707
        %v2709 = vrcp.pop %v2694
        %v2710 = vmul.f32 %v2670, %v2709
        %v2711 = vpack.c.bf16 %v2698, %v2696
        %v2712 = vpack.c.bf16 %v2702, %v2700
        %v2713 = vpack.c.bf16 %v2706, %v2704
        %v2714 = vpack.c.bf16 %v2710, %v2708
        %2715 = vrot.lane.b32.xlu0 %v977, 32
        %v2716 = vpop.permute.xlu0 %2715
        %v2719 = vsel %vm1170, %v2711, 0
        %2721 = vmatprep.subr.bf16.mxu0 0
        %2722 = vmatpush1.bf16.msra.mxu0 %v2716
        %2723 = vmatprep.subr.bf16.mxu0 0
        %2724 = vmatpush1.bf16.msra.mxu0 0
        %2725 = vmatprep.subr.bf16.mxu0 0
        %2726 = vmatpush1.bf16.msra.mxu0 0
        %2727 = vmatprep.subr.bf16.mxu0 0
        %2728 = vmatpush1.bf16.msra.mxu0 0
        %2729 = vmatprep.subr.bf16.mxu0 0
        %2730 = vmatpush1.bf16.msra.mxu0 0
        %2731 = vmatprep.subr.bf16.mxu0 0
        %2732 = vmatpush1.bf16.msra.mxu0 0
        %2733 = vmatprep.subr.bf16.mxu0 0
        %2734 = vmatpush1.bf16.msra.mxu0 0
        %2735 = vmatprep.subr.bf16.mxu0 0
        %2736 = vmatpush1.bf16.msra.mxu0 0
        %2737 = vmatprep.subr.bf16.mxu0 0
        %2738 = vmatpush1.bf16.msra.mxu0 0
        %2739 = vmatprep.subr.bf16.mxu0 0
        %2740 = vmatpush1.bf16.msra.mxu0 0
        %2741 = vmatprep.subr.bf16.mxu0 0
        %2742 = vmatpush1.bf16.msra.mxu0 0
        %2743 = vmatprep.subr.bf16.mxu0 0
        %2744 = vmatpush1.bf16.msra.mxu0 0
        %2745 = vmatprep.subr.bf16.mxu0 0
        %2746 = vmatpush1.bf16.msra.mxu0 0
        %2747 = vmatprep.subr.bf16.mxu0 0
        %2748 = vmatpush1.bf16.msra.mxu0 0
        %2749 = vmatprep.subr.bf16.mxu0 0
        %2750 = vmatpush1.bf16.msra.mxu0 0
        %2751 = vmatprep.subr.bf16.mxu0 0
        %2752 = vmatpush1.bf16.msra.mxu0 0
        %2753 = vmatprep.mubr.bf16.mxu0 0
        %2754 = vmatmul.mubr.bf16.gmra.mrb[0].mxu0 %v2719
        %v2755 = vpop.f32.mrb[0].mxu0
        %v2756 = vadd.f32 0.0, %v2755
        %v2757 = vpop.f32.mrb[0].mxu0
        %v2758 = vpop.f32.mrb[0].mxu0
        %v2759 = vadd.f32 0.0, %v2758
        %v2760 = vpop.f32.mrb[0].mxu0
        %2761 = vdwg.mxu0
        %2762 = vrot.lane.b32.xlu0 %v978, 32
        %v2763 = vpop.permute.xlu0 %2762
        %v2766 = vsel %vm1170, %v2712, 0
        %2768 = vmatprep.subr.bf16.mxu0 0
        %2769 = vmatpush1.bf16.msra.mxu0 %v2763
        %2770 = vmatprep.subr.bf16.mxu0 0
        %2771 = vmatpush1.bf16.msra.mxu0 0
        %2772 = vmatprep.subr.bf16.mxu0 0
        %2773 = vmatpush1.bf16.msra.mxu0 0
        %2774 = vmatprep.subr.bf16.mxu0 0
        %2775 = vmatpush1.bf16.msra.mxu0 0
        %2776 = vmatprep.subr.bf16.mxu0 0
        %2777 = vmatpush1.bf16.msra.mxu0 0
        %2778 = vmatprep.subr.bf16.mxu0 0
        %2779 = vmatpush1.bf16.msra.mxu0 0
        %2780 = vmatprep.subr.bf16.mxu0 0
        %2781 = vmatpush1.bf16.msra.mxu0 0
        %2782 = vmatprep.subr.bf16.mxu0 0
        %2783 = vmatpush1.bf16.msra.mxu0 0
        %2784 = vmatprep.subr.bf16.mxu0 0
        %2785 = vmatpush1.bf16.msra.mxu0 0
        %2786 = vmatprep.subr.bf16.mxu0 0
        %2787 = vmatpush1.bf16.msra.mxu0 0
        %2788 = vmatprep.subr.bf16.mxu0 0
        %2789 = vmatpush1.bf16.msra.mxu0 0
        %2790 = vmatprep.subr.bf16.mxu0 0
        %2791 = vmatpush1.bf16.msra.mxu0 0
        %2792 = vmatprep.subr.bf16.mxu0 0
        %2793 = vmatpush1.bf16.msra.mxu0 0
        %2794 = vmatprep.subr.bf16.mxu0 0
        %2795 = vmatpush1.bf16.msra.mxu0 0
        %2796 = vmatprep.subr.bf16.mxu0 0
        %2797 = vmatpush1.bf16.msra.mxu0 0
        %2798 = vmatprep.subr.bf16.mxu0 0
        %2799 = vmatpush1.bf16.msra.mxu0 0
        %2800 = vmatprep.mubr.bf16.mxu0 0
        %2801 = vmatmul.mubr.bf16.gmra.mrb[0].mxu0 %v2766
        %v2802 = vpop.f32.mrb[0].mxu0
        %v2803 = vadd.f32 0.0, %v2802
        %v2804 = vpop.f32.mrb[0].mxu0
        %v2805 = vpop.f32.mrb[0].mxu0
        %v2806 = vadd.f32 0.0, %v2805
        %v2807 = vpop.f32.mrb[0].mxu0
        %2808 = vdwg.mxu0
        %2809 = vrot.lane.b32.xlu0 %v979, 32
        %v2810 = vpop.permute.xlu0 %2809
        %v2813 = vsel %vm1170, %v2713, 0
        %2815 = vmatprep.subr.bf16.mxu0 0
        %2816 = vmatpush1.bf16.msra.mxu0 %v2810
        %2817 = vmatprep.subr.bf16.mxu0 0
        %2818 = vmatpush1.bf16.msra.mxu0 0
        %2819 = vmatprep.subr.bf16.mxu0 0
        %2820 = vmatpush1.bf16.msra.mxu0 0
        %2821 = vmatprep.subr.bf16.mxu0 0
        %2822 = vmatpush1.bf16.msra.mxu0 0
        %2823 = vmatprep.subr.bf16.mxu0 0
        %2824 = vmatpush1.bf16.msra.mxu0 0
        %2825 = vmatprep.subr.bf16.mxu0 0
        %2826 = vmatpush1.bf16.msra.mxu0 0
        %2827 = vmatprep.subr.bf16.mxu0 0
        %2828 = vmatpush1.bf16.msra.mxu0 0
        %2829 = vmatprep.subr.bf16.mxu0 0
        %2830 = vmatpush1.bf16.msra.mxu0 0
        %2831 = vmatprep.subr.bf16.mxu0 0
        %2832 = vmatpush1.bf16.msra.mxu0 0
        %2833 = vmatprep.subr.bf16.mxu0 0
        %2834 = vmatpush1.bf16.msra.mxu0 0
        %2835 = vmatprep.subr.bf16.mxu0 0
        %2836 = vmatpush1.bf16.msra.mxu0 0
        %2837 = vmatprep.subr.bf16.mxu0 0
        %2838 = vmatpush1.bf16.msra.mxu0 0
        %2839 = vmatprep.subr.bf16.mxu0 0
        %2840 = vmatpush1.bf16.msra.mxu0 0
        %2841 = vmatprep.subr.bf16.mxu0 0
        %2842 = vmatpush1.bf16.msra.mxu0 0
        %2843 = vmatprep.subr.bf16.mxu0 0
        %2844 = vmatpush1.bf16.msra.mxu0 0
        %2845 = vmatprep.subr.bf16.mxu0 0
        %2846 = vmatpush1.bf16.msra.mxu0 0
        %2847 = vmatprep.mubr.bf16.mxu0 0
        %2848 = vmatmul.mubr.bf16.gmra.mrb[0].mxu0 %v2813
        %v2849 = vpop.f32.mrb[0].mxu0
        %v2850 = vadd.f32 0.0, %v2849
        %v2851 = vpop.f32.mrb[0].mxu0
        %v2852 = vpop.f32.mrb[0].mxu0
        %v2853 = vadd.f32 0.0, %v2852
        %v2854 = vpop.f32.mrb[0].mxu0
        %2855 = vdwg.mxu0
        %2856 = vrot.lane.b32.xlu0 %v980, 32
        %v2857 = vpop.permute.xlu0 %2856
        %v2860 = vsel %vm1170, %v2714, 0
        %2862 = vmatprep.subr.bf16.mxu0 0
        %2863 = vmatpush1.bf16.msra.mxu0 %v2857
        %2864 = vmatprep.subr.bf16.mxu0 0
        %2865 = vmatpush1.bf16.msra.mxu0 0
        %2866 = vmatprep.subr.bf16.mxu0 0
        %2867 = vmatpush1.bf16.msra.mxu0 0
        %2868 = vmatprep.subr.bf16.mxu0 0
        %2869 = vmatpush1.bf16.msra.mxu0 0
        %2870 = vmatprep.subr.bf16.mxu0 0
        %2871 = vmatpush1.bf16.msra.mxu0 0
        %2872 = vmatprep.subr.bf16.mxu0 0
        %2873 = vmatpush1.bf16.msra.mxu0 0
        %2874 = vmatprep.subr.bf16.mxu0 0
        %2875 = vmatpush1.bf16.msra.mxu0 0
        %2876 = vmatprep.subr.bf16.mxu0 0
        %2877 = vmatpush1.bf16.msra.mxu0 0
        %2878 = vmatprep.subr.bf16.mxu0 0
        %2879 = vmatpush1.bf16.msra.mxu0 0
        %2880 = vmatprep.subr.bf16.mxu0 0
        %2881 = vmatpush1.bf16.msra.mxu0 0
        %2882 = vmatprep.subr.bf16.mxu0 0
        %2883 = vmatpush1.bf16.msra.mxu0 0
        %2884 = vmatprep.subr.bf16.mxu0 0
        %2885 = vmatpush1.bf16.msra.mxu0 0
        %2886 = vmatprep.subr.bf16.mxu0 0
        %2887 = vmatpush1.bf16.msra.mxu0 0
        %2888 = vmatprep.subr.bf16.mxu0 0
        %2889 = vmatpush1.bf16.msra.mxu0 0
        %2890 = vmatprep.subr.bf16.mxu0 0
        %2891 = vmatpush1.bf16.msra.mxu0 0
        %2892 = vmatprep.subr.bf16.mxu0 0
        %2893 = vmatpush1.bf16.msra.mxu0 0
        %2894 = vmatprep.mubr.bf16.mxu0 0
        %2895 = vmatmul.mubr.bf16.gmra.mrb[0].mxu0 %v2860
        %v2896 = vpop.f32.mrb[0].mxu0
        %v2897 = vadd.f32 0.0, %v2896
        %v2898 = vpop.f32.mrb[0].mxu0
        %v2899 = vpop.f32.mrb[0].mxu0
        %v2900 = vadd.f32 0.0, %v2899
        %v2901 = vpop.f32.mrb[0].mxu0
        %2902 = vdwg.mxu0
        %2911 = vrot.lane.b32.xlu0 %v1785, 32
        %v2912 = vpop.permute.xlu0 %2911
        %2913 = vrot.lane.b32.xlu0 %v1788, 32
        %v2914 = vpop.permute.xlu0 %2913
        %2915 = vrot.lane.b32.xlu0 %v1833, 32
        %v2916 = vpop.permute.xlu0 %2915
        %2917 = vrot.lane.b32.xlu0 %v1836, 32
        %v2918 = vpop.permute.xlu0 %2917
        %2919 = vrot.lane.b32.xlu0 %v1881, 32
        %v2920 = vpop.permute.xlu0 %2919
        %2921 = vrot.lane.b32.xlu0 %v1884, 32
        %v2922 = vpop.permute.xlu0 %2921
        %2923 = vrot.lane.b32.xlu0 %v1929, 32
        %v2924 = vpop.permute.xlu0 %2923
        %2925 = vrot.lane.b32.xlu0 %v1932, 32
        %v2926 = vpop.permute.xlu0 %2925
        %2943 = vrot.lane.b32.xlu0 %v2272, 64
        %v2944 = vpop.permute.xlu0 %2943
        %2945 = vrot.lane.b32.xlu0 %v2275, 64
        %v2946 = vpop.permute.xlu0 %2945
        %2947 = vrot.lane.b32.xlu0 %v2319, 64
        %v2948 = vpop.permute.xlu0 %2947
        %2949 = vrot.lane.b32.xlu0 %v2322, 64
        %v2950 = vpop.permute.xlu0 %2949
        %2951 = vrot.lane.b32.xlu0 %v2366, 64
        %v2952 = vpop.permute.xlu0 %2951
        %2953 = vrot.lane.b32.xlu0 %v2369, 64
        %v2954 = vpop.permute.xlu0 %2953
        %2955 = vrot.lane.b32.xlu0 %v2413, 64
        %v2956 = vpop.permute.xlu0 %2955
        %2957 = vrot.lane.b32.xlu0 %v2416, 64
        %v2958 = vpop.permute.xlu0 %2957
        %2975 = vrot.lane.b32.xlu0 %v2756, 96
        %v2976 = vpop.permute.xlu0 %2975
        %2977 = vrot.lane.b32.xlu0 %v2759, 96
        %v2978 = vpop.permute.xlu0 %2977
        %2979 = vrot.lane.b32.xlu0 %v2803, 96
        %v2980 = vpop.permute.xlu0 %2979
        %2981 = vrot.lane.b32.xlu0 %v2806, 96
        %v2982 = vpop.permute.xlu0 %2981
        %2983 = vrot.lane.b32.xlu0 %v2850, 96
        %v2984 = vpop.permute.xlu0 %2983
        %2985 = vrot.lane.b32.xlu0 %v2853, 96
        %v2986 = vpop.permute.xlu0 %2985
        %2987 = vrot.lane.b32.xlu0 %v2897, 96
        %v2988 = vpop.permute.xlu0 %2987
        %2989 = vrot.lane.b32.xlu0 %v2900, 96
        %v2990 = vpop.permute.xlu0 %2989
        %v2999 = vsel %vm981, %v1301, %v2912
        %v3000 = vsel %vm981, %v1304, %v2914
        %v3001 = vsel %vm981, %v1345, %v2916
        %v3002 = vsel %vm981, %v1348, %v2918
        %v3003 = vsel %vm981, %v1389, %v2920
        %v3004 = vsel %vm981, %v1392, %v2922
        %v3005 = vsel %vm981, %v1433, %v2924
        %v3006 = vsel %vm981, %v1436, %v2926
        %vm3007 = vcmask 523264
        %v3008 = vsel %vm3007, %v2999, %v2944
        %v3009 = vsel %vm3007, %v3000, %v2946
        %v3010 = vsel %vm3007, %v3001, %v2948
        %v3011 = vsel %vm3007, %v3002, %v2950
        %v3012 = vsel %vm3007, %v3003, %v2952
        %v3013 = vsel %vm3007, %v3004, %v2954
        %v3014 = vsel %vm3007, %v3005, %v2956
        %v3015 = vsel %vm3007, %v3006, %v2958
        %vm3016 = vcmask 785408
        %v3017 = vsel %vm3016, %v3008, %v2976
        %v3018 = vsel %vm3016, %v3009, %v2978
        %v3019 = vsel %vm3016, %v3010, %v2980
        %v3020 = vsel %vm3016, %v3011, %v2982
        %v3021 = vsel %vm3016, %v3012, %v2984
        %v3022 = vsel %vm3016, %v3013, %v2986
        %v3023 = vsel %vm3016, %v3014, %v2988
        %v3024 = vsel %vm3016, %v3015, %v2990
        %v3025 = vpack.c.bf16 %v3018, %v3017
        %v3026 = vpack.c.bf16 %v3020, %v3019
        %v3027 = vpack.c.bf16 %v3022, %v3021
        %v3028 = vpack.c.bf16 %v3024, %v3023
        %v3029 = vld [vmem:[#allocation10] sm:$0xf]
        %v3030 = vld [vmem:[#allocation10 + $0x4] sm:$0xf]
        %v3031 = vld [vmem:[#allocation10 + $0x8] sm:$0xf]
        %v3032 = vld [vmem:[#allocation10 + $0xc] sm:$0xf]
        %v3033 = vld [vmem:[#allocation10 + $0x10] sm:$0xf]
        %v3034 = vld [vmem:[#allocation10 + $0x14] sm:$0xf]
        %v3035 = vld [vmem:[#allocation10 + $0x18] sm:$0xf]
        %v3036 = vld [vmem:[#allocation10 + $0x1c] sm:$0xf]
        %v3037 = vld [vmem:[#allocation10 + $0x20] sm:$0xf]
        %v3038 = vld [vmem:[#allocation10 + $0x24] sm:$0xf]
        %v3039 = vld [vmem:[#allocation10 + $0x28] sm:$0xf]
        %v3040 = vld [vmem:[#allocation10 + $0x2c] sm:$0xf]
        %v3041 = vld [vmem:[#allocation10 + $0x30] sm:$0xf]
        %v3042 = vld [vmem:[#allocation10 + $0x34] sm:$0xf]
        %v3043 = vld [vmem:[#allocation10 + $0x38] sm:$0xf]
        %v3044 = vld [vmem:[#allocation10 + $0x3c] sm:$0xf]
        %v3061 = vunpack.c.l.b16 %v3029
        %v3062 = vunpack.c.l.b16 %v3030
        %v3063 = vunpack.c.l.b16 %v3031
        %v3064 = vunpack.c.l.b16 %v3032
        %v3065 = vunpack.c.l.b16 %v3033
        %v3066 = vunpack.c.l.b16 %v3034
        %v3067 = vunpack.c.l.b16 %v3035
        %v3068 = vunpack.c.l.b16 %v3036
        %v3069 = vunpack.c.l.b16 %v3037
        %v3070 = vunpack.c.l.b16 %v3038
        %v3071 = vunpack.c.l.b16 %v3039
        %v3072 = vunpack.c.l.b16 %v3040
        %v3073 = vunpack.c.l.b16 %v3041
        %v3074 = vunpack.c.l.b16 %v3042
        %v3075 = vunpack.c.l.b16 %v3043
        %v3076 = vunpack.c.l.b16 %v3044
        %v3077 = vpack.c.b16 %v3062, %v3061
        %v3078 = vpack.c.b16 %v3064, %v3063
        %v3079 = vpack.c.b16 %v3066, %v3065
        %v3080 = vpack.c.b16 %v3068, %v3067
        %v3081 = vpack.c.b16 %v3070, %v3069
        %v3082 = vpack.c.b16 %v3072, %v3071
        %v3083 = vpack.c.b16 %v3074, %v3073
        %v3084 = vpack.c.b16 %v3076, %v3075
        %3093 = vmatprep.subr.bf16.mxu0 0
        %3094 = vmatpush1.bf16.msra.mxu0 %v3077
        %3095 = vmatprep.subr.bf16.mxu0 0
        %3096 = vmatpush1.bf16.msra.mxu0 %v3078
        %3097 = vmatprep.subr.bf16.mxu0 0
        %3098 = vmatpush1.bf16.msra.mxu0 %v3079
        %3099 = vmatprep.subr.bf16.mxu0 0
        %3100 = vmatpush1.bf16.msra.mxu0 %v3080
        %3101 = vmatprep.subr.bf16.mxu0 0
        %3102 = vmatpush1.bf16.msra.mxu0 %v3081
        %3103 = vmatprep.subr.bf16.mxu0 0
        %3104 = vmatpush1.bf16.msra.mxu0 %v3082
        %3105 = vmatprep.subr.bf16.mxu0 0
        %3106 = vmatpush1.bf16.msra.mxu0 %v3083
        %3107 = vmatprep.subr.bf16.mxu0 0
        %3108 = vmatpush1.bf16.msra.mxu0 %v3084
        %3109 = vmatprep.subr.bf16.mxu0 0
        %3110 = vmatpush1.bf16.msra.mxu0 0
        %3111 = vmatprep.subr.bf16.mxu0 0
        %3112 = vmatpush1.bf16.msra.mxu0 0
        %3113 = vmatprep.subr.bf16.mxu0 0
        %3114 = vmatpush1.bf16.msra.mxu0 0
        %3115 = vmatprep.subr.bf16.mxu0 0
        %3116 = vmatpush1.bf16.msra.mxu0 0
        %3117 = vmatprep.subr.bf16.mxu0 0
        %3118 = vmatpush1.bf16.msra.mxu0 0
        %3119 = vmatprep.subr.bf16.mxu0 0
        %3120 = vmatpush1.bf16.msra.mxu0 0
        %3121 = vmatprep.subr.bf16.mxu0 0
        %3122 = vmatpush1.bf16.msra.mxu0 0
        %3123 = vmatprep.subr.bf16.mxu0 0
        %3124 = vmatpush1.bf16.msra.mxu0 0
        %3125 = vmatprep.mubr.bf16.mxu0 0
        %3126 = vmatmul.mubr.bf16.gmra.mrb[0].mxu0 %v3025
        %v3127 = vpop.f32.mrb[0].mxu0
        %v3128 = vadd.f32 0.0, %v3127
        %v3129 = vpop.f32.mrb[0].mxu0
        %v3130 = vpop.f32.mrb[0].mxu0
        %v3131 = vadd.f32 0.0, %v3130
        %v3132 = vpop.f32.mrb[0].mxu0
        %3133 = vmatprep.mubr.bf16.mxu0 0
        %3134 = vmatmul.mubr.bf16.gmra.mrb[0].mxu0 %v3026
        %v3135 = vpop.f32.mrb[0].mxu0
        %v3136 = vadd.f32 0.0, %v3135
        %v3137 = vpop.f32.mrb[0].mxu0
        %v3138 = vpop.f32.mrb[0].mxu0
        %v3139 = vadd.f32 0.0, %v3138
        %v3140 = vpop.f32.mrb[0].mxu0
        %3141 = vmatprep.mubr.bf16.mxu0 0
        %3142 = vmatmul.mubr.bf16.gmra.mrb[0].mxu0 %v3027
        %v3143 = vpop.f32.mrb[0].mxu0
        %v3144 = vadd.f32 0.0, %v3143
        %v3145 = vpop.f32.mrb[0].mxu0
        %v3146 = vpop.f32.mrb[0].mxu0
        %v3147 = vadd.f32 0.0, %v3146
        %v3148 = vpop.f32.mrb[0].mxu0
        %3149 = vmatprep.mubr.bf16.mxu0 0
        %3150 = vmatmul.mubr.bf16.gmra.mrb[0].mxu0 %v3028
        %v3151 = vpop.f32.mrb[0].mxu0
        %v3152 = vadd.f32 0.0, %v3151
        %v3153 = vpop.f32.mrb[0].mxu0
        %v3154 = vpop.f32.mrb[0].mxu0
        %v3155 = vadd.f32 0.0, %v3154
        %v3156 = vpop.f32.mrb[0].mxu0
        %3157 = vdwg.mxu0
        %v3158 = vadd.f32 %v503, %v3128
        %v3159 = vadd.f32 %v504, %v3131
        %v3160 = vadd.f32 %v505, %v3136
        %v3161 = vadd.f32 %v506, %v3139
        %v3162 = vadd.f32 %v507, %v3144
        %v3163 = vadd.f32 %v508, %v3147
        %v3164 = vadd.f32 %v509, %v3152
        %v3165 = vadd.f32 %v510, %v3155
        %v3166 = vmul.f32 %v3158, %v3158
        %v3167 = vmul.f32 %v3159, %v3159
        %v3168 = vmul.f32 %v3160, %v3160
        %v3169 = vmul.f32 %v3161, %v3161
        %v3170 = vmul.f32 %v3162, %v3162
        %v3171 = vmul.f32 %v3163, %v3163
        %v3172 = vmul.f32 %v3164, %v3164
        %v3173 = vmul.f32 %v3165, %v3165
        %3174 = vadd.xlane.f32.xlu0 %v3166
        %v3175 = vpop.xlane.xlu0 %3174
        %3176 = vadd.xlane.f32.xlu0 %v3167
        %v3177 = vpop.xlane.xlu0 %3176
        %3178 = vadd.xlane.f32.xlu0 %v3168
        %v3179 = vpop.xlane.xlu0 %3178
        %3180 = vadd.xlane.f32.xlu0 %v3169
        %v3181 = vpop.xlane.xlu0 %3180
        %3182 = vadd.xlane.f32.xlu0 %v3170
        %v3183 = vpop.xlane.xlu0 %3182
        %3184 = vadd.xlane.f32.xlu0 %v3171
        %v3185 = vpop.xlane.xlu0 %3184
        %3186 = vadd.xlane.f32.xlu0 %v3172
        %v3187 = vpop.xlane.xlu0 %3186
        %3188 = vadd.xlane.f32.xlu0 %v3173
        %v3189 = vpop.xlane.xlu0 %3188
        %v3190 = vmul.f32 %v3175, %v619
        %v3191 = vmul.f32 %v3177, %v619
        %v3192 = vmul.f32 %v3179, %v619
        %v3193 = vmul.f32 %v3181, %v619
        %v3194 = vmul.f32 %v3183, %v619
        %v3195 = vmul.f32 %v3185, %v619
        %v3196 = vmul.f32 %v3187, %v619
        %v3197 = vmul.f32 %v3189, %v619
        %v3198 = vadd.f32 %v3190, 1e-06
        %v3199 = vadd.f32 %v3191, 1e-06
        %v3200 = vadd.f32 %v3192, 1e-06
        %v3201 = vadd.f32 %v3193, 1e-06
        %v3202 = vadd.f32 %v3194, 1e-06
        %v3203 = vadd.f32 %v3195, 1e-06
        %v3204 = vadd.f32 %v3196, 1e-06
        %v3205 = vadd.f32 %v3197, 1e-06
        %v3206 = vrsqrt.pop %v3198
        %v3207 = vrsqrt.pop %v3199
        %v3208 = vrsqrt.pop %v3200
        %v3209 = vrsqrt.pop %v3201
        %v3210 = vrsqrt.pop %v3202
        %v3211 = vrsqrt.pop %v3203
        %v3212 = vrsqrt.pop %v3204
        %v3213 = vrsqrt.pop %v3205
        %v3214 = vmul.f32 %v3158, %v3206
        %v3215 = vmul.f32 %v3159, %v3207
        %v3216 = vmul.f32 %v3160, %v3208
        %v3217 = vmul.f32 %v3161, %v3209
        %v3218 = vmul.f32 %v3162, %v3210
        %v3219 = vmul.f32 %v3163, %v3211
        %v3220 = vmul.f32 %v3164, %v3212
        %v3221 = vmul.f32 %v3165, %v3213
        %v3222 = vld [vmem:[%s6] sm:$0x1]
        %v3224 = vlaneseq
        %v3225 = vshrl.u32 %v3224, 7
        %v3226 = vsub.s32 0, %v3225
        %v3227 = vrot.slane %v3222, %v3226
        %v3229 = vmul.f32 %v3214, %v3227
        %v3230 = vmul.f32 %v3215, %v3227
        %v3231 = vmul.f32 %v3216, %v3227
        %v3232 = vmul.f32 %v3217, %v3227
        %v3233 = vmul.f32 %v3218, %v3227
        %v3234 = vmul.f32 %v3219, %v3227
        %v3235 = vmul.f32 %v3220, %v3227
        %v3236 = vmul.f32 %v3221, %v3227
        %v3237 = vpack.c.bf16 %v3230, %v3229
        %v3238 = vpack.c.bf16 %v3232, %v3231
        %v3239 = vpack.c.bf16 %v3234, %v3233
        %v3240 = vpack.c.bf16 %v3236, %v3235
        %v3241 = vld [vmem:[#allocation11] sm:$0xff]
        %v3242 = vld [vmem:[#allocation11 + $0x8] sm:$0xff]
        %v3243 = vld [vmem:[#allocation11 + $0x10] sm:$0xff]
        %v3244 = vld [vmem:[#allocation11 + $0x18] sm:$0xff]
        %v3245 = vld [vmem:[#allocation11 + $0x20] sm:$0xff]
        %v3246 = vld [vmem:[#allocation11 + $0x28] sm:$0xff]
        %v3247 = vld [vmem:[#allocation11 + $0x30] sm:$0xff]
        %v3248 = vld [vmem:[#allocation11 + $0x38] sm:$0xff]
        %v3249 = vld [vmem:[#allocation11 + $0x40] sm:$0xff]
        %v3250 = vld [vmem:[#allocation11 + $0x48] sm:$0xff]
        %v3251 = vld [vmem:[#allocation11 + $0x50] sm:$0xff]
        %v3252 = vld [vmem:[#allocation11 + $0x58] sm:$0xff]
        %v3253 = vld [vmem:[#allocation11 + $0x60] sm:$0xff]
        %v3254 = vld [vmem:[#allocation11 + $0x68] sm:$0xff]
        %v3255 = vld [vmem:[#allocation11 + $0x70] sm:$0xff]
        %v3256 = vld [vmem:[#allocation11 + $0x78] sm:$0xff]
        %v3273 = vunpack.c.l.b16 %v3241
        %v3274 = vunpack.c.h.b16 %v3241
        %v3275 = vunpack.c.l.b16 %v3242
        %v3276 = vunpack.c.h.b16 %v3242
        %v3277 = vunpack.c.l.b16 %v3243
        %v3278 = vunpack.c.h.b16 %v3243
        %v3279 = vunpack.c.l.b16 %v3244
        %v3280 = vunpack.c.h.b16 %v3244
        %v3281 = vunpack.c.l.b16 %v3245
        %v3282 = vunpack.c.h.b16 %v3245
        %v3283 = vunpack.c.l.b16 %v3246
        %v3284 = vunpack.c.h.b16 %v3246
        %v3285 = vunpack.c.l.b16 %v3247
        %v3286 = vunpack.c.h.b16 %v3247
        %v3287 = vunpack.c.l.b16 %v3248
        %v3288 = vunpack.c.h.b16 %v3248
        %v3289 = vunpack.c.l.b16 %v3249
        %v3290 = vunpack.c.h.b16 %v3249
        %v3291 = vunpack.c.l.b16 %v3250
        %v3292 = vunpack.c.h.b16 %v3250
        %v3293 = vunpack.c.l.b16 %v3251
        %v3294 = vunpack.c.h.b16 %v3251
        %v3295 = vunpack.c.l.b16 %v3252
        %v3296 = vunpack.c.h.b16 %v3252
        %v3297 = vunpack.c.l.b16 %v3253
        %v3298 = vunpack.c.h.b16 %v3253
        %v3299 = vunpack.c.l.b16 %v3254
        %v3300 = vunpack.c.h.b16 %v3254
        %v3301 = vunpack.c.l.b16 %v3255
        %v3302 = vunpack.c.h.b16 %v3255
        %v3303 = vunpack.c.l.b16 %v3256
        %v3304 = vunpack.c.h.b16 %v3256
        %v3305 = vpack.c.b16 %v3275, %v3273
        %v3306 = vpack.c.b16 %v3276, %v3274
        %v3307 = vpack.c.b16 %v3279, %v3277
        %v3308 = vpack.c.b16 %v3280, %v3278
        %v3309 = vpack.c.b16 %v3283, %v3281
        %v3310 = vpack.c.b16 %v3284, %v3282
        %v3311 = vpack.c.b16 %v3287, %v3285
        %v3312 = vpack.c.b16 %v3288, %v3286
        %v3313 = vpack.c.b16 %v3291, %v3289
        %v3314 = vpack.c.b16 %v3292, %v3290
        %v3315 = vpack.c.b16 %v3295, %v3293
        %v3316 = vpack.c.b16 %v3296, %v3294
        %v3317 = vpack.c.b16 %v3299, %v3297
        %v3318 = vpack.c.b16 %v3300, %v3298
        %v3319 = vpack.c.b16 %v3303, %v3301
        %v3320 = vpack.c.b16 %v3304, %v3302
        %3337 = vmatprep.subr.bf16.mxu0 %v3306
        %3338 = vmatpush1.bf16.msra.mxu0 %v3305
        %3339 = vmatprep.subr.bf16.mxu0 %v3308
        %3340 = vmatpush1.bf16.msra.mxu0 %v3307
        %3341 = vmatprep.subr.bf16.mxu0 %v3310
        %3342 = vmatpush1.bf16.msra.mxu0 %v3309
        %3343 = vmatprep.subr.bf16.mxu0 %v3312
        %3344 = vmatpush1.bf16.msra.mxu0 %v3311
        %3345 = vmatprep.subr.bf16.mxu0 %v3314
        %3346 = vmatpush1.bf16.msra.mxu0 %v3313
        %3347 = vmatprep.subr.bf16.mxu0 %v3316
        %3348 = vmatpush1.bf16.msra.mxu0 %v3315
        %3349 = vmatprep.subr.bf16.mxu0 %v3318
        %3350 = vmatpush1.bf16.msra.mxu0 %v3317
        %3351 = vmatprep.subr.bf16.mxu0 %v3320
        %3352 = vmatpush1.bf16.msra.mxu0 %v3319
        %3353 = vmatprep.subr.bf16.mxu0 0
        %3354 = vmatpush1.bf16.msra.mxu0 0
        %3355 = vmatprep.subr.bf16.mxu0 0
        %3356 = vmatpush1.bf16.msra.mxu0 0
        %3357 = vmatprep.subr.bf16.mxu0 0
        %3358 = vmatpush1.bf16.msra.mxu0 0
        %3359 = vmatprep.subr.bf16.mxu0 0
        %3360 = vmatpush1.bf16.msra.mxu0 0
        %3361 = vmatprep.subr.bf16.mxu0 0
        %3362 = vmatpush1.bf16.msra.mxu0 0
        %3363 = vmatprep.subr.bf16.mxu0 0
        %3364 = vmatpush1.bf16.msra.mxu0 0
        %3365 = vmatprep.subr.bf16.mxu0 0
        %3366 = vmatpush1.bf16.msra.mxu0 0
        %3367 = vmatprep.subr.bf16.mxu0 0
        %3368 = vmatpush1.bf16.msra.mxu0 0
        %3369 = vmatprep.mubr.bf16.mxu0 0
        %3370 = vmatmul.mubr.bf16.gmra.mrb[0].mxu0 %v3237
        %v3371 = vpop.f32.mrb[0].mxu0
        %v3372 = vadd.f32 0.0, %v3371
        %v3373 = vpop.f32.mrb[0].mxu0
        %v3374 = vadd.f32 0.0, %v3373
        %v3375 = vpop.f32.mrb[0].mxu0
        %v3376 = vadd.f32 0.0, %v3375
        %v3377 = vpop.f32.mrb[0].mxu0
        %v3378 = vadd.f32 0.0, %v3377
        %3379 = vmatprep.mubr.bf16.mxu0 0
        %3380 = vmatmul.mubr.bf16.gmra.mrb[0].mxu0 %v3238
        %v3381 = vpop.f32.mrb[0].mxu0
        %v3382 = vadd.f32 0.0, %v3381
        %v3383 = vpop.f32.mrb[0].mxu0
        %v3384 = vadd.f32 0.0, %v3383
        %v3385 = vpop.f32.mrb[0].mxu0
        %v3386 = vadd.f32 0.0, %v3385
        %v3387 = vpop.f32.mrb[0].mxu0
        %v3388 = vadd.f32 0.0, %v3387
        %3389 = vmatprep.mubr.bf16.mxu0 0
        %3390 = vmatmul.mubr.bf16.gmra.mrb[0].mxu0 %v3239
        %v3391 = vpop.f32.mrb[0].mxu0
        %v3392 = vadd.f32 0.0, %v3391
        %v3393 = vpop.f32.mrb[0].mxu0
        %v3394 = vadd.f32 0.0, %v3393
        %v3395 = vpop.f32.mrb[0].mxu0
        %v3396 = vadd.f32 0.0, %v3395
        %v3397 = vpop.f32.mrb[0].mxu0
        %v3398 = vadd.f32 0.0, %v3397
        %3399 = vmatprep.mubr.bf16.mxu0 0
        %3400 = vmatmul.mubr.bf16.gmra.mrb[0].mxu0 %v3240
        %v3401 = vpop.f32.mrb[0].mxu0
        %v3402 = vadd.f32 0.0, %v3401
        %v3403 = vpop.f32.mrb[0].mxu0
        %v3404 = vadd.f32 0.0, %v3403
        %v3405 = vpop.f32.mrb[0].mxu0
        %v3406 = vadd.f32 0.0, %v3405
        %v3407 = vpop.f32.mrb[0].mxu0
        %v3408 = vadd.f32 0.0, %v3407
        %3409 = vdwg.mxu0
        %v3410 = vmax.f32 %v3372, 0.0
        %v3411 = vmax.f32 %v3374, 0.0
        %v3412 = vmax.f32 %v3376, 0.0
        %v3413 = vmax.f32 %v3378, 0.0
        %v3414 = vmax.f32 %v3382, 0.0
        %v3415 = vmax.f32 %v3384, 0.0
        %v3416 = vmax.f32 %v3386, 0.0
        %v3417 = vmax.f32 %v3388, 0.0
        %v3418 = vmax.f32 %v3392, 0.0
        %v3419 = vmax.f32 %v3394, 0.0
        %v3420 = vmax.f32 %v3396, 0.0
        %v3421 = vmax.f32 %v3398, 0.0
        %v3422 = vmax.f32 %v3402, 0.0
        %v3423 = vmax.f32 %v3404, 0.0
        %v3424 = vmax.f32 %v3406, 0.0
        %v3425 = vmax.f32 %v3408, 0.0
        %v3426 = vpack.c.bf16 %v3412, %v3410
        %v3427 = vpack.c.bf16 %v3413, %v3411
        %v3428 = vpack.c.bf16 %v3416, %v3414
        %v3429 = vpack.c.bf16 %v3417, %v3415
        %v3430 = vpack.c.bf16 %v3420, %v3418
        %v3431 = vpack.c.bf16 %v3421, %v3419
        %v3432 = vpack.c.bf16 %v3424, %v3422
        %v3433 = vpack.c.bf16 %v3425, %v3423
        %v3434 = vld [vmem:[#allocation13] sm:$0xf]
        %v3435 = vld [vmem:[#allocation13 + $0x4] sm:$0xf]
        %v3436 = vld [vmem:[#allocation13 + $0x8] sm:$0xf]
        %v3437 = vld [vmem:[#allocation13 + $0xc] sm:$0xf]
        %v3438 = vld [vmem:[#allocation13 + $0x10] sm:$0xf]
        %v3439 = vld [vmem:[#allocation13 + $0x14] sm:$0xf]
        %v3440 = vld [vmem:[#allocation13 + $0x18] sm:$0xf]
        %v3441 = vld [vmem:[#allocation13 + $0x1c] sm:$0xf]
        %v3442 = vld [vmem:[#allocation13 + $0x20] sm:$0xf]
        %v3443 = vld [vmem:[#allocation13 + $0x24] sm:$0xf]
        %v3444 = vld [vmem:[#allocation13 + $0x28] sm:$0xf]
        %v3445 = vld [vmem:[#allocation13 + $0x2c] sm:$0xf]
        %v3446 = vld [vmem:[#allocation13 + $0x30] sm:$0xf]
        %v3447 = vld [vmem:[#allocation13 + $0x34] sm:$0xf]
        %v3448 = vld [vmem:[#allocation13 + $0x38] sm:$0xf]
        %v3449 = vld [vmem:[#allocation13 + $0x3c] sm:$0xf]
        %v3450 = vld [vmem:[#allocation13 + $0x40] sm:$0xf]
        %v3451 = vld [vmem:[#allocation13 + $0x44] sm:$0xf]
        %v3452 = vld [vmem:[#allocation13 + $0x48] sm:$0xf]
        %v3453 = vld [vmem:[#allocation13 + $0x4c] sm:$0xf]
        %v3454 = vld [vmem:[#allocation13 + $0x50] sm:$0xf]
        %v3455 = vld [vmem:[#allocation13 + $0x54] sm:$0xf]
        %v3456 = vld [vmem:[#allocation13 + $0x58] sm:$0xf]
        %v3457 = vld [vmem:[#allocation13 + $0x5c] sm:$0xf]
        %v3458 = vld [vmem:[#allocation13 + $0x60] sm:$0xf]
        %v3459 = vld [vmem:[#allocation13 + $0x64] sm:$0xf]
        %v3460 = vld [vmem:[#allocation13 + $0x68] sm:$0xf]
        %v3461 = vld [vmem:[#allocation13 + $0x6c] sm:$0xf]
        %v3462 = vld [vmem:[#allocation13 + $0x70] sm:$0xf]
        %v3463 = vld [vmem:[#allocation13 + $0x74] sm:$0xf]
        %v3464 = vld [vmem:[#allocation13 + $0x78] sm:$0xf]
        %v3465 = vld [vmem:[#allocation13 + $0x7c] sm:$0xf]
        %v3498 = vunpack.c.l.b16 %v3434
        %v3499 = vunpack.c.l.b16 %v3435
        %v3500 = vunpack.c.l.b16 %v3436
        %v3501 = vunpack.c.l.b16 %v3437
        %v3502 = vunpack.c.l.b16 %v3438
        %v3503 = vunpack.c.l.b16 %v3439
        %v3504 = vunpack.c.l.b16 %v3440
        %v3505 = vunpack.c.l.b16 %v3441
        %v3506 = vunpack.c.l.b16 %v3442
        %v3507 = vunpack.c.l.b16 %v3443
        %v3508 = vunpack.c.l.b16 %v3444
        %v3509 = vunpack.c.l.b16 %v3445
        %v3510 = vunpack.c.l.b16 %v3446
        %v3511 = vunpack.c.l.b16 %v3447
        %v3512 = vunpack.c.l.b16 %v3448
        %v3513 = vunpack.c.l.b16 %v3449
        %v3514 = vunpack.c.l.b16 %v3450
        %v3515 = vunpack.c.l.b16 %v3451
        %v3516 = vunpack.c.l.b16 %v3452
        %v3517 = vunpack.c.l.b16 %v3453
        %v3518 = vunpack.c.l.b16 %v3454
        %v3519 = vunpack.c.l.b16 %v3455
        %v3520 = vunpack.c.l.b16 %v3456
        %v3521 = vunpack.c.l.b16 %v3457
        %v3522 = vunpack.c.l.b16 %v3458
        %v3523 = vunpack.c.l.b16 %v3459
        %v3524 = vunpack.c.l.b16 %v3460
        %v3525 = vunpack.c.l.b16 %v3461
        %v3526 = vunpack.c.l.b16 %v3462
        %v3527 = vunpack.c.l.b16 %v3463
        %v3528 = vunpack.c.l.b16 %v3464
        %v3529 = vunpack.c.l.b16 %v3465
        %v3530 = vpack.c.b16 %v3499, %v3498
        %v3531 = vpack.c.b16 %v3501, %v3500
        %v3532 = vpack.c.b16 %v3503, %v3502
        %v3533 = vpack.c.b16 %v3505, %v3504
        %v3534 = vpack.c.b16 %v3507, %v3506
        %v3535 = vpack.c.b16 %v3509, %v3508
        %v3536 = vpack.c.b16 %v3511, %v3510
        %v3537 = vpack.c.b16 %v3513, %v3512
        %v3538 = vpack.c.b16 %v3515, %v3514
        %v3539 = vpack.c.b16 %v3517, %v3516
        %v3540 = vpack.c.b16 %v3519, %v3518
        %v3541 = vpack.c.b16 %v3521, %v3520
        %v3542 = vpack.c.b16 %v3523, %v3522
        %v3543 = vpack.c.b16 %v3525, %v3524
        %v3544 = vpack.c.b16 %v3527, %v3526
        %v3545 = vpack.c.b16 %v3529, %v3528
        %3562 = vmatprep.subr.bf16.mxu0 0
        %3563 = vmatpush1.bf16.msra.mxu0 %v3530
        %3564 = vmatprep.subr.bf16.mxu0 0
        %3565 = vmatpush1.bf16.msra.mxu0 %v3531
        %3566 = vmatprep.subr.bf16.mxu0 0
        %3567 = vmatpush1.bf16.msra.mxu0 %v3532
        %3568 = vmatprep.subr.bf16.mxu0 0
        %3569 = vmatpush1.bf16.msra.mxu0 %v3533
        %3570 = vmatprep.subr.bf16.mxu0 0
        %3571 = vmatpush1.bf16.msra.mxu0 %v3534
        %3572 = vmatprep.subr.bf16.mxu0 0
        %3573 = vmatpush1.bf16.msra.mxu0 %v3535
        %3574 = vmatprep.subr.bf16.mxu0 0
        %3575 = vmatpush1.bf16.msra.mxu0 %v3536
        %3576 = vmatprep.subr.bf16.mxu0 0
        %3577 = vmatpush1.bf16.msra.mxu0 %v3537
        %3578 = vmatprep.subr.bf16.mxu0 0
        %3579 = vmatpush1.bf16.msra.mxu0 %v3538
        %3580 = vmatprep.subr.bf16.mxu0 0
        %3581 = vmatpush1.bf16.msra.mxu0 %v3539
        %3582 = vmatprep.subr.bf16.mxu0 0
        %3583 = vmatpush1.bf16.msra.mxu0 %v3540
        %3584 = vmatprep.subr.bf16.mxu0 0
        %3585 = vmatpush1.bf16.msra.mxu0 %v3541
        %3586 = vmatprep.subr.bf16.mxu0 0
        %3587 = vmatpush1.bf16.msra.mxu0 %v3542
        %3588 = vmatprep.subr.bf16.mxu0 0
        %3589 = vmatpush1.bf16.msra.mxu0 %v3543
        %3590 = vmatprep.subr.bf16.mxu0 0
        %3591 = vmatpush1.bf16.msra.mxu0 %v3544
        %3592 = vmatprep.subr.bf16.mxu0 0
        %3593 = vmatpush1.bf16.msra.mxu0 %v3545
        %3594 = vmatprep.mubr.bf16.mxu0 %v3427
        %3595 = vmatmul.mubr.bf16.gmra.mrb[0].mxu0 %v3426
        %v3596 = vpop.f32.mrb[0].mxu0
        %v3597 = vadd.f32 0.0, %v3596
        %v3598 = vpop.f32.mrb[0].mxu0
        %v3599 = vpop.f32.mrb[0].mxu0
        %v3600 = vadd.f32 0.0, %v3599
        %v3601 = vpop.f32.mrb[0].mxu0
        %3602 = vmatprep.mubr.bf16.mxu0 %v3429
        %3603 = vmatmul.mubr.bf16.gmra.mrb[0].mxu0 %v3428
        %v3604 = vpop.f32.mrb[0].mxu0
        %v3605 = vadd.f32 0.0, %v3604
        %v3606 = vpop.f32.mrb[0].mxu0
        %v3607 = vpop.f32.mrb[0].mxu0
        %v3608 = vadd.f32 0.0, %v3607
        %v3609 = vpop.f32.mrb[0].mxu0
        %3610 = vmatprep.mubr.bf16.mxu0 %v3431
        %3611 = vmatmul.mubr.bf16.gmra.mrb[0].mxu0 %v3430
        %v3612 = vpop.f32.mrb[0].mxu0
        %v3613 = vadd.f32 0.0, %v3612
        %v3614 = vpop.f32.mrb[0].mxu0
        %v3615 = vpop.f32.mrb[0].mxu0
        %v3616 = vadd.f32 0.0, %v3615
        %v3617 = vpop.f32.mrb[0].mxu0
        %3618 = vmatprep.mubr.bf16.mxu0 %v3433
        %3619 = vmatmul.mubr.bf16.gmra.mrb[0].mxu0 %v3432
        %v3620 = vpop.f32.mrb[0].mxu0
        %v3621 = vadd.f32 0.0, %v3620
        %v3622 = vpop.f32.mrb[0].mxu0
        %v3623 = vpop.f32.mrb[0].mxu0
        %v3624 = vadd.f32 0.0, %v3623
        %v3625 = vpop.f32.mrb[0].mxu0
        %3626 = vdwg.mxu0
        %v3627 = vadd.f32 %v3158, %v3597
        %v3628 = vadd.f32 %v3159, %v3600
        %v3629 = vadd.f32 %v3160, %v3605
        %v3630 = vadd.f32 %v3161, %v3608
        %v3631 = vadd.f32 %v3162, %v3613
        %v3632 = vadd.f32 %v3163, %v3616
        %v3633 = vadd.f32 %v3164, %v3621
        %v3634 = vadd.f32 %v3165, %v3624
        %v3635 = vmul.f32 %v3627, %v3627
        %v3636 = vmul.f32 %v3628, %v3628
        %v3637 = vmul.f32 %v3629, %v3629
        %v3638 = vmul.f32 %v3630, %v3630
        %v3639 = vmul.f32 %v3631, %v3631
        %v3640 = vmul.f32 %v3632, %v3632
        %v3641 = vmul.f32 %v3633, %v3633
        %v3642 = vmul.f32 %v3634, %v3634
        %3643 = vadd.xlane.f32.xlu0 %v3635
        %v3644 = vpop.xlane.xlu0 %3643
        %3645 = vadd.xlane.f32.xlu0 %v3636
        %v3646 = vpop.xlane.xlu0 %3645
        %3647 = vadd.xlane.f32.xlu0 %v3637
        %v3648 = vpop.xlane.xlu0 %3647
        %3649 = vadd.xlane.f32.xlu0 %v3638
        %v3650 = vpop.xlane.xlu0 %3649
        %3651 = vadd.xlane.f32.xlu0 %v3639
        %v3652 = vpop.xlane.xlu0 %3651
        %3653 = vadd.xlane.f32.xlu0 %v3640
        %v3654 = vpop.xlane.xlu0 %3653
        %3655 = vadd.xlane.f32.xlu0 %v3641
        %v3656 = vpop.xlane.xlu0 %3655
        %3657 = vadd.xlane.f32.xlu0 %v3642
        %v3658 = vpop.xlane.xlu0 %3657
        %v3659 = vmul.f32 %v3644, %v619
        %v3660 = vmul.f32 %v3646, %v619
        %v3661 = vmul.f32 %v3648, %v619
        %v3662 = vmul.f32 %v3650, %v619
        %v3663 = vmul.f32 %v3652, %v619
        %v3664 = vmul.f32 %v3654, %v619
        %v3665 = vmul.f32 %v3656, %v619
        %v3666 = vmul.f32 %v3658, %v619
        %v3667 = vadd.f32 %v3659, 1e-06
        %v3668 = vadd.f32 %v3660, 1e-06
        %v3669 = vadd.f32 %v3661, 1e-06
        %v3670 = vadd.f32 %v3662, 1e-06
        %v3671 = vadd.f32 %v3663, 1e-06
        %v3672 = vadd.f32 %v3664, 1e-06
        %v3673 = vadd.f32 %v3665, 1e-06
        %v3674 = vadd.f32 %v3666, 1e-06
        %v3675 = vrsqrt.pop %v3667
        %v3676 = vrsqrt.pop %v3668
        %v3677 = vrsqrt.pop %v3669
        %v3678 = vrsqrt.pop %v3670
        %v3679 = vrsqrt.pop %v3671
        %v3680 = vrsqrt.pop %v3672
        %v3681 = vrsqrt.pop %v3673
        %v3682 = vrsqrt.pop %v3674
        %v3683 = vmul.f32 %v3627, %v3675
        %v3684 = vmul.f32 %v3628, %v3676
        %v3685 = vmul.f32 %v3629, %v3677
        %v3686 = vmul.f32 %v3630, %v3678
        %v3687 = vmul.f32 %v3631, %v3679
        %v3688 = vmul.f32 %v3632, %v3680
        %v3689 = vmul.f32 %v3633, %v3681
        %v3690 = vmul.f32 %v3634, %v3682
        %v3691 = vld [vmem:[%s9] sm:$0x1]
        %v3693 = vlaneseq
        %v3694 = vshrl.u32 %v3693, 7
        %v3695 = vsub.s32 0, %v3694
        %v3696 = vrot.slane %v3691, %v3695
        %v3698 = vmul.f32 %v3683, %v3696
        %v3699 = vmul.f32 %v3684, %v3696
        %v3700 = vmul.f32 %v3685, %v3696
        %v3701 = vmul.f32 %v3686, %v3696
        %v3702 = vmul.f32 %v3687, %v3696
        %v3703 = vmul.f32 %v3688, %v3696
        %v3704 = vmul.f32 %v3689, %v3696
        %v3705 = vmul.f32 %v3690, %v3696
        %v3706 = vpack.c.bf16 %v3699, %v3698
        %v3707 = vpack.c.bf16 %v3701, %v3700
        %v3708 = vpack.c.bf16 %v3703, %v3702
        %v3709 = vpack.c.bf16 %v3705, %v3704
        %v3714 = vunpack.c.l.b16 %v3706
        %v3715 = vunpack.c.h.b16 %v3706
        %v3716 = vunpack.c.l.b16 %v3707
        %v3717 = vunpack.c.h.b16 %v3707
        %v3718 = vunpack.c.l.b16 %v3708
        %v3719 = vunpack.c.h.b16 %v3708
        %v3720 = vunpack.c.l.b16 %v3709
        %v3721 = vunpack.c.h.b16 %v3709
        %v3722 = vpack.c.b16 %v3714, %v3714
        %v3723 = vpack.c.b16 %v3715, %v3715
        %v3724 = vpack.c.b16 %v3716, %v3716
        %v3725 = vpack.c.b16 %v3717, %v3717
        %v3726 = vpack.c.b16 %v3718, %v3718
        %v3727 = vpack.c.b16 %v3719, %v3719
        %v3728 = vpack.c.b16 %v3720, %v3720
        %v3729 = vpack.c.b16 %v3721, %v3721
        %3738 = vst [vmem:[%s490] sm:$0xf] %v3722
        %3739 = vst [vmem:[%s490 + $0x4] sm:$0xf] %v3723
        %3740 = vst [vmem:[%s490 + $0x8] sm:$0xf] %v3724
        %3741 = vst [vmem:[%s490 + $0xc] sm:$0xf] %v3725
        %3742 = vst [vmem:[%s490 + $0x10] sm:$0xf] %v3726
        %3743 = vst [vmem:[%s490 + $0x14] sm:$0xf] %v3727
        %3744 = vst [vmem:[%s490 + $0x18] sm:$0xf] %v3728
        %3745 = vst [vmem:[%s490 + $0x1c] sm:$0xf] %v3729
        %s3746 = sand.u32 %s260, 1
        %s3747 = scalar_lea.sflag [#allocation4], %s3746
        %s3748 = sand.u32 %s260, 1
        %s3749 = smul.addr %s3748, 32
        %s3750 = scalar_lea.vmem [#allocation14], %s3749
        // Predicated region
        $region89: #{tpu_custom_call.1} parent=59 // pred_check
          %p3751 = pneg %p270
        $region90: #{tpu_custom_call.1} parent=59 // pred_check_branch
          %3753 = sbr.rel (%p3751) target = $region92
        $region91: #{tpu_custom_call.1} parent=59 // pred_region
          %s3754 = smul.u32 4, %s32
          %s3756 = ssub.s32 512, 512
          %3757 = vsyncadd %s3747, %s3756
          %s3758 = smul.addr %s3754, 2
          %s3759 = smul.addr %s3758, 64
          %s3760 = scalar_lea.hbm %s10, %s3759
          %s3761 = sshll.u32 %s3750, 4
          %s3762 = int_to_ptr.vmem [resolvable:$true] %s3761
          %3767 = dma.vmem_to_hbm [thread:$0]  %s3762, 512, %s3760, %s3747, 64, 64, 4
        $region92: #{tpu_custom_call.1} parent=59 // pred_fallthru
          _
      $region60: #{tpu_custom_call.1} parent=5 // pred_fallthru
        _
      %p3768 = scmp.le.s32.totalorder 2, %s27
      // Predicated region
      $region93: #{tpu_custom_call.1} parent=5 // pred_check
        %p3769 = pneg %p3768
      $region94: #{tpu_custom_call.1} parent=5 // pred_check_branch
        %3771 = sbr.rel (%p3769) target = $region96
      $region95: #{tpu_custom_call.1} parent=5 // pred_region
        %s3772 = ssub.s32 %s27, 2
        // Predicated region
        $region97: #{tpu_custom_call.1} parent=95 // pred_check
          %p3773 = pneg %p276
        $region98: #{tpu_custom_call.1} parent=95 // pred_check_branch
          %3775 = sbr.rel (%p3773) target = $region100
        $region99: #{tpu_custom_call.1} parent=95 // pred_region
          %s3776 = sand.u32 %s261, 1
          %s3777 = scalar_lea.sflag [#allocation4], %s3776
          %s3778 = sand.u32 %s261, 1
          %s3779 = smul.addr %s3778, 32
          %s3780 = scalar_lea.vmem [#allocation14], %s3779
          %3781 = dma.done %s3777, 512
        $region100: #{tpu_custom_call.1} parent=95 // pred_fallthru
          _
      $region96: #{tpu_custom_call.1} parent=5 // pred_fallthru
        _
    $region6: #{tpu_custom_call.1} parent=1 // loop_footer
      %s31 = sadd.s32 1, %s27
    $region7: #{tpu_custom_call.1} parent=1 // loop_footer_branch
      %26 = sbr.rel target = $region3
    $region8: #{tpu_custom_call.1} parent=1 // loop_exit
      _
    %3782 = vsyncpa [#allocation3], 1
    %s3783 = scalar_lea.sflag [#allocation3], 1
    %3784 = vsyncpa %s3783, 1
    %3785 = vsyncpa [#allocation6], 1
    %s3786 = scalar_lea.sflag [#allocation6], 1
    %3787 = vsyncpa %s3786, 1
    %3788 = vsyncpa [#allocation9], 1
    %3789 = vsyncpa [#allocation12], 1
    %3790 = vsyncpa [#allocation4], 1
    %s3791 = scalar_lea.sflag [#allocation4], 1
    %3792 = vsyncpa %s3791, 1

// kernel: tpu_custom_call.1
$region0: #{tpu_custom_call.1}
  #allocation0 [shape = 'u32[]', space=smem, size = 0x4, offset = 0x4, fixed_abs, tag = 'smem constant byte address 0x4 - core index']
  #allocation1 [shape = 'u32[144,128]{1,0:T(1,128)}', space=vmem, size = 0x12000, scoped, tag = 'internal scratch']
  %s0 = inlined_call_operand.hbm [shape: bf16[8,16,128], index: 0, kind: input, shape index: {}]
  %s1 = inlined_call_operand.hbm [shape: f32[8,1,16], index: 1, kind: input, shape index: {}]
  %s2 = inlined_call_operand.hbm [shape: bf16[4,16,16], index: 2, kind: input, shape index: {}]
  %s3 = inlined_call_operand.vmem [shape: f32[1,128], index: 3, kind: input, shape index: {}]
  %s4 = inlined_call_operand.hbm [shape: bf16[128,384], index: 4, kind: input, shape index: {}]
  %s5 = inlined_call_operand.hbm [shape: bf16[128,128], index: 5, kind: input, shape index: {}]
  %s6 = inlined_call_operand.vmem [shape: f32[1,128], index: 6, kind: input, shape index: {}]
  %s7 = inlined_call_operand.hbm [shape: bf16[128,256], index: 7, kind: input, shape index: {}]
  %s8 = inlined_call_operand.hbm [shape: bf16[256,128], index: 8, kind: input, shape index: {}]
  %s9 = inlined_call_operand.vmem [shape: f32[1,128], index: 9, kind: input, shape index: {}]
  %s10 = inlined_call_operand.hbm [shape: bf16[8,16,128], index: 10, kind: output, shape index: {}]
  %s11 = sld [smem:[#allocation0]]
  $region101: #{tpu_custom_call.1} parent=0
    _
  %s13 = ssub.s32 1, %s11
  %s14 = scalar_select 0, %s13, %s11
  $region1: #{tpu_custom_call.1} parent=0
    #allocation2 [shape = 'u8[32768]{0}', space=vmem, size = 0x8000, scoped, tag = 'input window, operand 0']
    #allocation3 [shape = 's32[2]{0}', space=sflag, size = 0x8, scoped, tag = 'scoped memory for tpu_custom_call.1']
    #allocation4 [shape = 's32[2]{0}', space=sflag, size = 0x8, scoped, tag = 'scoped memory for tpu_custom_call.1']
    #allocation5 [shape = 'u8[4096]{0}', space=vmem, size = 0x1000, scoped, tag = 'input window, operand 1']
    #allocation6 [shape = 's32[2]{0}', space=sflag, size = 0x8, scoped, tag = 'scoped memory for tpu_custom_call.1']
    #allocation7 [shape = 'u8[16384]{0}', space=vmem, size = 0x4000, scoped, tag = 'input window, operand 2, single buffered']
    #allocation8 [shape = 'u8[98304]{0}', space=vmem, size = 0x18000, scoped, tag = 'input window, operand 4, single buffered']
    #allocation9 [shape = 's32[1]{0}', space=sflag, size = 0x4, scoped, tag = 'scoped memory for tpu_custom_call.1']
    #allocation10 [shape = 'u8[32768]{0}', space=vmem, size = 0x8000, scoped, tag = 'input window, operand 5, single buffered']
    #allocation11 [shape = 'u8[65536]{0}', space=vmem, size = 0x10000, scoped, tag = 'input window, operand 7, single buffered']
    #allocation12 [shape = 's32[1]{0}', space=sflag, size = 0x4, scoped, tag = 'scoped memory for tpu_custom_call.1']
    #allocation13 [shape = 'u8[65536]{0}', space=vmem, size = 0x10000, scoped, tag = 'input window, operand 8, single buffered']
    #allocation14 [shape = 'u8[32768]{0}', space=vmem, size = 0x8000, scoped, tag = 'output window, operand 0']
    %15 = vsyncpa [#allocation3], 0
    %s16 = scalar_lea.sflag [#allocation3], 1
    %17 = vsyncpa %s16, 0
    %18 = vsyncpa [#allocation6], 0
    %s19 = scalar_lea.sflag [#allocation6], 1
    %20 = vsyncpa %s19, 0
    %21 = vsyncpa [#allocation9], 0
    %22 = vsyncpa [#allocation12], 0
    %23 = vsyncpa [#allocation4], 0
    %s24 = scalar_lea.sflag [#allocation4], 1
    %25 = vsyncpa %s24, 0
    loop: start=0, step=1, limit=4
    $region2: #{tpu_custom_call.1} parent=1 // loop_pre_header
      _
    $region3: #{tpu_custom_call.1} parent=1 // loop_header
      %s27 = sphi 0, %s31
      %p28 = scmp.ge.s32.totalorder %s27, 4
      %s37 = sphi 0, %s39
      %s40 = sphi 0, %s37
      %s41 = sphi 0, %s40
      %s57 = sphi 0, %s41
      %s63 = sphi 0, %s65
      %s66 = sphi 0, %s63
      %s67 = sphi 0, %s66
      %s83 = sphi 0, %s67
      %s87 = sphi 0, %s87
      %s89 = sphi 0, %s87
      %s90 = sphi 0, %s89
      %s104 = sphi 0, %s90
      %s108 = sphi 0, %s108
      %s110 = sphi 0, %s108
      %s111 = sphi 0, %s110
      %s125 = sphi 0, %s111
      %s129 = sphi 0, %s129
      %s131 = sphi 0, %s129
      %s132 = sphi 0, %s131
      %s146 = sphi 0, %s132
      %s150 = sphi 0, %s150
      %s152 = sphi 0, %s150
      %s153 = sphi 0, %s152
      %s167 = sphi 0, %s153
      %s171 = sphi 0, %s171
      %s173 = sphi 0, %s171
      %s174 = sphi 0, %s173
      %s188 = sphi 0, %s174
      %s192 = sphi 0, %s192
      %s194 = sphi 0, %s192
      %s195 = sphi 0, %s194
      %s209 = sphi 0, %s195
      %s213 = sphi 0, %s213
      %s215 = sphi 0, %s213
      %s216 = sphi 0, %s215
      %s230 = sphi 0, %s216
      %s234 = sphi 0, %s234
      %s236 = sphi 0, %s234
      %s237 = sphi 0, %s236
      %s251 = sphi 0, %s237
      %s257 = sphi 0, %s259
      %s260 = sphi 0, %s257
      %s261 = sphi 0, %s260
      %s277 = sphi 0, %s261
    $region4: #{tpu_custom_call.1} parent=1 // loop_header_branch
      %30 = sbr.rel (%p28) target = $region8
    $region5: #{tpu_custom_call.1} parent=1 // loop_body
      %s32 = ssub.s32 %s27, 1
      %s33 = ssub.s32 %s27, 2
      %s34 = sadd.s32 %s27, 1
      %s35 = ssub.s32 %s27, %s34
      %p36 = scmp.eq.s32.totalorder %s35, 0
      %s38 = sadd.s32 %s37, 1
      %s39 = scalar_select %p36, %s37, %s38
      %p42 = pneg %p36
      %p43 = scmp.eq.s32.totalorder %s27, 1
      %p44 = por %p42, %p43
      %p45 = scmp.ne.s32.totalorder %s37, %s40
      %p46 = scmp.eq.s32.totalorder %s27, 0
      %p47 = por %p45, %p46
      %p48 = scmp.ne.s32.totalorder %s37, %s40
      %p49 = scmp.eq.s32.totalorder %s32, 1
      %p50 = por %p48, %p49
      %p51 = scmp.ne.s32.totalorder %s40, %s41
      %p52 = scmp.eq.s32.totalorder %s32, 0
      %p53 = por %p51, %p52
      %p54 = scmp.ne.s32.totalorder %s40, %s41
      %p55 = scmp.eq.s32.totalorder %s33, 1
      %p56 = por %p54, %p55
      %p58 = scmp.ne.s32.totalorder %s41, %s57
      %p59 = scmp.eq.s32.totalorder %s33, 0
      %p60 = por %p58, %p59
      %s61 = ssub.s32 %s27, %s34
      %p62 = scmp.eq.s32.totalorder %s61, 0
      %s64 = sadd.s32 %s63, 1
      %s65 = scalar_select %p62, %s63, %s64
      %p68 = pneg %p62
      %p69 = scmp.eq.s32.totalorder %s27, 1
      %p70 = por %p68, %p69
      %p71 = scmp.ne.s32.totalorder %s63, %s66
      %p72 = scmp.eq.s32.totalorder %s27, 0
      %p73 = por %p71, %p72
      %p74 = scmp.ne.s32.totalorder %s63, %s66
      %p75 = scmp.eq.s32.totalorder %s32, 1
      %p76 = por %p74, %p75
      %p77 = scmp.ne.s32.totalorder %s66, %s67
      %p78 = scmp.eq.s32.totalorder %s32, 0
      %p79 = por %p77, %p78
      %p80 = scmp.ne.s32.totalorder %s66, %s67
      %p81 = scmp.eq.s32.totalorder %s33, 1
      %p82 = por %p80, %p81
      %p84 = scmp.ne.s32.totalorder %s67, %s83
      %p85 = scmp.eq.s32.totalorder %s33, 0
      %p86 = por %p84, %p85
      %s88 = sadd.s32 %s87, 1
      %p91 = scmp.eq.s32.totalorder %s27, 1
      %p92 = scmp.ne.s32.totalorder %s87, %s89
      %p93 = scmp.eq.s32.totalorder %s27, 0
      %p94 = por %p92, %p93
      %p95 = scmp.ne.s32.totalorder %s87, %s89
      %p96 = scmp.eq.s32.totalorder %s32, 1
      %p97 = por %p95, %p96
      %p98 = scmp.ne.s32.totalorder %s89, %s90
      %p99 = scmp.eq.s32.totalorder %s32, 0
      %p100 = por %p98, %p99
      %p101 = scmp.ne.s32.totalorder %s89, %s90
      %p102 = scmp.eq.s32.totalorder %s33, 1
      %p103 = por %p101, %p102
      %p105 = scmp.ne.s32.totalorder %s90, %s104
      %p106 = scmp.eq.s32.totalorder %s33, 0
      %p107 = por %p105, %p106
      %s109 = sadd.s32 %s108, 1
      %p112 = scmp.eq.s32.totalorder %s27, 1
      %p113 = scmp.ne.s32.totalorder %s108, %s110
      %p114 = scmp.eq.s32.totalorder %s27, 0
      %p115 = por %p113, %p114
      %p116 = scmp.ne.s32.totalorder %s108, %s110
      %p117 = scmp.eq.s32.totalorder %s32, 1
      %p118 = por %p116, %p117
      %p119 = scmp.ne.s32.totalorder %s110, %s111
      %p120 = scmp.eq.s32.totalorder %s32, 0
      %p121 = por %p119, %p120
      %p122 = scmp.ne.s32.totalorder %s110, %s111
      %p123 = scmp.eq.s32.totalorder %s33, 1
      %p124 = por %p122, %p123
      %p126 = scmp.ne.s32.totalorder %s111, %s125
      %p127 = scmp.eq.s32.totalorder %s33, 0
      %p128 = por %p126, %p127
      %s130 = sadd.s32 %s129, 1
      %p133 = scmp.eq.s32.totalorder %s27, 1
      %p134 = scmp.ne.s32.totalorder %s129, %s131
      %p135 = scmp.eq.s32.totalorder %s27, 0
      %p136 = por %p134, %p135
      %p137 = scmp.ne.s32.totalorder %s129, %s131
      %p138 = scmp.eq.s32.totalorder %s32, 1
      %p139 = por %p137, %p138
      %p140 = scmp.ne.s32.totalorder %s131, %s132
      %p141 = scmp.eq.s32.totalorder %s32, 0
      %p142 = por %p140, %p141
      %p143 = scmp.ne.s32.totalorder %s131, %s132
      %p144 = scmp.eq.s32.totalorder %s33, 1
      %p145 = por %p143, %p144
      %p147 = scmp.ne.s32.totalorder %s132, %s146
      %p148 = scmp.eq.s32.totalorder %s33, 0
      %p149 = por %p147, %p148
      %s151 = sadd.s32 %s150, 1
      %p154 = scmp.eq.s32.totalorder %s27, 1
      %p155 = scmp.ne.s32.totalorder %s150, %s152
      %p156 = scmp.eq.s32.totalorder %s27, 0
      %p157 = por %p155, %p156
      %p158 = scmp.ne.s32.totalorder %s150, %s152
      %p159 = scmp.eq.s32.totalorder %s32, 1
      %p160 = por %p158, %p159
      %p161 = scmp.ne.s32.totalorder %s152, %s153
      %p162 = scmp.eq.s32.totalorder %s32, 0
      %p163 = por %p161, %p162
      %p164 = scmp.ne.s32.totalorder %s152, %s153
      %p165 = scmp.eq.s32.totalorder %s33, 1
      %p166 = por %p164, %p165
      %p168 = scmp.ne.s32.totalorder %s153, %s167
      %p169 = scmp.eq.s32.totalorder %s33, 0
      %p170 = por %p168, %p169
      %s172 = sadd.s32 %s171, 1
      %p175 = scmp.eq.s32.totalorder %s27, 1
      %p176 = scmp.ne.s32.totalorder %s171, %s173
      %p177 = scmp.eq.s32.totalorder %s27, 0
      %p178 = por %p176, %p177
      %p179 = scmp.ne.s32.totalorder %s171, %s173
      %p180 = scmp.eq.s32.totalorder %s32, 1
      %p181 = por %p179, %p180
      %p182 = scmp.ne.s32.totalorder %s173, %s174
      %p183 = scmp.eq.s32.totalorder %s32, 0
      %p184 = por %p182, %p183
      %p185 = scmp.ne.s32.totalorder %s173, %s174
      %p186 = scmp.eq.s32.totalorder %s33, 1
      %p187 = por %p185, %p186
      %p189 = scmp.ne.s32.totalorder %s174, %s188
      %p190 = scmp.eq.s32.totalorder %s33, 0
      %p191 = por %p189, %p190
      %s193 = sadd.s32 %s192, 1
      %p196 = scmp.eq.s32.totalorder %s27, 1
      %p197 = scmp.ne.s32.totalorder %s192, %s194
      %p198 = scmp.eq.s32.totalorder %s27, 0
      %p199 = por %p197, %p198
      %p200 = scmp.ne.s32.totalorder %s192, %s194
      %p201 = scmp.eq.s32.totalorder %s32, 1
      %p202 = por %p200, %p201
      %p203 = scmp.ne.s32.totalorder %s194, %s195
      %p204 = scmp.eq.s32.totalorder %s32, 0
      %p205 = por %p203, %p204
      %p206 = scmp.ne.s32.totalorder %s194, %s195
      %p207 = scmp.eq.s32.totalorder %s33, 1
      %p208 = por %p206, %p207
      %p210 = scmp.ne.s32.totalorder %s195, %s209
      %p211 = scmp.eq.s32.totalorder %s33, 0
      %p212 = por %p210, %p211
      %s214 = sadd.s32 %s213, 1
      %p217 = scmp.eq.s32.totalorder %s27, 1
      %p218 = scmp.ne.s32.totalorder %s213, %s215
      %p219 = scmp.eq.s32.totalorder %s27, 0
      %p220 = por %p218, %p219
      %p221 = scmp.ne.s32.totalorder %s213, %s215
      %p222 = scmp.eq.s32.totalorder %s32, 1
      %p223 = por %p221, %p222
      %p224 = scmp.ne.s32.totalorder %s215, %s216
      %p225 = scmp.eq.s32.totalorder %s32, 0
      %p226 = por %p224, %p225
      %p227 = scmp.ne.s32.totalorder %s215, %s216
      %p228 = scmp.eq.s32.totalorder %s33, 1
      %p229 = por %p227, %p228
      %p231 = scmp.ne.s32.totalorder %s216, %s230
      %p232 = scmp.eq.s32.totalorder %s33, 0
      %p233 = por %p231, %p232
      %s235 = sadd.s32 %s234, 1
      %p238 = scmp.eq.s32.totalorder %s27, 1
      %p239 = scmp.ne.s32.totalorder %s234, %s236
      %p240 = scmp.eq.s32.totalorder %s27, 0
      %p241 = por %p239, %p240
      %p242 = scmp.ne.s32.totalorder %s234, %s236
      %p243 = scmp.eq.s32.totalorder %s32, 1
      %p244 = por %p242, %p243
      %p245 = scmp.ne.s32.totalorder %s236, %s237
      %p246 = scmp.eq.s32.totalorder %s32, 0
      %p247 = por %p245, %p246
      %p248 = scmp.ne.s32.totalorder %s236, %s237
      %p249 = scmp.eq.s32.totalorder %s33, 1
      %p250 = por %p248, %p249
      %p252 = scmp.ne.s32.totalorder %s237, %s251
      %p253 = scmp.eq.s32.totalorder %s33, 0
      %p254 = por %p252, %p253
      %s255 = ssub.s32 %s27, %s34
      %p256 = scmp.eq.s32.totalorder %s255, 0
      %s258 = sadd.s32 %s257, 1
      %s259 = scalar_select %p256, %s257, %s258
      %p262 = pneg %p256
      %p263 = scmp.eq.s32.totalorder %s27, 1
      %p264 = por %p262, %p263
      %p265 = scmp.ne.s32.totalorder %s257, %s260
      %p266 = scmp.eq.s32.totalorder %s27, 0
      %p267 = por %p265, %p266
      %p268 = scmp.ne.s32.totalorder %s257, %s260
      %p269 = scmp.eq.s32.totalorder %s32, 1
      %p270 = por %p268, %p269
      %p271 = scmp.ne.s32.totalorder %s260, %s261
      %p272 = scmp.eq.s32.totalorder %s32, 0
      %p273 = por %p271, %p272
      %p274 = scmp.ne.s32.totalorder %s260, %s261
      %p275 = scmp.eq.s32.totalorder %s33, 1
      %p276 = por %p274, %p275
      %p278 = scmp.ne.s32.totalorder %s261, %s277
      %p279 = scmp.eq.s32.totalorder %s33, 0
      %p280 = por %p278, %p279
      %p281 = scmp.le.s32.totalorder 1, %s27
      %p282 = scmp.lt.s32.totalorder %s27, 3
      %p283 = pnand %p281, %p282
      %p284 = pneg %p283
      // Predicated region
      $region9: #{tpu_custom_call.1} parent=5 // pred_check
        _
      $region10: #{tpu_custom_call.1} parent=5 // pred_check_branch
        %286 = sbr.rel (%p283) target = $region12
      $region11: #{tpu_custom_call.1} parent=5 // pred_region
        %s287 = ssub.s32 %s27, 1
        // Predicated region
        $region13: #{tpu_custom_call.1} parent=11 // pred_check
          %p288 = pneg %p100
        $region14: #{tpu_custom_call.1} parent=11 // pred_check_branch
          %290 = sbr.rel (%p288) target = $region16
        $region15: #{tpu_custom_call.1} parent=11 // pred_region
          %s292 = ssub.s32 512, 512
          %293 = vsyncadd [#allocation6], %s292
          %s294 = sshll.u32 [#allocation7], 4
          %s295 = int_to_ptr.vmem [resolvable:$true] %s294
          %300 = dma.hbm_to_vmem [thread:$0]  %s2, 512, %s295, [#allocation6], 64, 64, 4
        $region16: #{tpu_custom_call.1} parent=11 // pred_fallthru
          _
        // Predicated region
        $region17: #{tpu_custom_call.1} parent=11 // pred_check
          %p301 = pneg %p121
        $region18: #{tpu_custom_call.1} parent=11 // pred_check_branch
          %303 = sbr.rel (%p301) target = $region20
        $region19: #{tpu_custom_call.1} parent=11 // pred_region
          _
        $region20: #{tpu_custom_call.1} parent=11 // pred_fallthru
          _
        // Predicated region
        $region21: #{tpu_custom_call.1} parent=11 // pred_check
          %p304 = pneg %p142
        $region22: #{tpu_custom_call.1} parent=11 // pred_check_branch
          %306 = sbr.rel (%p304) target = $region24
        $region23: #{tpu_custom_call.1} parent=11 // pred_region
          %s308 = ssub.s32 3072, 3072
          %309 = vsyncadd [#allocation9], %s308
          %s310 = sshll.u32 [#allocation8], 4
          %s311 = int_to_ptr.vmem [resolvable:$true] %s310
          %316 = dma.hbm_to_vmem [thread:$0]  %s4, 3072, %s311, [#allocation9], 192, 192, 12
        $region24: #{tpu_custom_call.1} parent=11 // pred_fallthru
          _
        // Predicated region
        $region25: #{tpu_custom_call.1} parent=11 // pred_check
          %p317 = pneg %p163
        $region26: #{tpu_custom_call.1} parent=11 // pred_check_branch
          %319 = sbr.rel (%p317) target = $region28
        $region27: #{tpu_custom_call.1} parent=11 // pred_region
          %s321 = ssub.s32 1024, 1024
          %322 = vsyncadd [#allocation9], %s321
          %s323 = sshll.u32 [#allocation10], 4
          %s324 = int_to_ptr.vmem [resolvable:$true] %s323
          %329 = dma.hbm_to_vmem [thread:$0]  %s5, 1024, %s324, [#allocation9], 64, 64, 4
        $region28: #{tpu_custom_call.1} parent=11 // pred_fallthru
          _
        // Predicated region
        $region29: #{tpu_custom_call.1} parent=11 // pred_check
          %p330 = pneg %p184
        $region30: #{tpu_custom_call.1} parent=11 // pred_check_branch
          %332 = sbr.rel (%p330) target = $region32
        $region31: #{tpu_custom_call.1} parent=11 // pred_region
          _
        $region32: #{tpu_custom_call.1} parent=11 // pred_fallthru
          _
        // Predicated region
        $region33: #{tpu_custom_call.1} parent=11 // pred_check
          %p333 = pneg %p205
        $region34: #{tpu_custom_call.1} parent=11 // pred_check_branch
          %335 = sbr.rel (%p333) target = $region36
        $region35: #{tpu_custom_call.1} parent=11 // pred_region
          %s337 = ssub.s32 2048, 2048
          %338 = vsyncadd [#allocation12], %s337
          %s339 = sshll.u32 [#allocation11], 4
          %s340 = int_to_ptr.vmem [resolvable:$true] %s339
          %345 = dma.hbm_to_vmem [thread:$0]  %s7, 2048, %s340, [#allocation12], 128, 128, 8
        $region36: #{tpu_custom_call.1} parent=11 // pred_fallthru
          _
        // Predicated region
        $region37: #{tpu_custom_call.1} parent=11 // pred_check
          %p346 = pneg %p226
        $region38: #{tpu_custom_call.1} parent=11 // pred_check_branch
          %348 = sbr.rel (%p346) target = $region40
        $region39: #{tpu_custom_call.1} parent=11 // pred_region
          %s350 = ssub.s32 2048, 2048
          %351 = vsyncadd [#allocation12], %s350
          %s352 = sshll.u32 [#allocation13], 4
          %s353 = int_to_ptr.vmem [resolvable:$true] %s352
          %358 = dma.hbm_to_vmem [thread:$0]  %s8, 2048, %s353, [#allocation12], 64, 64, 4
        $region40: #{tpu_custom_call.1} parent=11 // pred_fallthru
          _
        // Predicated region
        $region41: #{tpu_custom_call.1} parent=11 // pred_check
          %p359 = pneg %p247
        $region42: #{tpu_custom_call.1} parent=11 // pred_check_branch
          %361 = sbr.rel (%p359) target = $region44
        $region43: #{tpu_custom_call.1} parent=11 // pred_region
          _
        $region44: #{tpu_custom_call.1} parent=11 // pred_fallthru
          _
      $region12: #{tpu_custom_call.1} parent=5 // pred_fallthru
        _
      %p362 = scmp.lt.s32.totalorder %s27, 2
      // Predicated region
      $region45: #{tpu_custom_call.1} parent=5 // pred_check
        %p363 = pneg %p362
      $region46: #{tpu_custom_call.1} parent=5 // pred_check_branch
        %365 = sbr.rel (%p363) target = $region48
      $region47: #{tpu_custom_call.1} parent=5 // pred_region
        // Predicated region
        $region49: #{tpu_custom_call.1} parent=47 // pred_check
          %p366 = pneg %p47
        $region50: #{tpu_custom_call.1} parent=47 // pred_check_branch
          %368 = sbr.rel (%p366) target = $region52
        $region51: #{tpu_custom_call.1} parent=47 // pred_region
          %s369 = sand.u32 %s37, 1
          %s370 = scalar_lea.sflag [#allocation3], %s369
          %s371 = sand.u32 %s37, 1
          %s372 = smul.addr %s371, 32
          %s373 = scalar_lea.vmem [#allocation2], %s372
          %s374 = smul.u32 4, %s27
          %s376 = ssub.s32 512, 512
          %377 = vsyncadd %s370, %s376
          %s378 = smul.addr %s374, 2
          %s379 = smul.addr %s378, 64
          %s380 = scalar_lea.hbm %s0, %s379
          %s381 = sshll.u32 %s373, 4
          %s382 = int_to_ptr.vmem [resolvable:$true] %s381
          %387 = dma.hbm_to_vmem [thread:$0]  %s380, 512, %s382, %s370, 64, 64, 4
        $region52: #{tpu_custom_call.1} parent=47 // pred_fallthru
          _
        // Predicated region
        $region53: #{tpu_custom_call.1} parent=47 // pred_check
          %p388 = pneg %p73
        $region54: #{tpu_custom_call.1} parent=47 // pred_check_branch
          %390 = sbr.rel (%p388) target = $region56
        $region55: #{tpu_custom_call.1} parent=47 // pred_region
          %s391 = sand.u32 %s27, 1
          %s392 = scalar_lea.sflag [#allocation6], %s391
          %s393 = sand.u32 %s63, 1
          %s394 = smul.addr %s393, 4
          %s395 = scalar_lea.vmem [#allocation5], %s394
          %s396 = smul.u32 4, %s27
          %s398 = ssub.s32 64, 64
          %399 = vsyncadd %s392, %s398
          %s400 = smul.addr %s396, 16
          %s401 = scalar_lea.hbm %s1, %s400
          %s402 = sshll.u32 %s395, 4
          %s403 = int_to_ptr.vmem [resolvable:$true] %s402
          %408 = dma.hbm_to_vmem [thread:$0]  %s401, 64, %s403, %s392, 16, 16, 1
        $region56: #{tpu_custom_call.1} parent=47 // pred_fallthru
          _
      $region48: #{tpu_custom_call.1} parent=5 // pred_fallthru
        _
      %p409 = scmp.le.s32.totalorder 1, %s27
      %p410 = scmp.lt.s32.totalorder %s27, 3
      %p411 = pnand %p409, %p410
      %p412 = pneg %p411
      // Predicated region
      $region57: #{tpu_custom_call.1} parent=5 // pred_check
        _
      $region58: #{tpu_custom_call.1} parent=5 // pred_check_branch
        %414 = sbr.rel (%p411) target = $region60
      $region59: #{tpu_custom_call.1} parent=5 // pred_region
        %s415 = ssub.s32 %s27, 1
        %s416 = sand.u32 %s40, 1
        %s417 = scalar_lea.sflag [#allocation3], %s416
        %s418 = sand.u32 %s40, 1
        %s419 = smul.addr %s418, 32
        %s420 = scalar_lea.vmem [#allocation2], %s419
        // Predicated region
        $region61: #{tpu_custom_call.1} parent=59 // pred_check
          %p421 = pneg %p53
        $region62: #{tpu_custom_call.1} parent=59 // pred_check_branch
          %423 = sbr.rel (%p421) target = $region64
        $region63: #{tpu_custom_call.1} parent=59 // pred_region
          %424 = dma.done %s417, 512
        $region64: #{tpu_custom_call.1} parent=59 // pred_fallthru
          _
        %s425 = sand.u32 %s32, 1
        %s426 = scalar_lea.sflag [#allocation6], %s425
        %s427 = sand.u32 %s66, 1
        %s428 = smul.addr %s427, 4
        %s429 = scalar_lea.vmem [#allocation5], %s428
        // Predicated region
        $region65: #{tpu_custom_call.1} parent=59 // pred_check
          %p430 = pneg %p79
        $region66: #{tpu_custom_call.1} parent=59 // pred_check_branch
          %432 = sbr.rel (%p430) target = $region68
        $region67: #{tpu_custom_call.1} parent=59 // pred_region
          %433 = dma.done %s426, 64
        $region68: #{tpu_custom_call.1} parent=59 // pred_fallthru
          _
        // Predicated region
        $region69: #{tpu_custom_call.1} parent=59 // pred_check
          %p434 = pneg %p100
        $region70: #{tpu_custom_call.1} parent=59 // pred_check_branch
          %436 = sbr.rel (%p434) target = $region72
        $region71: #{tpu_custom_call.1} parent=59 // pred_region
          %437 = dma.done [#allocation6], 512
        $region72: #{tpu_custom_call.1} parent=59 // pred_fallthru
          _
        // Predicated region
        $region73: #{tpu_custom_call.1} parent=59 // pred_check
          %p438 = pneg %p142
        $region74: #{tpu_custom_call.1} parent=59 // pred_check_branch
          %440 = sbr.rel (%p438) target = $region76
        $region75: #{tpu_custom_call.1} parent=59 // pred_region
          %441 = dma.done [#allocation9], 3072
        $region76: #{tpu_custom_call.1} parent=59 // pred_fallthru
          _
        // Predicated region
        $region77: #{tpu_custom_call.1} parent=59 // pred_check
          %p442 = pneg %p163
        $region78: #{tpu_custom_call.1} parent=59 // pred_check_branch
          %444 = sbr.rel (%p442) target = $region80
        $region79: #{tpu_custom_call.1} parent=59 // pred_region
          %445 = dma.done [#allocation9], 1024
        $region80: #{tpu_custom_call.1} parent=59 // pred_fallthru
          _
        // Predicated region
        $region81: #{tpu_custom_call.1} parent=59 // pred_check
          %p446 = pneg %p205
        $region82: #{tpu_custom_call.1} parent=59 // pred_check_branch
          %448 = sbr.rel (%p446) target = $region84
        $region83: #{tpu_custom_call.1} parent=59 // pred_region
          %449 = dma.done [#allocation12], 2048
        $region84: #{tpu_custom_call.1} parent=59 // pred_fallthru
          _
        // Predicated region
        $region85: #{tpu_custom_call.1} parent=59 // pred_check
          %p450 = pneg %p226
        $region86: #{tpu_custom_call.1} parent=59 // pred_check_branch
          %452 = sbr.rel (%p450) target = $region88
        $region87: #{tpu_custom_call.1} parent=59 // pred_region
          %453 = dma.done [#allocation12], 2048
        $region88: #{tpu_custom_call.1} parent=59 // pred_fallthru
          _
        %s454 = sand.u32 %s40, 1
        %s455 = scalar_lea.sflag [#allocation3], %s454
        %s456 = sand.u32 %s40, 1
        %s457 = smul.addr %s456, 32
        %s458 = scalar_lea.vmem [#allocation2], %s457
        %p459 = pneg %p53
        %p460 = pneg %p50
        %s461 = sand.u32 %s32, 1
        %s462 = scalar_lea.sflag [#allocation6], %s461
        %s463 = sand.u32 %s66, 1
        %s464 = smul.addr %s463, 4
        %s465 = scalar_lea.vmem [#allocation5], %s464
        %p466 = pneg %p79
        %p467 = pneg %p76
        %p468 = pneg %p100
        %p469 = pneg %p97
        %p470 = pneg %p121
        %p471 = pneg %p118
        %p472 = pneg %p142
        %p473 = pneg %p139
        %p474 = pneg %p163
        %p475 = pneg %p160
        %p476 = pneg %p184
        %p477 = pneg %p181
        %p478 = pneg %p205
        %p479 = pneg %p202
        %p480 = pneg %p226
        %p481 = pneg %p223
        %p482 = pneg %p247
        %p483 = pneg %p244
        %p484 = pneg %p273
        %p485 = pneg %p270
        %s486 = sand.u32 %s260, 1
        %s487 = scalar_lea.sflag [#allocation4], %s486
        %s488 = sand.u32 %s260, 1
        %s489 = smul.addr %s488, 32
        %s490 = scalar_lea.vmem [#allocation14], %s489
        %s491 = smul.u32 4, %s32
        %s492 = smul.u32 4, %s32
        %s493 = smul.u32 4, %s32
        %v495 = vld [vmem:[%s420] sm:$0xf]
        %v496 = vld [vmem:[%s420 + $0x4] sm:$0xf]
        %v497 = vld [vmem:[%s420 + $0x8] sm:$0xf]
        %v498 = vld [vmem:[%s420 + $0xc] sm:$0xf]
        %v499 = vld [vmem:[%s420 + $0x10] sm:$0xf]
        %v500 = vld [vmem:[%s420 + $0x14] sm:$0xf]
        %v501 = vld [vmem:[%s420 + $0x18] sm:$0xf]
        %v502 = vld [vmem:[%s420 + $0x1c] sm:$0xf]
        %v503 = vunpack.c.l.bf16 %v495
        %v504 = vunpack.c.l.bf16 %v496
        %v505 = vunpack.c.l.bf16 %v497
        %v506 = vunpack.c.l.bf16 %v498
        %v507 = vunpack.c.l.bf16 %v499
        %v508 = vunpack.c.l.bf16 %v500
        %v509 = vunpack.c.l.bf16 %v501
        %v510 = vunpack.c.l.bf16 %v502
        %v511 = vld [vmem:[%s429] sm:$0x1]
        %v512 = vld [vmem:[%s429 + $0x1] sm:$0x1]
        %v513 = vld [vmem:[%s429 + $0x2] sm:$0x1]
        %v514 = vld [vmem:[%s429 + $0x3] sm:$0x1]
        %v515 = vsub.f32 1.0, %v511
        %v516 = vsub.f32 1.0, %v512
        %v517 = vsub.f32 1.0, %v513
        %v518 = vsub.f32 1.0, %v514
        %v519 = vmul.f32 %v515, -1e+09
        %v520 = vmul.f32 %v516, -1e+09
        %v521 = vmul.f32 %v517, -1e+09
        %v522 = vmul.f32 %v518, -1e+09
        %v523 = vld [vmem:[#allocation7] sm:$0xf]
        %v524 = vld [vmem:[#allocation7 + $0x4] sm:$0xf]
        %v525 = vld [vmem:[#allocation7 + $0x8] sm:$0xf]
        %v526 = vld [vmem:[#allocation7 + $0xc] sm:$0xf]
        %v527 = vld [vmem:[#allocation7 + $0x10] sm:$0xf]
        %v528 = vld [vmem:[#allocation7 + $0x14] sm:$0xf]
        %v529 = vld [vmem:[#allocation7 + $0x18] sm:$0xf]
        %v530 = vld [vmem:[#allocation7 + $0x1c] sm:$0xf]
        %v531 = vunpack.c.l.bf16 %v523
        %v532 = vunpack.c.l.bf16 %v524
        %v533 = vunpack.c.l.bf16 %v525
        %v534 = vunpack.c.l.bf16 %v526
        %v535 = vunpack.c.l.bf16 %v527
        %v536 = vunpack.c.l.bf16 %v528
        %v537 = vunpack.c.l.bf16 %v529
        %v538 = vunpack.c.l.bf16 %v530
        %v543 = vlaneseq
        %v544 = vshrl.u32 %v543, 7
        %v545 = vsub.s32 0, %v544
        %v546 = vrot.slane %v519, %v545
        %v547 = vlaneseq
        %v548 = vshrl.u32 %v547, 7
        %v549 = vsub.s32 0, %v548
        %v550 = vrot.slane %v520, %v549
        %v551 = vlaneseq
        %v552 = vshrl.u32 %v551, 7
        %v553 = vsub.s32 0, %v552
        %v554 = vrot.slane %v521, %v553
        %v555 = vlaneseq
        %v556 = vshrl.u32 %v555, 7
        %v557 = vsub.s32 0, %v556
        %v558 = vrot.slane %v522, %v557
        %v563 = vadd.f32 %v531, %v546
        %v564 = vadd.f32 %v532, %v546
        %v565 = vadd.f32 %v533, %v546
        %v566 = vadd.f32 %v534, %v546
        %v567 = vadd.f32 %v535, %v546
        %v568 = vadd.f32 %v536, %v546
        %v569 = vadd.f32 %v537, %v546
        %v570 = vadd.f32 %v538, %v546
        %v571 = vadd.f32 %v531, %v550
        %v572 = vadd.f32 %v532, %v550
        %v573 = vadd.f32 %v533, %v550
        %v574 = vadd.f32 %v534, %v550
        %v575 = vadd.f32 %v535, %v550
        %v576 = vadd.f32 %v536, %v550
        %v577 = vadd.f32 %v537, %v550
        %v578 = vadd.f32 %v538, %v550
        %v579 = vadd.f32 %v531, %v554
        %v580 = vadd.f32 %v532, %v554
        %v581 = vadd.f32 %v533, %v554
        %v582 = vadd.f32 %v534, %v554
        %v583 = vadd.f32 %v535, %v554
        %v584 = vadd.f32 %v536, %v554
        %v585 = vadd.f32 %v537, %v554
        %v586 = vadd.f32 %v538, %v554
        %v587 = vadd.f32 %v531, %v558
        %v588 = vadd.f32 %v532, %v558
        %v589 = vadd.f32 %v533, %v558
        %v590 = vadd.f32 %v534, %v558
        %v591 = vadd.f32 %v535, %v558
        %v592 = vadd.f32 %v536, %v558
        %v593 = vadd.f32 %v537, %v558
        %v594 = vadd.f32 %v538, %v558
        %v595 = vmul.f32 %v503, %v503
        %v596 = vmul.f32 %v504, %v504
        %v597 = vmul.f32 %v505, %v505
        %v598 = vmul.f32 %v506, %v506
        %v599 = vmul.f32 %v507, %v507
        %v600 = vmul.f32 %v508, %v508
        %v601 = vmul.f32 %v509, %v509
        %v602 = vmul.f32 %v510, %v510
        %603 = vadd.xlane.f32.xlu0 %v595
        %v604 = vpop.xlane.xlu0 %603
        %605 = vadd.xlane.f32.xlu0 %v596
        %v606 = vpop.xlane.xlu0 %605
        %607 = vadd.xlane.f32.xlu0 %v597
        %v608 = vpop.xlane.xlu0 %607
        %609 = vadd.xlane.f32.xlu0 %v598
        %v610 = vpop.xlane.xlu0 %609
        %611 = vadd.xlane.f32.xlu0 %v599
        %v612 = vpop.xlane.xlu0 %611
        %613 = vadd.xlane.f32.xlu0 %v600
        %v614 = vpop.xlane.xlu0 %613
        %615 = vadd.xlane.f32.xlu0 %v601
        %v616 = vpop.xlane.xlu0 %615
        %617 = vadd.xlane.f32.xlu0 %v602
        %v618 = vpop.xlane.xlu0 %617
        %v619 = vrcp.pop 128.0
        %v620 = vmul.f32 %v604, %v619
        %v621 = vmul.f32 %v606, %v619
        %v622 = vmul.f32 %v608, %v619
        %v623 = vmul.f32 %v610, %v619
        %v624 = vmul.f32 %v612, %v619
        %v625 = vmul.f32 %v614, %v619
        %v626 = vmul.f32 %v616, %v619
        %v627 = vmul.f32 %v618, %v619
        %v628 = vadd.f32 %v620, 1e-06
        %v629 = vadd.f32 %v621, 1e-06
        %v630 = vadd.f32 %v622, 1e-06
        %v631 = vadd.f32 %v623, 1e-06
        %v632 = vadd.f32 %v624, 1e-06
        %v633 = vadd.f32 %v625, 1e-06
        %v634 = vadd.f32 %v626, 1e-06
        %v635 = vadd.f32 %v627, 1e-06
        %v636 = vrsqrt.pop %v628
        %v637 = vrsqrt.pop %v629
        %v638 = vrsqrt.pop %v630
        %v639 = vrsqrt.pop %v631
        %v640 = vrsqrt.pop %v632
        %v641 = vrsqrt.pop %v633
        %v642 = vrsqrt.pop %v634
        %v643 = vrsqrt.pop %v635
        %v644 = vmul.f32 %v503, %v636
        %v645 = vmul.f32 %v504, %v637
        %v646 = vmul.f32 %v505, %v638
        %v647 = vmul.f32 %v506, %v639
        %v648 = vmul.f32 %v507, %v640
        %v649 = vmul.f32 %v508, %v641
        %v650 = vmul.f32 %v509, %v642
        %v651 = vmul.f32 %v510, %v643
        %v652 = vld [vmem:[%s3] sm:$0x1]
        %v654 = vlaneseq
        %v655 = vshrl.u32 %v654, 7
        %v656 = vsub.s32 0, %v655
        %v657 = vrot.slane %v652, %v656
        %v659 = vmul.f32 %v644, %v657
        %v660 = vmul.f32 %v645, %v657
        %v661 = vmul.f32 %v646, %v657
        %v662 = vmul.f32 %v647, %v657
        %v663 = vmul.f32 %v648, %v657
        %v664 = vmul.f32 %v649, %v657
        %v665 = vmul.f32 %v650, %v657
        %v666 = vmul.f32 %v651, %v657
        %v667 = vpack.c.bf16 %v660, %v659
        %v668 = vpack.c.bf16 %v662, %v661
        %v669 = vpack.c.bf16 %v664, %v663
        %v670 = vpack.c.bf16 %v666, %v665
        %v671 = vld [vmem:[#allocation8] sm:$0xff]
        %v672 = vld [vmem:[#allocation8 + $0x8] sm:$0xf]
        %v673 = vld [vmem:[#allocation8 + $0xc] sm:$0xff]
        %v674 = vld [vmem:[#allocation8 + $0x14] sm:$0xf]
        %v675 = vld [vmem:[#allocation8 + $0x18] sm:$0xff]
        %v676 = vld [vmem:[#allocation8 + $0x20] sm:$0xf]
        %v677 = vld [vmem:[#allocation8 + $0x24] sm:$0xff]
        %v678 = vld [vmem:[#allocation8 + $0x2c] sm:$0xf]
        %v679 = vld [vmem:[#allocation8 + $0x30] sm:$0xff]
        %v680 = vld [vmem:[#allocation8 + $0x38] sm:$0xf]
        %v681 = vld [vmem:[#allocation8 + $0x3c] sm:$0xff]
        %v682 = vld [vmem:[#allocation8 + $0x44] sm:$0xf]
        %v683 = vld [vmem:[#allocation8 + $0x48] sm:$0xff]
        %v684 = vld [vmem:[#allocation8 + $0x50] sm:$0xf]
        %v685 = vld [vmem:[#allocation8 + $0x54] sm:$0xff]
        %v686 = vld [vmem:[#allocation8 + $0x5c] sm:$0xf]
        %v687 = vld [vmem:[#allocation8 + $0x60] sm:$0xff]
        %v688 = vld [vmem:[#allocation8 + $0x68] sm:$0xf]
        %v689 = vld [vmem:[#allocation8 + $0x6c] sm:$0xff]
        %v690 = vld [vmem:[#allocation8 + $0x74] sm:$0xf]
        %v691 = vld [vmem:[#allocation8 + $0x78] sm:$0xff]
        %v692 = vld [vmem:[#allocation8 + $0x80] sm:$0xf]
        %v693 = vld [vmem:[#allocation8 + $0x84] sm:$0xff]
        %v694 = vld [vmem:[#allocation8 + $0x8c] sm:$0xf]
        %v695 = vld [vmem:[#allocation8 + $0x90] sm:$0xff]
        %v696 = vld [vmem:[#allocation8 + $0x98] sm:$0xf]
        %v697 = vld [vmem:[#allocation8 + $0x9c] sm:$0xff]
        %v698 = vld [vmem:[#allocation8 + $0xa4] sm:$0xf]
        %v699 = vld [vmem:[#allocation8 + $0xa8] sm:$0xff]
        %v700 = vld [vmem:[#allocation8 + $0xb0] sm:$0xf]
        %v701 = vld [vmem:[#allocation8 + $0xb4] sm:$0xff]
        %v702 = vld [vmem:[#allocation8 + $0xbc] sm:$0xf]
        %v735 = vunpack.c.l.b16 %v671
        %v736 = vunpack.c.h.b16 %v671
        %v737 = vunpack.c.l.b16 %v672
        %v738 = vunpack.c.l.b16 %v673
        %v739 = vunpack.c.h.b16 %v673
        %v740 = vunpack.c.l.b16 %v674
        %v741 = vunpack.c.l.b16 %v675
        %v742 = vunpack.c.h.b16 %v675
        %v743 = vunpack.c.l.b16 %v676
        %v744 = vunpack.c.l.b16 %v677
        %v745 = vunpack.c.h.b16 %v677
        %v746 = vunpack.c.l.b16 %v678
        %v747 = vunpack.c.l.b16 %v679
        %v748 = vunpack.c.h.b16 %v679
        %v749 = vunpack.c.l.b16 %v680
        %v750 = vunpack.c.l.b16 %v681
        %v751 = vunpack.c.h.b16 %v681
        %v752 = vunpack.c.l.b16 %v682
        %v753 = vunpack.c.l.b16 %v683
        %v754 = vunpack.c.h.b16 %v683
        %v755 = vunpack.c.l.b16 %v684
        %v756 = vunpack.c.l.b16 %v685
        %v757 = vunpack.c.h.b16 %v685
        %v758 = vunpack.c.l.b16 %v686
        %v759 = vunpack.c.l.b16 %v687
        %v760 = vunpack.c.h.b16 %v687
        %v761 = vunpack.c.l.b16 %v688
        %v762 = vunpack.c.l.b16 %v689
        %v763 = vunpack.c.h.b16 %v689
        %v764 = vunpack.c.l.b16 %v690
        %v765 = vunpack.c.l.b16 %v691
        %v766 = vunpack.c.h.b16 %v691
        %v767 = vunpack.c.l.b16 %v692
        %v768 = vunpack.c.l.b16 %v693
        %v769 = vunpack.c.h.b16 %v693
        %v770 = vunpack.c.l.b16 %v694
        %v771 = vunpack.c.l.b16 %v695
        %v772 = vunpack.c.h.b16 %v695
        %v773 = vunpack.c.l.b16 %v696
        %v774 = vunpack.c.l.b16 %v697
        %v775 = vunpack.c.h.b16 %v697
        %v776 = vunpack.c.l.b16 %v698
        %v777 = vunpack.c.l.b16 %v699
        %v778 = vunpack.c.h.b16 %v699
        %v779 = vunpack.c.l.b16 %v700
        %v780 = vunpack.c.l.b16 %v701
        %v781 = vunpack.c.h.b16 %v701
        %v782 = vunpack.c.l.b16 %v702
        %v783 = vpack.c.b16 %v738, %v735
        %v784 = vpack.c.b16 %v739, %v736
        %v785 = vpack.c.b16 %v740, %v737
        %v786 = vpack.c.b16 %v744, %v741
        %v787 = vpack.c.b16 %v745, %v742
        %v788 = vpack.c.b16 %v746, %v743
        %v789 = vpack.c.b16 %v750, %v747
        %v790 = vpack.c.b16 %v751, %v748
        %v791 = vpack.c.b16 %v752, %v749
        %v792 = vpack.c.b16 %v756, %v753
        %v793 = vpack.c.b16 %v757, %v754
        %v794 = vpack.c.b16 %v758, %v755
        %v795 = vpack.c.b16 %v762, %v759
        %v796 = vpack.c.b16 %v763, %v760
        %v797 = vpack.c.b16 %v764, %v761
        %v798 = vpack.c.b16 %v768, %v765
        %v799 = vpack.c.b16 %v769, %v766
        %v800 = vpack.c.b16 %v770, %v767
        %v801 = vpack.c.b16 %v774, %v771
        %v802 = vpack.c.b16 %v775, %v772
        %v803 = vpack.c.b16 %v776, %v773
        %v804 = vpack.c.b16 %v780, %v777
        %v805 = vpack.c.b16 %v781, %v778
        %v806 = vpack.c.b16 %v782, %v779
        %831 = vmatprep.subr.bf16.mxu0 %v784
        %832 = vmatpush1.bf16.msra.mxu0 %v783
        %833 = vmatprep.subr.bf16.mxu0 %v787
        %834 = vmatpush1.bf16.msra.mxu0 %v786
        %835 = vmatprep.subr.bf16.mxu0 %v790
        %836 = vmatpush1.bf16.msra.mxu0 %v789
        %837 = vmatprep.subr.bf16.mxu0 %v793
        %838 = vmatpush1.bf16.msra.mxu0 %v792
        %839 = vmatprep.subr.bf16.mxu0 %v796
        %840 = vmatpush1.bf16.msra.mxu0 %v795
        %841 = vmatprep.subr.bf16.mxu0 %v799
        %842 = vmatpush1.bf16.msra.mxu0 %v798
        %843 = vmatprep.subr.bf16.mxu0 %v802
        %844 = vmatpush1.bf16.msra.mxu0 %v801
        %845 = vmatprep.subr.bf16.mxu0 %v805
        %846 = vmatpush1.bf16.msra.mxu0 %v804
        %847 = vmatprep.subr.bf16.mxu0 0
        %848 = vmatpush1.bf16.msra.mxu0 0
        %849 = vmatprep.subr.bf16.mxu0 0
        %850 = vmatpush1.bf16.msra.mxu0 0
        %851 = vmatprep.subr.bf16.mxu0 0
        %852 = vmatpush1.bf16.msra.mxu0 0
        %853 = vmatprep.subr.bf16.mxu0 0
        %854 = vmatpush1.bf16.msra.mxu0 0
        %855 = vmatprep.subr.bf16.mxu0 0
        %856 = vmatpush1.bf16.msra.mxu0 0
        %857 = vmatprep.subr.bf16.mxu0 0
        %858 = vmatpush1.bf16.msra.mxu0 0
        %859 = vmatprep.subr.bf16.mxu0 0
        %860 = vmatpush1.bf16.msra.mxu0 0
        %861 = vmatprep.subr.bf16.mxu0 0
        %862 = vmatpush1.bf16.msra.mxu0 0
        %863 = vmatprep.mubr.bf16.mxu0 0
        %864 = vmatmul.mubr.bf16.gmra.mrb[0].mxu0 %v667
        %v865 = vpop.f32.mrb[0].mxu0
        %v866 = vadd.f32 0.0, %v865
        %v867 = vpop.f32.mrb[0].mxu0
        %v868 = vadd.f32 0.0, %v867
        %v869 = vpop.f32.mrb[0].mxu0
        %v870 = vadd.f32 0.0, %v869
        %v871 = vpop.f32.mrb[0].mxu0
        %v872 = vadd.f32 0.0, %v871
        %873 = vmatprep.mubr.bf16.mxu0 0
        %874 = vmatmul.mubr.bf16.gmra.mrb[0].mxu0 %v668
        %v875 = vpop.f32.mrb[0].mxu0
        %v876 = vadd.f32 0.0, %v875
        %v877 = vpop.f32.mrb[0].mxu0
        %v878 = vadd.f32 0.0, %v877
        %v879 = vpop.f32.mrb[0].mxu0
        %v880 = vadd.f32 0.0, %v879
        %v881 = vpop.f32.mrb[0].mxu0
        %v882 = vadd.f32 0.0, %v881
        %883 = vmatprep.mubr.bf16.mxu0 0
        %884 = vmatmul.mubr.bf16.gmra.mrb[0].mxu0 %v669
        %v885 = vpop.f32.mrb[0].mxu0
        %v886 = vadd.f32 0.0, %v885
        %v887 = vpop.f32.mrb[0].mxu0
        %v888 = vadd.f32 0.0, %v887
        %v889 = vpop.f32.mrb[0].mxu0
        %v890 = vadd.f32 0.0, %v889
        %v891 = vpop.f32.mrb[0].mxu0
        %v892 = vadd.f32 0.0, %v891
        %893 = vmatprep.mubr.bf16.mxu0 0
        %894 = vmatmul.mubr.bf16.gmra.mrb[0].mxu0 %v670
        %v895 = vpop.f32.mrb[0].mxu0
        %v896 = vadd.f32 0.0, %v895
        %v897 = vpop.f32.mrb[0].mxu0
        %v898 = vadd.f32 0.0, %v897
        %v899 = vpop.f32.mrb[0].mxu0
        %v900 = vadd.f32 0.0, %v899
        %v901 = vpop.f32.mrb[0].mxu0
        %v902 = vadd.f32 0.0, %v901
        %903 = vdwg.mxu0
        %904 = vmatprep.subr.bf16.mxu0 0
        %905 = vmatpush1.bf16.msra.mxu0 %v785
        %906 = vmatprep.subr.bf16.mxu0 0
        %907 = vmatpush1.bf16.msra.mxu0 %v788
        %908 = vmatprep.subr.bf16.mxu0 0
        %909 = vmatpush1.bf16.msra.mxu0 %v791
        %910 = vmatprep.subr.bf16.mxu0 0
        %911 = vmatpush1.bf16.msra.mxu0 %v794
        %912 = vmatprep.subr.bf16.mxu0 0
        %913 = vmatpush1.bf16.msra.mxu0 %v797
        %914 = vmatprep.subr.bf16.mxu0 0
        %915 = vmatpush1.bf16.msra.mxu0 %v800
        %916 = vmatprep.subr.bf16.mxu0 0
        %917 = vmatpush1.bf16.msra.mxu0 %v803
        %918 = vmatprep.subr.bf16.mxu0 0
        %919 = vmatpush1.bf16.msra.mxu0 %v806
        %920 = vmatprep.subr.bf16.mxu0 0
        %921 = vmatpush1.bf16.msra.mxu0 0
        %922 = vmatprep.subr.bf16.mxu0 0
        %923 = vmatpush1.bf16.msra.mxu0 0
        %924 = vmatprep.subr.bf16.mxu0 0
        %925 = vmatpush1.bf16.msra.mxu0 0
        %926 = vmatprep.subr.bf16.mxu0 0
        %927 = vmatpush1.bf16.msra.mxu0 0
        %928 = vmatprep.subr.bf16.mxu0 0
        %929 = vmatpush1.bf16.msra.mxu0 0
        %930 = vmatprep.subr.bf16.mxu0 0
        %931 = vmatpush1.bf16.msra.mxu0 0
        %932 = vmatprep.subr.bf16.mxu0 0
        %933 = vmatpush1.bf16.msra.mxu0 0
        %934 = vmatprep.subr.bf16.mxu0 0
        %935 = vmatpush1.bf16.msra.mxu0 0
        %936 = vmatprep.mubr.bf16.mxu0 0
        %937 = vmatmul.mubr.bf16.gmra.mrb[0].mxu0 %v667
        %v938 = vpop.f32.mrb[0].mxu0
        %v939 = vadd.f32 0.0, %v938
        %v940 = vpop.f32.mrb[0].mxu0
        %v941 = vpop.f32.mrb[0].mxu0
        %v942 = vadd.f32 0.0, %v941
        %v943 = vpop.f32.mrb[0].mxu0
        %944 = vmatprep.mubr.bf16.mxu0 0
        %945 = vmatmul.mubr.bf16.gmra.mrb[0].mxu0 %v668
        %v946 = vpop.f32.mrb[0].mxu0
        %v947 = vadd.f32 0.0, %v946
        %v948 = vpop.f32.mrb[0].mxu0
        %v949 = vpop.f32.mrb[0].mxu0
        %v950 = vadd.f32 0.0, %v949
        %v951 = vpop.f32.mrb[0].mxu0
        %952 = vmatprep.mubr.bf16.mxu0 0
        %953 = vmatmul.mubr.bf16.gmra.mrb[0].mxu0 %v669
        %v954 = vpop.f32.mrb[0].mxu0
        %v955 = vadd.f32 0.0, %v954
        %v956 = vpop.f32.mrb[0].mxu0
        %v957 = vpop.f32.mrb[0].mxu0
        %v958 = vadd.f32 0.0, %v957
        %v959 = vpop.f32.mrb[0].mxu0
        %960 = vmatprep.mubr.bf16.mxu0 0
        %961 = vmatmul.mubr.bf16.gmra.mrb[0].mxu0 %v670
        %v962 = vpop.f32.mrb[0].mxu0
        %v963 = vadd.f32 0.0, %v962
        %v964 = vpop.f32.mrb[0].mxu0
        %v965 = vpop.f32.mrb[0].mxu0
        %v966 = vadd.f32 0.0, %v965
        %v967 = vpop.f32.mrb[0].mxu0
        %968 = vdwg.mxu0
        %v969 = vpack.c.bf16 %v870, %v866
        %v970 = vpack.c.bf16 %v880, %v876
        %v971 = vpack.c.bf16 %v890, %v886
        %v972 = vpack.c.bf16 %v900, %v896
        %v973 = vpack.c.bf16 %v872, %v868
        %v974 = vpack.c.bf16 %v882, %v878
        %v975 = vpack.c.bf16 %v892, %v888
        %v976 = vpack.c.bf16 %v902, %v898
        %v977 = vpack.c.bf16 %v942, %v939
        %v978 = vpack.c.bf16 %v950, %v947
        %v979 = vpack.c.bf16 %v958, %v955
        %v980 = vpack.c.bf16 %v966, %v963
        %vm981 = vcmask 261120
        %v983 = vsel %vm981, %v969, 0
        %v986 = vsel %vm981, %v973, 0
        %988 = vmatprep.subr.bf16.mxu0 0
        %989 = vmatpush1.bf16.xpose.msra.mxu0 %v986
        %990 = vmatprep.subr.bf16.mxu0 0
        %991 = vmatpush1.bf16.xpose.msra.mxu0 0
        %992 = vmatprep.subr.bf16.mxu0 0
        %993 = vmatpush1.bf16.xpose.msra.mxu0 0
        %994 = vmatprep.subr.bf16.mxu0 0
        %995 = vmatpush1.bf16.xpose.msra.mxu0 0
        %996 = vmatprep.subr.bf16.mxu0 0
        %997 = vmatpush1.bf16.xpose.msra.mxu0 0
        %998 = vmatprep.subr.bf16.mxu0 0
        %999 = vmatpush1.bf16.xpose.msra.mxu0 0
        %1000 = vmatprep.subr.bf16.mxu0 0
        %1001 = vmatpush1.bf16.xpose.msra.mxu0 0
        %1002 = vmatprep.subr.bf16.mxu0 0
        %1003 = vmatpush1.bf16.xpose.msra.mxu0 0
        %1004 = vmatprep.subr.bf16.mxu0 0
        %1005 = vmatpush1.bf16.xpose.msra.mxu0 0
        %1006 = vmatprep.subr.bf16.mxu0 0
        %1007 = vmatpush1.bf16.xpose.msra.mxu0 0
        %1008 = vmatprep.subr.bf16.mxu0 0
        %1009 = vmatpush1.bf16.xpose.msra.mxu0 0
        %1010 = vmatprep.subr.bf16.mxu0 0
        %1011 = vmatpush1.bf16.xpose.msra.mxu0 0
        %1012 = vmatprep.subr.bf16.mxu0 0
        %1013 = vmatpush1.bf16.xpose.msra.mxu0 0
        %1014 = vmatprep.subr.bf16.mxu0 0
        %1015 = vmatpush1.bf16.xpose.msra.mxu0 0
        %1016 = vmatprep.subr.bf16.mxu0 0
        %1017 = vmatpush1.bf16.xpose.msra.mxu0 0
        %1018 = vmatprep.subr.bf16.mxu0 0
        %1019 = vmatpush1.bf16.xpose.msra.mxu0 0
        %1020 = vmatprep.mubr.bf16.mxu0 0
        %1021 = vmatmul.mubr.bf16.gmra.mrb[0].mxu0 %v983
        %v1022 = vpop.f32.mrb[0].mxu0
        %v1023 = vadd.f32 %v563, %v1022
        %v1024 = vpop.f32.mrb[0].mxu0
        %v1025 = vpop.f32.mrb[0].mxu0
        %v1026 = vadd.f32 %v564, %v1025
        %v1027 = vpop.f32.mrb[0].mxu0
        %1028 = vdwg.mxu0
        %v1030 = vsel %vm981, %v970, 0
        %v1033 = vsel %vm981, %v974, 0
        %1035 = vmatprep.subr.bf16.mxu0 0
        %1036 = vmatpush1.bf16.xpose.msra.mxu0 %v1033
        %1037 = vmatprep.subr.bf16.mxu0 0
        %1038 = vmatpush1.bf16.xpose.msra.mxu0 0
        %1039 = vmatprep.subr.bf16.mxu0 0
        %1040 = vmatpush1.bf16.xpose.msra.mxu0 0
        %1041 = vmatprep.subr.bf16.mxu0 0
        %1042 = vmatpush1.bf16.xpose.msra.mxu0 0
        %1043 = vmatprep.subr.bf16.mxu0 0
        %1044 = vmatpush1.bf16.xpose.msra.mxu0 0
        %1045 = vmatprep.subr.bf16.mxu0 0
        %1046 = vmatpush1.bf16.xpose.msra.mxu0 0
        %1047 = vmatprep.subr.bf16.mxu0 0
        %1048 = vmatpush1.bf16.xpose.msra.mxu0 0
        %1049 = vmatprep.subr.bf16.mxu0 0
        %1050 = vmatpush1.bf16.xpose.msra.mxu0 0
        %1051 = vmatprep.subr.bf16.mxu0 0
        %1052 = vmatpush1.bf16.xpose.msra.mxu0 0
        %1053 = vmatprep.subr.bf16.mxu0 0
        %1054 = vmatpush1.bf16.xpose.msra.mxu0 0
        %1055 = vmatprep.subr.bf16.mxu0 0
        %1056 = vmatpush1.bf16.xpose.msra.mxu0 0
        %1057 = vmatprep.subr.bf16.mxu0 0
        %1058 = vmatpush1.bf16.xpose.msra.mxu0 0
        %1059 = vmatprep.subr.bf16.mxu0 0
        %1060 = vmatpush1.bf16.xpose.msra.mxu0 0
        %1061 = vmatprep.subr.bf16.mxu0 0
        %1062 = vmatpush1.bf16.xpose.msra.mxu0 0
        %1063 = vmatprep.subr.bf16.mxu0 0
        %1064 = vmatpush1.bf16.xpose.msra.mxu0 0
        %1065 = vmatprep.subr.bf16.mxu0 0
        %1066 = vmatpush1.bf16.xpose.msra.mxu0 0
        %1067 = vmatprep.mubr.bf16.mxu0 0
        %1068 = vmatmul.mubr.bf16.gmra.mrb[0].mxu0 %v1030
        %v1069 = vpop.f32.mrb[0].mxu0
        %v1070 = vadd.f32 %v571, %v1069
        %v1071 = vpop.f32.mrb[0].mxu0
        %v1072 = vpop.f32.mrb[0].mxu0
        %v1073 = vadd.f32 %v572, %v1072
        %v1074 = vpop.f32.mrb[0].mxu0
        %1075 = vdwg.mxu0
        %v1077 = vsel %vm981, %v971, 0
        %v1080 = vsel %vm981, %v975, 0
        %1082 = vmatprep.subr.bf16.mxu0 0
        %1083 = vmatpush1.bf16.xpose.msra.mxu0 %v1080
        %1084 = vmatprep.subr.bf16.mxu0 0
        %1085 = vmatpush1.bf16.xpose.msra.mxu0 0
        %1086 = vmatprep.subr.bf16.mxu0 0
        %1087 = vmatpush1.bf16.xpose.msra.mxu0 0
        %1088 = vmatprep.subr.bf16.mxu0 0
        %1089 = vmatpush1.bf16.xpose.msra.mxu0 0
        %1090 = vmatprep.subr.bf16.mxu0 0
        %1091 = vmatpush1.bf16.xpose.msra.mxu0 0
        %1092 = vmatprep.subr.bf16.mxu0 0
        %1093 = vmatpush1.bf16.xpose.msra.mxu0 0
        %1094 = vmatprep.subr.bf16.mxu0 0
        %1095 = vmatpush1.bf16.xpose.msra.mxu0 0
        %1096 = vmatprep.subr.bf16.mxu0 0
        %1097 = vmatpush1.bf16.xpose.msra.mxu0 0
        %1098 = vmatprep.subr.bf16.mxu0 0
        %1099 = vmatpush1.bf16.xpose.msra.mxu0 0
        %1100 = vmatprep.subr.bf16.mxu0 0
        %1101 = vmatpush1.bf16.xpose.msra.mxu0 0
        %1102 = vmatprep.subr.bf16.mxu0 0
        %1103 = vmatpush1.bf16.xpose.msra.mxu0 0
        %1104 = vmatprep.subr.bf16.mxu0 0
        %1105 = vmatpush1.bf16.xpose.msra.mxu0 0
        %1106 = vmatprep.subr.bf16.mxu0 0
        %1107 = vmatpush1.bf16.xpose.msra.mxu0 0
        %1108 = vmatprep.subr.bf16.mxu0 0
        %1109 = vmatpush1.bf16.xpose.msra.mxu0 0
        %1110 = vmatprep.subr.bf16.mxu0 0
        %1111 = vmatpush1.bf16.xpose.msra.mxu0 0
        %1112 = vmatprep.subr.bf16.mxu0 0
        %1113 = vmatpush1.bf16.xpose.msra.mxu0 0
        %1114 = vmatprep.mubr.bf16.mxu0 0
        %1115 = vmatmul.mubr.bf16.gmra.mrb[0].mxu0 %v1077
        %v1116 = vpop.f32.mrb[0].mxu0
        %v1117 = vadd.f32 %v579, %v1116
        %v1118 = vpop.f32.mrb[0].mxu0
        %v1119 = vpop.f32.mrb[0].mxu0
        %v1120 = vadd.f32 %v580, %v1119
        %v1121 = vpop.f32.mrb[0].mxu0
        %1122 = vdwg.mxu0
        %v1124 = vsel %vm981, %v972, 0
        %v1127 = vsel %vm981, %v976, 0
        %1129 = vmatprep.subr.bf16.mxu0 0
        %1130 = vmatpush1.bf16.xpose.msra.mxu0 %v1127
        %1131 = vmatprep.subr.bf16.mxu0 0
        %1132 = vmatpush1.bf16.xpose.msra.mxu0 0
        %1133 = vmatprep.subr.bf16.mxu0 0
        %1134 = vmatpush1.bf16.xpose.msra.mxu0 0
        %1135 = vmatprep.subr.bf16.mxu0 0
        %1136 = vmatpush1.bf16.xpose.msra.mxu0 0
        %1137 = vmatprep.subr.bf16.mxu0 0
        %1138 = vmatpush1.bf16.xpose.msra.mxu0 0
        %1139 = vmatprep.subr.bf16.mxu0 0
        %1140 = vmatpush1.bf16.xpose.msra.mxu0 0
        %1141 = vmatprep.subr.bf16.mxu0 0
        %1142 = vmatpush1.bf16.xpose.msra.mxu0 0
        %1143 = vmatprep.subr.bf16.mxu0 0
        %1144 = vmatpush1.bf16.xpose.msra.mxu0 0
        %1145 = vmatprep.subr.bf16.mxu0 0
        %1146 = vmatpush1.bf16.xpose.msra.mxu0 0
        %1147 = vmatprep.subr.bf16.mxu0 0
        %1148 = vmatpush1.bf16.xpose.msra.mxu0 0
        %1149 = vmatprep.subr.bf16.mxu0 0
        %1150 = vmatpush1.bf16.xpose.msra.mxu0 0
        %1151 = vmatprep.subr.bf16.mxu0 0
        %1152 = vmatpush1.bf16.xpose.msra.mxu0 0
        %1153 = vmatprep.subr.bf16.mxu0 0
        %1154 = vmatpush1.bf16.xpose.msra.mxu0 0
        %1155 = vmatprep.subr.bf16.mxu0 0
        %1156 = vmatpush1.bf16.xpose.msra.mxu0 0
        %1157 = vmatprep.subr.bf16.mxu0 0
        %1158 = vmatpush1.bf16.xpose.msra.mxu0 0
        %1159 = vmatprep.subr.bf16.mxu0 0
        %1160 = vmatpush1.bf16.xpose.msra.mxu0 0
        %1161 = vmatprep.mubr.bf16.mxu0 0
        %1162 = vmatmul.mubr.bf16.gmra.mrb[0].mxu0 %v1124
        %v1163 = vpop.f32.mrb[0].mxu0
        %v1164 = vadd.f32 %v587, %v1163
        %v1165 = vpop.f32.mrb[0].mxu0
        %v1166 = vpop.f32.mrb[0].mxu0
        %v1167 = vadd.f32 %v588, %v1166
        %v1168 = vpop.f32.mrb[0].mxu0
        %1169 = vdwg.mxu0
        %vm1170 = vcmask 130048
        %v1171 = vsel %vm1170, %v1023, -inf
        %1172 = vmax.xlane.f32.xlu0 %v1171
        %v1173 = vpop.xlane.xlu0 %1172
        %v1174 = vsel %vm1170, %v1026, -inf
        %1175 = vmax.xlane.f32.xlu0 %v1174
        %v1176 = vpop.xlane.xlu0 %1175
        %v1177 = vsel %vm1170, %v1070, -inf
        %1178 = vmax.xlane.f32.xlu0 %v1177
        %v1179 = vpop.xlane.xlu0 %1178
        %v1180 = vsel %vm1170, %v1073, -inf
        %1181 = vmax.xlane.f32.xlu0 %v1180
        %v1182 = vpop.xlane.xlu0 %1181
        %v1183 = vsel %vm1170, %v1117, -inf
        %1184 = vmax.xlane.f32.xlu0 %v1183
        %v1185 = vpop.xlane.xlu0 %1184
        %v1186 = vsel %vm1170, %v1120, -inf
        %1187 = vmax.xlane.f32.xlu0 %v1186
        %v1188 = vpop.xlane.xlu0 %1187
        %v1189 = vsel %vm1170, %v1164, -inf
        %1190 = vmax.xlane.f32.xlu0 %v1189
        %v1191 = vpop.xlane.xlu0 %1190
        %v1192 = vsel %vm1170, %v1167, -inf
        %1193 = vmax.xlane.f32.xlu0 %v1192
        %v1194 = vpop.xlane.xlu0 %1193
        %v1195 = vsub.f32 %v1023, %v1173
        %v1196 = vsub.f32 %v1026, %v1176
        %v1197 = vsub.f32 %v1070, %v1179
        %v1198 = vsub.f32 %v1073, %v1182
        %v1199 = vsub.f32 %v1117, %v1185
        %v1200 = vsub.f32 %v1120, %v1188
        %v1201 = vsub.f32 %v1164, %v1191
        %v1202 = vsub.f32 %v1167, %v1194
        %v1203 = vmul.f32 %v1195, 1.442695
        %v1204 = vpow.pop %v1203
        %v1205 = vmul.f32 %v1196, 1.442695
        %v1206 = vpow.pop %v1205
        %v1207 = vmul.f32 %v1197, 1.442695
        %v1208 = vpow.pop %v1207
        %v1209 = vmul.f32 %v1198, 1.442695
        %v1210 = vpow.pop %v1209
        %v1211 = vmul.f32 %v1199, 1.442695
        %v1212 = vpow.pop %v1211
        %v1213 = vmul.f32 %v1200, 1.442695
        %v1214 = vpow.pop %v1213
        %v1215 = vmul.f32 %v1201, 1.442695
        %v1216 = vpow.pop %v1215
        %v1217 = vmul.f32 %v1202, 1.442695
        %v1218 = vpow.pop %v1217
        %v1219 = vsel %vm1170, %v1204, 0.0
        %1220 = vadd.xlane.f32.xlu0 %v1219
        %v1221 = vpop.xlane.xlu0 %1220
        %v1222 = vsel %vm1170, %v1206, 0.0
        %1223 = vadd.xlane.f32.xlu0 %v1222
        %v1224 = vpop.xlane.xlu0 %1223
        %v1225 = vsel %vm1170, %v1208, 0.0
        %1226 = vadd.xlane.f32.xlu0 %v1225
        %v1227 = vpop.xlane.xlu0 %1226
        %v1228 = vsel %vm1170, %v1210, 0.0
        %1229 = vadd.xlane.f32.xlu0 %v1228
        %v1230 = vpop.xlane.xlu0 %1229
        %v1231 = vsel %vm1170, %v1212, 0.0
        %1232 = vadd.xlane.f32.xlu0 %v1231
        %v1233 = vpop.xlane.xlu0 %1232
        %v1234 = vsel %vm1170, %v1214, 0.0
        %1235 = vadd.xlane.f32.xlu0 %v1234
        %v1236 = vpop.xlane.xlu0 %1235
        %v1237 = vsel %vm1170, %v1216, 0.0
        %1238 = vadd.xlane.f32.xlu0 %v1237
        %v1239 = vpop.xlane.xlu0 %1238
        %v1240 = vsel %vm1170, %v1218, 0.0
        %1241 = vadd.xlane.f32.xlu0 %v1240
        %v1242 = vpop.xlane.xlu0 %1241
        %v1243 = vrcp.pop %v1221
        %v1244 = vmul.f32 %v1204, %v1243
        %v1245 = vrcp.pop %v1224
        %v1246 = vmul.f32 %v1206, %v1245
        %v1247 = vrcp.pop %v1227
        %v1248 = vmul.f32 %v1208, %v1247
        %v1249 = vrcp.pop %v1230
        %v1250 = vmul.f32 %v1210, %v1249
        %v1251 = vrcp.pop %v1233
        %v1252 = vmul.f32 %v1212, %v1251
        %v1253 = vrcp.pop %v1236
        %v1254 = vmul.f32 %v1214, %v1253
        %v1255 = vrcp.pop %v1239
        %v1256 = vmul.f32 %v1216, %v1255
        %v1257 = vrcp.pop %v1242
        %v1258 = vmul.f32 %v1218, %v1257
        %v1259 = vpack.c.bf16 %v1246, %v1244
        %v1260 = vpack.c.bf16 %v1250, %v1248
        %v1261 = vpack.c.bf16 %v1254, %v1252
        %v1262 = vpack.c.bf16 %v1258, %v1256
        %v1264 = vsel %vm1170, %v1259, 0
        %1266 = vmatprep.subr.bf16.mxu0 0
        %1267 = vmatpush1.bf16.msra.mxu0 %v977
        %1268 = vmatprep.subr.bf16.mxu0 0
        %1269 = vmatpush1.bf16.msra.mxu0 0
        %1270 = vmatprep.subr.bf16.mxu0 0
        %1271 = vmatpush1.bf16.msra.mxu0 0
        %1272 = vmatprep.subr.bf16.mxu0 0
        %1273 = vmatpush1.bf16.msra.mxu0 0
        %1274 = vmatprep.subr.bf16.mxu0 0
        %1275 = vmatpush1.bf16.msra.mxu0 0
        %1276 = vmatprep.subr.bf16.mxu0 0
        %1277 = vmatpush1.bf16.msra.mxu0 0
        %1278 = vmatprep.subr.bf16.mxu0 0
        %1279 = vmatpush1.bf16.msra.mxu0 0
        %1280 = vmatprep.subr.bf16.mxu0 0
        %1281 = vmatpush1.bf16.msra.mxu0 0
        %1282 = vmatprep.subr.bf16.mxu0 0
        %1283 = vmatpush1.bf16.msra.mxu0 0
        %1284 = vmatprep.subr.bf16.mxu0 0
        %1285 = vmatpush1.bf16.msra.mxu0 0
        %1286 = vmatprep.subr.bf16.mxu0 0
        %1287 = vmatpush1.bf16.msra.mxu0 0
        %1288 = vmatprep.subr.bf16.mxu0 0
        %1289 = vmatpush1.bf16.msra.mxu0 0
        %1290 = vmatprep.subr.bf16.mxu0 0
        %1291 = vmatpush1.bf16.msra.mxu0 0
        %1292 = vmatprep.subr.bf16.mxu0 0
        %1293 = vmatpush1.bf16.msra.mxu0 0
        %1294 = vmatprep.subr.bf16.mxu0 0
        %1295 = vmatpush1.bf16.msra.mxu0 0
        %1296 = vmatprep.subr.bf16.mxu0 0
        %1297 = vmatpush1.bf16.msra.mxu0 0
        %1298 = vmatprep.mubr.bf16.mxu0 0
        %1299 = vmatmul.mubr.bf16.gmra.mrb[0].mxu0 %v1264
        %v1300 = vpop.f32.mrb[0].mxu0
        %v1301 = vadd.f32 0.0, %v1300
        %v1302 = vpop.f32.mrb[0].mxu0
        %v1303 = vpop.f32.mrb[0].mxu0
        %v1304 = vadd.f32 0.0, %v1303
        %v1305 = vpop.f32.mrb[0].mxu0
        %1306 = vdwg.mxu0
        %v1308 = vsel %vm1170, %v1260, 0
        %1310 = vmatprep.subr.bf16.mxu0 0
        %1311 = vmatpush1.bf16.msra.mxu0 %v978
        %1312 = vmatprep.subr.bf16.mxu0 0
        %1313 = vmatpush1.bf16.msra.mxu0 0
        %1314 = vmatprep.subr.bf16.mxu0 0
        %1315 = vmatpush1.bf16.msra.mxu0 0
        %1316 = vmatprep.subr.bf16.mxu0 0
        %1317 = vmatpush1.bf16.msra.mxu0 0
        %1318 = vmatprep.subr.bf16.mxu0 0
        %1319 = vmatpush1.bf16.msra.mxu0 0
        %1320 = vmatprep.subr.bf16.mxu0 0
        %1321 = vmatpush1.bf16.msra.mxu0 0
        %1322 = vmatprep.subr.bf16.mxu0 0
        %1323 = vmatpush1.bf16.msra.mxu0 0
        %1324 = vmatprep.subr.bf16.mxu0 0
        %1325 = vmatpush1.bf16.msra.mxu0 0
        %1326 = vmatprep.subr.bf16.mxu0 0
        %1327 = vmatpush1.bf16.msra.mxu0 0
        %1328 = vmatprep.subr.bf16.mxu0 0
        %1329 = vmatpush1.bf16.msra.mxu0 0
        %1330 = vmatprep.subr.bf16.mxu0 0
        %1331 = vmatpush1.bf16.msra.mxu0 0
        %1332 = vmatprep.subr.bf16.mxu0 0
        %1333 = vmatpush1.bf16.msra.mxu0 0
        %1334 = vmatprep.subr.bf16.mxu0 0
        %1335 = vmatpush1.bf16.msra.mxu0 0
        %1336 = vmatprep.subr.bf16.mxu0 0
        %1337 = vmatpush1.bf16.msra.mxu0 0
        %1338 = vmatprep.subr.bf16.mxu0 0
        %1339 = vmatpush1.bf16.msra.mxu0 0
        %1340 = vmatprep.subr.bf16.mxu0 0
        %1341 = vmatpush1.bf16.msra.mxu0 0
        %1342 = vmatprep.mubr.bf16.mxu0 0
        %1343 = vmatmul.mubr.bf16.gmra.mrb[0].mxu0 %v1308
        %v1344 = vpop.f32.mrb[0].mxu0
        %v1345 = vadd.f32 0.0, %v1344
        %v1346 = vpop.f32.mrb[0].mxu0
        %v1347 = vpop.f32.mrb[0].mxu0
        %v1348 = vadd.f32 0.0, %v1347
        %v1349 = vpop.f32.mrb[0].mxu0
        %1350 = vdwg.mxu0
        %v1352 = vsel %vm1170, %v1261, 0
        %1354 = vmatprep.subr.bf16.mxu0 0
        %1355 = vmatpush1.bf16.msra.mxu0 %v979
        %1356 = vmatprep.subr.bf16.mxu0 0
        %1357 = vmatpush1.bf16.msra.mxu0 0
        %1358 = vmatprep.subr.bf16.mxu0 0
        %1359 = vmatpush1.bf16.msra.mxu0 0
        %1360 = vmatprep.subr.bf16.mxu0 0
        %1361 = vmatpush1.bf16.msra.mxu0 0
        %1362 = vmatprep.subr.bf16.mxu0 0
        %1363 = vmatpush1.bf16.msra.mxu0 0
        %1364 = vmatprep.subr.bf16.mxu0 0
        %1365 = vmatpush1.bf16.msra.mxu0 0
        %1366 = vmatprep.subr.bf16.mxu0 0
        %1367 = vmatpush1.bf16.msra.mxu0 0
        %1368 = vmatprep.subr.bf16.mxu0 0
        %1369 = vmatpush1.bf16.msra.mxu0 0
        %1370 = vmatprep.subr.bf16.mxu0 0
        %1371 = vmatpush1.bf16.msra.mxu0 0
        %1372 = vmatprep.subr.bf16.mxu0 0
        %1373 = vmatpush1.bf16.msra.mxu0 0
        %1374 = vmatprep.subr.bf16.mxu0 0
        %1375 = vmatpush1.bf16.msra.mxu0 0
        %1376 = vmatprep.subr.bf16.mxu0 0
        %1377 = vmatpush1.bf16.msra.mxu0 0
        %1378 = vmatprep.subr.bf16.mxu0 0
        %1379 = vmatpush1.bf16.msra.mxu0 0
        %1380 = vmatprep.subr.bf16.mxu0 0
        %1381 = vmatpush1.bf16.msra.mxu0 0
        %1382 = vmatprep.subr.bf16.mxu0 0
        %1383 = vmatpush1.bf16.msra.mxu0 0
        %1384 = vmatprep.subr.bf16.mxu0 0
        %1385 = vmatpush1.bf16.msra.mxu0 0
        %1386 = vmatprep.mubr.bf16.mxu0 0
        %1387 = vmatmul.mubr.bf16.gmra.mrb[0].mxu0 %v1352
        %v1388 = vpop.f32.mrb[0].mxu0
        %v1389 = vadd.f32 0.0, %v1388
        %v1390 = vpop.f32.mrb[0].mxu0
        %v1391 = vpop.f32.mrb[0].mxu0
        %v1392 = vadd.f32 0.0, %v1391
        %v1393 = vpop.f32.mrb[0].mxu0
        %1394 = vdwg.mxu0
        %v1396 = vsel %vm1170, %v1262, 0
        %1398 = vmatprep.subr.bf16.mxu0 0
        %1399 = vmatpush1.bf16.msra.mxu0 %v980
        %1400 = vmatprep.subr.bf16.mxu0 0
        %1401 = vmatpush1.bf16.msra.mxu0 0
        %1402 = vmatprep.subr.bf16.mxu0 0
        %1403 = vmatpush1.bf16.msra.mxu0 0
        %1404 = vmatprep.subr.bf16.mxu0 0
        %1405 = vmatpush1.bf16.msra.mxu0 0
        %1406 = vmatprep.subr.bf16.mxu0 0
        %1407 = vmatpush1.bf16.msra.mxu0 0
        %1408 = vmatprep.subr.bf16.mxu0 0
        %1409 = vmatpush1.bf16.msra.mxu0 0
        %1410 = vmatprep.subr.bf16.mxu0 0
        %1411 = vmatpush1.bf16.msra.mxu0 0
        %1412 = vmatprep.subr.bf16.mxu0 0
        %1413 = vmatpush1.bf16.msra.mxu0 0
        %1414 = vmatprep.subr.bf16.mxu0 0
        %1415 = vmatpush1.bf16.msra.mxu0 0
        %1416 = vmatprep.subr.bf16.mxu0 0
        %1417 = vmatpush1.bf16.msra.mxu0 0
        %1418 = vmatprep.subr.bf16.mxu0 0
        %1419 = vmatpush1.bf16.msra.mxu0 0
        %1420 = vmatprep.subr.bf16.mxu0 0
        %1421 = vmatpush1.bf16.msra.mxu0 0
        %1422 = vmatprep.subr.bf16.mxu0 0
        %1423 = vmatpush1.bf16.msra.mxu0 0
        %1424 = vmatprep.subr.bf16.mxu0 0
        %1425 = vmatpush1.bf16.msra.mxu0 0
        %1426 = vmatprep.subr.bf16.mxu0 0
        %1427 = vmatpush1.bf16.msra.mxu0 0
        %1428 = vmatprep.subr.bf16.mxu0 0
        %1429 = vmatpush1.bf16.msra.mxu0 0
        %1430 = vmatprep.mubr.bf16.mxu0 0
        %1431 = vmatmul.mubr.bf16.gmra.mrb[0].mxu0 %v1396
        %v1432 = vpop.f32.mrb[0].mxu0
        %v1433 = vadd.f32 0.0, %v1432
        %v1434 = vpop.f32.mrb[0].mxu0
        %v1435 = vpop.f32.mrb[0].mxu0
        %v1436 = vadd.f32 0.0, %v1435
        %v1437 = vpop.f32.mrb[0].mxu0
        %1438 = vdwg.mxu0
        %1440 = vrot.lane.b32.xlu0 %v969, 96
        %v1441 = vpop.permute.xlu0 %1440
        %1443 = vrot.lane.b32.xlu0 %v973, 96
        %v1444 = vpop.permute.xlu0 %1443
        %v1446 = vsel %vm981, %v1441, 0
        %v1449 = vsel %vm981, %v1444, 0
        %1451 = vmatprep.subr.bf16.mxu0 0
        %1452 = vmatpush1.bf16.xpose.msra.mxu0 %v1449
        %1453 = vmatprep.subr.bf16.mxu0 0
        %1454 = vmatpush1.bf16.xpose.msra.mxu0 0
        %1455 = vmatprep.subr.bf16.mxu0 0
        %1456 = vmatpush1.bf16.xpose.msra.mxu0 0
        %1457 = vmatprep.subr.bf16.mxu0 0
        %1458 = vmatpush1.bf16.xpose.msra.mxu0 0
        %1459 = vmatprep.subr.bf16.mxu0 0
        %1460 = vmatpush1.bf16.xpose.msra.mxu0 0
        %1461 = vmatprep.subr.bf16.mxu0 0
        %1462 = vmatpush1.bf16.xpose.msra.mxu0 0
        %1463 = vmatprep.subr.bf16.mxu0 0
        %1464 = vmatpush1.bf16.xpose.msra.mxu0 0
        %1465 = vmatprep.subr.bf16.mxu0 0
        %1466 = vmatpush1.bf16.xpose.msra.mxu0 0
        %1467 = vmatprep.subr.bf16.mxu0 0
        %1468 = vmatpush1.bf16.xpose.msra.mxu0 0
        %1469 = vmatprep.subr.bf16.mxu0 0
        %1470 = vmatpush1.bf16.xpose.msra.mxu0 0
        %1471 = vmatprep.subr.bf16.mxu0 0
        %1472 = vmatpush1.bf16.xpose.msra.mxu0 0
        %1473 = vmatprep.subr.bf16.mxu0 0
        %1474 = vmatpush1.bf16.xpose.msra.mxu0 0
        %1475 = vmatprep.subr.bf16.mxu0 0
        %1476 = vmatpush1.bf16.xpose.msra.mxu0 0
        %1477 = vmatprep.subr.bf16.mxu0 0
        %1478 = vmatpush1.bf16.xpose.msra.mxu0 0
        %1479 = vmatprep.subr.bf16.mxu0 0
        %1480 = vmatpush1.bf16.xpose.msra.mxu0 0
        %1481 = vmatprep.subr.bf16.mxu0 0
        %1482 = vmatpush1.bf16.xpose.msra.mxu0 0
        %1483 = vmatprep.mubr.bf16.mxu0 0
        %1484 = vmatmul.mubr.bf16.gmra.mrb[0].mxu0 %v1446
        %v1485 = vpop.f32.mrb[0].mxu0
        %v1486 = vadd.f32 %v565, %v1485
        %v1487 = vpop.f32.mrb[0].mxu0
        %v1488 = vpop.f32.mrb[0].mxu0
        %v1489 = vadd.f32 %v566, %v1488
        %v1490 = vpop.f32.mrb[0].mxu0
        %1491 = vdwg.mxu0
        %1493 = vrot.lane.b32.xlu0 %v970, 96
        %v1494 = vpop.permute.xlu0 %1493
        %1496 = vrot.lane.b32.xlu0 %v974, 96
        %v1497 = vpop.permute.xlu0 %1496
        %v1499 = vsel %vm981, %v1494, 0
        %v1502 = vsel %vm981, %v1497, 0
        %1504 = vmatprep.subr.bf16.mxu0 0
        %1505 = vmatpush1.bf16.xpose.msra.mxu0 %v1502
        %1506 = vmatprep.subr.bf16.mxu0 0
        %1507 = vmatpush1.bf16.xpose.msra.mxu0 0
        %1508 = vmatprep.subr.bf16.mxu0 0
        %1509 = vmatpush1.bf16.xpose.msra.mxu0 0
        %1510 = vmatprep.subr.bf16.mxu0 0
        %1511 = vmatpush1.bf16.xpose.msra.mxu0 0
        %1512 = vmatprep.subr.bf16.mxu0 0
        %1513 = vmatpush1.bf16.xpose.msra.mxu0 0
        %1514 = vmatprep.subr.bf16.mxu0 0
        %1515 = vmatpush1.bf16.xpose.msra.mxu0 0
        %1516 = vmatprep.subr.bf16.mxu0 0
        %1517 = vmatpush1.bf16.xpose.msra.mxu0 0
        %1518 = vmatprep.subr.bf16.mxu0 0
        %1519 = vmatpush1.bf16.xpose.msra.mxu0 0
        %1520 = vmatprep.subr.bf16.mxu0 0
        %1521 = vmatpush1.bf16.xpose.msra.mxu0 0
        %1522 = vmatprep.subr.bf16.mxu0 0
        %1523 = vmatpush1.bf16.xpose.msra.mxu0 0
        %1524 = vmatprep.subr.bf16.mxu0 0
        %1525 = vmatpush1.bf16.xpose.msra.mxu0 0
        %1526 = vmatprep.subr.bf16.mxu0 0
        %1527 = vmatpush1.bf16.xpose.msra.mxu0 0
        %1528 = vmatprep.subr.bf16.mxu0 0
        %1529 = vmatpush1.bf16.xpose.msra.mxu0 0
        %1530 = vmatprep.subr.bf16.mxu0 0
        %1531 = vmatpush1.bf16.xpose.msra.mxu0 0
        %1532 = vmatprep.subr.bf16.mxu0 0
        %1533 = vmatpush1.bf16.xpose.msra.mxu0 0
        %1534 = vmatprep.subr.bf16.mxu0 0
        %1535 = vmatpush1.bf16.xpose.msra.mxu0 0
        %1536 = vmatprep.mubr.bf16.mxu0 0
        %1537 = vmatmul.mubr.bf16.gmra.mrb[0].mxu0 %v1499
        %v1538 = vpop.f32.mrb[0].mxu0
        %v1539 = vadd.f32 %v573, %v1538
        %v1540 = vpop.f32.mrb[0].mxu0
        %v1541 = vpop.f32.mrb[0].mxu0
        %v1542 = vadd.f32 %v574, %v1541
        %v1543 = vpop.f32.mrb[0].mxu0
        %1544 = vdwg.mxu0
        %1546 = vrot.lane.b32.xlu0 %v971, 96
        %v1547 = vpop.permute.xlu0 %1546
        %1549 = vrot.lane.b32.xlu0 %v975, 96
        %v1550 = vpop.permute.xlu0 %1549
        %v1552 = vsel %vm981, %v1547, 0
        %v1555 = vsel %vm981, %v1550, 0
        %1557 = vmatprep.subr.bf16.mxu0 0
        %1558 = vmatpush1.bf16.xpose.msra.mxu0 %v1555
        %1559 = vmatprep.subr.bf16.mxu0 0
        %1560 = vmatpush1.bf16.xpose.msra.mxu0 0
        %1561 = vmatprep.subr.bf16.mxu0 0
        %1562 = vmatpush1.bf16.xpose.msra.mxu0 0
        %1563 = vmatprep.subr.bf16.mxu0 0
        %1564 = vmatpush1.bf16.xpose.msra.mxu0 0
        %1565 = vmatprep.subr.bf16.mxu0 0
        %1566 = vmatpush1.bf16.xpose.msra.mxu0 0
        %1567 = vmatprep.subr.bf16.mxu0 0
        %1568 = vmatpush1.bf16.xpose.msra.mxu0 0
        %1569 = vmatprep.subr.bf16.mxu0 0
        %1570 = vmatpush1.bf16.xpose.msra.mxu0 0
        %1571 = vmatprep.subr.bf16.mxu0 0
        %1572 = vmatpush1.bf16.xpose.msra.mxu0 0
        %1573 = vmatprep.subr.bf16.mxu0 0
        %1574 = vmatpush1.bf16.xpose.msra.mxu0 0
        %1575 = vmatprep.subr.bf16.mxu0 0
        %1576 = vmatpush1.bf16.xpose.msra.mxu0 0
        %1577 = vmatprep.subr.bf16.mxu0 0
        %1578 = vmatpush1.bf16.xpose.msra.mxu0 0
        %1579 = vmatprep.subr.bf16.mxu0 0
        %1580 = vmatpush1.bf16.xpose.msra.mxu0 0
        %1581 = vmatprep.subr.bf16.mxu0 0
        %1582 = vmatpush1.bf16.xpose.msra.mxu0 0
        %1583 = vmatprep.subr.bf16.mxu0 0
        %1584 = vmatpush1.bf16.xpose.msra.mxu0 0
        %1585 = vmatprep.subr.bf16.mxu0 0
        %1586 = vmatpush1.bf16.xpose.msra.mxu0 0
        %1587 = vmatprep.subr.bf16.mxu0 0
        %1588 = vmatpush1.bf16.xpose.msra.mxu0 0
        %1589 = vmatprep.mubr.bf16.mxu0 0
        %1590 = vmatmul.mubr.bf16.gmra.mrb[0].mxu0 %v1552
        %v1591 = vpop.f32.mrb[0].mxu0
        %v1592 = vadd.f32 %v581, %v1591
        %v1593 = vpop.f32.mrb[0].mxu0
        %v1594 = vpop.f32.mrb[0].mxu0
        %v1595 = vadd.f32 %v582, %v1594
        %v1596 = vpop.f32.mrb[0].mxu0
        %1597 = vdwg.mxu0
        %1599 = vrot.lane.b32.xlu0 %v972, 96
        %v1600 = vpop.permute.xlu0 %1599
        %1602 = vrot.lane.b32.xlu0 %v976, 96
        %v1603 = vpop.permute.xlu0 %1602
        %v1605 = vsel %vm981, %v1600, 0
        %v1608 = vsel %vm981, %v1603, 0
        %1610 = vmatprep.subr.bf16.mxu0 0
        %1611 = vmatpush1.bf16.xpose.msra.mxu0 %v1608
        %1612 = vmatprep.subr.bf16.mxu0 0
        %1613 = vmatpush1.bf16.xpose.msra.mxu0 0
        %1614 = vmatprep.subr.bf16.mxu0 0
        %1615 = vmatpush1.bf16.xpose.msra.mxu0 0
        %1616 = vmatprep.subr.bf16.mxu0 0
        %1617 = vmatpush1.bf16.xpose.msra.mxu0 0
        %1618 = vmatprep.subr.bf16.mxu0 0
        %1619 = vmatpush1.bf16.xpose.msra.mxu0 0
        %1620 = vmatprep.subr.bf16.mxu0 0
        %1621 = vmatpush1.bf16.xpose.msra.mxu0 0
        %1622 = vmatprep.subr.bf16.mxu0 0
        %1623 = vmatpush1.bf16.xpose.msra.mxu0 0
        %1624 = vmatprep.subr.bf16.mxu0 0
        %1625 = vmatpush1.bf16.xpose.msra.mxu0 0
        %1626 = vmatprep.subr.bf16.mxu0 0
        %1627 = vmatpush1.bf16.xpose.msra.mxu0 0
        %1628 = vmatprep.subr.bf16.mxu0 0
        %1629 = vmatpush1.bf16.xpose.msra.mxu0 0
        %1630 = vmatprep.subr.bf16.mxu0 0
        %1631 = vmatpush1.bf16.xpose.msra.mxu0 0
        %1632 = vmatprep.subr.bf16.mxu0 0
        %1633 = vmatpush1.bf16.xpose.msra.mxu0 0
        %1634 = vmatprep.subr.bf16.mxu0 0
        %1635 = vmatpush1.bf16.xpose.msra.mxu0 0
        %1636 = vmatprep.subr.bf16.mxu0 0
        %1637 = vmatpush1.bf16.xpose.msra.mxu0 0
        %1638 = vmatprep.subr.bf16.mxu0 0
        %1639 = vmatpush1.bf16.xpose.msra.mxu0 0
        %1640 = vmatprep.subr.bf16.mxu0 0
        %1641 = vmatpush1.bf16.xpose.msra.mxu0 0
        %1642 = vmatprep.mubr.bf16.mxu0 0
        %1643 = vmatmul.mubr.bf16.gmra.mrb[0].mxu0 %v1605
        %v1644 = vpop.f32.mrb[0].mxu0
        %v1645 = vadd.f32 %v589, %v1644
        %v1646 = vpop.f32.mrb[0].mxu0
        %v1647 = vpop.f32.mrb[0].mxu0
        %v1648 = vadd.f32 %v590, %v1647
        %v1649 = vpop.f32.mrb[0].mxu0
        %1650 = vdwg.mxu0
        %v1651 = vsel %vm1170, %v1486, -inf
        %1652 = vmax.xlane.f32.xlu0 %v1651
        %v1653 = vpop.xlane.xlu0 %1652
        %v1654 = vsel %vm1170, %v1489, -inf
        %1655 = vmax.xlane.f32.xlu0 %v1654
        %v1656 = vpop.xlane.xlu0 %1655
        %v1657 = vsel %vm1170, %v1539, -inf
        %1658 = vmax.xlane.f32.xlu0 %v1657
        %v1659 = vpop.xlane.xlu0 %1658
        %v1660 = vsel %vm1170, %v1542, -inf
        %1661 = vmax.xlane.f32.xlu0 %v1660
        %v1662 = vpop.xlane.xlu0 %1661
        %v1663 = vsel %vm1170, %v1592, -inf
        %1664 = vmax.xlane.f32.xlu0 %v1663
        %v1665 = vpop.xlane.xlu0 %1664
        %v1666 = vsel %vm1170, %v1595, -inf
        %1667 = vmax.xlane.f32.xlu0 %v1666
        %v1668 = vpop.xlane.xlu0 %1667
        %v1669 = vsel %vm1170, %v1645, -inf
        %1670 = vmax.xlane.f32.xlu0 %v1669
        %v1671 = vpop.xlane.xlu0 %1670
        %v1672 = vsel %vm1170, %v1648, -inf
        %1673 = vmax.xlane.f32.xlu0 %v1672
        %v1674 = vpop.xlane.xlu0 %1673
        %v1675 = vsub.f32 %v1486, %v1653
        %v1676 = vsub.f32 %v1489, %v1656
        %v1677 = vsub.f32 %v1539, %v1659
        %v1678 = vsub.f32 %v1542, %v1662
        %v1679 = vsub.f32 %v1592, %v1665
        %v1680 = vsub.f32 %v1595, %v1668
        %v1681 = vsub.f32 %v1645, %v1671
        %v1682 = vsub.f32 %v1648, %v1674
        %v1683 = vmul.f32 %v1675, 1.442695
        %v1684 = vpow.pop %v1683
        %v1685 = vmul.f32 %v1676, 1.442695
        %v1686 = vpow.pop %v1685
        %v1687 = vmul.f32 %v1677, 1.442695
        %v1688 = vpow.pop %v1687
        %v1689 = vmul.f32 %v1678, 1.442695
        %v1690 = vpow.pop %v1689
        %v1691 = vmul.f32 %v1679, 1.442695
        %v1692 = vpow.pop %v1691
        %v1693 = vmul.f32 %v1680, 1.442695
        %v1694 = vpow.pop %v1693
        %v1695 = vmul.f32 %v1681, 1.442695
        %v1696 = vpow.pop %v1695
        %v1697 = vmul.f32 %v1682, 1.442695
        %v1698 = vpow.pop %v1697
        %v1699 = vsel %vm1170, %v1684, 0.0
        %1700 = vadd.xlane.f32.xlu0 %v1699
        %v1701 = vpop.xlane.xlu0 %1700
        %v1702 = vsel %vm1170, %v1686, 0.0
        %1703 = vadd.xlane.f32.xlu0 %v1702
        %v1704 = vpop.xlane.xlu0 %1703
        %v1705 = vsel %vm1170, %v1688, 0.0
        %1706 = vadd.xlane.f32.xlu0 %v1705
        %v1707 = vpop.xlane.xlu0 %1706
        %v1708 = vsel %vm1170, %v1690, 0.0
        %1709 = vadd.xlane.f32.xlu0 %v1708
        %v1710 = vpop.xlane.xlu0 %1709
        %v1711 = vsel %vm1170, %v1692, 0.0
        %1712 = vadd.xlane.f32.xlu0 %v1711
        %v1713 = vpop.xlane.xlu0 %1712
        %v1714 = vsel %vm1170, %v1694, 0.0
        %1715 = vadd.xlane.f32.xlu0 %v1714
        %v1716 = vpop.xlane.xlu0 %1715
        %v1717 = vsel %vm1170, %v1696, 0.0
        %1718 = vadd.xlane.f32.xlu0 %v1717
        %v1719 = vpop.xlane.xlu0 %1718
        %v1720 = vsel %vm1170, %v1698, 0.0
        %1721 = vadd.xlane.f32.xlu0 %v1720
        %v1722 = vpop.xlane.xlu0 %1721
        %v1723 = vrcp.pop %v1701
        %v1724 = vmul.f32 %v1684, %v1723
        %v1725 = vrcp.pop %v1704
        %v1726 = vmul.f32 %v1686, %v1725
        %v1727 = vrcp.pop %v1707
        %v1728 = vmul.f32 %v1688, %v1727
        %v1729 = vrcp.pop %v1710
        %v1730 = vmul.f32 %v1690, %v1729
        %v1731 = vrcp.pop %v1713
        %v1732 = vmul.f32 %v1692, %v1731
        %v1733 = vrcp.pop %v1716
        %v1734 = vmul.f32 %v1694, %v1733
        %v1735 = vrcp.pop %v1719
        %v1736 = vmul.f32 %v1696, %v1735
        %v1737 = vrcp.pop %v1722
        %v1738 = vmul.f32 %v1698, %v1737
        %v1739 = vpack.c.bf16 %v1726, %v1724
        %v1740 = vpack.c.bf16 %v1730, %v1728
        %v1741 = vpack.c.bf16 %v1734, %v1732
        %v1742 = vpack.c.bf16 %v1738, %v1736
        %1744 = vrot.lane.b32.xlu0 %v977, 96
        %v1745 = vpop.permute.xlu0 %1744
        %v1748 = vsel %vm1170, %v1739, 0
        %1750 = vmatprep.subr.bf16.mxu0 0
        %1751 = vmatpush1.bf16.msra.mxu0 %v1745
        %1752 = vmatprep.subr.bf16.mxu0 0
        %1753 = vmatpush1.bf16.msra.mxu0 0
        %1754 = vmatprep.subr.bf16.mxu0 0
        %1755 = vmatpush1.bf16.msra.mxu0 0
        %1756 = vmatprep.subr.bf16.mxu0 0
        %1757 = vmatpush1.bf16.msra.mxu0 0
        %1758 = vmatprep.subr.bf16.mxu0 0
        %1759 = vmatpush1.bf16.msra.mxu0 0
        %1760 = vmatprep.subr.bf16.mxu0 0
        %1761 = vmatpush1.bf16.msra.mxu0 0
        %1762 = vmatprep.subr.bf16.mxu0 0
        %1763 = vmatpush1.bf16.msra.mxu0 0
        %1764 = vmatprep.subr.bf16.mxu0 0
        %1765 = vmatpush1.bf16.msra.mxu0 0
        %1766 = vmatprep.subr.bf16.mxu0 0
        %1767 = vmatpush1.bf16.msra.mxu0 0
        %1768 = vmatprep.subr.bf16.mxu0 0
        %1769 = vmatpush1.bf16.msra.mxu0 0
        %1770 = vmatprep.subr.bf16.mxu0 0
        %1771 = vmatpush1.bf16.msra.mxu0 0
        %1772 = vmatprep.subr.bf16.mxu0 0
        %1773 = vmatpush1.bf16.msra.mxu0 0
        %1774 = vmatprep.subr.bf16.mxu0 0
        %1775 = vmatpush1.bf16.msra.mxu0 0
        %1776 = vmatprep.subr.bf16.mxu0 0
        %1777 = vmatpush1.bf16.msra.mxu0 0
        %1778 = vmatprep.subr.bf16.mxu0 0
        %1779 = vmatpush1.bf16.msra.mxu0 0
        %1780 = vmatprep.subr.bf16.mxu0 0
        %1781 = vmatpush1.bf16.msra.mxu0 0
        %1782 = vmatprep.mubr.bf16.mxu0 0
        %1783 = vmatmul.mubr.bf16.gmra.mrb[0].mxu0 %v1748
        %v1784 = vpop.f32.mrb[0].mxu0
        %v1785 = vadd.f32 0.0, %v1784
        %v1786 = vpop.f32.mrb[0].mxu0
        %v1787 = vpop.f32.mrb[0].mxu0
        %v1788 = vadd.f32 0.0, %v1787
        %v1789 = vpop.f32.mrb[0].mxu0
        %1790 = vdwg.mxu0
        %1792 = vrot.lane.b32.xlu0 %v978, 96
        %v1793 = vpop.permute.xlu0 %1792
        %v1796 = vsel %vm1170, %v1740, 0
        %1798 = vmatprep.subr.bf16.mxu0 0
        %1799 = vmatpush1.bf16.msra.mxu0 %v1793
        %1800 = vmatprep.subr.bf16.mxu0 0
        %1801 = vmatpush1.bf16.msra.mxu0 0
        %1802 = vmatprep.subr.bf16.mxu0 0
        %1803 = vmatpush1.bf16.msra.mxu0 0
        %1804 = vmatprep.subr.bf16.mxu0 0
        %1805 = vmatpush1.bf16.msra.mxu0 0
        %1806 = vmatprep.subr.bf16.mxu0 0
        %1807 = vmatpush1.bf16.msra.mxu0 0
        %1808 = vmatprep.subr.bf16.mxu0 0
        %1809 = vmatpush1.bf16.msra.mxu0 0
        %1810 = vmatprep.subr.bf16.mxu0 0
        %1811 = vmatpush1.bf16.msra.mxu0 0
        %1812 = vmatprep.subr.bf16.mxu0 0
        %1813 = vmatpush1.bf16.msra.mxu0 0
        %1814 = vmatprep.subr.bf16.mxu0 0
        %1815 = vmatpush1.bf16.msra.mxu0 0
        %1816 = vmatprep.subr.bf16.mxu0 0
        %1817 = vmatpush1.bf16.msra.mxu0 0
        %1818 = vmatprep.subr.bf16.mxu0 0
        %1819 = vmatpush1.bf16.msra.mxu0 0
        %1820 = vmatprep.subr.bf16.mxu0 0
        %1821 = vmatpush1.bf16.msra.mxu0 0
        %1822 = vmatprep.subr.bf16.mxu0 0
        %1823 = vmatpush1.bf16.msra.mxu0 0
        %1824 = vmatprep.subr.bf16.mxu0 0
        %1825 = vmatpush1.bf16.msra.mxu0 0
        %1826 = vmatprep.subr.bf16.mxu0 0
        %1827 = vmatpush1.bf16.msra.mxu0 0
        %1828 = vmatprep.subr.bf16.mxu0 0
        %1829 = vmatpush1.bf16.msra.mxu0 0
        %1830 = vmatprep.mubr.bf16.mxu0 0
        %1831 = vmatmul.mubr.bf16.gmra.mrb[0].mxu0 %v1796
        %v1832 = vpop.f32.mrb[0].mxu0
        %v1833 = vadd.f32 0.0, %v1832
        %v1834 = vpop.f32.mrb[0].mxu0
        %v1835 = vpop.f32.mrb[0].mxu0
        %v1836 = vadd.f32 0.0, %v1835
        %v1837 = vpop.f32.mrb[0].mxu0
        %1838 = vdwg.mxu0
        %1840 = vrot.lane.b32.xlu0 %v979, 96
        %v1841 = vpop.permute.xlu0 %1840
        %v1844 = vsel %vm1170, %v1741, 0
        %1846 = vmatprep.subr.bf16.mxu0 0
        %1847 = vmatpush1.bf16.msra.mxu0 %v1841
        %1848 = vmatprep.subr.bf16.mxu0 0
        %1849 = vmatpush1.bf16.msra.mxu0 0
        %1850 = vmatprep.subr.bf16.mxu0 0
        %1851 = vmatpush1.bf16.msra.mxu0 0
        %1852 = vmatprep.subr.bf16.mxu0 0
        %1853 = vmatpush1.bf16.msra.mxu0 0
        %1854 = vmatprep.subr.bf16.mxu0 0
        %1855 = vmatpush1.bf16.msra.mxu0 0
        %1856 = vmatprep.subr.bf16.mxu0 0
        %1857 = vmatpush1.bf16.msra.mxu0 0
        %1858 = vmatprep.subr.bf16.mxu0 0
        %1859 = vmatpush1.bf16.msra.mxu0 0
        %1860 = vmatprep.subr.bf16.mxu0 0
        %1861 = vmatpush1.bf16.msra.mxu0 0
        %1862 = vmatprep.subr.bf16.mxu0 0
        %1863 = vmatpush1.bf16.msra.mxu0 0
        %1864 = vmatprep.subr.bf16.mxu0 0
        %1865 = vmatpush1.bf16.msra.mxu0 0
        %1866 = vmatprep.subr.bf16.mxu0 0
        %1867 = vmatpush1.bf16.msra.mxu0 0
        %1868 = vmatprep.subr.bf16.mxu0 0
        %1869 = vmatpush1.bf16.msra.mxu0 0
        %1870 = vmatprep.subr.bf16.mxu0 0
        %1871 = vmatpush1.bf16.msra.mxu0 0
        %1872 = vmatprep.subr.bf16.mxu0 0
        %1873 = vmatpush1.bf16.msra.mxu0 0
        %1874 = vmatprep.subr.bf16.mxu0 0
        %1875 = vmatpush1.bf16.msra.mxu0 0
        %1876 = vmatprep.subr.bf16.mxu0 0
        %1877 = vmatpush1.bf16.msra.mxu0 0
        %1878 = vmatprep.mubr.bf16.mxu0 0
        %1879 = vmatmul.mubr.bf16.gmra.mrb[0].mxu0 %v1844
        %v1880 = vpop.f32.mrb[0].mxu0
        %v1881 = vadd.f32 0.0, %v1880
        %v1882 = vpop.f32.mrb[0].mxu0
        %v1883 = vpop.f32.mrb[0].mxu0
        %v1884 = vadd.f32 0.0, %v1883
        %v1885 = vpop.f32.mrb[0].mxu0
        %1886 = vdwg.mxu0
        %1888 = vrot.lane.b32.xlu0 %v980, 96
        %v1889 = vpop.permute.xlu0 %1888
        %v1892 = vsel %vm1170, %v1742, 0
        %1894 = vmatprep.subr.bf16.mxu0 0
        %1895 = vmatpush1.bf16.msra.mxu0 %v1889
        %1896 = vmatprep.subr.bf16.mxu0 0
        %1897 = vmatpush1.bf16.msra.mxu0 0
        %1898 = vmatprep.subr.bf16.mxu0 0
        %1899 = vmatpush1.bf16.msra.mxu0 0
        %1900 = vmatprep.subr.bf16.mxu0 0
        %1901 = vmatpush1.bf16.msra.mxu0 0
        %1902 = vmatprep.subr.bf16.mxu0 0
        %1903 = vmatpush1.bf16.msra.mxu0 0
        %1904 = vmatprep.subr.bf16.mxu0 0
        %1905 = vmatpush1.bf16.msra.mxu0 0
        %1906 = vmatprep.subr.bf16.mxu0 0
        %1907 = vmatpush1.bf16.msra.mxu0 0
        %1908 = vmatprep.subr.bf16.mxu0 0
        %1909 = vmatpush1.bf16.msra.mxu0 0
        %1910 = vmatprep.subr.bf16.mxu0 0
        %1911 = vmatpush1.bf16.msra.mxu0 0
        %1912 = vmatprep.subr.bf16.mxu0 0
        %1913 = vmatpush1.bf16.msra.mxu0 0
        %1914 = vmatprep.subr.bf16.mxu0 0
        %1915 = vmatpush1.bf16.msra.mxu0 0
        %1916 = vmatprep.subr.bf16.mxu0 0
        %1917 = vmatpush1.bf16.msra.mxu0 0
        %1918 = vmatprep.subr.bf16.mxu0 0
        %1919 = vmatpush1.bf16.msra.mxu0 0
        %1920 = vmatprep.subr.bf16.mxu0 0
        %1921 = vmatpush1.bf16.msra.mxu0 0
        %1922 = vmatprep.subr.bf16.mxu0 0
        %1923 = vmatpush1.bf16.msra.mxu0 0
        %1924 = vmatprep.subr.bf16.mxu0 0
        %1925 = vmatpush1.bf16.msra.mxu0 0
        %1926 = vmatprep.mubr.bf16.mxu0 0
        %1927 = vmatmul.mubr.bf16.gmra.mrb[0].mxu0 %v1892
        %v1928 = vpop.f32.mrb[0].mxu0
        %v1929 = vadd.f32 0.0, %v1928
        %v1930 = vpop.f32.mrb[0].mxu0
        %v1931 = vpop.f32.mrb[0].mxu0
        %v1932 = vadd.f32 0.0, %v1931
        %v1933 = vpop.f32.mrb[0].mxu0
        %1934 = vdwg.mxu0
        %1935 = vrot.lane.b32.xlu0 %v969, 64
        %v1936 = vpop.permute.xlu0 %1935
        %1937 = vrot.lane.b32.xlu0 %v973, 64
        %v1938 = vpop.permute.xlu0 %1937
        %v1940 = vsel %vm981, %v1936, 0
        %v1943 = vsel %vm981, %v1938, 0
        %1945 = vmatprep.subr.bf16.mxu0 0
        %1946 = vmatpush1.bf16.xpose.msra.mxu0 %v1943
        %1947 = vmatprep.subr.bf16.mxu0 0
        %1948 = vmatpush1.bf16.xpose.msra.mxu0 0
        %1949 = vmatprep.subr.bf16.mxu0 0
        %1950 = vmatpush1.bf16.xpose.msra.mxu0 0
        %1951 = vmatprep.subr.bf16.mxu0 0
        %1952 = vmatpush1.bf16.xpose.msra.mxu0 0
        %1953 = vmatprep.subr.bf16.mxu0 0
        %1954 = vmatpush1.bf16.xpose.msra.mxu0 0
        %1955 = vmatprep.subr.bf16.mxu0 0
        %1956 = vmatpush1.bf16.xpose.msra.mxu0 0
        %1957 = vmatprep.subr.bf16.mxu0 0
        %1958 = vmatpush1.bf16.xpose.msra.mxu0 0
        %1959 = vmatprep.subr.bf16.mxu0 0
        %1960 = vmatpush1.bf16.xpose.msra.mxu0 0
        %1961 = vmatprep.subr.bf16.mxu0 0
        %1962 = vmatpush1.bf16.xpose.msra.mxu0 0
        %1963 = vmatprep.subr.bf16.mxu0 0
        %1964 = vmatpush1.bf16.xpose.msra.mxu0 0
        %1965 = vmatprep.subr.bf16.mxu0 0
        %1966 = vmatpush1.bf16.xpose.msra.mxu0 0
        %1967 = vmatprep.subr.bf16.mxu0 0
        %1968 = vmatpush1.bf16.xpose.msra.mxu0 0
        %1969 = vmatprep.subr.bf16.mxu0 0
        %1970 = vmatpush1.bf16.xpose.msra.mxu0 0
        %1971 = vmatprep.subr.bf16.mxu0 0
        %1972 = vmatpush1.bf16.xpose.msra.mxu0 0
        %1973 = vmatprep.subr.bf16.mxu0 0
        %1974 = vmatpush1.bf16.xpose.msra.mxu0 0
        %1975 = vmatprep.subr.bf16.mxu0 0
        %1976 = vmatpush1.bf16.xpose.msra.mxu0 0
        %1977 = vmatprep.mubr.bf16.mxu0 0
        %1978 = vmatmul.mubr.bf16.gmra.mrb[0].mxu0 %v1940
        %v1979 = vpop.f32.mrb[0].mxu0
        %v1980 = vadd.f32 %v567, %v1979
        %v1981 = vpop.f32.mrb[0].mxu0
        %v1982 = vpop.f32.mrb[0].mxu0
        %v1983 = vadd.f32 %v568, %v1982
        %v1984 = vpop.f32.mrb[0].mxu0
        %1985 = vdwg.mxu0
        %1986 = vrot.lane.b32.xlu0 %v970, 64
        %v1987 = vpop.permute.xlu0 %1986
        %1988 = vrot.lane.b32.xlu0 %v974, 64
        %v1989 = vpop.permute.xlu0 %1988
        %v1991 = vsel %vm981, %v1987, 0
        %v1994 = vsel %vm981, %v1989, 0
        %1996 = vmatprep.subr.bf16.mxu0 0
        %1997 = vmatpush1.bf16.xpose.msra.mxu0 %v1994
        %1998 = vmatprep.subr.bf16.mxu0 0
        %1999 = vmatpush1.bf16.xpose.msra.mxu0 0
        %2000 = vmatprep.subr.bf16.mxu0 0
        %2001 = vmatpush1.bf16.xpose.msra.mxu0 0
        %2002 = vmatprep.subr.bf16.mxu0 0
        %2003 = vmatpush1.bf16.xpose.msra.mxu0 0
        %2004 = vmatprep.subr.bf16.mxu0 0
        %2005 = vmatpush1.bf16.xpose.msra.mxu0 0
        %2006 = vmatprep.subr.bf16.mxu0 0
        %2007 = vmatpush1.bf16.xpose.msra.mxu0 0
        %2008 = vmatprep.subr.bf16.mxu0 0
        %2009 = vmatpush1.bf16.xpose.msra.mxu0 0
        %2010 = vmatprep.subr.bf16.mxu0 0
        %2011 = vmatpush1.bf16.xpose.msra.mxu0 0
        %2012 = vmatprep.subr.bf16.mxu0 0
        %2013 = vmatpush1.bf16.xpose.msra.mxu0 0
        %2014 = vmatprep.subr.bf16.mxu0 0
        %2015 = vmatpush1.bf16.xpose.msra.mxu0 0
        %2016 = vmatprep.subr.bf16.mxu0 0
        %2017 = vmatpush1.bf16.xpose.msra.mxu0 0
        %2018 = vmatprep.subr.bf16.mxu0 0
        %2019 = vmatpush1.bf16.xpose.msra.mxu0 0
        %2020 = vmatprep.subr.bf16.mxu0 0
        %2021 = vmatpush1.bf16.xpose.msra.mxu0 0
        %2022 = vmatprep.subr.bf16.mxu0 0
        %2023 = vmatpush1.bf16.xpose.msra.mxu0 0
        %2024 = vmatprep.subr.bf16.mxu0 0
        %2025 = vmatpush1.bf16.xpose.msra.mxu0 0
        %2026 = vmatprep.subr.bf16.mxu0 0
        %2027 = vmatpush1.bf16.xpose.msra.mxu0 0
        %2028 = vmatprep.mubr.bf16.mxu0 0
        %2029 = vmatmul.mubr.bf16.gmra.mrb[0].mxu0 %v1991
        %v2030 = vpop.f32.mrb[0].mxu0
        %v2031 = vadd.f32 %v575, %v2030
        %v2032 = vpop.f32.mrb[0].mxu0
        %v2033 = vpop.f32.mrb[0].mxu0
        %v2034 = vadd.f32 %v576, %v2033
        %v2035 = vpop.f32.mrb[0].mxu0
        %2036 = vdwg.mxu0
        %2037 = vrot.lane.b32.xlu0 %v971, 64
        %v2038 = vpop.permute.xlu0 %2037
        %2039 = vrot.lane.b32.xlu0 %v975, 64
        %v2040 = vpop.permute.xlu0 %2039
        %v2042 = vsel %vm981, %v2038, 0
        %v2045 = vsel %vm981, %v2040, 0
        %2047 = vmatprep.subr.bf16.mxu0 0
        %2048 = vmatpush1.bf16.xpose.msra.mxu0 %v2045
        %2049 = vmatprep.subr.bf16.mxu0 0
        %2050 = vmatpush1.bf16.xpose.msra.mxu0 0
        %2051 = vmatprep.subr.bf16.mxu0 0
        %2052 = vmatpush1.bf16.xpose.msra.mxu0 0
        %2053 = vmatprep.subr.bf16.mxu0 0
        %2054 = vmatpush1.bf16.xpose.msra.mxu0 0
        %2055 = vmatprep.subr.bf16.mxu0 0
        %2056 = vmatpush1.bf16.xpose.msra.mxu0 0
        %2057 = vmatprep.subr.bf16.mxu0 0
        %2058 = vmatpush1.bf16.xpose.msra.mxu0 0
        %2059 = vmatprep.subr.bf16.mxu0 0
        %2060 = vmatpush1.bf16.xpose.msra.mxu0 0
        %2061 = vmatprep.subr.bf16.mxu0 0
        %2062 = vmatpush1.bf16.xpose.msra.mxu0 0
        %2063 = vmatprep.subr.bf16.mxu0 0
        %2064 = vmatpush1.bf16.xpose.msra.mxu0 0
        %2065 = vmatprep.subr.bf16.mxu0 0
        %2066 = vmatpush1.bf16.xpose.msra.mxu0 0
        %2067 = vmatprep.subr.bf16.mxu0 0
        %2068 = vmatpush1.bf16.xpose.msra.mxu0 0
        %2069 = vmatprep.subr.bf16.mxu0 0
        %2070 = vmatpush1.bf16.xpose.msra.mxu0 0
        %2071 = vmatprep.subr.bf16.mxu0 0
        %2072 = vmatpush1.bf16.xpose.msra.mxu0 0
        %2073 = vmatprep.subr.bf16.mxu0 0
        %2074 = vmatpush1.bf16.xpose.msra.mxu0 0
        %2075 = vmatprep.subr.bf16.mxu0 0
        %2076 = vmatpush1.bf16.xpose.msra.mxu0 0
        %2077 = vmatprep.subr.bf16.mxu0 0
        %2078 = vmatpush1.bf16.xpose.msra.mxu0 0
        %2079 = vmatprep.mubr.bf16.mxu0 0
        %2080 = vmatmul.mubr.bf16.gmra.mrb[0].mxu0 %v2042
        %v2081 = vpop.f32.mrb[0].mxu0
        %v2082 = vadd.f32 %v583, %v2081
        %v2083 = vpop.f32.mrb[0].mxu0
        %v2084 = vpop.f32.mrb[0].mxu0
        %v2085 = vadd.f32 %v584, %v2084
        %v2086 = vpop.f32.mrb[0].mxu0
        %2087 = vdwg.mxu0
        %2088 = vrot.lane.b32.xlu0 %v972, 64
        %v2089 = vpop.permute.xlu0 %2088
        %2090 = vrot.lane.b32.xlu0 %v976, 64
        %v2091 = vpop.permute.xlu0 %2090
        %v2093 = vsel %vm981, %v2089, 0
        %v2096 = vsel %vm981, %v2091, 0
        %2098 = vmatprep.subr.bf16.mxu0 0
        %2099 = vmatpush1.bf16.xpose.msra.mxu0 %v2096
        %2100 = vmatprep.subr.bf16.mxu0 0
        %2101 = vmatpush1.bf16.xpose.msra.mxu0 0
        %2102 = vmatprep.subr.bf16.mxu0 0
        %2103 = vmatpush1.bf16.xpose.msra.mxu0 0
        %2104 = vmatprep.subr.bf16.mxu0 0
        %2105 = vmatpush1.bf16.xpose.msra.mxu0 0
        %2106 = vmatprep.subr.bf16.mxu0 0
        %2107 = vmatpush1.bf16.xpose.msra.mxu0 0
        %2108 = vmatprep.subr.bf16.mxu0 0
        %2109 = vmatpush1.bf16.xpose.msra.mxu0 0
        %2110 = vmatprep.subr.bf16.mxu0 0
        %2111 = vmatpush1.bf16.xpose.msra.mxu0 0
        %2112 = vmatprep.subr.bf16.mxu0 0
        %2113 = vmatpush1.bf16.xpose.msra.mxu0 0
        %2114 = vmatprep.subr.bf16.mxu0 0
        %2115 = vmatpush1.bf16.xpose.msra.mxu0 0
        %2116 = vmatprep.subr.bf16.mxu0 0
        %2117 = vmatpush1.bf16.xpose.msra.mxu0 0
        %2118 = vmatprep.subr.bf16.mxu0 0
        %2119 = vmatpush1.bf16.xpose.msra.mxu0 0
        %2120 = vmatprep.subr.bf16.mxu0 0
        %2121 = vmatpush1.bf16.xpose.msra.mxu0 0
        %2122 = vmatprep.subr.bf16.mxu0 0
        %2123 = vmatpush1.bf16.xpose.msra.mxu0 0
        %2124 = vmatprep.subr.bf16.mxu0 0
        %2125 = vmatpush1.bf16.xpose.msra.mxu0 0
        %2126 = vmatprep.subr.bf16.mxu0 0
        %2127 = vmatpush1.bf16.xpose.msra.mxu0 0
        %2128 = vmatprep.subr.bf16.mxu0 0
        %2129 = vmatpush1.bf16.xpose.msra.mxu0 0
        %2130 = vmatprep.mubr.bf16.mxu0 0
        %2131 = vmatmul.mubr.bf16.gmra.mrb[0].mxu0 %v2093
        %v2132 = vpop.f32.mrb[0].mxu0
        %v2133 = vadd.f32 %v591, %v2132
        %v2134 = vpop.f32.mrb[0].mxu0
        %v2135 = vpop.f32.mrb[0].mxu0
        %v2136 = vadd.f32 %v592, %v2135
        %v2137 = vpop.f32.mrb[0].mxu0
        %2138 = vdwg.mxu0
        %v2139 = vsel %vm1170, %v1980, -inf
        %2140 = vmax.xlane.f32.xlu0 %v2139
        %v2141 = vpop.xlane.xlu0 %2140
        %v2142 = vsel %vm1170, %v1983, -inf
        %2143 = vmax.xlane.f32.xlu0 %v2142
        %v2144 = vpop.xlane.xlu0 %2143
        %v2145 = vsel %vm1170, %v2031, -inf
        %2146 = vmax.xlane.f32.xlu0 %v2145
        %v2147 = vpop.xlane.xlu0 %2146
        %v2148 = vsel %vm1170, %v2034, -inf
        %2149 = vmax.xlane.f32.xlu0 %v2148
        %v2150 = vpop.xlane.xlu0 %2149
        %v2151 = vsel %vm1170, %v2082, -inf
        %2152 = vmax.xlane.f32.xlu0 %v2151
        %v2153 = vpop.xlane.xlu0 %2152
        %v2154 = vsel %vm1170, %v2085, -inf
        %2155 = vmax.xlane.f32.xlu0 %v2154
        %v2156 = vpop.xlane.xlu0 %2155
        %v2157 = vsel %vm1170, %v2133, -inf
        %2158 = vmax.xlane.f32.xlu0 %v2157
        %v2159 = vpop.xlane.xlu0 %2158
        %v2160 = vsel %vm1170, %v2136, -inf
        %2161 = vmax.xlane.f32.xlu0 %v2160
        %v2162 = vpop.xlane.xlu0 %2161
        %v2163 = vsub.f32 %v1980, %v2141
        %v2164 = vsub.f32 %v1983, %v2144
        %v2165 = vsub.f32 %v2031, %v2147
        %v2166 = vsub.f32 %v2034, %v2150
        %v2167 = vsub.f32 %v2082, %v2153
        %v2168 = vsub.f32 %v2085, %v2156
        %v2169 = vsub.f32 %v2133, %v2159
        %v2170 = vsub.f32 %v2136, %v2162
        %v2171 = vmul.f32 %v2163, 1.442695
        %v2172 = vpow.pop %v2171
        %v2173 = vmul.f32 %v2164, 1.442695
        %v2174 = vpow.pop %v2173
        %v2175 = vmul.f32 %v2165, 1.442695
        %v2176 = vpow.pop %v2175
        %v2177 = vmul.f32 %v2166, 1.442695
        %v2178 = vpow.pop %v2177
        %v2179 = vmul.f32 %v2167, 1.442695
        %v2180 = vpow.pop %v2179
        %v2181 = vmul.f32 %v2168, 1.442695
        %v2182 = vpow.pop %v2181
        %v2183 = vmul.f32 %v2169, 1.442695
        %v2184 = vpow.pop %v2183
        %v2185 = vmul.f32 %v2170, 1.442695
        %v2186 = vpow.pop %v2185
        %v2187 = vsel %vm1170, %v2172, 0.0
        %2188 = vadd.xlane.f32.xlu0 %v2187
        %v2189 = vpop.xlane.xlu0 %2188
        %v2190 = vsel %vm1170, %v2174, 0.0
        %2191 = vadd.xlane.f32.xlu0 %v2190
        %v2192 = vpop.xlane.xlu0 %2191
        %v2193 = vsel %vm1170, %v2176, 0.0
        %2194 = vadd.xlane.f32.xlu0 %v2193
        %v2195 = vpop.xlane.xlu0 %2194
        %v2196 = vsel %vm1170, %v2178, 0.0
        %2197 = vadd.xlane.f32.xlu0 %v2196
        %v2198 = vpop.xlane.xlu0 %2197
        %v2199 = vsel %vm1170, %v2180, 0.0
        %2200 = vadd.xlane.f32.xlu0 %v2199
        %v2201 = vpop.xlane.xlu0 %2200
        %v2202 = vsel %vm1170, %v2182, 0.0
        %2203 = vadd.xlane.f32.xlu0 %v2202
        %v2204 = vpop.xlane.xlu0 %2203
        %v2205 = vsel %vm1170, %v2184, 0.0
        %2206 = vadd.xlane.f32.xlu0 %v2205
        %v2207 = vpop.xlane.xlu0 %2206
        %v2208 = vsel %vm1170, %v2186, 0.0
        %2209 = vadd.xlane.f32.xlu0 %v2208
        %v2210 = vpop.xlane.xlu0 %2209
        %v2211 = vrcp.pop %v2189
        %v2212 = vmul.f32 %v2172, %v2211
        %v2213 = vrcp.pop %v2192
        %v2214 = vmul.f32 %v2174, %v2213
        %v2215 = vrcp.pop %v2195
        %v2216 = vmul.f32 %v2176, %v2215
        %v2217 = vrcp.pop %v2198
        %v2218 = vmul.f32 %v2178, %v2217
        %v2219 = vrcp.pop %v2201
        %v2220 = vmul.f32 %v2180, %v2219
        %v2221 = vrcp.pop %v2204
        %v2222 = vmul.f32 %v2182, %v2221
        %v2223 = vrcp.pop %v2207
        %v2224 = vmul.f32 %v2184, %v2223
        %v2225 = vrcp.pop %v2210
        %v2226 = vmul.f32 %v2186, %v2225
        %v2227 = vpack.c.bf16 %v2214, %v2212
        %v2228 = vpack.c.bf16 %v2218, %v2216
        %v2229 = vpack.c.bf16 %v2222, %v2220
        %v2230 = vpack.c.bf16 %v2226, %v2224
        %2231 = vrot.lane.b32.xlu0 %v977, 64
        %v2232 = vpop.permute.xlu0 %2231
        %v2235 = vsel %vm1170, %v2227, 0
        %2237 = vmatprep.subr.bf16.mxu0 0
        %2238 = vmatpush1.bf16.msra.mxu0 %v2232
        %2239 = vmatprep.subr.bf16.mxu0 0
        %2240 = vmatpush1.bf16.msra.mxu0 0
        %2241 = vmatprep.subr.bf16.mxu0 0
        %2242 = vmatpush1.bf16.msra.mxu0 0
        %2243 = vmatprep.subr.bf16.mxu0 0
        %2244 = vmatpush1.bf16.msra.mxu0 0
        %2245 = vmatprep.subr.bf16.mxu0 0
        %2246 = vmatpush1.bf16.msra.mxu0 0
        %2247 = vmatprep.subr.bf16.mxu0 0
        %2248 = vmatpush1.bf16.msra.mxu0 0
        %2249 = vmatprep.subr.bf16.mxu0 0
        %2250 = vmatpush1.bf16.msra.mxu0 0
        %2251 = vmatprep.subr.bf16.mxu0 0
        %2252 = vmatpush1.bf16.msra.mxu0 0
        %2253 = vmatprep.subr.bf16.mxu0 0
        %2254 = vmatpush1.bf16.msra.mxu0 0
        %2255 = vmatprep.subr.bf16.mxu0 0
        %2256 = vmatpush1.bf16.msra.mxu0 0
        %2257 = vmatprep.subr.bf16.mxu0 0
        %2258 = vmatpush1.bf16.msra.mxu0 0
        %2259 = vmatprep.subr.bf16.mxu0 0
        %2260 = vmatpush1.bf16.msra.mxu0 0
        %2261 = vmatprep.subr.bf16.mxu0 0
        %2262 = vmatpush1.bf16.msra.mxu0 0
        %2263 = vmatprep.subr.bf16.mxu0 0
        %2264 = vmatpush1.bf16.msra.mxu0 0
        %2265 = vmatprep.subr.bf16.mxu0 0
        %2266 = vmatpush1.bf16.msra.mxu0 0
        %2267 = vmatprep.subr.bf16.mxu0 0
        %2268 = vmatpush1.bf16.msra.mxu0 0
        %2269 = vmatprep.mubr.bf16.mxu0 0
        %2270 = vmatmul.mubr.bf16.gmra.mrb[0].mxu0 %v2235
        %v2271 = vpop.f32.mrb[0].mxu0
        %v2272 = vadd.f32 0.0, %v2271
        %v2273 = vpop.f32.mrb[0].mxu0
        %v2274 = vpop.f32.mrb[0].mxu0
        %v2275 = vadd.f32 0.0, %v2274
        %v2276 = vpop.f32.mrb[0].mxu0
        %2277 = vdwg.mxu0
        %2278 = vrot.lane.b32.xlu0 %v978, 64
        %v2279 = vpop.permute.xlu0 %2278
        %v2282 = vsel %vm1170, %v2228, 0
        %2284 = vmatprep.subr.bf16.mxu0 0
        %2285 = vmatpush1.bf16.msra.mxu0 %v2279
        %2286 = vmatprep.subr.bf16.mxu0 0
        %2287 = vmatpush1.bf16.msra.mxu0 0
        %2288 = vmatprep.subr.bf16.mxu0 0
        %2289 = vmatpush1.bf16.msra.mxu0 0
        %2290 = vmatprep.subr.bf16.mxu0 0
        %2291 = vmatpush1.bf16.msra.mxu0 0
        %2292 = vmatprep.subr.bf16.mxu0 0
        %2293 = vmatpush1.bf16.msra.mxu0 0
        %2294 = vmatprep.subr.bf16.mxu0 0
        %2295 = vmatpush1.bf16.msra.mxu0 0
        %2296 = vmatprep.subr.bf16.mxu0 0
        %2297 = vmatpush1.bf16.msra.mxu0 0
        %2298 = vmatprep.subr.bf16.mxu0 0
        %2299 = vmatpush1.bf16.msra.mxu0 0
        %2300 = vmatprep.subr.bf16.mxu0 0
        %2301 = vmatpush1.bf16.msra.mxu0 0
        %2302 = vmatprep.subr.bf16.mxu0 0
        %2303 = vmatpush1.bf16.msra.mxu0 0
        %2304 = vmatprep.subr.bf16.mxu0 0
        %2305 = vmatpush1.bf16.msra.mxu0 0
        %2306 = vmatprep.subr.bf16.mxu0 0
        %2307 = vmatpush1.bf16.msra.mxu0 0
        %2308 = vmatprep.subr.bf16.mxu0 0
        %2309 = vmatpush1.bf16.msra.mxu0 0
        %2310 = vmatprep.subr.bf16.mxu0 0
        %2311 = vmatpush1.bf16.msra.mxu0 0
        %2312 = vmatprep.subr.bf16.mxu0 0
        %2313 = vmatpush1.bf16.msra.mxu0 0
        %2314 = vmatprep.subr.bf16.mxu0 0
        %2315 = vmatpush1.bf16.msra.mxu0 0
        %2316 = vmatprep.mubr.bf16.mxu0 0
        %2317 = vmatmul.mubr.bf16.gmra.mrb[0].mxu0 %v2282
        %v2318 = vpop.f32.mrb[0].mxu0
        %v2319 = vadd.f32 0.0, %v2318
        %v2320 = vpop.f32.mrb[0].mxu0
        %v2321 = vpop.f32.mrb[0].mxu0
        %v2322 = vadd.f32 0.0, %v2321
        %v2323 = vpop.f32.mrb[0].mxu0
        %2324 = vdwg.mxu0
        %2325 = vrot.lane.b32.xlu0 %v979, 64
        %v2326 = vpop.permute.xlu0 %2325
        %v2329 = vsel %vm1170, %v2229, 0
        %2331 = vmatprep.subr.bf16.mxu0 0
        %2332 = vmatpush1.bf16.msra.mxu0 %v2326
        %2333 = vmatprep.subr.bf16.mxu0 0
        %2334 = vmatpush1.bf16.msra.mxu0 0
        %2335 = vmatprep.subr.bf16.mxu0 0
        %2336 = vmatpush1.bf16.msra.mxu0 0
        %2337 = vmatprep.subr.bf16.mxu0 0
        %2338 = vmatpush1.bf16.msra.mxu0 0
        %2339 = vmatprep.subr.bf16.mxu0 0
        %2340 = vmatpush1.bf16.msra.mxu0 0
        %2341 = vmatprep.subr.bf16.mxu0 0
        %2342 = vmatpush1.bf16.msra.mxu0 0
        %2343 = vmatprep.subr.bf16.mxu0 0
        %2344 = vmatpush1.bf16.msra.mxu0 0
        %2345 = vmatprep.subr.bf16.mxu0 0
        %2346 = vmatpush1.bf16.msra.mxu0 0
        %2347 = vmatprep.subr.bf16.mxu0 0
        %2348 = vmatpush1.bf16.msra.mxu0 0
        %2349 = vmatprep.subr.bf16.mxu0 0
        %2350 = vmatpush1.bf16.msra.mxu0 0
        %2351 = vmatprep.subr.bf16.mxu0 0
        %2352 = vmatpush1.bf16.msra.mxu0 0
        %2353 = vmatprep.subr.bf16.mxu0 0
        %2354 = vmatpush1.bf16.msra.mxu0 0
        %2355 = vmatprep.subr.bf16.mxu0 0
        %2356 = vmatpush1.bf16.msra.mxu0 0
        %2357 = vmatprep.subr.bf16.mxu0 0
        %2358 = vmatpush1.bf16.msra.mxu0 0
        %2359 = vmatprep.subr.bf16.mxu0 0
        %2360 = vmatpush1.bf16.msra.mxu0 0
        %2361 = vmatprep.subr.bf16.mxu0 0
        %2362 = vmatpush1.bf16.msra.mxu0 0
        %2363 = vmatprep.mubr.bf16.mxu0 0
        %2364 = vmatmul.mubr.bf16.gmra.mrb[0].mxu0 %v2329
        %v2365 = vpop.f32.mrb[0].mxu0
        %v2366 = vadd.f32 0.0, %v2365
        %v2367 = vpop.f32.mrb[0].mxu0
        %v2368 = vpop.f32.mrb[0].mxu0
        %v2369 = vadd.f32 0.0, %v2368
        %v2370 = vpop.f32.mrb[0].mxu0
        %2371 = vdwg.mxu0
        %2372 = vrot.lane.b32.xlu0 %v980, 64
        %v2373 = vpop.permute.xlu0 %2372
        %v2376 = vsel %vm1170, %v2230, 0
        %2378 = vmatprep.subr.bf16.mxu0 0
        %2379 = vmatpush1.bf16.msra.mxu0 %v2373
        %2380 = vmatprep.subr.bf16.mxu0 0
        %2381 = vmatpush1.bf16.msra.mxu0 0
        %2382 = vmatprep.subr.bf16.mxu0 0
        %2383 = vmatpush1.bf16.msra.mxu0 0
        %2384 = vmatprep.subr.bf16.mxu0 0
        %2385 = vmatpush1.bf16.msra.mxu0 0
        %2386 = vmatprep.subr.bf16.mxu0 0
        %2387 = vmatpush1.bf16.msra.mxu0 0
        %2388 = vmatprep.subr.bf16.mxu0 0
        %2389 = vmatpush1.bf16.msra.mxu0 0
        %2390 = vmatprep.subr.bf16.mxu0 0
        %2391 = vmatpush1.bf16.msra.mxu0 0
        %2392 = vmatprep.subr.bf16.mxu0 0
        %2393 = vmatpush1.bf16.msra.mxu0 0
        %2394 = vmatprep.subr.bf16.mxu0 0
        %2395 = vmatpush1.bf16.msra.mxu0 0
        %2396 = vmatprep.subr.bf16.mxu0 0
        %2397 = vmatpush1.bf16.msra.mxu0 0
        %2398 = vmatprep.subr.bf16.mxu0 0
        %2399 = vmatpush1.bf16.msra.mxu0 0
        %2400 = vmatprep.subr.bf16.mxu0 0
        %2401 = vmatpush1.bf16.msra.mxu0 0
        %2402 = vmatprep.subr.bf16.mxu0 0
        %2403 = vmatpush1.bf16.msra.mxu0 0
        %2404 = vmatprep.subr.bf16.mxu0 0
        %2405 = vmatpush1.bf16.msra.mxu0 0
        %2406 = vmatprep.subr.bf16.mxu0 0
        %2407 = vmatpush1.bf16.msra.mxu0 0
        %2408 = vmatprep.subr.bf16.mxu0 0
        %2409 = vmatpush1.bf16.msra.mxu0 0
        %2410 = vmatprep.mubr.bf16.mxu0 0
        %2411 = vmatmul.mubr.bf16.gmra.mrb[0].mxu0 %v2376
        %v2412 = vpop.f32.mrb[0].mxu0
        %v2413 = vadd.f32 0.0, %v2412
        %v2414 = vpop.f32.mrb[0].mxu0
        %v2415 = vpop.f32.mrb[0].mxu0
        %v2416 = vadd.f32 0.0, %v2415
        %v2417 = vpop.f32.mrb[0].mxu0
        %2418 = vdwg.mxu0
        %2419 = vrot.lane.b32.xlu0 %v969, 32
        %v2420 = vpop.permute.xlu0 %2419
        %2421 = vrot.lane.b32.xlu0 %v973, 32
        %v2422 = vpop.permute.xlu0 %2421
        %v2424 = vsel %vm981, %v2420, 0
        %v2427 = vsel %vm981, %v2422, 0
        %2429 = vmatprep.subr.bf16.mxu0 0
        %2430 = vmatpush1.bf16.xpose.msra.mxu0 %v2427
        %2431 = vmatprep.subr.bf16.mxu0 0
        %2432 = vmatpush1.bf16.xpose.msra.mxu0 0
        %2433 = vmatprep.subr.bf16.mxu0 0
        %2434 = vmatpush1.bf16.xpose.msra.mxu0 0
        %2435 = vmatprep.subr.bf16.mxu0 0
        %2436 = vmatpush1.bf16.xpose.msra.mxu0 0
        %2437 = vmatprep.subr.bf16.mxu0 0
        %2438 = vmatpush1.bf16.xpose.msra.mxu0 0
        %2439 = vmatprep.subr.bf16.mxu0 0
        %2440 = vmatpush1.bf16.xpose.msra.mxu0 0
        %2441 = vmatprep.subr.bf16.mxu0 0
        %2442 = vmatpush1.bf16.xpose.msra.mxu0 0
        %2443 = vmatprep.subr.bf16.mxu0 0
        %2444 = vmatpush1.bf16.xpose.msra.mxu0 0
        %2445 = vmatprep.subr.bf16.mxu0 0
        %2446 = vmatpush1.bf16.xpose.msra.mxu0 0
        %2447 = vmatprep.subr.bf16.mxu0 0
        %2448 = vmatpush1.bf16.xpose.msra.mxu0 0
        %2449 = vmatprep.subr.bf16.mxu0 0
        %2450 = vmatpush1.bf16.xpose.msra.mxu0 0
        %2451 = vmatprep.subr.bf16.mxu0 0
        %2452 = vmatpush1.bf16.xpose.msra.mxu0 0
        %2453 = vmatprep.subr.bf16.mxu0 0
        %2454 = vmatpush1.bf16.xpose.msra.mxu0 0
        %2455 = vmatprep.subr.bf16.mxu0 0
        %2456 = vmatpush1.bf16.xpose.msra.mxu0 0
        %2457 = vmatprep.subr.bf16.mxu0 0
        %2458 = vmatpush1.bf16.xpose.msra.mxu0 0
        %2459 = vmatprep.subr.bf16.mxu0 0
        %2460 = vmatpush1.bf16.xpose.msra.mxu0 0
        %2461 = vmatprep.mubr.bf16.mxu0 0
        %2462 = vmatmul.mubr.bf16.gmra.mrb[0].mxu0 %v2424
        %v2463 = vpop.f32.mrb[0].mxu0
        %v2464 = vadd.f32 %v569, %v2463
        %v2465 = vpop.f32.mrb[0].mxu0
        %v2466 = vpop.f32.mrb[0].mxu0
        %v2467 = vadd.f32 %v570, %v2466
        %v2468 = vpop.f32.mrb[0].mxu0
        %2469 = vdwg.mxu0
        %2470 = vrot.lane.b32.xlu0 %v970, 32
        %v2471 = vpop.permute.xlu0 %2470
        %2472 = vrot.lane.b32.xlu0 %v974, 32
        %v2473 = vpop.permute.xlu0 %2472
        %v2475 = vsel %vm981, %v2471, 0
        %v2478 = vsel %vm981, %v2473, 0
        %2480 = vmatprep.subr.bf16.mxu0 0
        %2481 = vmatpush1.bf16.xpose.msra.mxu0 %v2478
        %2482 = vmatprep.subr.bf16.mxu0 0
        %2483 = vmatpush1.bf16.xpose.msra.mxu0 0
        %2484 = vmatprep.subr.bf16.mxu0 0
        %2485 = vmatpush1.bf16.xpose.msra.mxu0 0
        %2486 = vmatprep.subr.bf16.mxu0 0
        %2487 = vmatpush1.bf16.xpose.msra.mxu0 0
        %2488 = vmatprep.subr.bf16.mxu0 0
        %2489 = vmatpush1.bf16.xpose.msra.mxu0 0
        %2490 = vmatprep.subr.bf16.mxu0 0
        %2491 = vmatpush1.bf16.xpose.msra.mxu0 0
        %2492 = vmatprep.subr.bf16.mxu0 0
        %2493 = vmatpush1.bf16.xpose.msra.mxu0 0
        %2494 = vmatprep.subr.bf16.mxu0 0
        %2495 = vmatpush1.bf16.xpose.msra.mxu0 0
        %2496 = vmatprep.subr.bf16.mxu0 0
        %2497 = vmatpush1.bf16.xpose.msra.mxu0 0
        %2498 = vmatprep.subr.bf16.mxu0 0
        %2499 = vmatpush1.bf16.xpose.msra.mxu0 0
        %2500 = vmatprep.subr.bf16.mxu0 0
        %2501 = vmatpush1.bf16.xpose.msra.mxu0 0
        %2502 = vmatprep.subr.bf16.mxu0 0
        %2503 = vmatpush1.bf16.xpose.msra.mxu0 0
        %2504 = vmatprep.subr.bf16.mxu0 0
        %2505 = vmatpush1.bf16.xpose.msra.mxu0 0
        %2506 = vmatprep.subr.bf16.mxu0 0
        %2507 = vmatpush1.bf16.xpose.msra.mxu0 0
        %2508 = vmatprep.subr.bf16.mxu0 0
        %2509 = vmatpush1.bf16.xpose.msra.mxu0 0
        %2510 = vmatprep.subr.bf16.mxu0 0
        %2511 = vmatpush1.bf16.xpose.msra.mxu0 0
        %2512 = vmatprep.mubr.bf16.mxu0 0
        %2513 = vmatmul.mubr.bf16.gmra.mrb[0].mxu0 %v2475
        %v2514 = vpop.f32.mrb[0].mxu0
        %v2515 = vadd.f32 %v577, %v2514
        %v2516 = vpop.f32.mrb[0].mxu0
        %v2517 = vpop.f32.mrb[0].mxu0
        %v2518 = vadd.f32 %v578, %v2517
        %v2519 = vpop.f32.mrb[0].mxu0
        %2520 = vdwg.mxu0
        %2521 = vrot.lane.b32.xlu0 %v971, 32
        %v2522 = vpop.permute.xlu0 %2521
        %2523 = vrot.lane.b32.xlu0 %v975, 32
        %v2524 = vpop.permute.xlu0 %2523
        %v2526 = vsel %vm981, %v2522, 0
        %v2529 = vsel %vm981, %v2524, 0
        %2531 = vmatprep.subr.bf16.mxu0 0
        %2532 = vmatpush1.bf16.xpose.msra.mxu0 %v2529
        %2533 = vmatprep.subr.bf16.mxu0 0
        %2534 = vmatpush1.bf16.xpose.msra.mxu0 0
        %2535 = vmatprep.subr.bf16.mxu0 0
        %2536 = vmatpush1.bf16.xpose.msra.mxu0 0
        %2537 = vmatprep.subr.bf16.mxu0 0
        %2538 = vmatpush1.bf16.xpose.msra.mxu0 0
        %2539 = vmatprep.subr.bf16.mxu0 0
        %2540 = vmatpush1.bf16.xpose.msra.mxu0 0
        %2541 = vmatprep.subr.bf16.mxu0 0
        %2542 = vmatpush1.bf16.xpose.msra.mxu0 0
        %2543 = vmatprep.subr.bf16.mxu0 0
        %2544 = vmatpush1.bf16.xpose.msra.mxu0 0
        %2545 = vmatprep.subr.bf16.mxu0 0
        %2546 = vmatpush1.bf16.xpose.msra.mxu0 0
        %2547 = vmatprep.subr.bf16.mxu0 0
        %2548 = vmatpush1.bf16.xpose.msra.mxu0 0
        %2549 = vmatprep.subr.bf16.mxu0 0
        %2550 = vmatpush1.bf16.xpose.msra.mxu0 0
        %2551 = vmatprep.subr.bf16.mxu0 0
        %2552 = vmatpush1.bf16.xpose.msra.mxu0 0
        %2553 = vmatprep.subr.bf16.mxu0 0
        %2554 = vmatpush1.bf16.xpose.msra.mxu0 0
        %2555 = vmatprep.subr.bf16.mxu0 0
        %2556 = vmatpush1.bf16.xpose.msra.mxu0 0
        %2557 = vmatprep.subr.bf16.mxu0 0
        %2558 = vmatpush1.bf16.xpose.msra.mxu0 0
        %2559 = vmatprep.subr.bf16.mxu0 0
        %2560 = vmatpush1.bf16.xpose.msra.mxu0 0
        %2561 = vmatprep.subr.bf16.mxu0 0
        %2562 = vmatpush1.bf16.xpose.msra.mxu0 0
        %2563 = vmatprep.mubr.bf16.mxu0 0
        %2564 = vmatmul.mubr.bf16.gmra.mrb[0].mxu0 %v2526
        %v2565 = vpop.f32.mrb[0].mxu0
        %v2566 = vadd.f32 %v585, %v2565
        %v2567 = vpop.f32.mrb[0].mxu0
        %v2568 = vpop.f32.mrb[0].mxu0
        %v2569 = vadd.f32 %v586, %v2568
        %v2570 = vpop.f32.mrb[0].mxu0
        %2571 = vdwg.mxu0
        %2572 = vrot.lane.b32.xlu0 %v972, 32
        %v2573 = vpop.permute.xlu0 %2572
        %2574 = vrot.lane.b32.xlu0 %v976, 32
        %v2575 = vpop.permute.xlu0 %2574
        %v2577 = vsel %vm981, %v2573, 0
        %v2580 = vsel %vm981, %v2575, 0
        %2582 = vmatprep.subr.bf16.mxu0 0
        %2583 = vmatpush1.bf16.xpose.msra.mxu0 %v2580
        %2584 = vmatprep.subr.bf16.mxu0 0
        %2585 = vmatpush1.bf16.xpose.msra.mxu0 0
        %2586 = vmatprep.subr.bf16.mxu0 0
        %2587 = vmatpush1.bf16.xpose.msra.mxu0 0
        %2588 = vmatprep.subr.bf16.mxu0 0
        %2589 = vmatpush1.bf16.xpose.msra.mxu0 0
        %2590 = vmatprep.subr.bf16.mxu0 0
        %2591 = vmatpush1.bf16.xpose.msra.mxu0 0
        %2592 = vmatprep.subr.bf16.mxu0 0
        %2593 = vmatpush1.bf16.xpose.msra.mxu0 0
        %2594 = vmatprep.subr.bf16.mxu0 0
        %2595 = vmatpush1.bf16.xpose.msra.mxu0 0
        %2596 = vmatprep.subr.bf16.mxu0 0
        %2597 = vmatpush1.bf16.xpose.msra.mxu0 0
        %2598 = vmatprep.subr.bf16.mxu0 0
        %2599 = vmatpush1.bf16.xpose.msra.mxu0 0
        %2600 = vmatprep.subr.bf16.mxu0 0
        %2601 = vmatpush1.bf16.xpose.msra.mxu0 0
        %2602 = vmatprep.subr.bf16.mxu0 0
        %2603 = vmatpush1.bf16.xpose.msra.mxu0 0
        %2604 = vmatprep.subr.bf16.mxu0 0
        %2605 = vmatpush1.bf16.xpose.msra.mxu0 0
        %2606 = vmatprep.subr.bf16.mxu0 0
        %2607 = vmatpush1.bf16.xpose.msra.mxu0 0
        %2608 = vmatprep.subr.bf16.mxu0 0
        %2609 = vmatpush1.bf16.xpose.msra.mxu0 0
        %2610 = vmatprep.subr.bf16.mxu0 0
        %2611 = vmatpush1.bf16.xpose.msra.mxu0 0
        %2612 = vmatprep.subr.bf16.mxu0 0
        %2613 = vmatpush1.bf16.xpose.msra.mxu0 0
        %2614 = vmatprep.mubr.bf16.mxu0 0
        %2615 = vmatmul.mubr.bf16.gmra.mrb[0].mxu0 %v2577
        %v2616 = vpop.f32.mrb[0].mxu0
        %v2617 = vadd.f32 %v593, %v2616
        %v2618 = vpop.f32.mrb[0].mxu0
        %v2619 = vpop.f32.mrb[0].mxu0
        %v2620 = vadd.f32 %v594, %v2619
        %v2621 = vpop.f32.mrb[0].mxu0
        %2622 = vdwg.mxu0
        %v2623 = vsel %vm1170, %v2464, -inf
        %2624 = vmax.xlane.f32.xlu0 %v2623
        %v2625 = vpop.xlane.xlu0 %2624
        %v2626 = vsel %vm1170, %v2467, -inf
        %2627 = vmax.xlane.f32.xlu0 %v2626
        %v2628 = vpop.xlane.xlu0 %2627
        %v2629 = vsel %vm1170, %v2515, -inf
        %2630 = vmax.xlane.f32.xlu0 %v2629
        %v2631 = vpop.xlane.xlu0 %2630
        %v2632 = vsel %vm1170, %v2518, -inf
        %2633 = vmax.xlane.f32.xlu0 %v2632
        %v2634 = vpop.xlane.xlu0 %2633
        %v2635 = vsel %vm1170, %v2566, -inf
        %2636 = vmax.xlane.f32.xlu0 %v2635
        %v2637 = vpop.xlane.xlu0 %2636
        %v2638 = vsel %vm1170, %v2569, -inf
        %2639 = vmax.xlane.f32.xlu0 %v2638
        %v2640 = vpop.xlane.xlu0 %2639
        %v2641 = vsel %vm1170, %v2617, -inf
        %2642 = vmax.xlane.f32.xlu0 %v2641
        %v2643 = vpop.xlane.xlu0 %2642
        %v2644 = vsel %vm1170, %v2620, -inf
        %2645 = vmax.xlane.f32.xlu0 %v2644
        %v2646 = vpop.xlane.xlu0 %2645
        %v2647 = vsub.f32 %v2464, %v2625
        %v2648 = vsub.f32 %v2467, %v2628
        %v2649 = vsub.f32 %v2515, %v2631
        %v2650 = vsub.f32 %v2518, %v2634
        %v2651 = vsub.f32 %v2566, %v2637
        %v2652 = vsub.f32 %v2569, %v2640
        %v2653 = vsub.f32 %v2617, %v2643
        %v2654 = vsub.f32 %v2620, %v2646
        %v2655 = vmul.f32 %v2647, 1.442695
        %v2656 = vpow.pop %v2655
        %v2657 = vmul.f32 %v2648, 1.442695
        %v2658 = vpow.pop %v2657
        %v2659 = vmul.f32 %v2649, 1.442695
        %v2660 = vpow.pop %v2659
        %v2661 = vmul.f32 %v2650, 1.442695
        %v2662 = vpow.pop %v2661
        %v2663 = vmul.f32 %v2651, 1.442695
        %v2664 = vpow.pop %v2663
        %v2665 = vmul.f32 %v2652, 1.442695
        %v2666 = vpow.pop %v2665
        %v2667 = vmul.f32 %v2653, 1.442695
        %v2668 = vpow.pop %v2667
        %v2669 = vmul.f32 %v2654, 1.442695
        %v2670 = vpow.pop %v2669
        %v2671 = vsel %vm1170, %v2656, 0.0
        %2672 = vadd.xlane.f32.xlu0 %v2671
        %v2673 = vpop.xlane.xlu0 %2672
        %v2674 = vsel %vm1170, %v2658, 0.0
        %2675 = vadd.xlane.f32.xlu0 %v2674
        %v2676 = vpop.xlane.xlu0 %2675
        %v2677 = vsel %vm1170, %v2660, 0.0
        %2678 = vadd.xlane.f32.xlu0 %v2677
        %v2679 = vpop.xlane.xlu0 %2678
        %v2680 = vsel %vm1170, %v2662, 0.0
        %2681 = vadd.xlane.f32.xlu0 %v2680
        %v2682 = vpop.xlane.xlu0 %2681
        %v2683 = vsel %vm1170, %v2664, 0.0
        %2684 = vadd.xlane.f32.xlu0 %v2683
        %v2685 = vpop.xlane.xlu0 %2684
        %v2686 = vsel %vm1170, %v2666, 0.0
        %2687 = vadd.xlane.f32.xlu0 %v2686
        %v2688 = vpop.xlane.xlu0 %2687
        %v2689 = vsel %vm1170, %v2668, 0.0
        %2690 = vadd.xlane.f32.xlu0 %v2689
        %v2691 = vpop.xlane.xlu0 %2690
        %v2692 = vsel %vm1170, %v2670, 0.0
        %2693 = vadd.xlane.f32.xlu0 %v2692
        %v2694 = vpop.xlane.xlu0 %2693
        %v2695 = vrcp.pop %v2673
        %v2696 = vmul.f32 %v2656, %v2695
        %v2697 = vrcp.pop %v2676
        %v2698 = vmul.f32 %v2658, %v2697
        %v2699 = vrcp.pop %v2679
        %v2700 = vmul.f32 %v2660, %v2699
        %v2701 = vrcp.pop %v2682
        %v2702 = vmul.f32 %v2662, %v2701
        %v2703 = vrcp.pop %v2685
        %v2704 = vmul.f32 %v2664, %v2703
        %v2705 = vrcp.pop %v2688
        %v2706 = vmul.f32 %v2666, %v2705
        %v2707 = vrcp.pop %v2691
        %v2708 = vmul.f32 %v2668, %v2707
        %v2709 = vrcp.pop %v2694
        %v2710 = vmul.f32 %v2670, %v2709
        %v2711 = vpack.c.bf16 %v2698, %v2696
        %v2712 = vpack.c.bf16 %v2702, %v2700
        %v2713 = vpack.c.bf16 %v2706, %v2704
        %v2714 = vpack.c.bf16 %v2710, %v2708
        %2715 = vrot.lane.b32.xlu0 %v977, 32
        %v2716 = vpop.permute.xlu0 %2715
        %v2719 = vsel %vm1170, %v2711, 0
        %2721 = vmatprep.subr.bf16.mxu0 0
        %2722 = vmatpush1.bf16.msra.mxu0 %v2716
        %2723 = vmatprep.subr.bf16.mxu0 0
        %2724 = vmatpush1.bf16.msra.mxu0 0
        %2725 = vmatprep.subr.bf16.mxu0 0
        %2726 = vmatpush1.bf16.msra.mxu0 0
        %2727 = vmatprep.subr.bf16.mxu0 0
        %2728 = vmatpush1.bf16.msra.mxu0 0
        %2729 = vmatprep.subr.bf16.mxu0 0
        %2730 = vmatpush1.bf16.msra.mxu0 0
        %2731 = vmatprep.subr.bf16.mxu0 0
        %2732 = vmatpush1.bf16.msra.mxu0 0
        %2733 = vmatprep.subr.bf16.mxu0 0
        %2734 = vmatpush1.bf16.msra.mxu0 0
        %2735 = vmatprep.subr.bf16.mxu0 0
        %2736 = vmatpush1.bf16.msra.mxu0 0
        %2737 = vmatprep.subr.bf16.mxu0 0
        %2738 = vmatpush1.bf16.msra.mxu0 0
        %2739 = vmatprep.subr.bf16.mxu0 0
        %2740 = vmatpush1.bf16.msra.mxu0 0
        %2741 = vmatprep.subr.bf16.mxu0 0
        %2742 = vmatpush1.bf16.msra.mxu0 0
        %2743 = vmatprep.subr.bf16.mxu0 0
        %2744 = vmatpush1.bf16.msra.mxu0 0
        %2745 = vmatprep.subr.bf16.mxu0 0
        %2746 = vmatpush1.bf16.msra.mxu0 0
        %2747 = vmatprep.subr.bf16.mxu0 0
        %2748 = vmatpush1.bf16.msra.mxu0 0
        %2749 = vmatprep.subr.bf16.mxu0 0
        %2750 = vmatpush1.bf16.msra.mxu0 0
        %2751 = vmatprep.subr.bf16.mxu0 0
        %2752 = vmatpush1.bf16.msra.mxu0 0
        %2753 = vmatprep.mubr.bf16.mxu0 0
        %2754 = vmatmul.mubr.bf16.gmra.mrb[0].mxu0 %v2719
        %v2755 = vpop.f32.mrb[0].mxu0
        %v2756 = vadd.f32 0.0, %v2755
        %v2757 = vpop.f32.mrb[0].mxu0
        %v2758 = vpop.f32.mrb[0].mxu0
        %v2759 = vadd.f32 0.0, %v2758
        %v2760 = vpop.f32.mrb[0].mxu0
        %2761 = vdwg.mxu0
        %2762 = vrot.lane.b32.xlu0 %v978, 32
        %v2763 = vpop.permute.xlu0 %2762
        %v2766 = vsel %vm1170, %v2712, 0
        %2768 = vmatprep.subr.bf16.mxu0 0
        %2769 = vmatpush1.bf16.msra.mxu0 %v2763
        %2770 = vmatprep.subr.bf16.mxu0 0
        %2771 = vmatpush1.bf16.msra.mxu0 0
        %2772 = vmatprep.subr.bf16.mxu0 0
        %2773 = vmatpush1.bf16.msra.mxu0 0
        %2774 = vmatprep.subr.bf16.mxu0 0
        %2775 = vmatpush1.bf16.msra.mxu0 0
        %2776 = vmatprep.subr.bf16.mxu0 0
        %2777 = vmatpush1.bf16.msra.mxu0 0
        %2778 = vmatprep.subr.bf16.mxu0 0
        %2779 = vmatpush1.bf16.msra.mxu0 0
        %2780 = vmatprep.subr.bf16.mxu0 0
        %2781 = vmatpush1.bf16.msra.mxu0 0
        %2782 = vmatprep.subr.bf16.mxu0 0
        %2783 = vmatpush1.bf16.msra.mxu0 0
        %2784 = vmatprep.subr.bf16.mxu0 0
        %2785 = vmatpush1.bf16.msra.mxu0 0
        %2786 = vmatprep.subr.bf16.mxu0 0
        %2787 = vmatpush1.bf16.msra.mxu0 0
        %2788 = vmatprep.subr.bf16.mxu0 0
        %2789 = vmatpush1.bf16.msra.mxu0 0
        %2790 = vmatprep.subr.bf16.mxu0 0
        %2791 = vmatpush1.bf16.msra.mxu0 0
        %2792 = vmatprep.subr.bf16.mxu0 0
        %2793 = vmatpush1.bf16.msra.mxu0 0
        %2794 = vmatprep.subr.bf16.mxu0 0
        %2795 = vmatpush1.bf16.msra.mxu0 0
        %2796 = vmatprep.subr.bf16.mxu0 0
        %2797 = vmatpush1.bf16.msra.mxu0 0
        %2798 = vmatprep.subr.bf16.mxu0 0
        %2799 = vmatpush1.bf16.msra.mxu0 0
        %2800 = vmatprep.mubr.bf16.mxu0 0
        %2801 = vmatmul.mubr.bf16.gmra.mrb[0].mxu0 %v2766
        %v2802 = vpop.f32.mrb[0].mxu0
        %v2803 = vadd.f32 0.0, %v2802
        %v2804 = vpop.f32.mrb[0].mxu0
        %v2805 = vpop.f32.mrb[0].mxu0
        %v2806 = vadd.f32 0.0, %v2805
        %v2807 = vpop.f32.mrb[0].mxu0
        %2808 = vdwg.mxu0
        %2809 = vrot.lane.b32.xlu0 %v979, 32
        %v2810 = vpop.permute.xlu0 %2809
        %v2813 = vsel %vm1170, %v2713, 0
        %2815 = vmatprep.subr.bf16.mxu0 0
        %2816 = vmatpush1.bf16.msra.mxu0 %v2810
        %2817 = vmatprep.subr.bf16.mxu0 0
        %2818 = vmatpush1.bf16.msra.mxu0 0
        %2819 = vmatprep.subr.bf16.mxu0 0
        %2820 = vmatpush1.bf16.msra.mxu0 0
        %2821 = vmatprep.subr.bf16.mxu0 0
        %2822 = vmatpush1.bf16.msra.mxu0 0
        %2823 = vmatprep.subr.bf16.mxu0 0
        %2824 = vmatpush1.bf16.msra.mxu0 0
        %2825 = vmatprep.subr.bf16.mxu0 0
        %2826 = vmatpush1.bf16.msra.mxu0 0
        %2827 = vmatprep.subr.bf16.mxu0 0
        %2828 = vmatpush1.bf16.msra.mxu0 0
        %2829 = vmatprep.subr.bf16.mxu0 0
        %2830 = vmatpush1.bf16.msra.mxu0 0
        %2831 = vmatprep.subr.bf16.mxu0 0
        %2832 = vmatpush1.bf16.msra.mxu0 0
        %2833 = vmatprep.subr.bf16.mxu0 0
        %2834 = vmatpush1.bf16.msra.mxu0 0
        %2835 = vmatprep.subr.bf16.mxu0 0
        %2836 = vmatpush1.bf16.msra.mxu0 0
        %2837 = vmatprep.subr.bf16.mxu0 0
        %2838 = vmatpush1.bf16.msra.mxu0 0
        %2839 = vmatprep.subr.bf16.mxu0 0
        %2840 = vmatpush1.bf16.msra.mxu0 0
        %2841 = vmatprep.subr.bf16.mxu0 0
        %2842 = vmatpush1.bf16.msra.mxu0 0
        %2843 = vmatprep.subr.bf16.mxu0 0
        %2844 = vmatpush1.bf16.msra.mxu0 0
        %2845 = vmatprep.subr.bf16.mxu0 0
        %2846 = vmatpush1.bf16.msra.mxu0 0
        %2847 = vmatprep.mubr.bf16.mxu0 0
        %2848 = vmatmul.mubr.bf16.gmra.mrb[0].mxu0 %v2813
        %v2849 = vpop.f32.mrb[0].mxu0
        %v2850 = vadd.f32 0.0, %v2849
        %v2851 = vpop.f32.mrb[0].mxu0
        %v2852 = vpop.f32.mrb[0].mxu0
        %v2853 = vadd.f32 0.0, %v2852
        %v2854 = vpop.f32.mrb[0].mxu0
        %2855 = vdwg.mxu0
        %2856 = vrot.lane.b32.xlu0 %v980, 32
        %v2857 = vpop.permute.xlu0 %2856
        %v2860 = vsel %vm1170, %v2714, 0
        %2862 = vmatprep.subr.bf16.mxu0 0
        %2863 = vmatpush1.bf16.msra.mxu0 %v2857
        %2864 = vmatprep.subr.bf16.mxu0 0
        %2865 = vmatpush1.bf16.msra.mxu0 0
        %2866 = vmatprep.subr.bf16.mxu0 0
        %2867 = vmatpush1.bf16.msra.mxu0 0
        %2868 = vmatprep.subr.bf16.mxu0 0
        %2869 = vmatpush1.bf16.msra.mxu0 0
        %2870 = vmatprep.subr.bf16.mxu0 0
        %2871 = vmatpush1.bf16.msra.mxu0 0
        %2872 = vmatprep.subr.bf16.mxu0 0
        %2873 = vmatpush1.bf16.msra.mxu0 0
        %2874 = vmatprep.subr.bf16.mxu0 0
        %2875 = vmatpush1.bf16.msra.mxu0 0
        %2876 = vmatprep.subr.bf16.mxu0 0
        %2877 = vmatpush1.bf16.msra.mxu0 0
        %2878 = vmatprep.subr.bf16.mxu0 0
        %2879 = vmatpush1.bf16.msra.mxu0 0
        %2880 = vmatprep.subr.bf16.mxu0 0
        %2881 = vmatpush1.bf16.msra.mxu0 0
        %2882 = vmatprep.subr.bf16.mxu0 0
        %2883 = vmatpush1.bf16.msra.mxu0 0
        %2884 = vmatprep.subr.bf16.mxu0 0
        %2885 = vmatpush1.bf16.msra.mxu0 0
        %2886 = vmatprep.subr.bf16.mxu0 0
        %2887 = vmatpush1.bf16.msra.mxu0 0
        %2888 = vmatprep.subr.bf16.mxu0 0
        %2889 = vmatpush1.bf16.msra.mxu0 0
        %2890 = vmatprep.subr.bf16.mxu0 0
        %2891 = vmatpush1.bf16.msra.mxu0 0
        %2892 = vmatprep.subr.bf16.mxu0 0
        %2893 = vmatpush1.bf16.msra.mxu0 0
        %2894 = vmatprep.mubr.bf16.mxu0 0
        %2895 = vmatmul.mubr.bf16.gmra.mrb[0].mxu0 %v2860
        %v2896 = vpop.f32.mrb[0].mxu0
        %v2897 = vadd.f32 0.0, %v2896
        %v2898 = vpop.f32.mrb[0].mxu0
        %v2899 = vpop.f32.mrb[0].mxu0
        %v2900 = vadd.f32 0.0, %v2899
        %v2901 = vpop.f32.mrb[0].mxu0
        %2902 = vdwg.mxu0
        %2911 = vrot.lane.b32.xlu0 %v1785, 32
        %v2912 = vpop.permute.xlu0 %2911
        %2913 = vrot.lane.b32.xlu0 %v1788, 32
        %v2914 = vpop.permute.xlu0 %2913
        %2915 = vrot.lane.b32.xlu0 %v1833, 32
        %v2916 = vpop.permute.xlu0 %2915
        %2917 = vrot.lane.b32.xlu0 %v1836, 32
        %v2918 = vpop.permute.xlu0 %2917
        %2919 = vrot.lane.b32.xlu0 %v1881, 32
        %v2920 = vpop.permute.xlu0 %2919
        %2921 = vrot.lane.b32.xlu0 %v1884, 32
        %v2922 = vpop.permute.xlu0 %2921
        %2923 = vrot.lane.b32.xlu0 %v1929, 32
        %v2924 = vpop.permute.xlu0 %2923
        %2925 = vrot.lane.b32.xlu0 %v1932, 32
        %v2926 = vpop.permute.xlu0 %2925
        %2943 = vrot.lane.b32.xlu0 %v2272, 64
        %v2944 = vpop.permute.xlu0 %2943
        %2945 = vrot.lane.b32.xlu0 %v2275, 64
        %v2946 = vpop.permute.xlu0 %2945
        %2947 = vrot.lane.b32.xlu0 %v2319, 64
        %v2948 = vpop.permute.xlu0 %2947
        %2949 = vrot.lane.b32.xlu0 %v2322, 64
        %v2950 = vpop.permute.xlu0 %2949
        %2951 = vrot.lane.b32.xlu0 %v2366, 64
        %v2952 = vpop.permute.xlu0 %2951
        %2953 = vrot.lane.b32.xlu0 %v2369, 64
        %v2954 = vpop.permute.xlu0 %2953
        %2955 = vrot.lane.b32.xlu0 %v2413, 64
        %v2956 = vpop.permute.xlu0 %2955
        %2957 = vrot.lane.b32.xlu0 %v2416, 64
        %v2958 = vpop.permute.xlu0 %2957
        %2975 = vrot.lane.b32.xlu0 %v2756, 96
        %v2976 = vpop.permute.xlu0 %2975
        %2977 = vrot.lane.b32.xlu0 %v2759, 96
        %v2978 = vpop.permute.xlu0 %2977
        %2979 = vrot.lane.b32.xlu0 %v2803, 96
        %v2980 = vpop.permute.xlu0 %2979
        %2981 = vrot.lane.b32.xlu0 %v2806, 96
        %v2982 = vpop.permute.xlu0 %2981
        %2983 = vrot.lane.b32.xlu0 %v2850, 96
        %v2984 = vpop.permute.xlu0 %2983
        %2985 = vrot.lane.b32.xlu0 %v2853, 96
        %v2986 = vpop.permute.xlu0 %2985
        %2987 = vrot.lane.b32.xlu0 %v2897, 96
        %v2988 = vpop.permute.xlu0 %2987
        %2989 = vrot.lane.b32.xlu0 %v2900, 96
        %v2990 = vpop.permute.xlu0 %2989
        %v2999 = vsel %vm981, %v1301, %v2912
        %v3000 = vsel %vm981, %v1304, %v2914
        %v3001 = vsel %vm981, %v1345, %v2916
        %v3002 = vsel %vm981, %v1348, %v2918
        %v3003 = vsel %vm981, %v1389, %v2920
        %v3004 = vsel %vm981, %v1392, %v2922
        %v3005 = vsel %vm981, %v1433, %v2924
        %v3006 = vsel %vm981, %v1436, %v2926
        %vm3007 = vcmask 523264
        %v3008 = vsel %vm3007, %v2999, %v2944
        %v3009 = vsel %vm3007, %v3000, %v2946
        %v3010 = vsel %vm3007, %v3001, %v2948
        %v3011 = vsel %vm3007, %v3002, %v2950
        %v3012 = vsel %vm3007, %v3003, %v2952
        %v3013 = vsel %vm3007, %v3004, %v2954
        %v3014 = vsel %vm3007, %v3005, %v2956
        %v3015 = vsel %vm3007, %v3006, %v2958
        %vm3016 = vcmask 785408
        %v3017 = vsel %vm3016, %v3008, %v2976
        %v3018 = vsel %vm3016, %v3009, %v2978
        %v3019 = vsel %vm3016, %v3010, %v2980
        %v3020 = vsel %vm3016, %v3011, %v2982
        %v3021 = vsel %vm3016, %v3012, %v2984
        %v3022 = vsel %vm3016, %v3013, %v2986
        %v3023 = vsel %vm3016, %v3014, %v2988
        %v3024 = vsel %vm3016, %v3015, %v2990
        %v3025 = vpack.c.bf16 %v3018, %v3017
        %v3026 = vpack.c.bf16 %v3020, %v3019
        %v3027 = vpack.c.bf16 %v3022, %v3021
        %v3028 = vpack.c.bf16 %v3024, %v3023
        %v3029 = vld [vmem:[#allocation10] sm:$0xf]
        %v3030 = vld [vmem:[#allocation10 + $0x4] sm:$0xf]
        %v3031 = vld [vmem:[#allocation10 + $0x8] sm:$0xf]
        %v3032 = vld [vmem:[#allocation10 + $0xc] sm:$0xf]
        %v3033 = vld [vmem:[#allocation10 + $0x10] sm:$0xf]
        %v3034 = vld [vmem:[#allocation10 + $0x14] sm:$0xf]
        %v3035 = vld [vmem:[#allocation10 + $0x18] sm:$0xf]
        %v3036 = vld [vmem:[#allocation10 + $0x1c] sm:$0xf]
        %v3037 = vld [vmem:[#allocation10 + $0x20] sm:$0xf]
        %v3038 = vld [vmem:[#allocation10 + $0x24] sm:$0xf]
        %v3039 = vld [vmem:[#allocation10 + $0x28] sm:$0xf]
        %v3040 = vld [vmem:[#allocation10 + $0x2c] sm:$0xf]
        %v3041 = vld [vmem:[#allocation10 + $0x30] sm:$0xf]
        %v3042 = vld [vmem:[#allocation10 + $0x34] sm:$0xf]
        %v3043 = vld [vmem:[#allocation10 + $0x38] sm:$0xf]
        %v3044 = vld [vmem:[#allocation10 + $0x3c] sm:$0xf]
        %v3061 = vunpack.c.l.b16 %v3029
        %v3062 = vunpack.c.l.b16 %v3030
        %v3063 = vunpack.c.l.b16 %v3031
        %v3064 = vunpack.c.l.b16 %v3032
        %v3065 = vunpack.c.l.b16 %v3033
        %v3066 = vunpack.c.l.b16 %v3034
        %v3067 = vunpack.c.l.b16 %v3035
        %v3068 = vunpack.c.l.b16 %v3036
        %v3069 = vunpack.c.l.b16 %v3037
        %v3070 = vunpack.c.l.b16 %v3038
        %v3071 = vunpack.c.l.b16 %v3039
        %v3072 = vunpack.c.l.b16 %v3040
        %v3073 = vunpack.c.l.b16 %v3041
        %v3074 = vunpack.c.l.b16 %v3042
        %v3075 = vunpack.c.l.b16 %v3043
        %v3076 = vunpack.c.l.b16 %v3044
        %v3077 = vpack.c.b16 %v3062, %v3061
        %v3078 = vpack.c.b16 %v3064, %v3063
        %v3079 = vpack.c.b16 %v3066, %v3065
        %v3080 = vpack.c.b16 %v3068, %v3067
        %v3081 = vpack.c.b16 %v3070, %v3069
        %v3082 = vpack.c.b16 %v3072, %v3071
        %v3083 = vpack.c.b16 %v3074, %v3073
        %v3084 = vpack.c.b16 %v3076, %v3075
        %3093 = vmatprep.subr.bf16.mxu0 0
        %3094 = vmatpush1.bf16.msra.mxu0 %v3077
        %3095 = vmatprep.subr.bf16.mxu0 0
        %3096 = vmatpush1.bf16.msra.mxu0 %v3078
        %3097 = vmatprep.subr.bf16.mxu0 0
        %3098 = vmatpush1.bf16.msra.mxu0 %v3079
        %3099 = vmatprep.subr.bf16.mxu0 0
        %3100 = vmatpush1.bf16.msra.mxu0 %v3080
        %3101 = vmatprep.subr.bf16.mxu0 0
        %3102 = vmatpush1.bf16.msra.mxu0 %v3081
        %3103 = vmatprep.subr.bf16.mxu0 0
        %3104 = vmatpush1.bf16.msra.mxu0 %v3082
        %3105 = vmatprep.subr.bf16.mxu0 0
        %3106 = vmatpush1.bf16.msra.mxu0 %v3083
        %3107 = vmatprep.subr.bf16.mxu0 0
        %3108 = vmatpush1.bf16.msra.mxu0 %v3084
        %3109 = vmatprep.subr.bf16.mxu0 0
        %3110 = vmatpush1.bf16.msra.mxu0 0
        %3111 = vmatprep.subr.bf16.mxu0 0
        %3112 = vmatpush1.bf16.msra.mxu0 0
        %3113 = vmatprep.subr.bf16.mxu0 0
        %3114 = vmatpush1.bf16.msra.mxu0 0
        %3115 = vmatprep.subr.bf16.mxu0 0
        %3116 = vmatpush1.bf16.msra.mxu0 0
        %3117 = vmatprep.subr.bf16.mxu0 0
        %3118 = vmatpush1.bf16.msra.mxu0 0
        %3119 = vmatprep.subr.bf16.mxu0 0
        %3120 = vmatpush1.bf16.msra.mxu0 0
        %3121 = vmatprep.subr.bf16.mxu0 0
        %3122 = vmatpush1.bf16.msra.mxu0 0
        %3123 = vmatprep.subr.bf16.mxu0 0
        %3124 = vmatpush1.bf16.msra.mxu0 0
        %3125 = vmatprep.mubr.bf16.mxu0 0
        %3126 = vmatmul.mubr.bf16.gmra.mrb[0].mxu0 %v3025
        %v3127 = vpop.f32.mrb[0].mxu0
        %v3128 = vadd.f32 0.0, %v3127
        %v3129 = vpop.f32.mrb[0].mxu0
        %v3130 = vpop.f32.mrb[0].mxu0
        %v3131 = vadd.f32 0.0, %v3130
        %v3132 = vpop.f32.mrb[0].mxu0
        %3133 = vmatprep.mubr.bf16.mxu0 0
        %3134 = vmatmul.mubr.bf16.gmra.mrb[0].mxu0 %v3026
        %v3135 = vpop.f32.mrb[0].mxu0
        %v3136 = vadd.f32 0.0, %v3135
        %v3137 = vpop.f32.mrb[0].mxu0
        %v3138 = vpop.f32.mrb[0].mxu0
        %v3139 = vadd.f32 0.0, %v3138
        %v3140 = vpop.f32.mrb[0].mxu0
        %3141 = vmatprep.mubr.bf16.mxu0 0
        %3142 = vmatmul.mubr.bf16.gmra.mrb[0].mxu0 %v3027
        %v3143 = vpop.f32.mrb[0].mxu0
        %v3144 = vadd.f32 0.0, %v3143
        %v3145 = vpop.f32.mrb[0].mxu0
        %v3146 = vpop.f32.mrb[0].mxu0
        %v3147 = vadd.f32 0.0, %v3146
        %v3148 = vpop.f32.mrb[0].mxu0
        %3149 = vmatprep.mubr.bf16.mxu0 0
        %3150 = vmatmul.mubr.bf16.gmra.mrb[0].mxu0 %v3028
        %v3151 = vpop.f32.mrb[0].mxu0
        %v3152 = vadd.f32 0.0, %v3151
        %v3153 = vpop.f32.mrb[0].mxu0
        %v3154 = vpop.f32.mrb[0].mxu0
        %v3155 = vadd.f32 0.0, %v3154
        %v3156 = vpop.f32.mrb[0].mxu0
        %3157 = vdwg.mxu0
        %v3158 = vadd.f32 %v503, %v3128
        %v3159 = vadd.f32 %v504, %v3131
        %v3160 = vadd.f32 %v505, %v3136
        %v3161 = vadd.f32 %v506, %v3139
        %v3162 = vadd.f32 %v507, %v3144
        %v3163 = vadd.f32 %v508, %v3147
        %v3164 = vadd.f32 %v509, %v3152
        %v3165 = vadd.f32 %v510, %v3155
        %v3166 = vmul.f32 %v3158, %v3158
        %v3167 = vmul.f32 %v3159, %v3159
        %v3168 = vmul.f32 %v3160, %v3160
        %v3169 = vmul.f32 %v3161, %v3161
        %v3170 = vmul.f32 %v3162, %v3162
        %v3171 = vmul.f32 %v3163, %v3163
        %v3172 = vmul.f32 %v3164, %v3164
        %v3173 = vmul.f32 %v3165, %v3165
        %3174 = vadd.xlane.f32.xlu0 %v3166
        %v3175 = vpop.xlane.xlu0 %3174
        %3176 = vadd.xlane.f32.xlu0 %v3167
        %v3177 = vpop.xlane.xlu0 %3176
        %3178 = vadd.xlane.f32.xlu0 %v3168
        %v3179 = vpop.xlane.xlu0 %3178
        %3180 = vadd.xlane.f32.xlu0 %v3169
        %v3181 = vpop.xlane.xlu0 %3180
        %3182 = vadd.xlane.f32.xlu0 %v3170
        %v3183 = vpop.xlane.xlu0 %3182
        %3184 = vadd.xlane.f32.xlu0 %v3171
        %v3185 = vpop.xlane.xlu0 %3184
        %3186 = vadd.xlane.f32.xlu0 %v3172
        %v3187 = vpop.xlane.xlu0 %3186
        %3188 = vadd.xlane.f32.xlu0 %v3173
        %v3189 = vpop.xlane.xlu0 %3188
        %v3190 = vmul.f32 %v3175, %v619
        %v3191 = vmul.f32 %v3177, %v619
        %v3192 = vmul.f32 %v3179, %v619
        %v3193 = vmul.f32 %v3181, %v619
        %v3194 = vmul.f32 %v3183, %v619
        %v3195 = vmul.f32 %v3185, %v619
        %v3196 = vmul.f32 %v3187, %v619
        %v3197 = vmul.f32 %v3189, %v619
        %v3198 = vadd.f32 %v3190, 1e-06
        %v3199 = vadd.f32 %v3191, 1e-06
        %v3200 = vadd.f32 %v3192, 1e-06
        %v3201 = vadd.f32 %v3193, 1e-06
        %v3202 = vadd.f32 %v3194, 1e-06
        %v3203 = vadd.f32 %v3195, 1e-06
        %v3204 = vadd.f32 %v3196, 1e-06
        %v3205 = vadd.f32 %v3197, 1e-06
        %v3206 = vrsqrt.pop %v3198
        %v3207 = vrsqrt.pop %v3199
        %v3208 = vrsqrt.pop %v3200
        %v3209 = vrsqrt.pop %v3201
        %v3210 = vrsqrt.pop %v3202
        %v3211 = vrsqrt.pop %v3203
        %v3212 = vrsqrt.pop %v3204
        %v3213 = vrsqrt.pop %v3205
        %v3214 = vmul.f32 %v3158, %v3206
        %v3215 = vmul.f32 %v3159, %v3207
        %v3216 = vmul.f32 %v3160, %v3208
        %v3217 = vmul.f32 %v3161, %v3209
        %v3218 = vmul.f32 %v3162, %v3210
        %v3219 = vmul.f32 %v3163, %v3211
        %v3220 = vmul.f32 %v3164, %v3212
        %v3221 = vmul.f32 %v3165, %v3213
        %v3222 = vld [vmem:[%s6] sm:$0x1]
        %v3224 = vlaneseq
        %v3225 = vshrl.u32 %v3224, 7
        %v3226 = vsub.s32 0, %v3225
        %v3227 = vrot.slane %v3222, %v3226
        %v3229 = vmul.f32 %v3214, %v3227
        %v3230 = vmul.f32 %v3215, %v3227
        %v3231 = vmul.f32 %v3216, %v3227
        %v3232 = vmul.f32 %v3217, %v3227
        %v3233 = vmul.f32 %v3218, %v3227
        %v3234 = vmul.f32 %v3219, %v3227
        %v3235 = vmul.f32 %v3220, %v3227
        %v3236 = vmul.f32 %v3221, %v3227
        %v3237 = vpack.c.bf16 %v3230, %v3229
        %v3238 = vpack.c.bf16 %v3232, %v3231
        %v3239 = vpack.c.bf16 %v3234, %v3233
        %v3240 = vpack.c.bf16 %v3236, %v3235
        %v3241 = vld [vmem:[#allocation11] sm:$0xff]
        %v3242 = vld [vmem:[#allocation11 + $0x8] sm:$0xff]
        %v3243 = vld [vmem:[#allocation11 + $0x10] sm:$0xff]
        %v3244 = vld [vmem:[#allocation11 + $0x18] sm:$0xff]
        %v3245 = vld [vmem:[#allocation11 + $0x20] sm:$0xff]
        %v3246 = vld [vmem:[#allocation11 + $0x28] sm:$0xff]
        %v3247 = vld [vmem:[#allocation11 + $0x30] sm:$0xff]
        %v3248 = vld [vmem:[#allocation11 + $0x38] sm:$0xff]
        %v3249 = vld [vmem:[#allocation11 + $0x40] sm:$0xff]
        %v3250 = vld [vmem:[#allocation11 + $0x48] sm:$0xff]
        %v3251 = vld [vmem:[#allocation11 + $0x50] sm:$0xff]
        %v3252 = vld [vmem:[#allocation11 + $0x58] sm:$0xff]
        %v3253 = vld [vmem:[#allocation11 + $0x60] sm:$0xff]
        %v3254 = vld [vmem:[#allocation11 + $0x68] sm:$0xff]
        %v3255 = vld [vmem:[#allocation11 + $0x70] sm:$0xff]
        %v3256 = vld [vmem:[#allocation11 + $0x78] sm:$0xff]
        %v3273 = vunpack.c.l.b16 %v3241
        %v3274 = vunpack.c.h.b16 %v3241
        %v3275 = vunpack.c.l.b16 %v3242
        %v3276 = vunpack.c.h.b16 %v3242
        %v3277 = vunpack.c.l.b16 %v3243
        %v3278 = vunpack.c.h.b16 %v3243
        %v3279 = vunpack.c.l.b16 %v3244
        %v3280 = vunpack.c.h.b16 %v3244
        %v3281 = vunpack.c.l.b16 %v3245
        %v3282 = vunpack.c.h.b16 %v3245
        %v3283 = vunpack.c.l.b16 %v3246
        %v3284 = vunpack.c.h.b16 %v3246
        %v3285 = vunpack.c.l.b16 %v3247
        %v3286 = vunpack.c.h.b16 %v3247
        %v3287 = vunpack.c.l.b16 %v3248
        %v3288 = vunpack.c.h.b16 %v3248
        %v3289 = vunpack.c.l.b16 %v3249
        %v3290 = vunpack.c.h.b16 %v3249
        %v3291 = vunpack.c.l.b16 %v3250
        %v3292 = vunpack.c.h.b16 %v3250
        %v3293 = vunpack.c.l.b16 %v3251
        %v3294 = vunpack.c.h.b16 %v3251
        %v3295 = vunpack.c.l.b16 %v3252
        %v3296 = vunpack.c.h.b16 %v3252
        %v3297 = vunpack.c.l.b16 %v3253
        %v3298 = vunpack.c.h.b16 %v3253
        %v3299 = vunpack.c.l.b16 %v3254
        %v3300 = vunpack.c.h.b16 %v3254
        %v3301 = vunpack.c.l.b16 %v3255
        %v3302 = vunpack.c.h.b16 %v3255
        %v3303 = vunpack.c.l.b16 %v3256
        %v3304 = vunpack.c.h.b16 %v3256
        %v3305 = vpack.c.b16 %v3275, %v3273
        %v3306 = vpack.c.b16 %v3276, %v3274
        %v3307 = vpack.c.b16 %v3279, %v3277
        %v3308 = vpack.c.b16 %v3280, %v3278
        %v3309 = vpack.c.b16 %v3283, %v3281
        %v3310 = vpack.c.b16 %v3284, %v3282
        %v3311 = vpack.c.b16 %v3287, %v3285
        %v3312 = vpack.c.b16 %v3288, %v3286
        %v3313 = vpack.c.b16 %v3291, %v3289
        %v3314 = vpack.c.b16 %v3292, %v3290
        %v3315 = vpack.c.b16 %v3295, %v3293
        %v3316 = vpack.c.b16 %v3296, %v3294
        %v3317 = vpack.c.b16 %v3299, %v3297
        %v3318 = vpack.c.b16 %v3300, %v3298
        %v3319 = vpack.c.b16 %v3303, %v3301
        %v3320 = vpack.c.b16 %v3304, %v3302
        %3337 = vmatprep.subr.bf16.mxu0 %v3306
        %3338 = vmatpush1.bf16.msra.mxu0 %v3305
        %3339 = vmatprep.subr.bf16.mxu0 %v3308
        %3340 = vmatpush1.bf16.msra.mxu0 %v3307
        %3341 = vmatprep.subr.bf16.mxu0 %v3310
        %3342 = vmatpush1.bf16.msra.mxu0 %v3309
        %3343 = vmatprep.subr.bf16.mxu0 %v3312
        %3344 = vmatpush1.bf16.msra.mxu0 %v3311
        %3345 = vmatprep.subr.bf16.mxu0 %v3314
        %3346 = vmatpush1.bf16.msra.mxu0 %v3313
        %3347 = vmatprep.subr.bf16.mxu0 %v3316
        %3348 = vmatpush1.bf16.msra.mxu0 %v3315
        %3349 = vmatprep.subr.bf16.mxu0 %v3318
        %3350 = vmatpush1.bf16.msra.mxu0 %v3317
        %3351 = vmatprep.subr.bf16.mxu0 %v3320
        %3352 = vmatpush1.bf16.msra.mxu0 %v3319
        %3353 = vmatprep.subr.bf16.mxu0 0
        %3354 = vmatpush1.bf16.msra.mxu0 0
        %3355 = vmatprep.subr.bf16.mxu0 0
        %3356 = vmatpush1.bf16.msra.mxu0 0
        %3357 = vmatprep.subr.bf16.mxu0 0
        %3358 = vmatpush1.bf16.msra.mxu0 0
        %3359 = vmatprep.subr.bf16.mxu0 0
        %3360 = vmatpush1.bf16.msra.mxu0 0
        %3361 = vmatprep.subr.bf16.mxu0 0
        %3362 = vmatpush1.bf16.msra.mxu0 0
        %3363 = vmatprep.subr.bf16.mxu0 0
        %3364 = vmatpush1.bf16.msra.mxu0 0
        %3365 = vmatprep.subr.bf16.mxu0 0
        %3366 = vmatpush1.bf16.msra.mxu0 0
        %3367 = vmatprep.subr.bf16.mxu0 0
        %3368 = vmatpush1.bf16.msra.mxu0 0
        %3369 = vmatprep.mubr.bf16.mxu0 0
        %3370 = vmatmul.mubr.bf16.gmra.mrb[0].mxu0 %v3237
        %v3371 = vpop.f32.mrb[0].mxu0
        %v3372 = vadd.f32 0.0, %v3371
        %v3373 = vpop.f32.mrb[0].mxu0
        %v3374 = vadd.f32 0.0, %v3373
        %v3375 = vpop.f32.mrb[0].mxu0
        %v3376 = vadd.f32 0.0, %v3375
        %v3377 = vpop.f32.mrb[0].mxu0
        %v3378 = vadd.f32 0.0, %v3377
        %3379 = vmatprep.mubr.bf16.mxu0 0
        %3380 = vmatmul.mubr.bf16.gmra.mrb[0].mxu0 %v3238
        %v3381 = vpop.f32.mrb[0].mxu0
        %v3382 = vadd.f32 0.0, %v3381
        %v3383 = vpop.f32.mrb[0].mxu0
        %v3384 = vadd.f32 0.0, %v3383
        %v3385 = vpop.f32.mrb[0].mxu0
        %v3386 = vadd.f32 0.0, %v3385
        %v3387 = vpop.f32.mrb[0].mxu0
        %v3388 = vadd.f32 0.0, %v3387
        %3389 = vmatprep.mubr.bf16.mxu0 0
        %3390 = vmatmul.mubr.bf16.gmra.mrb[0].mxu0 %v3239
        %v3391 = vpop.f32.mrb[0].mxu0
        %v3392 = vadd.f32 0.0, %v3391
        %v3393 = vpop.f32.mrb[0].mxu0
        %v3394 = vadd.f32 0.0, %v3393
        %v3395 = vpop.f32.mrb[0].mxu0
        %v3396 = vadd.f32 0.0, %v3395
        %v3397 = vpop.f32.mrb[0].mxu0
        %v3398 = vadd.f32 0.0, %v3397
        %3399 = vmatprep.mubr.bf16.mxu0 0
        %3400 = vmatmul.mubr.bf16.gmra.mrb[0].mxu0 %v3240
        %v3401 = vpop.f32.mrb[0].mxu0
        %v3402 = vadd.f32 0.0, %v3401
        %v3403 = vpop.f32.mrb[0].mxu0
        %v3404 = vadd.f32 0.0, %v3403
        %v3405 = vpop.f32.mrb[0].mxu0
        %v3406 = vadd.f32 0.0, %v3405
        %v3407 = vpop.f32.mrb[0].mxu0
        %v3408 = vadd.f32 0.0, %v3407
        %3409 = vdwg.mxu0
        %v3410 = vmax.f32 %v3372, 0.0
        %v3411 = vmax.f32 %v3374, 0.0
        %v3412 = vmax.f32 %v3376, 0.0
        %v3413 = vmax.f32 %v3378, 0.0
        %v3414 = vmax.f32 %v3382, 0.0
        %v3415 = vmax.f32 %v3384, 0.0
        %v3416 = vmax.f32 %v3386, 0.0
        %v3417 = vmax.f32 %v3388, 0.0
        %v3418 = vmax.f32 %v3392, 0.0
        %v3419 = vmax.f32 %v3394, 0.0
        %v3420 = vmax.f32 %v3396, 0.0
        %v3421 = vmax.f32 %v3398, 0.0
        %v3422 = vmax.f32 %v3402, 0.0
        %v3423 = vmax.f32 %v3404, 0.0
        %v3424 = vmax.f32 %v3406, 0.0
        %v3425 = vmax.f32 %v3408, 0.0
        %v3426 = vpack.c.bf16 %v3412, %v3410
        %v3427 = vpack.c.bf16 %v3413, %v3411
        %v3428 = vpack.c.bf16 %v3416, %v3414
        %v3429 = vpack.c.bf16 %v3417, %v3415
        %v3430 = vpack.c.bf16 %v3420, %v3418
        %v3431 = vpack.c.bf16 %v3421, %v3419
        %v3432 = vpack.c.bf16 %v3424, %v3422
        %v3433 = vpack.c.bf16 %v3425, %v3423
        %v3434 = vld [vmem:[#allocation13] sm:$0xf]
        %v3435 = vld [vmem:[#allocation13 + $0x4] sm:$0xf]
        %v3436 = vld [vmem:[#allocation13 + $0x8] sm:$0xf]
        %v3437 = vld [vmem:[#allocation13 + $0xc] sm:$0xf]
        %v3438 = vld [vmem:[#allocation13 + $0x10] sm:$0xf]
        %v3439 = vld [vmem:[#allocation13 + $0x14] sm:$0xf]
        %v3440 = vld [vmem:[#allocation13 + $0x18] sm:$0xf]
        %v3441 = vld [vmem:[#allocation13 + $0x1c] sm:$0xf]
        %v3442 = vld [vmem:[#allocation13 + $0x20] sm:$0xf]
        %v3443 = vld [vmem:[#allocation13 + $0x24] sm:$0xf]
        %v3444 = vld [vmem:[#allocation13 + $0x28] sm:$0xf]
        %v3445 = vld [vmem:[#allocation13 + $0x2c] sm:$0xf]
        %v3446 = vld [vmem:[#allocation13 + $0x30] sm:$0xf]
        %v3447 = vld [vmem:[#allocation13 + $0x34] sm:$0xf]
        %v3448 = vld [vmem:[#allocation13 + $0x38] sm:$0xf]
        %v3449 = vld [vmem:[#allocation13 + $0x3c] sm:$0xf]
        %v3450 = vld [vmem:[#allocation13 + $0x40] sm:$0xf]
        %v3451 = vld [vmem:[#allocation13 + $0x44] sm:$0xf]
        %v3452 = vld [vmem:[#allocation13 + $0x48] sm:$0xf]
        %v3453 = vld [vmem:[#allocation13 + $0x4c] sm:$0xf]
        %v3454 = vld [vmem:[#allocation13 + $0x50] sm:$0xf]
        %v3455 = vld [vmem:[#allocation13 + $0x54] sm:$0xf]
        %v3456 = vld [vmem:[#allocation13 + $0x58] sm:$0xf]
        %v3457 = vld [vmem:[#allocation13 + $0x5c] sm:$0xf]
        %v3458 = vld [vmem:[#allocation13 + $0x60] sm:$0xf]
        %v3459 = vld [vmem:[#allocation13 + $0x64] sm:$0xf]
        %v3460 = vld [vmem:[#allocation13 + $0x68] sm:$0xf]
        %v3461 = vld [vmem:[#allocation13 + $0x6c] sm:$0xf]
        %v3462 = vld [vmem:[#allocation13 + $0x70] sm:$0xf]
        %v3463 = vld [vmem:[#allocation13 + $0x74] sm:$0xf]
        %v3464 = vld [vmem:[#allocation13 + $0x78] sm:$0xf]
        %v3465 = vld [vmem:[#allocation13 + $0x7c] sm:$0xf]
        %v3498 = vunpack.c.l.b16 %v3434
        %v3499 = vunpack.c.l.b16 %v3435
        %v3500 = vunpack.c.l.b16 %v3436
        %v3501 = vunpack.c.l.b16 %v3437
        %v3502 = vunpack.c.l.b16 %v3438
        %v3503 = vunpack.c.l.b16 %v3439
        %v3504 = vunpack.c.l.b16 %v3440
        %v3505 = vunpack.c.l.b16 %v3441
        %v3506 = vunpack.c.l.b16 %v3442
        %v3507 = vunpack.c.l.b16 %v3443
        %v3508 = vunpack.c.l.b16 %v3444
        %v3509 = vunpack.c.l.b16 %v3445
        %v3510 = vunpack.c.l.b16 %v3446
        %v3511 = vunpack.c.l.b16 %v3447
        %v3512 = vunpack.c.l.b16 %v3448
        %v3513 = vunpack.c.l.b16 %v3449
        %v3514 = vunpack.c.l.b16 %v3450
        %v3515 = vunpack.c.l.b16 %v3451
        %v3516 = vunpack.c.l.b16 %v3452
        %v3517 = vunpack.c.l.b16 %v3453
        %v3518 = vunpack.c.l.b16 %v3454
        %v3519 = vunpack.c.l.b16 %v3455
        %v3520 = vunpack.c.l.b16 %v3456
        %v3521 = vunpack.c.l.b16 %v3457
        %v3522 = vunpack.c.l.b16 %v3458
        %v3523 = vunpack.c.l.b16 %v3459
        %v3524 = vunpack.c.l.b16 %v3460
        %v3525 = vunpack.c.l.b16 %v3461
        %v3526 = vunpack.c.l.b16 %v3462
        %v3527 = vunpack.c.l.b16 %v3463
        %v3528 = vunpack.c.l.b16 %v3464
        %v3529 = vunpack.c.l.b16 %v3465
        %v3530 = vpack.c.b16 %v3499, %v3498
        %v3531 = vpack.c.b16 %v3501, %v3500
        %v3532 = vpack.c.b16 %v3503, %v3502
        %v3533 = vpack.c.b16 %v3505, %v3504
        %v3534 = vpack.c.b16 %v3507, %v3506
        %v3535 = vpack.c.b16 %v3509, %v3508
        %v3536 = vpack.c.b16 %v3511, %v3510
        %v3537 = vpack.c.b16 %v3513, %v3512
        %v3538 = vpack.c.b16 %v3515, %v3514
        %v3539 = vpack.c.b16 %v3517, %v3516
        %v3540 = vpack.c.b16 %v3519, %v3518
        %v3541 = vpack.c.b16 %v3521, %v3520
        %v3542 = vpack.c.b16 %v3523, %v3522
        %v3543 = vpack.c.b16 %v3525, %v3524
        %v3544 = vpack.c.b16 %v3527, %v3526
        %v3545 = vpack.c.b16 %v3529, %v3528
        %3562 = vmatprep.subr.bf16.mxu0 0
        %3563 = vmatpush1.bf16.msra.mxu0 %v3530
        %3564 = vmatprep.subr.bf16.mxu0 0
        %3565 = vmatpush1.bf16.msra.mxu0 %v3531
        %3566 = vmatprep.subr.bf16.mxu0 0
        %3567 = vmatpush1.bf16.msra.mxu0 %v3532
        %3568 = vmatprep.subr.bf16.mxu0 0
        %3569 = vmatpush1.bf16.msra.mxu0 %v3533
        %3570 = vmatprep.subr.bf16.mxu0 0
        %3571 = vmatpush1.bf16.msra.mxu0 %v3534
        %3572 = vmatprep.subr.bf16.mxu0 0
        %3573 = vmatpush1.bf16.msra.mxu0 %v3535
        %3574 = vmatprep.subr.bf16.mxu0 0
        %3575 = vmatpush1.bf16.msra.mxu0 %v3536
        %3576 = vmatprep.subr.bf16.mxu0 0
        %3577 = vmatpush1.bf16.msra.mxu0 %v3537
        %3578 = vmatprep.subr.bf16.mxu0 0
        %3579 = vmatpush1.bf16.msra.mxu0 %v3538
        %3580 = vmatprep.subr.bf16.mxu0 0
        %3581 = vmatpush1.bf16.msra.mxu0 %v3539
        %3582 = vmatprep.subr.bf16.mxu0 0
        %3583 = vmatpush1.bf16.msra.mxu0 %v3540
        %3584 = vmatprep.subr.bf16.mxu0 0
        %3585 = vmatpush1.bf16.msra.mxu0 %v3541
        %3586 = vmatprep.subr.bf16.mxu0 0
        %3587 = vmatpush1.bf16.msra.mxu0 %v3542
        %3588 = vmatprep.subr.bf16.mxu0 0
        %3589 = vmatpush1.bf16.msra.mxu0 %v3543
        %3590 = vmatprep.subr.bf16.mxu0 0
        %3591 = vmatpush1.bf16.msra.mxu0 %v3544
        %3592 = vmatprep.subr.bf16.mxu0 0
        %3593 = vmatpush1.bf16.msra.mxu0 %v3545
        %3594 = vmatprep.mubr.bf16.mxu0 %v3427
        %3595 = vmatmul.mubr.bf16.gmra.mrb[0].mxu0 %v3426
        %v3596 = vpop.f32.mrb[0].mxu0
        %v3597 = vadd.f32 0.0, %v3596
        %v3598 = vpop.f32.mrb[0].mxu0
        %v3599 = vpop.f32.mrb[0].mxu0
        %v3600 = vadd.f32 0.0, %v3599
        %v3601 = vpop.f32.mrb[0].mxu0
        %3602 = vmatprep.mubr.bf16.mxu0 %v3429
        %3603 = vmatmul.mubr.bf16.gmra.mrb[0].mxu0 %v3428
        %v3604 = vpop.f32.mrb[0].mxu0
        %v3605 = vadd.f32 0.0, %v3604
        %v3606 = vpop.f32.mrb[0].mxu0
        %v3607 = vpop.f32.mrb[0].mxu0
        %v3608 = vadd.f32 0.0, %v3607
        %v3609 = vpop.f32.mrb[0].mxu0
        %3610 = vmatprep.mubr.bf16.mxu0 %v3431
        %3611 = vmatmul.mubr.bf16.gmra.mrb[0].mxu0 %v3430
        %v3612 = vpop.f32.mrb[0].mxu0
        %v3613 = vadd.f32 0.0, %v3612
        %v3614 = vpop.f32.mrb[0].mxu0
        %v3615 = vpop.f32.mrb[0].mxu0
        %v3616 = vadd.f32 0.0, %v3615
        %v3617 = vpop.f32.mrb[0].mxu0
        %3618 = vmatprep.mubr.bf16.mxu0 %v3433
        %3619 = vmatmul.mubr.bf16.gmra.mrb[0].mxu0 %v3432
        %v3620 = vpop.f32.mrb[0].mxu0
        %v3621 = vadd.f32 0.0, %v3620
        %v3622 = vpop.f32.mrb[0].mxu0
        %v3623 = vpop.f32.mrb[0].mxu0
        %v3624 = vadd.f32 0.0, %v3623
        %v3625 = vpop.f32.mrb[0].mxu0
        %3626 = vdwg.mxu0
        %v3627 = vadd.f32 %v3158, %v3597
        %v3628 = vadd.f32 %v3159, %v3600
        %v3629 = vadd.f32 %v3160, %v3605
        %v3630 = vadd.f32 %v3161, %v3608
        %v3631 = vadd.f32 %v3162, %v3613
        %v3632 = vadd.f32 %v3163, %v3616
        %v3633 = vadd.f32 %v3164, %v3621
        %v3634 = vadd.f32 %v3165, %v3624
        %v3635 = vmul.f32 %v3627, %v3627
        %v3636 = vmul.f32 %v3628, %v3628
        %v3637 = vmul.f32 %v3629, %v3629
        %v3638 = vmul.f32 %v3630, %v3630
        %v3639 = vmul.f32 %v3631, %v3631
        %v3640 = vmul.f32 %v3632, %v3632
        %v3641 = vmul.f32 %v3633, %v3633
        %v3642 = vmul.f32 %v3634, %v3634
        %3643 = vadd.xlane.f32.xlu0 %v3635
        %v3644 = vpop.xlane.xlu0 %3643
        %3645 = vadd.xlane.f32.xlu0 %v3636
        %v3646 = vpop.xlane.xlu0 %3645
        %3647 = vadd.xlane.f32.xlu0 %v3637
        %v3648 = vpop.xlane.xlu0 %3647
        %3649 = vadd.xlane.f32.xlu0 %v3638
        %v3650 = vpop.xlane.xlu0 %3649
        %3651 = vadd.xlane.f32.xlu0 %v3639
        %v3652 = vpop.xlane.xlu0 %3651
        %3653 = vadd.xlane.f32.xlu0 %v3640
        %v3654 = vpop.xlane.xlu0 %3653
        %3655 = vadd.xlane.f32.xlu0 %v3641
        %v3656 = vpop.xlane.xlu0 %3655
        %3657 = vadd.xlane.f32.xlu0 %v3642
        %v3658 = vpop.xlane.xlu0 %3657
        %v3659 = vmul.f32 %v3644, %v619
        %v3660 = vmul.f32 %v3646, %v619
        %v3661 = vmul.f32 %v3648, %v619
        %v3662 = vmul.f32 %v3650, %v619
        %v3663 = vmul.f32 %v3652, %v619
        %v3664 = vmul.f32 %v3654, %v619
        %v3665 = vmul.f32 %v3656, %v619
        %v3666 = vmul.f32 %v3658, %v619
        %v3667 = vadd.f32 %v3659, 1e-06
        %v3668 = vadd.f32 %v3660, 1e-06
        %v3669 = vadd.f32 %v3661, 1e-06
        %v3670 = vadd.f32 %v3662, 1e-06
        %v3671 = vadd.f32 %v3663, 1e-06
        %v3672 = vadd.f32 %v3664, 1e-06
        %v3673 = vadd.f32 %v3665, 1e-06
        %v3674 = vadd.f32 %v3666, 1e-06
        %v3675 = vrsqrt.pop %v3667
        %v3676 = vrsqrt.pop %v3668
        %v3677 = vrsqrt.pop %v3669
        %v3678 = vrsqrt.pop %v3670
        %v3679 = vrsqrt.pop %v3671
        %v3680 = vrsqrt.pop %v3672
        %v3681 = vrsqrt.pop %v3673
        %v3682 = vrsqrt.pop %v3674
        %v3683 = vmul.f32 %v3627, %v3675
        %v3684 = vmul.f32 %v3628, %v3676
        %v3685 = vmul.f32 %v3629, %v3677
        %v3686 = vmul.f32 %v3630, %v3678
        %v3687 = vmul.f32 %v3631, %v3679
        %v3688 = vmul.f32 %v3632, %v3680
        %v3689 = vmul.f32 %v3633, %v3681
        %v3690 = vmul.f32 %v3634, %v3682
        %v3691 = vld [vmem:[%s9] sm:$0x1]
        %v3693 = vlaneseq
        %v3694 = vshrl.u32 %v3693, 7
        %v3695 = vsub.s32 0, %v3694
        %v3696 = vrot.slane %v3691, %v3695
        %v3698 = vmul.f32 %v3683, %v3696
        %v3699 = vmul.f32 %v3684, %v3696
        %v3700 = vmul.f32 %v3685, %v3696
        %v3701 = vmul.f32 %v3686, %v3696
        %v3702 = vmul.f32 %v3687, %v3696
        %v3703 = vmul.f32 %v3688, %v3696
        %v3704 = vmul.f32 %v3689, %v3696
        %v3705 = vmul.f32 %v3690, %v3696
        %v3706 = vpack.c.bf16 %v3699, %v3698
        %v3707 = vpack.c.bf16 %v3701, %v3700
        %v3708 = vpack.c.bf16 %v3703, %v3702
        %v3709 = vpack.c.bf16 %v3705, %v3704
        %v3714 = vunpack.c.l.b16 %v3706
        %v3715 = vunpack.c.h.b16 %v3706
        %v3716 = vunpack.c.l.b16 %v3707
        %v3717 = vunpack.c.h.b16 %v3707
        %v3718 = vunpack.c.l.b16 %v3708
        %v3719 = vunpack.c.h.b16 %v3708
        %v3720 = vunpack.c.l.b16 %v3709
        %v3721 = vunpack.c.h.b16 %v3709
        %v3722 = vpack.c.b16 %v3714, %v3714
        %v3723 = vpack.c.b16 %v3715, %v3715
        %v3724 = vpack.c.b16 %v3716, %v3716
        %v3725 = vpack.c.b16 %v3717, %v3717
        %v3726 = vpack.c.b16 %v3718, %v3718
        %v3727 = vpack.c.b16 %v3719, %v3719
        %v3728 = vpack.c.b16 %v3720, %v3720
        %v3729 = vpack.c.b16 %v3721, %v3721
        %3738 = vst [vmem:[%s490] sm:$0xf] %v3722
        %3739 = vst [vmem:[%s490 + $0x4] sm:$0xf] %v3723
        %3740 = vst [vmem:[%s490 + $0x8] sm:$0xf] %v3724
        %3741 = vst [vmem:[%s490 + $0xc] sm:$0xf] %v3725
        %3742 = vst [vmem:[%s490 + $0x10] sm:$0xf] %v3726
        %3743 = vst [vmem:[%s490 + $0x14] sm:$0xf] %v3727
        %3744 = vst [vmem:[%s490 + $0x18] sm:$0xf] %v3728
        %3745 = vst [vmem:[%s490 + $0x1c] sm:$0xf] %v3729
        %s3746 = sand.u32 %s260, 1
        %s3747 = scalar_lea.sflag [#allocation4], %s3746
        %s3748 = sand.u32 %s260, 1
        %s3749 = smul.addr %s3748, 32
        %s3750 = scalar_lea.vmem [#allocation14], %s3749
        // Predicated region
        $region89: #{tpu_custom_call.1} parent=59 // pred_check
          %p3751 = pneg %p270
        $region90: #{tpu_custom_call.1} parent=59 // pred_check_branch
          %3753 = sbr.rel (%p3751) target = $region92
        $region91: #{tpu_custom_call.1} parent=59 // pred_region
          %s3754 = smul.u32 4, %s32
          %s3756 = ssub.s32 512, 512
          %3757 = vsyncadd %s3747, %s3756
          %s3758 = smul.addr %s3754, 2
          %s3759 = smul.addr %s3758, 64
          %s3760 = scalar_lea.hbm %s10, %s3759
          %s3761 = sshll.u32 %s3750, 4
          %s3762 = int_to_ptr.vmem [resolvable:$true] %s3761
          %3767 = dma.vmem_to_hbm [thread:$0]  %s3762, 512, %s3760, %s3747, 64, 64, 4
        $region92: #{tpu_custom_call.1} parent=59 // pred_fallthru
          _
      $region60: #{tpu_custom_call.1} parent=5 // pred_fallthru
        _
      %p3768 = scmp.le.s32.totalorder 2, %s27
      // Predicated region
      $region93: #{tpu_custom_call.1} parent=5 // pred_check
        %p3769 = pneg %p3768
      $region94: #{tpu_custom_call.1} parent=5 // pred_check_branch
        %3771 = sbr.rel (%p3769) target = $region96
      $region95: #{tpu_custom_call.1} parent=5 // pred_region
        %s3772 = ssub.s32 %s27, 2
        // Predicated region
        $region97: #{tpu_custom_call.1} parent=95 // pred_check
          %p3773 = pneg %p276
        $region98: #{tpu_custom_call.1} parent=95 // pred_check_branch
          %3775 = sbr.rel (%p3773) target = $region100
        $region99: #{tpu_custom_call.1} parent=95 // pred_region
          %s3776 = sand.u32 %s261, 1
          %s3777 = scalar_lea.sflag [#allocation4], %s3776
          %s3778 = sand.u32 %s261, 1
          %s3779 = smul.addr %s3778, 32
          %s3780 = scalar_lea.vmem [#allocation14], %s3779
          %3781 = dma.done %s3777, 512
        $region100: #{tpu_custom_call.1} parent=95 // pred_fallthru
          _
      $region96: #{tpu_custom_call.1} parent=5 // pred_fallthru
        _
    $region6: #{tpu_custom_call.1} parent=1 // loop_footer
      %s31 = sadd.s32 1, %s27
    $region7: #{tpu_custom_call.1} parent=1 // loop_footer_branch
      %26 = sbr.rel target = $region3
    $region8: #{tpu_custom_call.1} parent=1 // loop_exit
      _
    %3782 = vsyncpa [#allocation3], 1
    %s3783 = scalar_lea.sflag [#allocation3], 1
    %3784 = vsyncpa %s3783, 1
    %3785 = vsyncpa [#allocation6], 1
    %s3786 = scalar_lea.sflag [#allocation6], 1
    %3787 = vsyncpa %s3786, 1
    %3788 = vsyncpa [#allocation9], 1
    %3789 = vsyncpa [#allocation12], 1
    %3790 = vsyncpa [#allocation4], 1
    %s3791 = scalar_lea.sflag [#allocation4], 1
    %3792 = vsyncpa %s3791, 1

</llo_original>
